<compile_context>
chip_gen: v6e
topology: v6e:2x2x1
jax: 0.10.0
libtpu: 0.0.40
codegen_flags: <defaults>
</compile_context>

<pallas_src>
import math

import jax
import jax.numpy as jnp
from jax import lax
from jax.experimental import pallas as pl
from jax.experimental.pallas import tpu as pltpu

LN_EPS = 1e-5


# ---------------- in-kernel helpers ----------------

def _layer_norm(x, gamma, beta):
    # x: (N, D) f32; gamma/beta: (1, D) f32
    mu = jnp.mean(x, axis=-1, keepdims=True)
    xc = x - mu
    var = jnp.mean(xc * xc, axis=-1, keepdims=True)
    return xc * lax.rsqrt(var + LN_EPS) * gamma + beta


def _gelu_tanh(x):
    # tanh-form GELU: runs on the EUP (exp/tanh slot) instead of a long f32 erf
    # polynomial on the VALU.  Small numerics delta (<~3e-3) vs torch's
    # exact-erf nn.GELU(), well inside the bf16-matmul error budget.
    c = math.sqrt(2.0 / math.pi)
    return 0.5 * x * (1.0 + jnp.tanh(c * (x + 0.044715 * x * x * x)))


def _attention(q, k, v, bg, lq, lk, d):
    # q: (bg*lq, d) f32, k/v: (bg*lk, d) f32.  1/sqrt(d) already folded into Wq.
    q3 = q.reshape(bg, lq, d).astype(jnp.bfloat16)
    k3 = k.reshape(bg, lk, d).astype(jnp.bfloat16)
    v3 = v.reshape(bg, lk, d).astype(jnp.bfloat16)
    s = jnp.einsum('bqd,bkd->bqk', q3, k3, preferred_element_type=jnp.float32)
    s = s - jnp.max(s, axis=-1, keepdims=True)
    p = jnp.exp(s)
    inv = pl.reciprocal(jnp.sum(p, axis=-1, keepdims=True), approx=True)
    attn = (p * inv).astype(jnp.bfloat16)
    msg = jnp.einsum('bqk,bkd->bqd', attn, v3, preferred_element_type=jnp.float32)
    return msg.reshape(bg * lq, d)


# ---------------- fused Pallas kernel ----------------

def _block_kernel(src_ref, tgt_ref,
                  wqkv_s_ref, wm_s_ref,
                  wq_c_ref, wkv_c_ref, wm_c_ref,
                  w1s_ref, w1m_ref, w2_ref,
                  ln_ref,
                  out_ref):
    bg, lq, d = src_ref.shape
    lk, din = tgt_ref.shape[1], tgt_ref.shape[2]

    ln = ln_ref[...]                            # (6, d) f32: g1s,b1s,g1c,b1c,g2,b2
    src = src_ref[...].reshape(bg * lq, d)      # f32 slab (token-major)
    tgt = tgt_ref[...].reshape(bg * lk, din)    # f32 slab

    # ---- layer 1: self-attention (no FFN) ----
    qkv = jnp.dot(src.astype(jnp.bfloat16), wqkv_s_ref[...],
                  preferred_element_type=jnp.float32)            # (bg*lq, 3d)
    msg = _attention(qkv[:, :d], qkv[:, d:2 * d], qkv[:, 2 * d:], bg, lq, lq, d)
    msg = jnp.dot(msg.astype(jnp.bfloat16), wm_s_ref[...],
                  preferred_element_type=jnp.float32)
    msg = _layer_norm(msg, ln[0:1, :], ln[1:2, :])
    src1 = src + msg                        # stays resident in VMEM (no HBM trip)
    src1_bf = src1.astype(jnp.bfloat16)     # cast once; reused by wq_c and w1s dots

    # ---- layer 2: cross-attention + FFN ----
    q = jnp.dot(src1_bf, wq_c_ref[...], preferred_element_type=jnp.float32)
    kv = jnp.dot(tgt.astype(jnp.bfloat16), wkv_c_ref[...],
                 preferred_element_type=jnp.float32)             # (bg*lk, 2d)
    msg = _attention(q, kv[:, :d], kv[:, d:], bg, lq, lk, d)
    msg = jnp.dot(msg.astype(jnp.bfloat16), wm_c_ref[...],
                  preferred_element_type=jnp.float32)
    msg = _layer_norm(msg, ln[2:3, :], ln[3:4, :])

    # mlp(concat([src1, msg], -1)) without the lane-axis concat:
    # TODO(synk): for large d_model / Dff, tile these dots over Dff with an f32
    #             accumulator (extra "arbitrary" grid axis) and set
    #             vmem_limit_bytes explicitly — v7x only has 64 MiB VMEM.
    h = (jnp.dot(src1_bf, w1s_ref[...], preferred_element_type=jnp.float32)
         + jnp.dot(msg.astype(jnp.bfloat16), w1m_ref[...],
                   preferred_element_type=jnp.float32))
    h = _gelu_tanh(h)
    msg = jnp.dot(h.astype(jnp.bfloat16), w2_ref[...],
                  preferred_element_type=jnp.float32)
    msg = _layer_norm(msg, ln[4:5, :], ln[5:6, :])

    out_ref[...] = (src1 + msg).reshape(bg, lq, d)


# ---------------- weight packing (one-time, NOT per-call) ----------------

def pack_block_params(params):
    """Pack module params into fused bf16 kernel weights ONCE.

    Keeping this out of the per-call wrapper avoids rewriting ~the entire
    weight set through HBM on every forward (comparable to the whole kernel's
    HBM traffic at small shapes).
    """
    p_self, p_cross = params
    wq_s, wk_s, wv_s, wm_s, g1_s, b1_s = p_self
    wq_c, wk_c, wv_c, wm_c, g1_c, b1_c, w1, w2, g2, b2 = p_cross
    D = wq_s.shape[0]
    scale = 1.0 / math.sqrt(D)
    bf = jnp.bfloat16
    ln = jnp.concatenate([g1_s, b1_s, g1_c, b1_c, g2, b2], axis=0).astype(jnp.float32)
    return (
        jnp.concatenate([wq_s * scale, wk_s, wv_s], axis=1).astype(bf),  # (D, 3D)
        wm_s.astype(bf),                                                 # (D, D)
        (wq_c * scale).astype(bf),                                       # (D, D)
        jnp.concatenate([wk_c, wv_c], axis=1).astype(bf),                # (Din, 2D)
        wm_c.astype(bf),                                                 # (D, D)
        w1[:D].astype(bf),                                               # (D, Dff)
        w1[D:].astype(bf),                                               # (D, Dff)
        w2.astype(bf),                                                   # (Dff, D)
        ln,                                                              # (6, D)
    )


def _num_tensorcores():
    # v5e/v6e expose 1 TensorCore per chip; v7x exposes 2.  If the attribute is
    # not available, fall back to 1 (conservative: no grid split).
    try:
        dev = jax.devices()[0]
        for attr in ("num_cores", "core_count"):
            n = getattr(dev, attr, None)
            if isinstance(n, int) and n > 0:
                return n
    except Exception:
        pass
    return 1


# ---------------- wrapper ----------------

def transformer_block(source, target, packed):
    """Fused TransformerBlock forward; `packed` comes from pack_block_params."""
    B, Lq, D = source.shape
    _, Lk, Din = target.shape
    w2 = packed[7]
    Dff = w2.shape[0]

    # TODO(synk): the fused-projection lane slices (qkv[:, :D], kv[:, :D]) are
    #             only free when D is a multiple of 128; other d_model sizes
    #             need an unfused (separate-dot) kernel variant.
    assert D % 128 == 0, "fused q/k/v path requires d_model % 128 == 0"

    # Device-aware grid: split the batch only when there are >=2 TensorCores
    # (v7x) AND each half still feeds the MXU with enough rows.  On single-TC
    # chips (v5e/v6e) a split is just a serial loop that adds ~0.35us/step and
    # halves the matmul M dimension, so keep G=1.
    G = 1
    if _num_tensorcores() >= 2 and B % 2 == 0 and (B // 2) * Lq >= 256:
        G = 2
    Bg = B // G

    def _resident_spec(shape):
        nd = len(shape)
        idx = lambda g, _nd=nd: (0,) * _nd
        if G > 1:
            # Constant-index weights: single-buffer so the per-core VMEM
            # footprint does not double when the batch is sharded across TCs.
            return pl.BlockSpec(shape, idx, pipeline_mode=pl.Buffered(1))
        return pl.BlockSpec(shape, idx)

    in_specs = [
        pl.BlockSpec((Bg, Lq, D), lambda g: (g, 0, 0)),
        pl.BlockSpec((Bg, Lk, Din), lambda g: (g, 0, 0)),
    ] + [_resident_spec(w.shape) for w in packed]
    out_spec = pl.BlockSpec((Bg, Lq, D), lambda g: (g, 0, 0))

    if G > 1:
        # Shard batch halves across the two v7x TensorCores.
        # TODO(synk): weights are still DMA'd once per core; move them to
        #             VMEM_SHARED/CMEM if weight traffic dominates at this shape.
        dim_sem = (pltpu.CORE_PARALLEL,)
    else:
        dim_sem = ("arbitrary",)

    flops = 2 * B * (
        Lq * D * 3 * D + 2 * Lq * Lq * D + Lq * D * D                   # self-attn
        + Lq * D * D + Lk * Din * 2 * D + 2 * Lq * Lk * D + Lq * D * D  # cross-attn
        + 2 * Lq * D * Dff + Lq * Dff * D)                              # FFN
    transcendentals = B * (Lq * Lq + Lq * Lk + Lq * Dff)
    bytes_accessed = 4 * (source.size + target.size + B * Lq * D) + sum(
        int(w.size) * w.dtype.itemsize for w in packed)

    return pl.pallas_call(
        _block_kernel,
        out_shape=jax.ShapeDtypeStruct((B, Lq, D), jnp.float32),
        grid_spec=pltpu.PrefetchScalarGridSpec(
            num_scalar_prefetch=0,
            grid=(G,),
            in_specs=in_specs,
            out_specs=out_spec,
        ),
        compiler_params=pltpu.CompilerParams(dimension_semantics=dim_sem),
        cost_estimate=pl.CostEstimate(
            flops=int(flops),
            transcendentals=int(transcendentals),
            bytes_accessed=int(bytes_accessed)),
    )(source, target, *packed)


# ---------------- deterministic parameter init ----------------

def _init_params(key, d_model, input_d_model, ffn_dim_expansion):
    ks = jax.random.split(key, 8)

    def lin(k, din, dout):
        # stored as (in, out) so the kernel computes x @ W (bias=False in module)
        return jax.random.normal(k, (din, dout), jnp.float32) * 0.05

    # self-attn layer (no_ffn=True, input_d_model = d_model)
    p_self = (
        lin(ks[0], d_model, d_model),          # wq
        lin(ks[1], d_model, d_model),          # wk
        lin(ks[2], d_model, d_model),          # wv
        lin(ks[3], d_model, d_model),          # merge
        jnp.ones((1, d_model), jnp.float32),   # norm1 weight
        jnp.zeros((1, d_model), jnp.float32),  # norm1 bias
    )
    dff_in = d_model * 2
    dff_hidden = dff_in * ffn_dim_expansion
    p_cross = (
        lin(ks[4], d_model, d_model),          # wq
        lin(ks[5], input_d_model, d_model),    # wk
        lin(ks[6], input_d_model, d_model),    # wv
        lin(ks[7], d_model, d_model),          # merge
        jnp.ones((1, d_model), jnp.float32),   # norm1 weight
        jnp.zeros((1, d_model), jnp.float32),  # norm1 bias
        jax.random.normal(jax.random.PRNGKey(101), (dff_in, dff_hidden), jnp.float32) * 0.05,
        jax.random.normal(jax.random.PRNGKey(102), (dff_hidden, d_model), jnp.float32) * 0.05,
        jnp.ones((1, d_model), jnp.float32),   # norm2 weight
        jnp.zeros((1, d_model), jnp.float32),  # norm2 bias
    )
    return p_self, p_cross


# ---------------- plain-JAX reference (pure f32, exact-erf GELU) ----------------

def _ref_layer(source, target, w, no_ffn):
    wq, wk, wv, wm, g1, b1 = w[:6]
    q = source @ wq
    k = target @ wk
    v = target @ wv
    scores = jnp.einsum("bld,bmd->blm", q, k) / math.sqrt(q.shape[-1])
    attn = jax.nn.softmax(scores, axis=-1)
    msg = jnp.einsum("blm,bmd->bld", attn, v) @ wm
    mu = msg.mean(-1, keepdims=True)
    var = ((msg - mu) ** 2).mean(-1, keepdims=True)
    msg = (msg - mu) / jnp.sqrt(var + LN_EPS) * g1[0] + b1[0]
    if not no_ffn:
        w1, w2, g2, b2 = w[6:]
        h = jnp.concatenate([source, msg], axis=-1) @ w1
        h = 0.5 * h * (1.0 + lax.erf(h / math.sqrt(2.0)))
        msg = h @ w2
        mu = msg.mean(-1, keepdims=True)
        var = ((msg - mu) ** 2).mean(-1, keepdims=True)
        msg = (msg - mu) / jnp.sqrt(var + LN_EPS) * g2[0] + b2[0]
    return source + msg


def _ref_block(source, target, params):
    p_self, p_cross = params
    source = _ref_layer(source, source, p_self, no_ffn=True)
    source = _ref_layer(source, target, p_cross, no_ffn=False)
    return source


# ---------------- main ----------------

if __name__ == "__main__":
    B, H, W, D = 2, 8, 8, 128
    L = H * W
    key = jax.random.PRNGKey(0)
    k_src, k_tgt, k_par = jax.random.split(key, 3)
    source = jax.random.normal(k_src, (B, L, D), jnp.float32)
    target = jax.random.normal(k_tgt, (B, L, D), jnp.float32)
    params = _init_params(k_par, d_model=D, input_d_model=D, ffn_dim_expansion=4)

    packed = pack_block_params(params)      # one-time weight packing (not per call)
    run = jax.jit(transformer_block)
    out = jax.block_until_ready(run(source, target, packed))

    ref = _ref_block(source, target, params)
    assert out.shape == (B, L, D)
    # Kernel feeds the MXU with bf16 operands (f32 accumulation) and uses
    # tanh-GELU / approx reciprocal; the pure-f32 exact-erf reference therefore
    # needs a loose tolerance.
    max_err = float(jnp.max(jnp.abs(out - ref)))
    assert jnp.allclose(out, ref, atol=1e-1, rtol=1e-1), max_err

    print("KERNEL_OK")
</pallas_src>

<mosaic_0001>
module attributes {stable_mosaic.version = 11 : i64} {
  func.func @_block_kernel(%arg0: i32, %arg1: memref<2x64x128xf32, #tpu.memory_space<vmem>>, %arg2: memref<2x64x128xf32, #tpu.memory_space<vmem>>, %arg3: memref<128x384xbf16, #tpu.memory_space<vmem>>, %arg4: memref<128x128xbf16, #tpu.memory_space<vmem>>, %arg5: memref<128x128xbf16, #tpu.memory_space<vmem>>, %arg6: memref<128x256xbf16, #tpu.memory_space<vmem>>, %arg7: memref<128x128xbf16, #tpu.memory_space<vmem>>, %arg8: memref<128x1024xbf16, #tpu.memory_space<vmem>>, %arg9: memref<128x1024xbf16, #tpu.memory_space<vmem>>, %arg10: memref<1024x128xbf16, #tpu.memory_space<vmem>>, %arg11: memref<6x128xf32, #tpu.memory_space<vmem>>, %arg12: memref<2x64x128xf32, #tpu.memory_space<vmem>>) attributes {dimension_semantics = [#tpu.dimension_semantics<arbitrary>], iteration_bounds = array<i64: 1>, scalar_prefetch = 0 : i64, scratch_operands = 0 : i64, tpu.core_type = #tpu.core_type<tc>, window_params = [{transform_indices = @transform_0, window_bounds = array<i64: 2, 64, 128>}, {transform_indices = @transform_1, window_bounds = array<i64: 2, 64, 128>}, {pipeline_mode = #tpu.pipeline_mode<synchronous>, transform_indices = @transform_2, window_bounds = array<i64: 128, 384>}, {pipeline_mode = #tpu.pipeline_mode<synchronous>, transform_indices = @transform_3, window_bounds = array<i64: 128, 128>}, {pipeline_mode = #tpu.pipeline_mode<synchronous>, transform_indices = @transform_4, window_bounds = array<i64: 128, 128>}, {pipeline_mode = #tpu.pipeline_mode<synchronous>, transform_indices = @transform_5, window_bounds = array<i64: 128, 256>}, {pipeline_mode = #tpu.pipeline_mode<synchronous>, transform_indices = @transform_6, window_bounds = array<i64: 128, 128>}, {pipeline_mode = #tpu.pipeline_mode<synchronous>, transform_indices = @transform_7, window_bounds = array<i64: 128, 1024>}, {pipeline_mode = #tpu.pipeline_mode<synchronous>, transform_indices = @transform_8, window_bounds = array<i64: 128, 1024>}, {pipeline_mode = #tpu.pipeline_mode<synchronous>, transform_indices = @transform_9, window_bounds = array<i64: 1024, 128>}, {pipeline_mode = #tpu.pipeline_mode<synchronous>, transform_indices = @transform_10, window_bounds = array<i64: 6, 128>}, {transform_indices = @transform_11, window_bounds = array<i64: 2, 64, 128>}]} {
    %c0 = arith.constant 0 : index
    %c0_0 = arith.constant 0 : index
    %0 = vector.load %arg11[%c0, %c0_0] : memref<6x128xf32, #tpu.memory_space<vmem>>, vector<6x128xf32>
    %c0_1 = arith.constant 0 : index
    %c0_2 = arith.constant 0 : index
    %c0_3 = arith.constant 0 : index
    %1 = vector.load %arg1[%c0_1, %c0_2, %c0_3] : memref<2x64x128xf32, #tpu.memory_space<vmem>>, vector<2x64x128xf32>
    %2 = vector.shape_cast %1 : vector<2x64x128xf32> to vector<128x128xf32>
    %c0_4 = arith.constant 0 : index
    %c0_5 = arith.constant 0 : index
    %c0_6 = arith.constant 0 : index
    %3 = vector.load %arg2[%c0_4, %c0_5, %c0_6] : memref<2x64x128xf32, #tpu.memory_space<vmem>>, vector<2x64x128xf32>
    %4 = vector.shape_cast %3 : vector<2x64x128xf32> to vector<128x128xf32>
    %5 = arith.truncf %2 : vector<128x128xf32> to vector<128x128xbf16>
    %c0_7 = arith.constant 0 : index
    %c0_8 = arith.constant 0 : index
    %6 = vector.load %arg3[%c0_7, %c0_8] : memref<128x384xbf16, #tpu.memory_space<vmem>>, vector<128x384xbf16>
    %cst = arith.constant dense<0.000000e+00> : vector<128x384xf32>
    %7 = tpu.matmul %5, %6, %cst {dimension_numbers = #tpu.dot_dimension_numbers<[1], [0], [0], [1], [0, 0, 1, 1], [], []>} : vector<128x128xbf16>, vector<128x384xbf16>, vector<128x384xf32> -> vector<128x384xf32>
    %8 = vector.extract_strided_slice %7 {offsets = [0, 0], sizes = [128, 128], strides = [1, 1]} : vector<128x384xf32> to vector<128x128xf32>
    %9 = vector.extract_strided_slice %7 {offsets = [0, 128], sizes = [128, 128], strides = [1, 1]} : vector<128x384xf32> to vector<128x128xf32>
    %10 = vector.extract_strided_slice %7 {offsets = [0, 256], sizes = [128, 128], strides = [1, 1]} : vector<128x384xf32> to vector<128x128xf32>
    %11 = vector.shape_cast %8 : vector<128x128xf32> to vector<2x64x128xf32>
    %12 = arith.truncf %11 : vector<2x64x128xf32> to vector<2x64x128xbf16>
    %13 = vector.shape_cast %9 : vector<128x128xf32> to vector<2x64x128xf32>
    %14 = arith.truncf %13 : vector<2x64x128xf32> to vector<2x64x128xbf16>
    %15 = vector.shape_cast %10 : vector<128x128xf32> to vector<2x64x128xf32>
    %16 = arith.truncf %15 : vector<2x64x128xf32> to vector<2x64x128xbf16>
    "tpu.trace_start"() <{level = 10 : i32, message = "bqd,bkd->bqk"}> : () -> ()
    %cst_9 = arith.constant dense<0.000000e+00> : vector<2x64x64xf32>
    %17 = tpu.matmul %12, %14, %cst_9 {dimension_numbers = #tpu.dot_dimension_numbers<[2], [2], [1], [1], [0, 0, 0, 1, 1, 1], [0], [0]>} : vector<2x64x128xbf16>, vector<2x64x128xbf16>, vector<2x64x64xf32> -> vector<2x64x64xf32>
    "tpu.trace_stop"() : () -> ()
    %cst_10 = arith.constant dense<0xFF800000> : vector<2x64xf32>
    %18 = vector.multi_reduction <maximumf>, %17, %cst_10 [2] : vector<2x64x64xf32> to vector<2x64xf32>
    %19 = vector.shape_cast %18 : vector<2x64xf32> to vector<2x64x1xf32>
    %20 = vector.broadcast %19 : vector<2x64x1xf32> to vector<2x64x64xf32>
    %21 = arith.subf %17, %20 : vector<2x64x64xf32>
    %22 = math.exp %21 : vector<2x64x64xf32>
    %cst_11 = arith.constant dense<0.000000e+00> : vector<2x64xf32>
    %23 = vector.multi_reduction <add>, %22, %cst_11 [2] : vector<2x64x64xf32> to vector<2x64xf32>
    %24 = vector.shape_cast %23 : vector<2x64xf32> to vector<2x64x1xf32>
    %25 = tpu.reciprocal %24 {approx = true} : vector<2x64x1xf32> -> vector<2x64x1xf32>
    %26 = vector.broadcast %25 : vector<2x64x1xf32> to vector<2x64x64xf32>
    %27 = arith.mulf %22, %26 : vector<2x64x64xf32>
    %28 = arith.truncf %27 : vector<2x64x64xf32> to vector<2x64x64xbf16>
    "tpu.trace_start"() <{level = 10 : i32, message = "bqk,bkd->bqd"}> : () -> ()
    %cst_12 = arith.constant dense<0.000000e+00> : vector<2x64x128xf32>
    %29 = tpu.matmul %28, %16, %cst_12 {dimension_numbers = #tpu.dot_dimension_numbers<[2], [1], [1], [2], [0, 0, 0, 1, 1, 2], [0], [0]>} : vector<2x64x64xbf16>, vector<2x64x128xbf16>, vector<2x64x128xf32> -> vector<2x64x128xf32>
    "tpu.trace_stop"() : () -> ()
    %30 = vector.shape_cast %29 : vector<2x64x128xf32> to vector<128x128xf32>
    %31 = arith.truncf %30 : vector<128x128xf32> to vector<128x128xbf16>
    %c0_13 = arith.constant 0 : index
    %c0_14 = arith.constant 0 : index
    %32 = vector.load %arg4[%c0_13, %c0_14] : memref<128x128xbf16, #tpu.memory_space<vmem>>, vector<128x128xbf16>
    %cst_15 = arith.constant dense<0.000000e+00> : vector<128x128xf32>
    %33 = tpu.matmul %31, %32, %cst_15 {dimension_numbers = #tpu.dot_dimension_numbers<[1], [0], [0], [1], [0, 0, 1, 1], [], []>} : vector<128x128xbf16>, vector<128x128xbf16>, vector<128x128xf32> -> vector<128x128xf32>
    %34 = vector.extract_strided_slice %0 {offsets = [0, 0], sizes = [1, 128], strides = [1, 1]} : vector<6x128xf32> to vector<1x128xf32>
    %35 = vector.extract_strided_slice %0 {offsets = [1, 0], sizes = [1, 128], strides = [1, 1]} : vector<6x128xf32> to vector<1x128xf32>
    %cst_16 = arith.constant dense<0.000000e+00> : vector<128xf32>
    %36 = vector.multi_reduction <add>, %33, %cst_16 [1] : vector<128x128xf32> to vector<128xf32>
    %37 = vector.shape_cast %36 : vector<128xf32> to vector<128x1xf32>
    %cst_17 = arith.constant 1.280000e+02 : f32
    %38 = vector.broadcast %cst_17 : f32 to vector<128x1xf32>
    %39 = arith.divf %37, %38 : vector<128x1xf32>
    %40 = vector.broadcast %39 : vector<128x1xf32> to vector<128x128xf32>
    %41 = arith.subf %33, %40 : vector<128x128xf32>
    %42 = arith.mulf %41, %41 : vector<128x128xf32>
    %cst_18 = arith.constant dense<0.000000e+00> : vector<128xf32>
    %43 = vector.multi_reduction <add>, %42, %cst_18 [1] : vector<128x128xf32> to vector<128xf32>
    %44 = vector.shape_cast %43 : vector<128xf32> to vector<128x1xf32>
    %cst_19 = arith.constant 1.280000e+02 : f32
    %45 = vector.broadcast %cst_19 : f32 to vector<128x1xf32>
    %46 = arith.divf %44, %45 : vector<128x1xf32>
    %cst_20 = arith.constant 9.99999974E-6 : f32
    %47 = vector.broadcast %cst_20 : f32 to vector<128x1xf32>
    %48 = arith.addf %46, %47 : vector<128x1xf32>
    %49 = math.rsqrt %48 : vector<128x1xf32>
    %50 = vector.broadcast %49 : vector<128x1xf32> to vector<128x128xf32>
    %51 = arith.mulf %41, %50 : vector<128x128xf32>
    %52 = vector.broadcast %34 : vector<1x128xf32> to vector<128x128xf32>
    %53 = arith.mulf %51, %52 : vector<128x128xf32>
    %54 = vector.broadcast %35 : vector<1x128xf32> to vector<128x128xf32>
    %55 = arith.addf %53, %54 : vector<128x128xf32>
    %56 = arith.addf %2, %55 : vector<128x128xf32>
    %57 = arith.truncf %56 : vector<128x128xf32> to vector<128x128xbf16>
    %c0_21 = arith.constant 0 : index
    %c0_22 = arith.constant 0 : index
    %58 = vector.load %arg5[%c0_21, %c0_22] : memref<128x128xbf16, #tpu.memory_space<vmem>>, vector<128x128xbf16>
    %cst_23 = arith.constant dense<0.000000e+00> : vector<128x128xf32>
    %59 = tpu.matmul %57, %58, %cst_23 {dimension_numbers = #tpu.dot_dimension_numbers<[1], [0], [0], [1], [0, 0, 1, 1], [], []>} : vector<128x128xbf16>, vector<128x128xbf16>, vector<128x128xf32> -> vector<128x128xf32>
    %60 = arith.truncf %4 : vector<128x128xf32> to vector<128x128xbf16>
    %c0_24 = arith.constant 0 : index
    %c0_25 = arith.constant 0 : index
    %61 = vector.load %arg6[%c0_24, %c0_25] : memref<128x256xbf16, #tpu.memory_space<vmem>>, vector<128x256xbf16>
    %cst_26 = arith.constant dense<0.000000e+00> : vector<128x256xf32>
    %62 = tpu.matmul %60, %61, %cst_26 {dimension_numbers = #tpu.dot_dimension_numbers<[1], [0], [0], [1], [0, 0, 1, 1], [], []>} : vector<128x128xbf16>, vector<128x256xbf16>, vector<128x256xf32> -> vector<128x256xf32>
    %63 = vector.extract_strided_slice %62 {offsets = [0, 0], sizes = [128, 128], strides = [1, 1]} : vector<128x256xf32> to vector<128x128xf32>
    %64 = vector.extract_strided_slice %62 {offsets = [0, 128], sizes = [128, 128], strides = [1, 1]} : vector<128x256xf32> to vector<128x128xf32>
    %65 = vector.shape_cast %59 : vector<128x128xf32> to vector<2x64x128xf32>
    %66 = arith.truncf %65 : vector<2x64x128xf32> to vector<2x64x128xbf16>
    %67 = vector.shape_cast %63 : vector<128x128xf32> to vector<2x64x128xf32>
    %68 = arith.truncf %67 : vector<2x64x128xf32> to vector<2x64x128xbf16>
    %69 = vector.shape_cast %64 : vector<128x128xf32> to vector<2x64x128xf32>
    %70 = arith.truncf %69 : vector<2x64x128xf32> to vector<2x64x128xbf16>
    "tpu.trace_start"() <{level = 10 : i32, message = "bqd,bkd->bqk"}> : () -> ()
    %cst_27 = arith.constant dense<0.000000e+00> : vector<2x64x64xf32>
    %71 = tpu.matmul %66, %68, %cst_27 {dimension_numbers = #tpu.dot_dimension_numbers<[2], [2], [1], [1], [0, 0, 0, 1, 1, 1], [0], [0]>} : vector<2x64x128xbf16>, vector<2x64x128xbf16>, vector<2x64x64xf32> -> vector<2x64x64xf32>
    "tpu.trace_stop"() : () -> ()
    %cst_28 = arith.constant dense<0xFF800000> : vector<2x64xf32>
    %72 = vector.multi_reduction <maximumf>, %71, %cst_28 [2] : vector<2x64x64xf32> to vector<2x64xf32>
    %73 = vector.shape_cast %72 : vector<2x64xf32> to vector<2x64x1xf32>
    %74 = vector.broadcast %73 : vector<2x64x1xf32> to vector<2x64x64xf32>
    %75 = arith.subf %71, %74 : vector<2x64x64xf32>
    %76 = math.exp %75 : vector<2x64x64xf32>
    %cst_29 = arith.constant dense<0.000000e+00> : vector<2x64xf32>
    %77 = vector.multi_reduction <add>, %76, %cst_29 [2] : vector<2x64x64xf32> to vector<2x64xf32>
    %78 = vector.shape_cast %77 : vector<2x64xf32> to vector<2x64x1xf32>
    %79 = tpu.reciprocal %78 {approx = true} : vector<2x64x1xf32> -> vector<2x64x1xf32>
    %80 = vector.broadcast %79 : vector<2x64x1xf32> to vector<2x64x64xf32>
    %81 = arith.mulf %76, %80 : vector<2x64x64xf32>
    %82 = arith.truncf %81 : vector<2x64x64xf32> to vector<2x64x64xbf16>
    "tpu.trace_start"() <{level = 10 : i32, message = "bqk,bkd->bqd"}> : () -> ()
    %cst_30 = arith.constant dense<0.000000e+00> : vector<2x64x128xf32>
    %83 = tpu.matmul %82, %70, %cst_30 {dimension_numbers = #tpu.dot_dimension_numbers<[2], [1], [1], [2], [0, 0, 0, 1, 1, 2], [0], [0]>} : vector<2x64x64xbf16>, vector<2x64x128xbf16>, vector<2x64x128xf32> -> vector<2x64x128xf32>
    "tpu.trace_stop"() : () -> ()
    %84 = vector.shape_cast %83 : vector<2x64x128xf32> to vector<128x128xf32>
    %85 = arith.truncf %84 : vector<128x128xf32> to vector<128x128xbf16>
    %c0_31 = arith.constant 0 : index
    %c0_32 = arith.constant 0 : index
    %86 = vector.load %arg7[%c0_31, %c0_32] : memref<128x128xbf16, #tpu.memory_space<vmem>>, vector<128x128xbf16>
    %cst_33 = arith.constant dense<0.000000e+00> : vector<128x128xf32>
    %87 = tpu.matmul %85, %86, %cst_33 {dimension_numbers = #tpu.dot_dimension_numbers<[1], [0], [0], [1], [0, 0, 1, 1], [], []>} : vector<128x128xbf16>, vector<128x128xbf16>, vector<128x128xf32> -> vector<128x128xf32>
    %88 = vector.extract_strided_slice %0 {offsets = [2, 0], sizes = [1, 128], strides = [1, 1]} : vector<6x128xf32> to vector<1x128xf32>
    %89 = vector.extract_strided_slice %0 {offsets = [3, 0], sizes = [1, 128], strides = [1, 1]} : vector<6x128xf32> to vector<1x128xf32>
    %cst_34 = arith.constant dense<0.000000e+00> : vector<128xf32>
    %90 = vector.multi_reduction <add>, %87, %cst_34 [1] : vector<128x128xf32> to vector<128xf32>
    %91 = vector.shape_cast %90 : vector<128xf32> to vector<128x1xf32>
    %cst_35 = arith.constant 1.280000e+02 : f32
    %92 = vector.broadcast %cst_35 : f32 to vector<128x1xf32>
    %93 = arith.divf %91, %92 : vector<128x1xf32>
    %94 = vector.broadcast %93 : vector<128x1xf32> to vector<128x128xf32>
    %95 = arith.subf %87, %94 : vector<128x128xf32>
    %96 = arith.mulf %95, %95 : vector<128x128xf32>
    %cst_36 = arith.constant dense<0.000000e+00> : vector<128xf32>
    %97 = vector.multi_reduction <add>, %96, %cst_36 [1] : vector<128x128xf32> to vector<128xf32>
    %98 = vector.shape_cast %97 : vector<128xf32> to vector<128x1xf32>
    %cst_37 = arith.constant 1.280000e+02 : f32
    %99 = vector.broadcast %cst_37 : f32 to vector<128x1xf32>
    %100 = arith.divf %98, %99 : vector<128x1xf32>
    %cst_38 = arith.constant 9.99999974E-6 : f32
    %101 = vector.broadcast %cst_38 : f32 to vector<128x1xf32>
    %102 = arith.addf %100, %101 : vector<128x1xf32>
    %103 = math.rsqrt %102 : vector<128x1xf32>
    %104 = vector.broadcast %103 : vector<128x1xf32> to vector<128x128xf32>
    %105 = arith.mulf %95, %104 : vector<128x128xf32>
    %106 = vector.broadcast %88 : vector<1x128xf32> to vector<128x128xf32>
    %107 = arith.mulf %105, %106 : vector<128x128xf32>
    %108 = vector.broadcast %89 : vector<1x128xf32> to vector<128x128xf32>
    %109 = arith.addf %107, %108 : vector<128x128xf32>
    %c0_39 = arith.constant 0 : index
    %c0_40 = arith.constant 0 : index
    %110 = vector.load %arg8[%c0_39, %c0_40] : memref<128x1024xbf16, #tpu.memory_space<vmem>>, vector<128x1024xbf16>
    %cst_41 = arith.constant dense<0.000000e+00> : vector<128x1024xf32>
    %111 = tpu.matmul %57, %110, %cst_41 {dimension_numbers = #tpu.dot_dimension_numbers<[1], [0], [0], [1], [0, 0, 1, 1], [], []>} : vector<128x128xbf16>, vector<128x1024xbf16>, vector<128x1024xf32> -> vector<128x1024xf32>
    %112 = arith.truncf %109 : vector<128x128xf32> to vector<128x128xbf16>
    %c0_42 = arith.constant 0 : index
    %c0_43 = arith.constant 0 : index
    %113 = vector.load %arg9[%c0_42, %c0_43] : memref<128x1024xbf16, #tpu.memory_space<vmem>>, vector<128x1024xbf16>
    %cst_44 = arith.constant dense<0.000000e+00> : vector<128x1024xf32>
    %114 = tpu.matmul %112, %113, %cst_44 {dimension_numbers = #tpu.dot_dimension_numbers<[1], [0], [0], [1], [0, 0, 1, 1], [], []>} : vector<128x128xbf16>, vector<128x1024xbf16>, vector<128x1024xf32> -> vector<128x1024xf32>
    %115 = arith.addf %111, %114 : vector<128x1024xf32>
    %cst_45 = arith.constant 5.000000e-01 : f32
    %116 = vector.broadcast %cst_45 : f32 to vector<128x1024xf32>
    %117 = arith.mulf %116, %115 : vector<128x1024xf32>
    %cst_46 = arith.constant 4.471500e-02 : f32
    %118 = vector.broadcast %cst_46 : f32 to vector<128x1024xf32>
    %119 = arith.mulf %118, %115 : vector<128x1024xf32>
    %120 = arith.mulf %119, %115 : vector<128x1024xf32>
    %121 = arith.mulf %120, %115 : vector<128x1024xf32>
    %122 = arith.addf %115, %121 : vector<128x1024xf32>
    %cst_47 = arith.constant 0.797884583 : f32
    %123 = vector.broadcast %cst_47 : f32 to vector<128x1024xf32>
    %124 = arith.mulf %123, %122 : vector<128x1024xf32>
    %125 = math.tanh %124 : vector<128x1024xf32>
    %cst_48 = arith.constant 1.000000e+00 : f32
    %126 = vector.broadcast %cst_48 : f32 to vector<128x1024xf32>
    %127 = arith.addf %126, %125 : vector<128x1024xf32>
    %128 = arith.mulf %117, %127 : vector<128x1024xf32>
    %129 = arith.truncf %128 : vector<128x1024xf32> to vector<128x1024xbf16>
    %c0_49 = arith.constant 0 : index
    %c0_50 = arith.constant 0 : index
    %130 = vector.load %arg10[%c0_49, %c0_50] : memref<1024x128xbf16, #tpu.memory_space<vmem>>, vector<1024x128xbf16>
    %cst_51 = arith.constant dense<0.000000e+00> : vector<128x128xf32>
    %131 = tpu.matmul %129, %130, %cst_51 {dimension_numbers = #tpu.dot_dimension_numbers<[1], [0], [0], [1], [0, 0, 1, 1], [], []>} : vector<128x1024xbf16>, vector<1024x128xbf16>, vector<128x128xf32> -> vector<128x128xf32>
    %132 = vector.extract_strided_slice %0 {offsets = [4, 0], sizes = [1, 128], strides = [1, 1]} : vector<6x128xf32> to vector<1x128xf32>
    %133 = vector.extract_strided_slice %0 {offsets = [5, 0], sizes = [1, 128], strides = [1, 1]} : vector<6x128xf32> to vector<1x128xf32>
    %cst_52 = arith.constant dense<0.000000e+00> : vector<128xf32>
    %134 = vector.multi_reduction <add>, %131, %cst_52 [1] : vector<128x128xf32> to vector<128xf32>
    %135 = vector.shape_cast %134 : vector<128xf32> to vector<128x1xf32>
    %cst_53 = arith.constant 1.280000e+02 : f32
    %136 = vector.broadcast %cst_53 : f32 to vector<128x1xf32>
    %137 = arith.divf %135, %136 : vector<128x1xf32>
    %138 = vector.broadcast %137 : vector<128x1xf32> to vector<128x128xf32>
    %139 = arith.subf %131, %138 : vector<128x128xf32>
    %140 = arith.mulf %139, %139 : vector<128x128xf32>
    %cst_54 = arith.constant dense<0.000000e+00> : vector<128xf32>
    %141 = vector.multi_reduction <add>, %140, %cst_54 [1] : vector<128x128xf32> to vector<128xf32>
    %142 = vector.shape_cast %141 : vector<128xf32> to vector<128x1xf32>
    %cst_55 = arith.constant 1.280000e+02 : f32
    %143 = vector.broadcast %cst_55 : f32 to vector<128x1xf32>
    %144 = arith.divf %142, %143 : vector<128x1xf32>
    %cst_56 = arith.constant 9.99999974E-6 : f32
    %145 = vector.broadcast %cst_56 : f32 to vector<128x1xf32>
    %146 = arith.addf %144, %145 : vector<128x1xf32>
    %147 = math.rsqrt %146 : vector<128x1xf32>
    %148 = vector.broadcast %147 : vector<128x1xf32> to vector<128x128xf32>
    %149 = arith.mulf %139, %148 : vector<128x128xf32>
    %150 = vector.broadcast %132 : vector<1x128xf32> to vector<128x128xf32>
    %151 = arith.mulf %149, %150 : vector<128x128xf32>
    %152 = vector.broadcast %133 : vector<1x128xf32> to vector<128x128xf32>
    %153 = arith.addf %151, %152 : vector<128x128xf32>
    %154 = arith.addf %56, %153 : vector<128x128xf32>
    %155 = vector.shape_cast %154 : vector<128x128xf32> to vector<2x64x128xf32>
    %c0_57 = arith.constant 0 : index
    %c0_58 = arith.constant 0 : index
    %c0_59 = arith.constant 0 : index
    %156 = vector.load %arg12[%c0_57, %c0_58, %c0_59] : memref<2x64x128xf32, #tpu.memory_space<vmem>>, vector<2x64x128xf32>
    tpu.vector_store %arg12[%c0_57, %c0_58, %c0_59], %155 {strides = array<i32>} : memref<2x64x128xf32, #tpu.memory_space<vmem>>, vector<2x64x128xf32>,
    return
  }
  func.func @transform_0(%arg0: i32) -> (i32, i32, i32) {
    %c0_i32 = arith.constant 0 : i32
    %c0_i32_0 = arith.constant 0 : i32
    %c0_i32_1 = arith.constant 0 : i32
    return %arg0, %c0_i32, %c0_i32_0 : i32, i32, i32
  }
  func.func @transform_1(%arg0: i32) -> (i32, i32, i32) {
    %c0_i32 = arith.constant 0 : i32
    %c0_i32_0 = arith.constant 0 : i32
    %c0_i32_1 = arith.constant 0 : i32
    return %arg0, %c0_i32, %c0_i32_0 : i32, i32, i32
  }
  func.func @transform_2(%arg0: i32) -> (i32, i32) {
    %c0_i32 = arith.constant 0 : i32
    %c0_i32_0 = arith.constant 0 : i32
    %c0_i32_1 = arith.constant 0 : i32
    return %c0_i32, %c0_i32_0 : i32, i32
  }
  func.func @transform_3(%arg0: i32) -> (i32, i32) {
    %c0_i32 = arith.constant 0 : i32
    %c0_i32_0 = arith.constant 0 : i32
    %c0_i32_1 = arith.constant 0 : i32
    return %c0_i32, %c0_i32_0 : i32, i32
  }
  func.func @transform_4(%arg0: i32) -> (i32, i32) {
    %c0_i32 = arith.constant 0 : i32
    %c0_i32_0 = arith.constant 0 : i32
    %c0_i32_1 = arith.constant 0 : i32
    return %c0_i32, %c0_i32_0 : i32, i32
  }
  func.func @transform_5(%arg0: i32) -> (i32, i32) {
    %c0_i32 = arith.constant 0 : i32
    %c0_i32_0 = arith.constant 0 : i32
    %c0_i32_1 = arith.constant 0 : i32
    return %c0_i32, %c0_i32_0 : i32, i32
  }
  func.func @transform_6(%arg0: i32) -> (i32, i32) {
    %c0_i32 = arith.constant 0 : i32
    %c0_i32_0 = arith.constant 0 : i32
    %c0_i32_1 = arith.constant 0 : i32
    return %c0_i32, %c0_i32_0 : i32, i32
  }
  func.func @transform_7(%arg0: i32) -> (i32, i32) {
    %c0_i32 = arith.constant 0 : i32
    %c0_i32_0 = arith.constant 0 : i32
    %c0_i32_1 = arith.constant 0 : i32
    return %c0_i32, %c0_i32_0 : i32, i32
  }
  func.func @transform_8(%arg0: i32) -> (i32, i32) {
    %c0_i32 = arith.constant 0 : i32
    %c0_i32_0 = arith.constant 0 : i32
    %c0_i32_1 = arith.constant 0 : i32
    return %c0_i32, %c0_i32_0 : i32, i32
  }
  func.func @transform_9(%arg0: i32) -> (i32, i32) {
    %c0_i32 = arith.constant 0 : i32
    %c0_i32_0 = arith.constant 0 : i32
    %c0_i32_1 = arith.constant 0 : i32
    return %c0_i32, %c0_i32_0 : i32, i32
  }
  func.func @transform_10(%arg0: i32) -> (i32, i32) {
    %c0_i32 = arith.constant 0 : i32
    %c0_i32_0 = arith.constant 0 : i32
    %c0_i32_1 = arith.constant 0 : i32
    return %c0_i32, %c0_i32_0 : i32, i32
  }
  func.func @transform_11(%arg0: i32) -> (i32, i32, i32) {
    %c0_i32 = arith.constant 0 : i32
    %c0_i32_0 = arith.constant 0 : i32
    %c0_i32_1 = arith.constant 0 : i32
    return %arg0, %c0_i32, %c0_i32_0 : i32, i32, i32
  }
}

</mosaic_0001>

<llo_original>
// kernel: transformer_block.1
$region0: #{transformer_block.1}
  #allocation0 [shape = 'u32[]', space=smem, size = 0x4, offset = 0x4, fixed_abs, tag = 'smem constant byte address 0x4 - core index']
  #allocation1 [shape = 'u32[144,128]{1,0:T(1,128)}', space=vmem, size = 0x12000, scoped, tag = 'internal scratch']
  %s0 = inlined_call_operand.hbm [shape: f32[2,64,128], index: 0, kind: input, shape index: {}]
  %s1 = inlined_call_operand.hbm [shape: f32[2,64,128], index: 1, kind: input, shape index: {}]
  %s2 = inlined_call_operand.hbm [shape: bf16[128,384], index: 2, kind: input, shape index: {}]
  %s3 = inlined_call_operand.hbm [shape: bf16[128,128], index: 3, kind: input, shape index: {}]
  %s4 = inlined_call_operand.hbm [shape: bf16[128,128], index: 4, kind: input, shape index: {}]
  %s5 = inlined_call_operand.hbm [shape: bf16[128,256], index: 5, kind: input, shape index: {}]
  %s6 = inlined_call_operand.hbm [shape: bf16[128,128], index: 6, kind: input, shape index: {}]
  %s7 = inlined_call_operand.hbm [shape: bf16[128,1024], index: 7, kind: input, shape index: {}]
  %s8 = inlined_call_operand.hbm [shape: bf16[128,1024], index: 8, kind: input, shape index: {}]
  %s9 = inlined_call_operand.hbm [shape: bf16[1024,128], index: 9, kind: input, shape index: {}]
  %s10 = inlined_call_operand.vmem [shape: f32[6,128], index: 10, kind: input, shape index: {}]
  %s11 = inlined_call_operand.hbm [shape: f32[2,64,128], index: 11, kind: output, shape index: {}]
  %s12 = sld [smem:[#allocation0]]
  $region94: #{transformer_block.1} parent=0
    _
  %s14 = ssub.s32 1, %s12
  %s15 = scalar_select 0, %s14, %s12
  $region1: #{transformer_block.1} parent=0
    #allocation2 [shape = 'u8[65536]{0}', space=vmem, size = 0x10000, scoped, tag = 'input window, operand 0, single buffered']
    #allocation3 [shape = 's32[1]{0}', space=sflag, size = 0x4, scoped, tag = 'scoped memory for transformer_block.1']
    #allocation4 [shape = 's32[1]{0}', space=sflag, size = 0x4, scoped, tag = 'scoped memory for transformer_block.1']
    #allocation5 [shape = 'u8[65536]{0}', space=vmem, size = 0x10000, scoped, tag = 'input window, operand 1, single buffered']
    #allocation6 [shape = 's32[1]{0}', space=sflag, size = 0x4, scoped, tag = 'scoped memory for transformer_block.1']
    #allocation7 [shape = 'u8[98304]{0}', space=vmem, size = 0x18000, scoped, tag = 'input window, operand 2, single buffered']
    #allocation8 [shape = 'u8[32768]{0}', space=vmem, size = 0x8000, scoped, tag = 'input window, operand 3, single buffered']
    #allocation9 [shape = 's32[1]{0}', space=sflag, size = 0x4, scoped, tag = 'scoped memory for transformer_block.1']
    #allocation10 [shape = 'u8[32768]{0}', space=vmem, size = 0x8000, scoped, tag = 'input window, operand 4, single buffered']
    #allocation11 [shape = 'u8[65536]{0}', space=vmem, size = 0x10000, scoped, tag = 'input window, operand 5, single buffered']
    #allocation12 [shape = 's32[1]{0}', space=sflag, size = 0x4, scoped, tag = 'scoped memory for transformer_block.1']
    #allocation13 [shape = 'u8[32768]{0}', space=vmem, size = 0x8000, scoped, tag = 'input window, operand 6, single buffered']
    #allocation14 [shape = 'u8[262144]{0}', space=vmem, size = 0x40000, scoped, tag = 'input window, operand 7, single buffered']
    #allocation15 [shape = 's32[1]{0}', space=sflag, size = 0x4, scoped, tag = 'scoped memory for transformer_block.1']
    #allocation16 [shape = 'u8[262144]{0}', space=vmem, size = 0x40000, scoped, tag = 'input window, operand 8, single buffered']
    #allocation17 [shape = 'u8[262144]{0}', space=vmem, size = 0x40000, scoped, tag = 'input window, operand 9, single buffered']
    #allocation18 [shape = 's32[1]{0}', space=sflag, size = 0x4, scoped, tag = 'scoped memory for transformer_block.1']
    #allocation19 [shape = 'u8[65536]{0}', space=vmem, size = 0x10000, scoped, tag = 'output window, operand 0, single buffered']
    %16 = vsyncpa [#allocation3], 0
    %17 = vsyncpa [#allocation6], 0
    %18 = vsyncpa [#allocation9], 0
    %19 = vsyncpa [#allocation12], 0
    %20 = vsyncpa [#allocation15], 0
    %21 = vsyncpa [#allocation18], 0
    %22 = vsyncpa [#allocation4], 0
    // Predicated region
    $region2: #{transformer_block.1} parent=1 // pred_check
      _
    $region3: #{transformer_block.1} parent=1 // pred_check_branch
      %24 = sbr.rel (0) target = $region5
    $region4: #{transformer_block.1} parent=1 // pred_region
      %s26 = ssub.s32 2048, 2048
      %27 = vsyncadd [#allocation3], %s26
      %s28 = sshll.u32 [#allocation2], 4
      %s29 = int_to_ptr.vmem [resolvable:$true] %s28
      %34 = dma.hbm_to_vmem [thread:$0]  %s0, 2048, %s29, [#allocation3], 128, 128, 8
    $region5: #{transformer_block.1} parent=1 // pred_fallthru
      _
    // Predicated region
    $region6: #{transformer_block.1} parent=1 // pred_check
      _
    $region7: #{transformer_block.1} parent=1 // pred_check_branch
      %36 = sbr.rel (0) target = $region9
    $region8: #{transformer_block.1} parent=1 // pred_region
      %s38 = ssub.s32 2048, 2048
      %39 = vsyncadd [#allocation6], %s38
      %s40 = sshll.u32 [#allocation5], 4
      %s41 = int_to_ptr.vmem [resolvable:$true] %s40
      %46 = dma.hbm_to_vmem [thread:$0]  %s1, 2048, %s41, [#allocation6], 128, 128, 8
    $region9: #{transformer_block.1} parent=1 // pred_fallthru
      _
    // Predicated region
    $region10: #{transformer_block.1} parent=1 // pred_check
      _
    $region11: #{transformer_block.1} parent=1 // pred_check_branch
      %48 = sbr.rel (0) target = $region13
    $region12: #{transformer_block.1} parent=1 // pred_region
      %s50 = ssub.s32 3072, 3072
      %51 = vsyncadd [#allocation6], %s50
      %s52 = sshll.u32 [#allocation7], 4
      %s53 = int_to_ptr.vmem [resolvable:$true] %s52
      %58 = dma.hbm_to_vmem [thread:$0]  %s2, 3072, %s53, [#allocation6], 192, 192, 12
    $region13: #{transformer_block.1} parent=1 // pred_fallthru
      _
    // Predicated region
    $region14: #{transformer_block.1} parent=1 // pred_check
      _
    $region15: #{transformer_block.1} parent=1 // pred_check_branch
      %60 = sbr.rel (0) target = $region17
    $region16: #{transformer_block.1} parent=1 // pred_region
      %s62 = ssub.s32 1024, 1024
      %63 = vsyncadd [#allocation9], %s62
      %s64 = sshll.u32 [#allocation8], 4
      %s65 = int_to_ptr.vmem [resolvable:$true] %s64
      %70 = dma.hbm_to_vmem [thread:$0]  %s3, 1024, %s65, [#allocation9], 64, 64, 4
    $region17: #{transformer_block.1} parent=1 // pred_fallthru
      _
    // Predicated region
    $region18: #{transformer_block.1} parent=1 // pred_check
      _
    $region19: #{transformer_block.1} parent=1 // pred_check_branch
      %72 = sbr.rel (0) target = $region21
    $region20: #{transformer_block.1} parent=1 // pred_region
      %s74 = ssub.s32 1024, 1024
      %75 = vsyncadd [#allocation9], %s74
      %s76 = sshll.u32 [#allocation10], 4
      %s77 = int_to_ptr.vmem [resolvable:$true] %s76
      %82 = dma.hbm_to_vmem [thread:$0]  %s4, 1024, %s77, [#allocation9], 64, 64, 4
    $region21: #{transformer_block.1} parent=1 // pred_fallthru
      _
    // Predicated region
    $region22: #{transformer_block.1} parent=1 // pred_check
      _
    $region23: #{transformer_block.1} parent=1 // pred_check_branch
      %84 = sbr.rel (0) target = $region25
    $region24: #{transformer_block.1} parent=1 // pred_region
      %s86 = ssub.s32 2048, 2048
      %87 = vsyncadd [#allocation12], %s86
      %s88 = sshll.u32 [#allocation11], 4
      %s89 = int_to_ptr.vmem [resolvable:$true] %s88
      %94 = dma.hbm_to_vmem [thread:$0]  %s5, 2048, %s89, [#allocation12], 128, 128, 8
    $region25: #{transformer_block.1} parent=1 // pred_fallthru
      _
    // Predicated region
    $region26: #{transformer_block.1} parent=1 // pred_check
      _
    $region27: #{transformer_block.1} parent=1 // pred_check_branch
      %96 = sbr.rel (0) target = $region29
    $region28: #{transformer_block.1} parent=1 // pred_region
      %s98 = ssub.s32 1024, 1024
      %99 = vsyncadd [#allocation12], %s98
      %s100 = sshll.u32 [#allocation13], 4
      %s101 = int_to_ptr.vmem [resolvable:$true] %s100
      %106 = dma.hbm_to_vmem [thread:$0]  %s6, 1024, %s101, [#allocation12], 64, 64, 4
    $region29: #{transformer_block.1} parent=1 // pred_fallthru
      _
    // Predicated region
    $region30: #{transformer_block.1} parent=1 // pred_check
      _
    $region31: #{transformer_block.1} parent=1 // pred_check_branch
      %108 = sbr.rel (0) target = $region33
    $region32: #{transformer_block.1} parent=1 // pred_region
      %s110 = ssub.s32 8192, 8192
      %111 = vsyncadd [#allocation15], %s110
      %s112 = sshll.u32 [#allocation14], 4
      %s113 = int_to_ptr.vmem [resolvable:$true] %s112
      %118 = dma.hbm_to_vmem [thread:$0]  %s7, 8192, %s113, [#allocation15], 512, 512, 32
    $region33: #{transformer_block.1} parent=1 // pred_fallthru
      _
    // Predicated region
    $region34: #{transformer_block.1} parent=1 // pred_check
      _
    $region35: #{transformer_block.1} parent=1 // pred_check_branch
      %120 = sbr.rel (0) target = $region37
    $region36: #{transformer_block.1} parent=1 // pred_region
      %s122 = ssub.s32 8192, 8192
      %123 = vsyncadd [#allocation15], %s122
      %s124 = sshll.u32 [#allocation16], 4
      %s125 = int_to_ptr.vmem [resolvable:$true] %s124
      %130 = dma.hbm_to_vmem [thread:$0]  %s8, 8192, %s125, [#allocation15], 512, 512, 32
    $region37: #{transformer_block.1} parent=1 // pred_fallthru
      _
    // Predicated region
    $region38: #{transformer_block.1} parent=1 // pred_check
      _
    $region39: #{transformer_block.1} parent=1 // pred_check_branch
      %132 = sbr.rel (0) target = $region41
    $region40: #{transformer_block.1} parent=1 // pred_region
      %s134 = ssub.s32 8192, 8192
      %135 = vsyncadd [#allocation18], %s134
      %s136 = sshll.u32 [#allocation17], 4
      %s137 = int_to_ptr.vmem [resolvable:$true] %s136
      %142 = dma.hbm_to_vmem [thread:$0]  %s9, 8192, %s137, [#allocation18], 64, 64, 4
    $region41: #{transformer_block.1} parent=1 // pred_fallthru
      _
    // Predicated region
    $region42: #{transformer_block.1} parent=1 // pred_check
      _
    $region43: #{transformer_block.1} parent=1 // pred_check_branch
      %144 = sbr.rel (0) target = $region45
    $region44: #{transformer_block.1} parent=1 // pred_region
      _
    $region45: #{transformer_block.1} parent=1 // pred_fallthru
      _
    // Predicated region
    $region46: #{transformer_block.1} parent=1 // pred_check
      _
    $region47: #{transformer_block.1} parent=1 // pred_check_branch
      %146 = sbr.rel (0) target = $region49
    $region48: #{transformer_block.1} parent=1 // pred_region
      %147 = dma.done [#allocation3], 2048
    $region49: #{transformer_block.1} parent=1 // pred_fallthru
      _
    // Predicated region
    $region50: #{transformer_block.1} parent=1 // pred_check
      _
    $region51: #{transformer_block.1} parent=1 // pred_check_branch
      %149 = sbr.rel (0) target = $region53
    $region52: #{transformer_block.1} parent=1 // pred_region
      %150 = dma.done [#allocation6], 2048
    $region53: #{transformer_block.1} parent=1 // pred_fallthru
      _
    // Predicated region
    $region54: #{transformer_block.1} parent=1 // pred_check
      _
    $region55: #{transformer_block.1} parent=1 // pred_check_branch
      %152 = sbr.rel (0) target = $region57
    $region56: #{transformer_block.1} parent=1 // pred_region
      %153 = dma.done [#allocation6], 3072
    $region57: #{transformer_block.1} parent=1 // pred_fallthru
      _
    // Predicated region
    $region58: #{transformer_block.1} parent=1 // pred_check
      _
    $region59: #{transformer_block.1} parent=1 // pred_check_branch
      %155 = sbr.rel (0) target = $region61
    $region60: #{transformer_block.1} parent=1 // pred_region
      %156 = dma.done [#allocation9], 1024
    $region61: #{transformer_block.1} parent=1 // pred_fallthru
      _
    // Predicated region
    $region62: #{transformer_block.1} parent=1 // pred_check
      _
    $region63: #{transformer_block.1} parent=1 // pred_check_branch
      %158 = sbr.rel (0) target = $region65
    $region64: #{transformer_block.1} parent=1 // pred_region
      %159 = dma.done [#allocation9], 1024
    $region65: #{transformer_block.1} parent=1 // pred_fallthru
      _
    // Predicated region
    $region66: #{transformer_block.1} parent=1 // pred_check
      _
    $region67: #{transformer_block.1} parent=1 // pred_check_branch
      %161 = sbr.rel (0) target = $region69
    $region68: #{transformer_block.1} parent=1 // pred_region
      %162 = dma.done [#allocation12], 2048
    $region69: #{transformer_block.1} parent=1 // pred_fallthru
      _
    // Predicated region
    $region70: #{transformer_block.1} parent=1 // pred_check
      _
    $region71: #{transformer_block.1} parent=1 // pred_check_branch
      %164 = sbr.rel (0) target = $region73
    $region72: #{transformer_block.1} parent=1 // pred_region
      %165 = dma.done [#allocation12], 1024
    $region73: #{transformer_block.1} parent=1 // pred_fallthru
      _
    // Predicated region
    $region74: #{transformer_block.1} parent=1 // pred_check
      _
    $region75: #{transformer_block.1} parent=1 // pred_check_branch
      %167 = sbr.rel (0) target = $region77
    $region76: #{transformer_block.1} parent=1 // pred_region
      %168 = dma.done [#allocation15], 8192
    $region77: #{transformer_block.1} parent=1 // pred_fallthru
      _
    // Predicated region
    $region78: #{transformer_block.1} parent=1 // pred_check
      _
    $region79: #{transformer_block.1} parent=1 // pred_check_branch
      %170 = sbr.rel (0) target = $region81
    $region80: #{transformer_block.1} parent=1 // pred_region
      %171 = dma.done [#allocation15], 8192
    $region81: #{transformer_block.1} parent=1 // pred_fallthru
      _
    // Predicated region
    $region82: #{transformer_block.1} parent=1 // pred_check
      _
    $region83: #{transformer_block.1} parent=1 // pred_check_branch
      %173 = sbr.rel (0) target = $region85
    $region84: #{transformer_block.1} parent=1 // pred_region
      %174 = dma.done [#allocation18], 8192
    $region85: #{transformer_block.1} parent=1 // pred_fallthru
      _
    %v176 = vld [vmem:[%s10] sm:$0x3f]
    %v177 = vld [vmem:[#allocation2] sm:$0xff]
    %v178 = vld [vmem:[#allocation2 + $0x8] sm:$0xff]
    %v179 = vld [vmem:[#allocation2 + $0x10] sm:$0xff]
    %v180 = vld [vmem:[#allocation2 + $0x18] sm:$0xff]
    %v181 = vld [vmem:[#allocation2 + $0x20] sm:$0xff]
    %v182 = vld [vmem:[#allocation2 + $0x28] sm:$0xff]
    %v183 = vld [vmem:[#allocation2 + $0x30] sm:$0xff]
    %v184 = vld [vmem:[#allocation2 + $0x38] sm:$0xff]
    %v185 = vld [vmem:[#allocation2 + $0x40] sm:$0xff]
    %v186 = vld [vmem:[#allocation2 + $0x48] sm:$0xff]
    %v187 = vld [vmem:[#allocation2 + $0x50] sm:$0xff]
    %v188 = vld [vmem:[#allocation2 + $0x58] sm:$0xff]
    %v189 = vld [vmem:[#allocation2 + $0x60] sm:$0xff]
    %v190 = vld [vmem:[#allocation2 + $0x68] sm:$0xff]
    %v191 = vld [vmem:[#allocation2 + $0x70] sm:$0xff]
    %v192 = vld [vmem:[#allocation2 + $0x78] sm:$0xff]
    %v193 = vld [vmem:[#allocation5] sm:$0xff]
    %v194 = vld [vmem:[#allocation5 + $0x8] sm:$0xff]
    %v195 = vld [vmem:[#allocation5 + $0x10] sm:$0xff]
    %v196 = vld [vmem:[#allocation5 + $0x18] sm:$0xff]
    %v197 = vld [vmem:[#allocation5 + $0x20] sm:$0xff]
    %v198 = vld [vmem:[#allocation5 + $0x28] sm:$0xff]
    %v199 = vld [vmem:[#allocation5 + $0x30] sm:$0xff]
    %v200 = vld [vmem:[#allocation5 + $0x38] sm:$0xff]
    %v201 = vld [vmem:[#allocation5 + $0x40] sm:$0xff]
    %v202 = vld [vmem:[#allocation5 + $0x48] sm:$0xff]
    %v203 = vld [vmem:[#allocation5 + $0x50] sm:$0xff]
    %v204 = vld [vmem:[#allocation5 + $0x58] sm:$0xff]
    %v205 = vld [vmem:[#allocation5 + $0x60] sm:$0xff]
    %v206 = vld [vmem:[#allocation5 + $0x68] sm:$0xff]
    %v207 = vld [vmem:[#allocation5 + $0x70] sm:$0xff]
    %v208 = vld [vmem:[#allocation5 + $0x78] sm:$0xff]
    %v209 = vpack.c.bf16 %v178, %v177
    %v210 = vpack.c.bf16 %v180, %v179
    %v211 = vpack.c.bf16 %v182, %v181
    %v212 = vpack.c.bf16 %v184, %v183
    %v213 = vpack.c.bf16 %v186, %v185
    %v214 = vpack.c.bf16 %v188, %v187
    %v215 = vpack.c.bf16 %v190, %v189
    %v216 = vpack.c.bf16 %v192, %v191
    %v217 = vld [vmem:[#allocation7] sm:$0xff]
    %v218 = vld [vmem:[#allocation7 + $0x8] sm:$0xf]
    %v219 = vld [vmem:[#allocation7 + $0xc] sm:$0xff]
    %v220 = vld [vmem:[#allocation7 + $0x14] sm:$0xf]
    %v221 = vld [vmem:[#allocation7 + $0x18] sm:$0xff]
    %v222 = vld [vmem:[#allocation7 + $0x20] sm:$0xf]
    %v223 = vld [vmem:[#allocation7 + $0x24] sm:$0xff]
    %v224 = vld [vmem:[#allocation7 + $0x2c] sm:$0xf]
    %v225 = vld [vmem:[#allocation7 + $0x30] sm:$0xff]
    %v226 = vld [vmem:[#allocation7 + $0x38] sm:$0xf]
    %v227 = vld [vmem:[#allocation7 + $0x3c] sm:$0xff]
    %v228 = vld [vmem:[#allocation7 + $0x44] sm:$0xf]
    %v229 = vld [vmem:[#allocation7 + $0x48] sm:$0xff]
    %v230 = vld [vmem:[#allocation7 + $0x50] sm:$0xf]
    %v231 = vld [vmem:[#allocation7 + $0x54] sm:$0xff]
    %v232 = vld [vmem:[#allocation7 + $0x5c] sm:$0xf]
    %v233 = vld [vmem:[#allocation7 + $0x60] sm:$0xff]
    %v234 = vld [vmem:[#allocation7 + $0x68] sm:$0xf]
    %v235 = vld [vmem:[#allocation7 + $0x6c] sm:$0xff]
    %v236 = vld [vmem:[#allocation7 + $0x74] sm:$0xf]
    %v237 = vld [vmem:[#allocation7 + $0x78] sm:$0xff]
    %v238 = vld [vmem:[#allocation7 + $0x80] sm:$0xf]
    %v239 = vld [vmem:[#allocation7 + $0x84] sm:$0xff]
    %v240 = vld [vmem:[#allocation7 + $0x8c] sm:$0xf]
    %v241 = vld [vmem:[#allocation7 + $0x90] sm:$0xff]
    %v242 = vld [vmem:[#allocation7 + $0x98] sm:$0xf]
    %v243 = vld [vmem:[#allocation7 + $0x9c] sm:$0xff]
    %v244 = vld [vmem:[#allocation7 + $0xa4] sm:$0xf]
    %v245 = vld [vmem:[#allocation7 + $0xa8] sm:$0xff]
    %v246 = vld [vmem:[#allocation7 + $0xb0] sm:$0xf]
    %v247 = vld [vmem:[#allocation7 + $0xb4] sm:$0xff]
    %v248 = vld [vmem:[#allocation7 + $0xbc] sm:$0xf]
    %v281 = vunpack.c.l.b16 %v217
    %v282 = vunpack.c.h.b16 %v217
    %v283 = vunpack.c.l.b16 %v218
    %v284 = vunpack.c.l.b16 %v219
    %v285 = vunpack.c.h.b16 %v219
    %v286 = vunpack.c.l.b16 %v220
    %v287 = vunpack.c.l.b16 %v221
    %v288 = vunpack.c.h.b16 %v221
    %v289 = vunpack.c.l.b16 %v222
    %v290 = vunpack.c.l.b16 %v223
    %v291 = vunpack.c.h.b16 %v223
    %v292 = vunpack.c.l.b16 %v224
    %v293 = vunpack.c.l.b16 %v225
    %v294 = vunpack.c.h.b16 %v225
    %v295 = vunpack.c.l.b16 %v226
    %v296 = vunpack.c.l.b16 %v227
    %v297 = vunpack.c.h.b16 %v227
    %v298 = vunpack.c.l.b16 %v228
    %v299 = vunpack.c.l.b16 %v229
    %v300 = vunpack.c.h.b16 %v229
    %v301 = vunpack.c.l.b16 %v230
    %v302 = vunpack.c.l.b16 %v231
    %v303 = vunpack.c.h.b16 %v231
    %v304 = vunpack.c.l.b16 %v232
    %v305 = vunpack.c.l.b16 %v233
    %v306 = vunpack.c.h.b16 %v233
    %v307 = vunpack.c.l.b16 %v234
    %v308 = vunpack.c.l.b16 %v235
    %v309 = vunpack.c.h.b16 %v235
    %v310 = vunpack.c.l.b16 %v236
    %v311 = vunpack.c.l.b16 %v237
    %v312 = vunpack.c.h.b16 %v237
    %v313 = vunpack.c.l.b16 %v238
    %v314 = vunpack.c.l.b16 %v239
    %v315 = vunpack.c.h.b16 %v239
    %v316 = vunpack.c.l.b16 %v240
    %v317 = vunpack.c.l.b16 %v241
    %v318 = vunpack.c.h.b16 %v241
    %v319 = vunpack.c.l.b16 %v242
    %v320 = vunpack.c.l.b16 %v243
    %v321 = vunpack.c.h.b16 %v243
    %v322 = vunpack.c.l.b16 %v244
    %v323 = vunpack.c.l.b16 %v245
    %v324 = vunpack.c.h.b16 %v245
    %v325 = vunpack.c.l.b16 %v246
    %v326 = vunpack.c.l.b16 %v247
    %v327 = vunpack.c.h.b16 %v247
    %v328 = vunpack.c.l.b16 %v248
    %v329 = vpack.c.b16 %v284, %v281
    %v330 = vpack.c.b16 %v285, %v282
    %v331 = vpack.c.b16 %v286, %v283
    %v332 = vpack.c.b16 %v290, %v287
    %v333 = vpack.c.b16 %v291, %v288
    %v334 = vpack.c.b16 %v292, %v289
    %v335 = vpack.c.b16 %v296, %v293
    %v336 = vpack.c.b16 %v297, %v294
    %v337 = vpack.c.b16 %v298, %v295
    %v338 = vpack.c.b16 %v302, %v299
    %v339 = vpack.c.b16 %v303, %v300
    %v340 = vpack.c.b16 %v304, %v301
    %v341 = vpack.c.b16 %v308, %v305
    %v342 = vpack.c.b16 %v309, %v306
    %v343 = vpack.c.b16 %v310, %v307
    %v344 = vpack.c.b16 %v314, %v311
    %v345 = vpack.c.b16 %v315, %v312
    %v346 = vpack.c.b16 %v316, %v313
    %v347 = vpack.c.b16 %v320, %v317
    %v348 = vpack.c.b16 %v321, %v318
    %v349 = vpack.c.b16 %v322, %v319
    %v350 = vpack.c.b16 %v326, %v323
    %v351 = vpack.c.b16 %v327, %v324
    %v352 = vpack.c.b16 %v328, %v325
    %377 = vmatprep.subr.bf16.mxu0 %v351
    %378 = vmatpush1.bf16.msra.mxu0 %v350
    %379 = vmatprep.subr.bf16.mxu0 %v348
    %380 = vmatpush1.bf16.msra.mxu0 %v347
    %381 = vmatprep.subr.bf16.mxu0 %v345
    %382 = vmatpush1.bf16.msra.mxu0 %v344
    %383 = vmatprep.subr.bf16.mxu0 %v342
    %384 = vmatpush1.bf16.msra.mxu0 %v341
    %385 = vmatprep.subr.bf16.mxu0 %v339
    %386 = vmatpush1.bf16.msra.mxu0 %v338
    %387 = vmatprep.subr.bf16.mxu0 %v336
    %388 = vmatpush1.bf16.msra.mxu0 %v335
    %389 = vmatprep.subr.bf16.mxu0 %v333
    %390 = vmatpush1.bf16.msra.mxu0 %v332
    %391 = vmatprep.subr.bf16.mxu0 %v330
    %392 = vmatpush1.bf16.msra.mxu0 %v329
    %393 = vmatprep.subr.bf16.mxu0 0
    %394 = vmatpush2.bf16.msra.mxu0 0
    %395 = vmatprep.subr.bf16.mxu0 0
    %396 = vmatpush2.bf16.msra.mxu0 0
    %397 = vmatprep.subr.bf16.mxu0 0
    %398 = vmatpush2.bf16.msra.mxu0 0
    %399 = vmatprep.subr.bf16.mxu0 0
    %400 = vmatpush2.bf16.msra.mxu0 0
    %401 = vmatprep.subr.bf16.mxu0 0
    %402 = vmatpush2.bf16.msra.mxu0 0
    %403 = vmatprep.subr.bf16.mxu0 0
    %404 = vmatpush2.bf16.msra.mxu0 0
    %405 = vmatprep.subr.bf16.mxu0 0
    %406 = vmatpush2.bf16.msra.mxu0 0
    %407 = vmatprep.subr.bf16.mxu0 0
    %408 = vmatpush2.bf16.msra.mxu0 0
    %409 = vmatprep.mubr.bf16.mxu0 0
    %410 = vmatmul.mubr.bf16.gmra.mxu0 %v209
    %v411 = vpop.f32.mrf.mxu0
    %v412 = vadd.f32 0.0, %v411
    %v413 = vpop.f32.mrf.mxu0
    %v414 = vadd.f32 0.0, %v413
    %v415 = vpop.f32.mrf.mxu0
    %v416 = vadd.f32 0.0, %v415
    %v417 = vpop.f32.mrf.mxu0
    %v418 = vadd.f32 0.0, %v417
    %419 = vmatprep.mubr.bf16.mxu0 0
    %420 = vmatmul.mubr.bf16.gmra.mxu0 %v210
    %v421 = vpop.f32.mrf.mxu0
    %v422 = vadd.f32 0.0, %v421
    %v423 = vpop.f32.mrf.mxu0
    %v424 = vadd.f32 0.0, %v423
    %v425 = vpop.f32.mrf.mxu0
    %v426 = vadd.f32 0.0, %v425
    %v427 = vpop.f32.mrf.mxu0
    %v428 = vadd.f32 0.0, %v427
    %429 = vmatprep.mubr.bf16.mxu0 0
    %430 = vmatmul.mubr.bf16.gmra.mxu0 %v211
    %v431 = vpop.f32.mrf.mxu0
    %v432 = vadd.f32 0.0, %v431
    %v433 = vpop.f32.mrf.mxu0
    %v434 = vadd.f32 0.0, %v433
    %v435 = vpop.f32.mrf.mxu0
    %v436 = vadd.f32 0.0, %v435
    %v437 = vpop.f32.mrf.mxu0
    %v438 = vadd.f32 0.0, %v437
    %439 = vmatprep.mubr.bf16.mxu0 0
    %440 = vmatmul.mubr.bf16.gmra.mxu0 %v212
    %v441 = vpop.f32.mrf.mxu0
    %v442 = vadd.f32 0.0, %v441
    %v443 = vpop.f32.mrf.mxu0
    %v444 = vadd.f32 0.0, %v443
    %v445 = vpop.f32.mrf.mxu0
    %v446 = vadd.f32 0.0, %v445
    %v447 = vpop.f32.mrf.mxu0
    %v448 = vadd.f32 0.0, %v447
    %449 = vmatprep.mubr.bf16.mxu0 0
    %450 = vmatmul.mubr.bf16.gmra.mxu0 %v213
    %v451 = vpop.f32.mrf.mxu0
    %v452 = vadd.f32 0.0, %v451
    %v453 = vpop.f32.mrf.mxu0
    %v454 = vadd.f32 0.0, %v453
    %v455 = vpop.f32.mrf.mxu0
    %v456 = vadd.f32 0.0, %v455
    %v457 = vpop.f32.mrf.mxu0
    %v458 = vadd.f32 0.0, %v457
    %459 = vmatprep.mubr.bf16.mxu0 0
    %460 = vmatmul.mubr.bf16.gmra.mxu0 %v214
    %v461 = vpop.f32.mrf.mxu0
    %v462 = vadd.f32 0.0, %v461
    %v463 = vpop.f32.mrf.mxu0
    %v464 = vadd.f32 0.0, %v463
    %v465 = vpop.f32.mrf.mxu0
    %v466 = vadd.f32 0.0, %v465
    %v467 = vpop.f32.mrf.mxu0
    %v468 = vadd.f32 0.0, %v467
    %469 = vmatprep.mubr.bf16.mxu0 0
    %470 = vmatmul.mubr.bf16.gmra.mxu0 %v215
    %v471 = vpop.f32.mrf.mxu0
    %v472 = vadd.f32 0.0, %v471
    %v473 = vpop.f32.mrf.mxu0
    %v474 = vadd.f32 0.0, %v473
    %v475 = vpop.f32.mrf.mxu0
    %v476 = vadd.f32 0.0, %v475
    %v477 = vpop.f32.mrf.mxu0
    %v478 = vadd.f32 0.0, %v477
    %479 = vmatprep.mubr.bf16.mxu0 0
    %480 = vmatmul.mubr.bf16.gmra.mxu0 %v216
    %v481 = vpop.f32.mrf.mxu0
    %v482 = vadd.f32 0.0, %v481
    %v483 = vpop.f32.mrf.mxu0
    %v484 = vadd.f32 0.0, %v483
    %v485 = vpop.f32.mrf.mxu0
    %v486 = vadd.f32 0.0, %v485
    %v487 = vpop.f32.mrf.mxu0
    %v488 = vadd.f32 0.0, %v487
    %489 = vdwg.mxu0
    %490 = vmatprep.subr.bf16.mxu0 0
    %491 = vmatpush1.bf16.msra.mxu0 %v352
    %492 = vmatprep.subr.bf16.mxu0 0
    %493 = vmatpush1.bf16.msra.mxu0 %v349
    %494 = vmatprep.subr.bf16.mxu0 0
    %495 = vmatpush1.bf16.msra.mxu0 %v346
    %496 = vmatprep.subr.bf16.mxu0 0
    %497 = vmatpush1.bf16.msra.mxu0 %v343
    %498 = vmatprep.subr.bf16.mxu0 0
    %499 = vmatpush1.bf16.msra.mxu0 %v340
    %500 = vmatprep.subr.bf16.mxu0 0
    %501 = vmatpush1.bf16.msra.mxu0 %v337
    %502 = vmatprep.subr.bf16.mxu0 0
    %503 = vmatpush1.bf16.msra.mxu0 %v334
    %504 = vmatprep.subr.bf16.mxu0 0
    %505 = vmatpush1.bf16.msra.mxu0 %v331
    %506 = vmatprep.subr.bf16.mxu0 0
    %507 = vmatpush2.bf16.msra.mxu0 0
    %508 = vmatprep.subr.bf16.mxu0 0
    %509 = vmatpush2.bf16.msra.mxu0 0
    %510 = vmatprep.subr.bf16.mxu0 0
    %511 = vmatpush2.bf16.msra.mxu0 0
    %512 = vmatprep.subr.bf16.mxu0 0
    %513 = vmatpush2.bf16.msra.mxu0 0
    %514 = vmatprep.subr.bf16.mxu0 0
    %515 = vmatpush2.bf16.msra.mxu0 0
    %516 = vmatprep.subr.bf16.mxu0 0
    %517 = vmatpush2.bf16.msra.mxu0 0
    %518 = vmatprep.subr.bf16.mxu0 0
    %519 = vmatpush2.bf16.msra.mxu0 0
    %520 = vmatprep.subr.bf16.mxu0 0
    %521 = vmatpush2.bf16.msra.mxu0 0
    %522 = vmatprep.mubr.bf16.mxu0 0
    %523 = vmatmul.mubr.bf16.gmra.mxu0 %v209
    %v524 = vpop.f32.mrf.mxu0
    %v525 = vadd.f32 0.0, %v524
    %v526 = vpop.f32.mrf.mxu0
    %v527 = vpop.f32.mrf.mxu0
    %v528 = vadd.f32 0.0, %v527
    %v529 = vpop.f32.mrf.mxu0
    %530 = vmatprep.mubr.bf16.mxu0 0
    %531 = vmatmul.mubr.bf16.gmra.mxu0 %v210
    %v532 = vpop.f32.mrf.mxu0
    %v533 = vadd.f32 0.0, %v532
    %v534 = vpop.f32.mrf.mxu0
    %v535 = vpop.f32.mrf.mxu0
    %v536 = vadd.f32 0.0, %v535
    %v537 = vpop.f32.mrf.mxu0
    %538 = vmatprep.mubr.bf16.mxu0 0
    %539 = vmatmul.mubr.bf16.gmra.mxu0 %v211
    %v540 = vpop.f32.mrf.mxu0
    %v541 = vadd.f32 0.0, %v540
    %v542 = vpop.f32.mrf.mxu0
    %v543 = vpop.f32.mrf.mxu0
    %v544 = vadd.f32 0.0, %v543
    %v545 = vpop.f32.mrf.mxu0
    %546 = vmatprep.mubr.bf16.mxu0 0
    %547 = vmatmul.mubr.bf16.gmra.mxu0 %v212
    %v548 = vpop.f32.mrf.mxu0
    %v549 = vadd.f32 0.0, %v548
    %v550 = vpop.f32.mrf.mxu0
    %v551 = vpop.f32.mrf.mxu0
    %v552 = vadd.f32 0.0, %v551
    %v553 = vpop.f32.mrf.mxu0
    %554 = vmatprep.mubr.bf16.mxu0 0
    %555 = vmatmul.mubr.bf16.gmra.mxu0 %v213
    %v556 = vpop.f32.mrf.mxu0
    %v557 = vadd.f32 0.0, %v556
    %v558 = vpop.f32.mrf.mxu0
    %v559 = vpop.f32.mrf.mxu0
    %v560 = vadd.f32 0.0, %v559
    %v561 = vpop.f32.mrf.mxu0
    %562 = vmatprep.mubr.bf16.mxu0 0
    %563 = vmatmul.mubr.bf16.gmra.mxu0 %v214
    %v564 = vpop.f32.mrf.mxu0
    %v565 = vadd.f32 0.0, %v564
    %v566 = vpop.f32.mrf.mxu0
    %v567 = vpop.f32.mrf.mxu0
    %v568 = vadd.f32 0.0, %v567
    %v569 = vpop.f32.mrf.mxu0
    %570 = vmatprep.mubr.bf16.mxu0 0
    %571 = vmatmul.mubr.bf16.gmra.mxu0 %v215
    %v572 = vpop.f32.mrf.mxu0
    %v573 = vadd.f32 0.0, %v572
    %v574 = vpop.f32.mrf.mxu0
    %v575 = vpop.f32.mrf.mxu0
    %v576 = vadd.f32 0.0, %v575
    %v577 = vpop.f32.mrf.mxu0
    %578 = vmatprep.mubr.bf16.mxu0 0
    %579 = vmatmul.mubr.bf16.gmra.mxu0 %v216
    %v580 = vpop.f32.mrf.mxu0
    %v581 = vadd.f32 0.0, %v580
    %v582 = vpop.f32.mrf.mxu0
    %v583 = vpop.f32.mrf.mxu0
    %v584 = vadd.f32 0.0, %v583
    %v585 = vpop.f32.mrf.mxu0
    %586 = vdwg.mxu0
    %v587 = vpack.c.bf16 %v416, %v412
    %v588 = vpack.c.bf16 %v426, %v422
    %v589 = vpack.c.bf16 %v436, %v432
    %v590 = vpack.c.bf16 %v446, %v442
    %v591 = vpack.c.bf16 %v456, %v452
    %v592 = vpack.c.bf16 %v466, %v462
    %v593 = vpack.c.bf16 %v476, %v472
    %v594 = vpack.c.bf16 %v486, %v482
    %v595 = vpack.c.bf16 %v418, %v414
    %v596 = vpack.c.bf16 %v428, %v424
    %v597 = vpack.c.bf16 %v438, %v434
    %v598 = vpack.c.bf16 %v448, %v444
    %v599 = vpack.c.bf16 %v458, %v454
    %v600 = vpack.c.bf16 %v468, %v464
    %v601 = vpack.c.bf16 %v478, %v474
    %v602 = vpack.c.bf16 %v488, %v484
    %v603 = vpack.c.bf16 %v528, %v525
    %v604 = vpack.c.bf16 %v536, %v533
    %v605 = vpack.c.bf16 %v544, %v541
    %v606 = vpack.c.bf16 %v552, %v549
    %v607 = vpack.c.bf16 %v560, %v557
    %v608 = vpack.c.bf16 %v568, %v565
    %v609 = vpack.c.bf16 %v576, %v573
    %v610 = vpack.c.bf16 %v584, %v581
    %611 = vmatprep.subr.bf16.mxu0 0
    %612 = vmatpush1.bf16.xpose.msra.mxu0 0
    %613 = vmatprep.subr.bf16.mxu0 0
    %614 = vmatpush1.bf16.xpose.msra.mxu0 0
    %615 = vmatprep.subr.bf16.mxu0 0
    %616 = vmatpush1.bf16.xpose.msra.mxu0 0
    %617 = vmatprep.subr.bf16.mxu0 0
    %618 = vmatpush1.bf16.xpose.msra.mxu0 0
    %619 = vmatprep.subr.bf16.mxu0 0
    %620 = vmatpush1.bf16.xpose.msra.mxu0 %v598
    %621 = vmatprep.subr.bf16.mxu0 0
    %622 = vmatpush1.bf16.xpose.msra.mxu0 %v597
    %623 = vmatprep.subr.bf16.mxu0 0
    %624 = vmatpush1.bf16.xpose.msra.mxu0 %v596
    %625 = vmatprep.subr.bf16.mxu0 0
    %626 = vmatpush1.bf16.xpose.msra.mxu0 %v595
    %627 = vmatprep.subr.bf16.mxu0 0
    %628 = vmatpush2.bf16.xpose.msra.mxu0 0
    %629 = vmatprep.subr.bf16.mxu0 0
    %630 = vmatpush2.bf16.xpose.msra.mxu0 0
    %631 = vmatprep.subr.bf16.mxu0 0
    %632 = vmatpush2.bf16.xpose.msra.mxu0 0
    %633 = vmatprep.subr.bf16.mxu0 0
    %634 = vmatpush2.bf16.xpose.msra.mxu0 0
    %635 = vmatprep.subr.bf16.mxu0 0
    %636 = vmatpush2.bf16.xpose.msra.mxu0 0
    %637 = vmatprep.subr.bf16.mxu0 0
    %638 = vmatpush2.bf16.xpose.msra.mxu0 0
    %639 = vmatprep.subr.bf16.mxu0 0
    %640 = vmatpush2.bf16.xpose.msra.mxu0 0
    %641 = vmatprep.subr.bf16.mxu0 0
    %642 = vmatpush2.bf16.xpose.msra.mxu0 0
    %643 = vmatprep.mubr.bf16.mxu0 0
    %644 = vmatmul.mubr.bf16.gmra.mxu0 %v587
    %v645 = vpop.f32.mrf.mxu0
    %v646 = vadd.f32 0.0, %v645
    %v647 = vpop.f32.mrf.mxu0
    %v648 = vpop.f32.mrf.mxu0
    %v649 = vadd.f32 0.0, %v648
    %v650 = vpop.f32.mrf.mxu0
    %651 = vmatprep.mubr.bf16.mxu0 0
    %652 = vmatmul.mubr.bf16.gmra.mxu0 %v588
    %v653 = vpop.f32.mrf.mxu0
    %v654 = vadd.f32 0.0, %v653
    %v655 = vpop.f32.mrf.mxu0
    %v656 = vpop.f32.mrf.mxu0
    %v657 = vadd.f32 0.0, %v656
    %v658 = vpop.f32.mrf.mxu0
    %659 = vmatprep.mubr.bf16.mxu0 0
    %660 = vmatmul.mubr.bf16.gmra.mxu0 %v589
    %v661 = vpop.f32.mrf.mxu0
    %v662 = vadd.f32 0.0, %v661
    %v663 = vpop.f32.mrf.mxu0
    %v664 = vpop.f32.mrf.mxu0
    %v665 = vadd.f32 0.0, %v664
    %v666 = vpop.f32.mrf.mxu0
    %667 = vmatprep.mubr.bf16.mxu0 0
    %668 = vmatmul.mubr.bf16.gmra.mxu0 %v590
    %v669 = vpop.f32.mrf.mxu0
    %v670 = vadd.f32 0.0, %v669
    %v671 = vpop.f32.mrf.mxu0
    %v672 = vpop.f32.mrf.mxu0
    %v673 = vadd.f32 0.0, %v672
    %v674 = vpop.f32.mrf.mxu0
    %675 = vdwg.mxu0
    %676 = vmatprep.subr.bf16.mxu0 0
    %677 = vmatpush1.bf16.xpose.msra.mxu0 0
    %678 = vmatprep.subr.bf16.mxu0 0
    %679 = vmatpush1.bf16.xpose.msra.mxu0 0
    %680 = vmatprep.subr.bf16.mxu0 0
    %681 = vmatpush1.bf16.xpose.msra.mxu0 0
    %682 = vmatprep.subr.bf16.mxu0 0
    %683 = vmatpush1.bf16.xpose.msra.mxu0 0
    %684 = vmatprep.subr.bf16.mxu0 0
    %685 = vmatpush1.bf16.xpose.msra.mxu0 %v602
    %686 = vmatprep.subr.bf16.mxu0 0
    %687 = vmatpush1.bf16.xpose.msra.mxu0 %v601
    %688 = vmatprep.subr.bf16.mxu0 0
    %689 = vmatpush1.bf16.xpose.msra.mxu0 %v600
    %690 = vmatprep.subr.bf16.mxu0 0
    %691 = vmatpush1.bf16.xpose.msra.mxu0 %v599
    %692 = vmatprep.subr.bf16.mxu0 0
    %693 = vmatpush2.bf16.xpose.msra.mxu0 0
    %694 = vmatprep.subr.bf16.mxu0 0
    %695 = vmatpush2.bf16.xpose.msra.mxu0 0
    %696 = vmatprep.subr.bf16.mxu0 0
    %697 = vmatpush2.bf16.xpose.msra.mxu0 0
    %698 = vmatprep.subr.bf16.mxu0 0
    %699 = vmatpush2.bf16.xpose.msra.mxu0 0
    %700 = vmatprep.subr.bf16.mxu0 0
    %701 = vmatpush2.bf16.xpose.msra.mxu0 0
    %702 = vmatprep.subr.bf16.mxu0 0
    %703 = vmatpush2.bf16.xpose.msra.mxu0 0
    %704 = vmatprep.subr.bf16.mxu0 0
    %705 = vmatpush2.bf16.xpose.msra.mxu0 0
    %706 = vmatprep.subr.bf16.mxu0 0
    %707 = vmatpush2.bf16.xpose.msra.mxu0 0
    %708 = vmatprep.mubr.bf16.mxu0 0
    %709 = vmatmul.mubr.bf16.gmra.mxu0 %v591
    %v710 = vpop.f32.mrf.mxu0
    %v711 = vadd.f32 0.0, %v710
    %v712 = vpop.f32.mrf.mxu0
    %v713 = vpop.f32.mrf.mxu0
    %v714 = vadd.f32 0.0, %v713
    %v715 = vpop.f32.mrf.mxu0
    %716 = vmatprep.mubr.bf16.mxu0 0
    %717 = vmatmul.mubr.bf16.gmra.mxu0 %v592
    %v718 = vpop.f32.mrf.mxu0
    %v719 = vadd.f32 0.0, %v718
    %v720 = vpop.f32.mrf.mxu0
    %v721 = vpop.f32.mrf.mxu0
    %v722 = vadd.f32 0.0, %v721
    %v723 = vpop.f32.mrf.mxu0
    %724 = vmatprep.mubr.bf16.mxu0 0
    %725 = vmatmul.mubr.bf16.gmra.mxu0 %v593
    %v726 = vpop.f32.mrf.mxu0
    %v727 = vadd.f32 0.0, %v726
    %v728 = vpop.f32.mrf.mxu0
    %v729 = vpop.f32.mrf.mxu0
    %v730 = vadd.f32 0.0, %v729
    %v731 = vpop.f32.mrf.mxu0
    %732 = vmatprep.mubr.bf16.mxu0 0
    %733 = vmatmul.mubr.bf16.gmra.mxu0 %v594
    %v734 = vpop.f32.mrf.mxu0
    %v735 = vadd.f32 0.0, %v734
    %v736 = vpop.f32.mrf.mxu0
    %v737 = vpop.f32.mrf.mxu0
    %v738 = vadd.f32 0.0, %v737
    %v739 = vpop.f32.mrf.mxu0
    %740 = vdwg.mxu0
    %vm741 = vcmask 523264
    %v742 = vsel %vm741, %v646, -inf
    %743 = vmax.xlane.f32.xlu0 %v742
    %v744 = vpop.xlane.xlu0 %743
    %v745 = vsel %vm741, %v649, -inf
    %746 = vmax.xlane.f32.xlu0 %v745
    %v747 = vpop.xlane.xlu0 %746
    %v748 = vsel %vm741, %v654, -inf
    %749 = vmax.xlane.f32.xlu0 %v748
    %v750 = vpop.xlane.xlu0 %749
    %v751 = vsel %vm741, %v657, -inf
    %752 = vmax.xlane.f32.xlu0 %v751
    %v753 = vpop.xlane.xlu0 %752
    %v754 = vsel %vm741, %v662, -inf
    %755 = vmax.xlane.f32.xlu0 %v754
    %v756 = vpop.xlane.xlu0 %755
    %v757 = vsel %vm741, %v665, -inf
    %758 = vmax.xlane.f32.xlu0 %v757
    %v759 = vpop.xlane.xlu0 %758
    %v760 = vsel %vm741, %v670, -inf
    %761 = vmax.xlane.f32.xlu0 %v760
    %v762 = vpop.xlane.xlu0 %761
    %v763 = vsel %vm741, %v673, -inf
    %764 = vmax.xlane.f32.xlu0 %v763
    %v765 = vpop.xlane.xlu0 %764
    %v766 = vsel %vm741, %v711, -inf
    %767 = vmax.xlane.f32.xlu0 %v766
    %v768 = vpop.xlane.xlu0 %767
    %v769 = vsel %vm741, %v714, -inf
    %770 = vmax.xlane.f32.xlu0 %v769
    %v771 = vpop.xlane.xlu0 %770
    %v772 = vsel %vm741, %v719, -inf
    %773 = vmax.xlane.f32.xlu0 %v772
    %v774 = vpop.xlane.xlu0 %773
    %v775 = vsel %vm741, %v722, -inf
    %776 = vmax.xlane.f32.xlu0 %v775
    %v777 = vpop.xlane.xlu0 %776
    %v778 = vsel %vm741, %v727, -inf
    %779 = vmax.xlane.f32.xlu0 %v778
    %v780 = vpop.xlane.xlu0 %779
    %v781 = vsel %vm741, %v730, -inf
    %782 = vmax.xlane.f32.xlu0 %v781
    %v783 = vpop.xlane.xlu0 %782
    %v784 = vsel %vm741, %v735, -inf
    %785 = vmax.xlane.f32.xlu0 %v784
    %v786 = vpop.xlane.xlu0 %785
    %v787 = vsel %vm741, %v738, -inf
    %788 = vmax.xlane.f32.xlu0 %v787
    %v789 = vpop.xlane.xlu0 %788
    %v790 = vsub.f32 %v646, %v744
    %v791 = vsub.f32 %v649, %v747
    %v792 = vsub.f32 %v654, %v750
    %v793 = vsub.f32 %v657, %v753
    %v794 = vsub.f32 %v662, %v756
    %v795 = vsub.f32 %v665, %v759
    %v796 = vsub.f32 %v670, %v762
    %v797 = vsub.f32 %v673, %v765
    %v798 = vsub.f32 %v711, %v768
    %v799 = vsub.f32 %v714, %v771
    %v800 = vsub.f32 %v719, %v774
    %v801 = vsub.f32 %v722, %v777
    %v802 = vsub.f32 %v727, %v780
    %v803 = vsub.f32 %v730, %v783
    %v804 = vsub.f32 %v735, %v786
    %v805 = vsub.f32 %v738, %v789
    %v806 = vmul.f32 %v790, 1.442695
    %v807 = vpow.pop %v806
    %v808 = vmul.f32 %v791, 1.442695
    %v809 = vpow.pop %v808
    %v810 = vmul.f32 %v792, 1.442695
    %v811 = vpow.pop %v810
    %v812 = vmul.f32 %v793, 1.442695
    %v813 = vpow.pop %v812
    %v814 = vmul.f32 %v794, 1.442695
    %v815 = vpow.pop %v814
    %v816 = vmul.f32 %v795, 1.442695
    %v817 = vpow.pop %v816
    %v818 = vmul.f32 %v796, 1.442695
    %v819 = vpow.pop %v818
    %v820 = vmul.f32 %v797, 1.442695
    %v821 = vpow.pop %v820
    %v822 = vmul.f32 %v798, 1.442695
    %v823 = vpow.pop %v822
    %v824 = vmul.f32 %v799, 1.442695
    %v825 = vpow.pop %v824
    %v826 = vmul.f32 %v800, 1.442695
    %v827 = vpow.pop %v826
    %v828 = vmul.f32 %v801, 1.442695
    %v829 = vpow.pop %v828
    %v830 = vmul.f32 %v802, 1.442695
    %v831 = vpow.pop %v830
    %v832 = vmul.f32 %v803, 1.442695
    %v833 = vpow.pop %v832
    %v834 = vmul.f32 %v804, 1.442695
    %v835 = vpow.pop %v834
    %v836 = vmul.f32 %v805, 1.442695
    %v837 = vpow.pop %v836
    %v838 = vsel %vm741, %v807, 0.0
    %839 = vadd.xlane.f32.xlu0 %v838
    %v840 = vpop.xlane.xlu0 %839
    %v841 = vsel %vm741, %v809, 0.0
    %842 = vadd.xlane.f32.xlu0 %v841
    %v843 = vpop.xlane.xlu0 %842
    %v844 = vsel %vm741, %v811, 0.0
    %845 = vadd.xlane.f32.xlu0 %v844
    %v846 = vpop.xlane.xlu0 %845
    %v847 = vsel %vm741, %v813, 0.0
    %848 = vadd.xlane.f32.xlu0 %v847
    %v849 = vpop.xlane.xlu0 %848
    %v850 = vsel %vm741, %v815, 0.0
    %851 = vadd.xlane.f32.xlu0 %v850
    %v852 = vpop.xlane.xlu0 %851
    %v853 = vsel %vm741, %v817, 0.0
    %854 = vadd.xlane.f32.xlu0 %v853
    %v855 = vpop.xlane.xlu0 %854
    %v856 = vsel %vm741, %v819, 0.0
    %857 = vadd.xlane.f32.xlu0 %v856
    %v858 = vpop.xlane.xlu0 %857
    %v859 = vsel %vm741, %v821, 0.0
    %860 = vadd.xlane.f32.xlu0 %v859
    %v861 = vpop.xlane.xlu0 %860
    %v862 = vsel %vm741, %v823, 0.0
    %863 = vadd.xlane.f32.xlu0 %v862
    %v864 = vpop.xlane.xlu0 %863
    %v865 = vsel %vm741, %v825, 0.0
    %866 = vadd.xlane.f32.xlu0 %v865
    %v867 = vpop.xlane.xlu0 %866
    %v868 = vsel %vm741, %v827, 0.0
    %869 = vadd.xlane.f32.xlu0 %v868
    %v870 = vpop.xlane.xlu0 %869
    %v871 = vsel %vm741, %v829, 0.0
    %872 = vadd.xlane.f32.xlu0 %v871
    %v873 = vpop.xlane.xlu0 %872
    %v874 = vsel %vm741, %v831, 0.0
    %875 = vadd.xlane.f32.xlu0 %v874
    %v876 = vpop.xlane.xlu0 %875
    %v877 = vsel %vm741, %v833, 0.0
    %878 = vadd.xlane.f32.xlu0 %v877
    %v879 = vpop.xlane.xlu0 %878
    %v880 = vsel %vm741, %v835, 0.0
    %881 = vadd.xlane.f32.xlu0 %v880
    %v882 = vpop.xlane.xlu0 %881
    %v883 = vsel %vm741, %v837, 0.0
    %884 = vadd.xlane.f32.xlu0 %v883
    %v885 = vpop.xlane.xlu0 %884
    %v886 = vrcp.pop %v840
    %v887 = vrcp.pop %v843
    %v888 = vrcp.pop %v846
    %v889 = vrcp.pop %v849
    %v890 = vrcp.pop %v852
    %v891 = vrcp.pop %v855
    %v892 = vrcp.pop %v858
    %v893 = vrcp.pop %v861
    %v894 = vrcp.pop %v864
    %v895 = vrcp.pop %v867
    %v896 = vrcp.pop %v870
    %v897 = vrcp.pop %v873
    %v898 = vrcp.pop %v876
    %v899 = vrcp.pop %v879
    %v900 = vrcp.pop %v882
    %v901 = vrcp.pop %v885
    %v902 = vmul.f32 %v807, %v886
    %v903 = vmul.f32 %v809, %v887
    %v904 = vmul.f32 %v811, %v888
    %v905 = vmul.f32 %v813, %v889
    %v906 = vmul.f32 %v815, %v890
    %v907 = vmul.f32 %v817, %v891
    %v908 = vmul.f32 %v819, %v892
    %v909 = vmul.f32 %v821, %v893
    %v910 = vmul.f32 %v823, %v894
    %v911 = vmul.f32 %v825, %v895
    %v912 = vmul.f32 %v827, %v896
    %v913 = vmul.f32 %v829, %v897
    %v914 = vmul.f32 %v831, %v898
    %v915 = vmul.f32 %v833, %v899
    %v916 = vmul.f32 %v835, %v900
    %v917 = vmul.f32 %v837, %v901
    %v918 = vpack.c.bf16 %v903, %v902
    %v919 = vpack.c.bf16 %v905, %v904
    %v920 = vpack.c.bf16 %v907, %v906
    %v921 = vpack.c.bf16 %v909, %v908
    %v922 = vpack.c.bf16 %v911, %v910
    %v923 = vpack.c.bf16 %v913, %v912
    %v924 = vpack.c.bf16 %v915, %v914
    %v925 = vpack.c.bf16 %v917, %v916
    %v927 = vsel %vm741, %v918, 0
    %v930 = vsel %vm741, %v919, 0
    %v933 = vsel %vm741, %v920, 0
    %v936 = vsel %vm741, %v921, 0
    %938 = vmatprep.subr.bf16.mxu0 0
    %939 = vmatpush1.bf16.msra.mxu0 0
    %940 = vmatprep.subr.bf16.mxu0 0
    %941 = vmatpush1.bf16.msra.mxu0 0
    %942 = vmatprep.subr.bf16.mxu0 0
    %943 = vmatpush1.bf16.msra.mxu0 0
    %944 = vmatprep.subr.bf16.mxu0 0
    %945 = vmatpush1.bf16.msra.mxu0 0
    %946 = vmatprep.subr.bf16.mxu0 0
    %947 = vmatpush1.bf16.msra.mxu0 %v606
    %948 = vmatprep.subr.bf16.mxu0 0
    %949 = vmatpush1.bf16.msra.mxu0 %v605
    %950 = vmatprep.subr.bf16.mxu0 0
    %951 = vmatpush1.bf16.msra.mxu0 %v604
    %952 = vmatprep.subr.bf16.mxu0 0
    %953 = vmatpush1.bf16.msra.mxu0 %v603
    %954 = vmatprep.subr.bf16.mxu0 0
    %955 = vmatpush2.bf16.msra.mxu0 0
    %956 = vmatprep.subr.bf16.mxu0 0
    %957 = vmatpush2.bf16.msra.mxu0 0
    %958 = vmatprep.subr.bf16.mxu0 0
    %959 = vmatpush2.bf16.msra.mxu0 0
    %960 = vmatprep.subr.bf16.mxu0 0
    %961 = vmatpush2.bf16.msra.mxu0 0
    %962 = vmatprep.subr.bf16.mxu0 0
    %963 = vmatpush2.bf16.msra.mxu0 0
    %964 = vmatprep.subr.bf16.mxu0 0
    %965 = vmatpush2.bf16.msra.mxu0 0
    %966 = vmatprep.subr.bf16.mxu0 0
    %967 = vmatpush2.bf16.msra.mxu0 0
    %968 = vmatprep.subr.bf16.mxu0 0
    %969 = vmatpush2.bf16.msra.mxu0 0
    %970 = vmatprep.mubr.bf16.mxu0 0
    %971 = vmatmul.mubr.bf16.gmra.mxu0 %v927
    %v972 = vpop.f32.mrf.mxu0
    %v973 = vadd.f32 0.0, %v972
    %v974 = vpop.f32.mrf.mxu0
    %v975 = vpop.f32.mrf.mxu0
    %v976 = vadd.f32 0.0, %v975
    %v977 = vpop.f32.mrf.mxu0
    %978 = vmatprep.mubr.bf16.mxu0 0
    %979 = vmatmul.mubr.bf16.gmra.mxu0 %v930
    %v980 = vpop.f32.mrf.mxu0
    %v981 = vadd.f32 0.0, %v980
    %v982 = vpop.f32.mrf.mxu0
    %v983 = vpop.f32.mrf.mxu0
    %v984 = vadd.f32 0.0, %v983
    %v985 = vpop.f32.mrf.mxu0
    %986 = vmatprep.mubr.bf16.mxu0 0
    %987 = vmatmul.mubr.bf16.gmra.mxu0 %v933
    %v988 = vpop.f32.mrf.mxu0
    %v989 = vadd.f32 0.0, %v988
    %v990 = vpop.f32.mrf.mxu0
    %v991 = vpop.f32.mrf.mxu0
    %v992 = vadd.f32 0.0, %v991
    %v993 = vpop.f32.mrf.mxu0
    %994 = vmatprep.mubr.bf16.mxu0 0
    %995 = vmatmul.mubr.bf16.gmra.mxu0 %v936
    %v996 = vpop.f32.mrf.mxu0
    %v997 = vadd.f32 0.0, %v996
    %v998 = vpop.f32.mrf.mxu0
    %v999 = vpop.f32.mrf.mxu0
    %v1000 = vadd.f32 0.0, %v999
    %v1001 = vpop.f32.mrf.mxu0
    %1002 = vdwg.mxu0
    %v1004 = vsel %vm741, %v922, 0
    %v1007 = vsel %vm741, %v923, 0
    %v1010 = vsel %vm741, %v924, 0
    %v1013 = vsel %vm741, %v925, 0
    %1015 = vmatprep.subr.bf16.mxu0 0
    %1016 = vmatpush1.bf16.msra.mxu0 0
    %1017 = vmatprep.subr.bf16.mxu0 0
    %1018 = vmatpush1.bf16.msra.mxu0 0
    %1019 = vmatprep.subr.bf16.mxu0 0
    %1020 = vmatpush1.bf16.msra.mxu0 0
    %1021 = vmatprep.subr.bf16.mxu0 0
    %1022 = vmatpush1.bf16.msra.mxu0 0
    %1023 = vmatprep.subr.bf16.mxu0 0
    %1024 = vmatpush1.bf16.msra.mxu0 %v610
    %1025 = vmatprep.subr.bf16.mxu0 0
    %1026 = vmatpush1.bf16.msra.mxu0 %v609
    %1027 = vmatprep.subr.bf16.mxu0 0
    %1028 = vmatpush1.bf16.msra.mxu0 %v608
    %1029 = vmatprep.subr.bf16.mxu0 0
    %1030 = vmatpush1.bf16.msra.mxu0 %v607
    %1031 = vmatprep.subr.bf16.mxu0 0
    %1032 = vmatpush2.bf16.msra.mxu0 0
    %1033 = vmatprep.subr.bf16.mxu0 0
    %1034 = vmatpush2.bf16.msra.mxu0 0
    %1035 = vmatprep.subr.bf16.mxu0 0
    %1036 = vmatpush2.bf16.msra.mxu0 0
    %1037 = vmatprep.subr.bf16.mxu0 0
    %1038 = vmatpush2.bf16.msra.mxu0 0
    %1039 = vmatprep.subr.bf16.mxu0 0
    %1040 = vmatpush2.bf16.msra.mxu0 0
    %1041 = vmatprep.subr.bf16.mxu0 0
    %1042 = vmatpush2.bf16.msra.mxu0 0
    %1043 = vmatprep.subr.bf16.mxu0 0
    %1044 = vmatpush2.bf16.msra.mxu0 0
    %1045 = vmatprep.subr.bf16.mxu0 0
    %1046 = vmatpush2.bf16.msra.mxu0 0
    %1047 = vmatprep.mubr.bf16.mxu0 0
    %1048 = vmatmul.mubr.bf16.gmra.mxu0 %v1004
    %v1049 = vpop.f32.mrf.mxu0
    %v1050 = vadd.f32 0.0, %v1049
    %v1051 = vpop.f32.mrf.mxu0
    %v1052 = vpop.f32.mrf.mxu0
    %v1053 = vadd.f32 0.0, %v1052
    %v1054 = vpop.f32.mrf.mxu0
    %1055 = vmatprep.mubr.bf16.mxu0 0
    %1056 = vmatmul.mubr.bf16.gmra.mxu0 %v1007
    %v1057 = vpop.f32.mrf.mxu0
    %v1058 = vadd.f32 0.0, %v1057
    %v1059 = vpop.f32.mrf.mxu0
    %v1060 = vpop.f32.mrf.mxu0
    %v1061 = vadd.f32 0.0, %v1060
    %v1062 = vpop.f32.mrf.mxu0
    %1063 = vmatprep.mubr.bf16.mxu0 0
    %1064 = vmatmul.mubr.bf16.gmra.mxu0 %v1010
    %v1065 = vpop.f32.mrf.mxu0
    %v1066 = vadd.f32 0.0, %v1065
    %v1067 = vpop.f32.mrf.mxu0
    %v1068 = vpop.f32.mrf.mxu0
    %v1069 = vadd.f32 0.0, %v1068
    %v1070 = vpop.f32.mrf.mxu0
    %1071 = vmatprep.mubr.bf16.mxu0 0
    %1072 = vmatmul.mubr.bf16.gmra.mxu0 %v1013
    %v1073 = vpop.f32.mrf.mxu0
    %v1074 = vadd.f32 0.0, %v1073
    %v1075 = vpop.f32.mrf.mxu0
    %v1076 = vpop.f32.mrf.mxu0
    %v1077 = vadd.f32 0.0, %v1076
    %v1078 = vpop.f32.mrf.mxu0
    %1079 = vdwg.mxu0
    %v1080 = vpack.c.bf16 %v976, %v973
    %v1081 = vpack.c.bf16 %v984, %v981
    %v1082 = vpack.c.bf16 %v992, %v989
    %v1083 = vpack.c.bf16 %v1000, %v997
    %v1084 = vpack.c.bf16 %v1053, %v1050
    %v1085 = vpack.c.bf16 %v1061, %v1058
    %v1086 = vpack.c.bf16 %v1069, %v1066
    %v1087 = vpack.c.bf16 %v1077, %v1074
    %v1088 = vld [vmem:[#allocation8] sm:$0xf]
    %v1089 = vld [vmem:[#allocation8 + $0x4] sm:$0xf]
    %v1090 = vld [vmem:[#allocation8 + $0x8] sm:$0xf]
    %v1091 = vld [vmem:[#allocation8 + $0xc] sm:$0xf]
    %v1092 = vld [vmem:[#allocation8 + $0x10] sm:$0xf]
    %v1093 = vld [vmem:[#allocation8 + $0x14] sm:$0xf]
    %v1094 = vld [vmem:[#allocation8 + $0x18] sm:$0xf]
    %v1095 = vld [vmem:[#allocation8 + $0x1c] sm:$0xf]
    %v1096 = vld [vmem:[#allocation8 + $0x20] sm:$0xf]
    %v1097 = vld [vmem:[#allocation8 + $0x24] sm:$0xf]
    %v1098 = vld [vmem:[#allocation8 + $0x28] sm:$0xf]
    %v1099 = vld [vmem:[#allocation8 + $0x2c] sm:$0xf]
    %v1100 = vld [vmem:[#allocation8 + $0x30] sm:$0xf]
    %v1101 = vld [vmem:[#allocation8 + $0x34] sm:$0xf]
    %v1102 = vld [vmem:[#allocation8 + $0x38] sm:$0xf]
    %v1103 = vld [vmem:[#allocation8 + $0x3c] sm:$0xf]
    %v1120 = vunpack.c.l.b16 %v1088
    %v1121 = vunpack.c.l.b16 %v1089
    %v1122 = vunpack.c.l.b16 %v1090
    %v1123 = vunpack.c.l.b16 %v1091
    %v1124 = vunpack.c.l.b16 %v1092
    %v1125 = vunpack.c.l.b16 %v1093
    %v1126 = vunpack.c.l.b16 %v1094
    %v1127 = vunpack.c.l.b16 %v1095
    %v1128 = vunpack.c.l.b16 %v1096
    %v1129 = vunpack.c.l.b16 %v1097
    %v1130 = vunpack.c.l.b16 %v1098
    %v1131 = vunpack.c.l.b16 %v1099
    %v1132 = vunpack.c.l.b16 %v1100
    %v1133 = vunpack.c.l.b16 %v1101
    %v1134 = vunpack.c.l.b16 %v1102
    %v1135 = vunpack.c.l.b16 %v1103
    %v1136 = vpack.c.b16 %v1121, %v1120
    %v1137 = vpack.c.b16 %v1123, %v1122
    %v1138 = vpack.c.b16 %v1125, %v1124
    %v1139 = vpack.c.b16 %v1127, %v1126
    %v1140 = vpack.c.b16 %v1129, %v1128
    %v1141 = vpack.c.b16 %v1131, %v1130
    %v1142 = vpack.c.b16 %v1133, %v1132
    %v1143 = vpack.c.b16 %v1135, %v1134
    %1152 = vmatprep.subr.bf16.mxu0 0
    %1153 = vmatpush1.bf16.msra.mxu0 %v1143
    %1154 = vmatprep.subr.bf16.mxu0 0
    %1155 = vmatpush1.bf16.msra.mxu0 %v1142
    %1156 = vmatprep.subr.bf16.mxu0 0
    %1157 = vmatpush1.bf16.msra.mxu0 %v1141
    %1158 = vmatprep.subr.bf16.mxu0 0
    %1159 = vmatpush1.bf16.msra.mxu0 %v1140
    %1160 = vmatprep.subr.bf16.mxu0 0
    %1161 = vmatpush1.bf16.msra.mxu0 %v1139
    %1162 = vmatprep.subr.bf16.mxu0 0
    %1163 = vmatpush1.bf16.msra.mxu0 %v1138
    %1164 = vmatprep.subr.bf16.mxu0 0
    %1165 = vmatpush1.bf16.msra.mxu0 %v1137
    %1166 = vmatprep.subr.bf16.mxu0 0
    %1167 = vmatpush1.bf16.msra.mxu0 %v1136
    %1168 = vmatprep.subr.bf16.mxu0 0
    %1169 = vmatpush2.bf16.msra.mxu0 0
    %1170 = vmatprep.subr.bf16.mxu0 0
    %1171 = vmatpush2.bf16.msra.mxu0 0
    %1172 = vmatprep.subr.bf16.mxu0 0
    %1173 = vmatpush2.bf16.msra.mxu0 0
    %1174 = vmatprep.subr.bf16.mxu0 0
    %1175 = vmatpush2.bf16.msra.mxu0 0
    %1176 = vmatprep.subr.bf16.mxu0 0
    %1177 = vmatpush2.bf16.msra.mxu0 0
    %1178 = vmatprep.subr.bf16.mxu0 0
    %1179 = vmatpush2.bf16.msra.mxu0 0
    %1180 = vmatprep.subr.bf16.mxu0 0
    %1181 = vmatpush2.bf16.msra.mxu0 0
    %1182 = vmatprep.subr.bf16.mxu0 0
    %1183 = vmatpush2.bf16.msra.mxu0 0
    %1184 = vmatprep.mubr.bf16.mxu0 0
    %1185 = vmatmul.mubr.bf16.gmra.mxu0 %v1080
    %v1186 = vpop.f32.mrf.mxu0
    %v1187 = vadd.f32 0.0, %v1186
    %v1188 = vpop.f32.mrf.mxu0
    %v1189 = vpop.f32.mrf.mxu0
    %v1190 = vadd.f32 0.0, %v1189
    %v1191 = vpop.f32.mrf.mxu0
    %1192 = vmatprep.mubr.bf16.mxu0 0
    %1193 = vmatmul.mubr.bf16.gmra.mxu0 %v1081
    %v1194 = vpop.f32.mrf.mxu0
    %v1195 = vadd.f32 0.0, %v1194
    %v1196 = vpop.f32.mrf.mxu0
    %v1197 = vpop.f32.mrf.mxu0
    %v1198 = vadd.f32 0.0, %v1197
    %v1199 = vpop.f32.mrf.mxu0
    %1200 = vmatprep.mubr.bf16.mxu0 0
    %1201 = vmatmul.mubr.bf16.gmra.mxu0 %v1082
    %v1202 = vpop.f32.mrf.mxu0
    %v1203 = vadd.f32 0.0, %v1202
    %v1204 = vpop.f32.mrf.mxu0
    %v1205 = vpop.f32.mrf.mxu0
    %v1206 = vadd.f32 0.0, %v1205
    %v1207 = vpop.f32.mrf.mxu0
    %1208 = vmatprep.mubr.bf16.mxu0 0
    %1209 = vmatmul.mubr.bf16.gmra.mxu0 %v1083
    %v1210 = vpop.f32.mrf.mxu0
    %v1211 = vadd.f32 0.0, %v1210
    %v1212 = vpop.f32.mrf.mxu0
    %v1213 = vpop.f32.mrf.mxu0
    %v1214 = vadd.f32 0.0, %v1213
    %v1215 = vpop.f32.mrf.mxu0
    %1216 = vmatprep.mubr.bf16.mxu0 0
    %1217 = vmatmul.mubr.bf16.gmra.mxu0 %v1084
    %v1218 = vpop.f32.mrf.mxu0
    %v1219 = vadd.f32 0.0, %v1218
    %v1220 = vpop.f32.mrf.mxu0
    %v1221 = vpop.f32.mrf.mxu0
    %v1222 = vadd.f32 0.0, %v1221
    %v1223 = vpop.f32.mrf.mxu0
    %1224 = vmatprep.mubr.bf16.mxu0 0
    %1225 = vmatmul.mubr.bf16.gmra.mxu0 %v1085
    %v1226 = vpop.f32.mrf.mxu0
    %v1227 = vadd.f32 0.0, %v1226
    %v1228 = vpop.f32.mrf.mxu0
    %v1229 = vpop.f32.mrf.mxu0
    %v1230 = vadd.f32 0.0, %v1229
    %v1231 = vpop.f32.mrf.mxu0
    %1232 = vmatprep.mubr.bf16.mxu0 0
    %1233 = vmatmul.mubr.bf16.gmra.mxu0 %v1086
    %v1234 = vpop.f32.mrf.mxu0
    %v1235 = vadd.f32 0.0, %v1234
    %v1236 = vpop.f32.mrf.mxu0
    %v1237 = vpop.f32.mrf.mxu0
    %v1238 = vadd.f32 0.0, %v1237
    %v1239 = vpop.f32.mrf.mxu0
    %1240 = vmatprep.mubr.bf16.mxu0 0
    %1241 = vmatmul.mubr.bf16.gmra.mxu0 %v1087
    %v1242 = vpop.f32.mrf.mxu0
    %v1243 = vadd.f32 0.0, %v1242
    %v1244 = vpop.f32.mrf.mxu0
    %v1245 = vpop.f32.mrf.mxu0
    %v1246 = vadd.f32 0.0, %v1245
    %v1247 = vpop.f32.mrf.mxu0
    %1248 = vdwg.mxu0
    %1249 = vadd.xlane.f32.xlu0 %v1187
    %v1250 = vpop.xlane.xlu0 %1249
    %1251 = vadd.xlane.f32.xlu0 %v1190
    %v1252 = vpop.xlane.xlu0 %1251
    %1253 = vadd.xlane.f32.xlu0 %v1195
    %v1254 = vpop.xlane.xlu0 %1253
    %1255 = vadd.xlane.f32.xlu0 %v1198
    %v1256 = vpop.xlane.xlu0 %1255
    %1257 = vadd.xlane.f32.xlu0 %v1203
    %v1258 = vpop.xlane.xlu0 %1257
    %1259 = vadd.xlane.f32.xlu0 %v1206
    %v1260 = vpop.xlane.xlu0 %1259
    %1261 = vadd.xlane.f32.xlu0 %v1211
    %v1262 = vpop.xlane.xlu0 %1261
    %1263 = vadd.xlane.f32.xlu0 %v1214
    %v1264 = vpop.xlane.xlu0 %1263
    %1265 = vadd.xlane.f32.xlu0 %v1219
    %v1266 = vpop.xlane.xlu0 %1265
    %1267 = vadd.xlane.f32.xlu0 %v1222
    %v1268 = vpop.xlane.xlu0 %1267
    %1269 = vadd.xlane.f32.xlu0 %v1227
    %v1270 = vpop.xlane.xlu0 %1269
    %1271 = vadd.xlane.f32.xlu0 %v1230
    %v1272 = vpop.xlane.xlu0 %1271
    %1273 = vadd.xlane.f32.xlu0 %v1235
    %v1274 = vpop.xlane.xlu0 %1273
    %1275 = vadd.xlane.f32.xlu0 %v1238
    %v1276 = vpop.xlane.xlu0 %1275
    %1277 = vadd.xlane.f32.xlu0 %v1243
    %v1278 = vpop.xlane.xlu0 %1277
    %1279 = vadd.xlane.f32.xlu0 %v1246
    %v1280 = vpop.xlane.xlu0 %1279
    %v1281 = vrcp.pop 128.0
    %v1282 = vmul.f32 %v1250, %v1281
    %v1283 = vmul.f32 %v1252, %v1281
    %v1284 = vmul.f32 %v1254, %v1281
    %v1285 = vmul.f32 %v1256, %v1281
    %v1286 = vmul.f32 %v1258, %v1281
    %v1287 = vmul.f32 %v1260, %v1281
    %v1288 = vmul.f32 %v1262, %v1281
    %v1289 = vmul.f32 %v1264, %v1281
    %v1290 = vmul.f32 %v1266, %v1281
    %v1291 = vmul.f32 %v1268, %v1281
    %v1292 = vmul.f32 %v1270, %v1281
    %v1293 = vmul.f32 %v1272, %v1281
    %v1294 = vmul.f32 %v1274, %v1281
    %v1295 = vmul.f32 %v1276, %v1281
    %v1296 = vmul.f32 %v1278, %v1281
    %v1297 = vmul.f32 %v1280, %v1281
    %v1298 = vsub.f32 %v1187, %v1282
    %v1299 = vsub.f32 %v1190, %v1283
    %v1300 = vsub.f32 %v1195, %v1284
    %v1301 = vsub.f32 %v1198, %v1285
    %v1302 = vsub.f32 %v1203, %v1286
    %v1303 = vsub.f32 %v1206, %v1287
    %v1304 = vsub.f32 %v1211, %v1288
    %v1305 = vsub.f32 %v1214, %v1289
    %v1306 = vsub.f32 %v1219, %v1290
    %v1307 = vsub.f32 %v1222, %v1291
    %v1308 = vsub.f32 %v1227, %v1292
    %v1309 = vsub.f32 %v1230, %v1293
    %v1310 = vsub.f32 %v1235, %v1294
    %v1311 = vsub.f32 %v1238, %v1295
    %v1312 = vsub.f32 %v1243, %v1296
    %v1313 = vsub.f32 %v1246, %v1297
    %v1314 = vmul.f32 %v1298, %v1298
    %v1315 = vmul.f32 %v1299, %v1299
    %v1316 = vmul.f32 %v1300, %v1300
    %v1317 = vmul.f32 %v1301, %v1301
    %v1318 = vmul.f32 %v1302, %v1302
    %v1319 = vmul.f32 %v1303, %v1303
    %v1320 = vmul.f32 %v1304, %v1304
    %v1321 = vmul.f32 %v1305, %v1305
    %v1322 = vmul.f32 %v1306, %v1306
    %v1323 = vmul.f32 %v1307, %v1307
    %v1324 = vmul.f32 %v1308, %v1308
    %v1325 = vmul.f32 %v1309, %v1309
    %v1326 = vmul.f32 %v1310, %v1310
    %v1327 = vmul.f32 %v1311, %v1311
    %v1328 = vmul.f32 %v1312, %v1312
    %v1329 = vmul.f32 %v1313, %v1313
    %1330 = vadd.xlane.f32.xlu0 %v1314
    %v1331 = vpop.xlane.xlu0 %1330
    %1332 = vadd.xlane.f32.xlu0 %v1315
    %v1333 = vpop.xlane.xlu0 %1332
    %1334 = vadd.xlane.f32.xlu0 %v1316
    %v1335 = vpop.xlane.xlu0 %1334
    %1336 = vadd.xlane.f32.xlu0 %v1317
    %v1337 = vpop.xlane.xlu0 %1336
    %1338 = vadd.xlane.f32.xlu0 %v1318
    %v1339 = vpop.xlane.xlu0 %1338
    %1340 = vadd.xlane.f32.xlu0 %v1319
    %v1341 = vpop.xlane.xlu0 %1340
    %1342 = vadd.xlane.f32.xlu0 %v1320
    %v1343 = vpop.xlane.xlu0 %1342
    %1344 = vadd.xlane.f32.xlu0 %v1321
    %v1345 = vpop.xlane.xlu0 %1344
    %1346 = vadd.xlane.f32.xlu0 %v1322
    %v1347 = vpop.xlane.xlu0 %1346
    %1348 = vadd.xlane.f32.xlu0 %v1323
    %v1349 = vpop.xlane.xlu0 %1348
    %1350 = vadd.xlane.f32.xlu0 %v1324
    %v1351 = vpop.xlane.xlu0 %1350
    %1352 = vadd.xlane.f32.xlu0 %v1325
    %v1353 = vpop.xlane.xlu0 %1352
    %1354 = vadd.xlane.f32.xlu0 %v1326
    %v1355 = vpop.xlane.xlu0 %1354
    %1356 = vadd.xlane.f32.xlu0 %v1327
    %v1357 = vpop.xlane.xlu0 %1356
    %1358 = vadd.xlane.f32.xlu0 %v1328
    %v1359 = vpop.xlane.xlu0 %1358
    %1360 = vadd.xlane.f32.xlu0 %v1329
    %v1361 = vpop.xlane.xlu0 %1360
    %v1362 = vmul.f32 %v1331, %v1281
    %v1363 = vmul.f32 %v1333, %v1281
    %v1364 = vmul.f32 %v1335, %v1281
    %v1365 = vmul.f32 %v1337, %v1281
    %v1366 = vmul.f32 %v1339, %v1281
    %v1367 = vmul.f32 %v1341, %v1281
    %v1368 = vmul.f32 %v1343, %v1281
    %v1369 = vmul.f32 %v1345, %v1281
    %v1370 = vmul.f32 %v1347, %v1281
    %v1371 = vmul.f32 %v1349, %v1281
    %v1372 = vmul.f32 %v1351, %v1281
    %v1373 = vmul.f32 %v1353, %v1281
    %v1374 = vmul.f32 %v1355, %v1281
    %v1375 = vmul.f32 %v1357, %v1281
    %v1376 = vmul.f32 %v1359, %v1281
    %v1377 = vmul.f32 %v1361, %v1281
    %v1378 = vadd.f32 %v1362, 1e-05
    %v1379 = vadd.f32 %v1363, 1e-05
    %v1380 = vadd.f32 %v1364, 1e-05
    %v1381 = vadd.f32 %v1365, 1e-05
    %v1382 = vadd.f32 %v1366, 1e-05
    %v1383 = vadd.f32 %v1367, 1e-05
    %v1384 = vadd.f32 %v1368, 1e-05
    %v1385 = vadd.f32 %v1369, 1e-05
    %v1386 = vadd.f32 %v1370, 1e-05
    %v1387 = vadd.f32 %v1371, 1e-05
    %v1388 = vadd.f32 %v1372, 1e-05
    %v1389 = vadd.f32 %v1373, 1e-05
    %v1390 = vadd.f32 %v1374, 1e-05
    %v1391 = vadd.f32 %v1375, 1e-05
    %v1392 = vadd.f32 %v1376, 1e-05
    %v1393 = vadd.f32 %v1377, 1e-05
    %v1394 = vrsqrt.pop %v1378
    %v1395 = vrsqrt.pop %v1379
    %v1396 = vrsqrt.pop %v1380
    %v1397 = vrsqrt.pop %v1381
    %v1398 = vrsqrt.pop %v1382
    %v1399 = vrsqrt.pop %v1383
    %v1400 = vrsqrt.pop %v1384
    %v1401 = vrsqrt.pop %v1385
    %v1402 = vrsqrt.pop %v1386
    %v1403 = vrsqrt.pop %v1387
    %v1404 = vrsqrt.pop %v1388
    %v1405 = vrsqrt.pop %v1389
    %v1406 = vrsqrt.pop %v1390
    %v1407 = vrsqrt.pop %v1391
    %v1408 = vrsqrt.pop %v1392
    %v1409 = vrsqrt.pop %v1393
    %v1410 = vmul.f32 %v1298, %v1394
    %v1411 = vmul.f32 %v1299, %v1395
    %v1412 = vmul.f32 %v1300, %v1396
    %v1413 = vmul.f32 %v1301, %v1397
    %v1414 = vmul.f32 %v1302, %v1398
    %v1415 = vmul.f32 %v1303, %v1399
    %v1416 = vmul.f32 %v1304, %v1400
    %v1417 = vmul.f32 %v1305, %v1401
    %v1418 = vmul.f32 %v1306, %v1402
    %v1419 = vmul.f32 %v1307, %v1403
    %v1420 = vmul.f32 %v1308, %v1404
    %v1421 = vmul.f32 %v1309, %v1405
    %v1422 = vmul.f32 %v1310, %v1406
    %v1423 = vmul.f32 %v1311, %v1407
    %v1424 = vmul.f32 %v1312, %v1408
    %v1425 = vmul.f32 %v1313, %v1409
    %v1426 = vlaneseq
    %v1427 = vshrl.u32 %v1426, 7
    %v1428 = vsub.s32 0, %v1427
    %v1429 = vrot.slane %v176, %v1428
    %v1430 = vmul.f32 %v1410, %v1429
    %v1431 = vmul.f32 %v1411, %v1429
    %v1432 = vmul.f32 %v1412, %v1429
    %v1433 = vmul.f32 %v1413, %v1429
    %v1434 = vmul.f32 %v1414, %v1429
    %v1435 = vmul.f32 %v1415, %v1429
    %v1436 = vmul.f32 %v1416, %v1429
    %v1437 = vmul.f32 %v1417, %v1429
    %v1438 = vmul.f32 %v1418, %v1429
    %v1439 = vmul.f32 %v1419, %v1429
    %v1440 = vmul.f32 %v1420, %v1429
    %v1441 = vmul.f32 %v1421, %v1429
    %v1442 = vmul.f32 %v1422, %v1429
    %v1443 = vmul.f32 %v1423, %v1429
    %v1444 = vmul.f32 %v1424, %v1429
    %v1445 = vmul.f32 %v1425, %v1429
    %v1446 = vlaneseq
    %v1447 = vshrl.u32 %v1446, 7
    %v1448 = vsub.s32 1, %v1447
    %v1449 = vrot.slane %v176, %v1448
    %v1450 = vadd.f32 %v1430, %v1449
    %v1451 = vadd.f32 %v1431, %v1449
    %v1452 = vadd.f32 %v1432, %v1449
    %v1453 = vadd.f32 %v1433, %v1449
    %v1454 = vadd.f32 %v1434, %v1449
    %v1455 = vadd.f32 %v1435, %v1449
    %v1456 = vadd.f32 %v1436, %v1449
    %v1457 = vadd.f32 %v1437, %v1449
    %v1458 = vadd.f32 %v1438, %v1449
    %v1459 = vadd.f32 %v1439, %v1449
    %v1460 = vadd.f32 %v1440, %v1449
    %v1461 = vadd.f32 %v1441, %v1449
    %v1462 = vadd.f32 %v1442, %v1449
    %v1463 = vadd.f32 %v1443, %v1449
    %v1464 = vadd.f32 %v1444, %v1449
    %v1465 = vadd.f32 %v1445, %v1449
    %v1466 = vadd.f32 %v177, %v1450
    %v1467 = vadd.f32 %v178, %v1451
    %v1468 = vadd.f32 %v179, %v1452
    %v1469 = vadd.f32 %v180, %v1453
    %v1470 = vadd.f32 %v181, %v1454
    %v1471 = vadd.f32 %v182, %v1455
    %v1472 = vadd.f32 %v183, %v1456
    %v1473 = vadd.f32 %v184, %v1457
    %v1474 = vadd.f32 %v185, %v1458
    %v1475 = vadd.f32 %v186, %v1459
    %v1476 = vadd.f32 %v187, %v1460
    %v1477 = vadd.f32 %v188, %v1461
    %v1478 = vadd.f32 %v189, %v1462
    %v1479 = vadd.f32 %v190, %v1463
    %v1480 = vadd.f32 %v191, %v1464
    %v1481 = vadd.f32 %v192, %v1465
    %v1482 = vpack.c.bf16 %v1467, %v1466
    %v1483 = vpack.c.bf16 %v1469, %v1468
    %v1484 = vpack.c.bf16 %v1471, %v1470
    %v1485 = vpack.c.bf16 %v1473, %v1472
    %v1486 = vpack.c.bf16 %v1475, %v1474
    %v1487 = vpack.c.bf16 %v1477, %v1476
    %v1488 = vpack.c.bf16 %v1479, %v1478
    %v1489 = vpack.c.bf16 %v1481, %v1480
    %v1490 = vld [vmem:[#allocation10] sm:$0xf]
    %v1491 = vld [vmem:[#allocation10 + $0x4] sm:$0xf]
    %v1492 = vld [vmem:[#allocation10 + $0x8] sm:$0xf]
    %v1493 = vld [vmem:[#allocation10 + $0xc] sm:$0xf]
    %v1494 = vld [vmem:[#allocation10 + $0x10] sm:$0xf]
    %v1495 = vld [vmem:[#allocation10 + $0x14] sm:$0xf]
    %v1496 = vld [vmem:[#allocation10 + $0x18] sm:$0xf]
    %v1497 = vld [vmem:[#allocation10 + $0x1c] sm:$0xf]
    %v1498 = vld [vmem:[#allocation10 + $0x20] sm:$0xf]
    %v1499 = vld [vmem:[#allocation10 + $0x24] sm:$0xf]
    %v1500 = vld [vmem:[#allocation10 + $0x28] sm:$0xf]
    %v1501 = vld [vmem:[#allocation10 + $0x2c] sm:$0xf]
    %v1502 = vld [vmem:[#allocation10 + $0x30] sm:$0xf]
    %v1503 = vld [vmem:[#allocation10 + $0x34] sm:$0xf]
    %v1504 = vld [vmem:[#allocation10 + $0x38] sm:$0xf]
    %v1505 = vld [vmem:[#allocation10 + $0x3c] sm:$0xf]
    %v1522 = vunpack.c.l.b16 %v1490
    %v1523 = vunpack.c.l.b16 %v1491
    %v1524 = vunpack.c.l.b16 %v1492
    %v1525 = vunpack.c.l.b16 %v1493
    %v1526 = vunpack.c.l.b16 %v1494
    %v1527 = vunpack.c.l.b16 %v1495
    %v1528 = vunpack.c.l.b16 %v1496
    %v1529 = vunpack.c.l.b16 %v1497
    %v1530 = vunpack.c.l.b16 %v1498
    %v1531 = vunpack.c.l.b16 %v1499
    %v1532 = vunpack.c.l.b16 %v1500
    %v1533 = vunpack.c.l.b16 %v1501
    %v1534 = vunpack.c.l.b16 %v1502
    %v1535 = vunpack.c.l.b16 %v1503
    %v1536 = vunpack.c.l.b16 %v1504
    %v1537 = vunpack.c.l.b16 %v1505
    %v1538 = vpack.c.b16 %v1523, %v1522
    %v1539 = vpack.c.b16 %v1525, %v1524
    %v1540 = vpack.c.b16 %v1527, %v1526
    %v1541 = vpack.c.b16 %v1529, %v1528
    %v1542 = vpack.c.b16 %v1531, %v1530
    %v1543 = vpack.c.b16 %v1533, %v1532
    %v1544 = vpack.c.b16 %v1535, %v1534
    %v1545 = vpack.c.b16 %v1537, %v1536
    %1554 = vmatprep.subr.bf16.mxu0 0
    %1555 = vmatpush1.bf16.msra.mxu0 %v1545
    %1556 = vmatprep.subr.bf16.mxu0 0
    %1557 = vmatpush1.bf16.msra.mxu0 %v1544
    %1558 = vmatprep.subr.bf16.mxu0 0
    %1559 = vmatpush1.bf16.msra.mxu0 %v1543
    %1560 = vmatprep.subr.bf16.mxu0 0
    %1561 = vmatpush1.bf16.msra.mxu0 %v1542
    %1562 = vmatprep.subr.bf16.mxu0 0
    %1563 = vmatpush1.bf16.msra.mxu0 %v1541
    %1564 = vmatprep.subr.bf16.mxu0 0
    %1565 = vmatpush1.bf16.msra.mxu0 %v1540
    %1566 = vmatprep.subr.bf16.mxu0 0
    %1567 = vmatpush1.bf16.msra.mxu0 %v1539
    %1568 = vmatprep.subr.bf16.mxu0 0
    %1569 = vmatpush1.bf16.msra.mxu0 %v1538
    %1570 = vmatprep.subr.bf16.mxu0 0
    %1571 = vmatpush2.bf16.msra.mxu0 0
    %1572 = vmatprep.subr.bf16.mxu0 0
    %1573 = vmatpush2.bf16.msra.mxu0 0
    %1574 = vmatprep.subr.bf16.mxu0 0
    %1575 = vmatpush2.bf16.msra.mxu0 0
    %1576 = vmatprep.subr.bf16.mxu0 0
    %1577 = vmatpush2.bf16.msra.mxu0 0
    %1578 = vmatprep.subr.bf16.mxu0 0
    %1579 = vmatpush2.bf16.msra.mxu0 0
    %1580 = vmatprep.subr.bf16.mxu0 0
    %1581 = vmatpush2.bf16.msra.mxu0 0
    %1582 = vmatprep.subr.bf16.mxu0 0
    %1583 = vmatpush2.bf16.msra.mxu0 0
    %1584 = vmatprep.subr.bf16.mxu0 0
    %1585 = vmatpush2.bf16.msra.mxu0 0
    %1586 = vmatprep.mubr.bf16.mxu0 0
    %1587 = vmatmul.mubr.bf16.gmra.mxu0 %v1482
    %v1588 = vpop.f32.mrf.mxu0
    %v1589 = vadd.f32 0.0, %v1588
    %v1590 = vpop.f32.mrf.mxu0
    %v1591 = vpop.f32.mrf.mxu0
    %v1592 = vadd.f32 0.0, %v1591
    %v1593 = vpop.f32.mrf.mxu0
    %1594 = vmatprep.mubr.bf16.mxu0 0
    %1595 = vmatmul.mubr.bf16.gmra.mxu0 %v1483
    %v1596 = vpop.f32.mrf.mxu0
    %v1597 = vadd.f32 0.0, %v1596
    %v1598 = vpop.f32.mrf.mxu0
    %v1599 = vpop.f32.mrf.mxu0
    %v1600 = vadd.f32 0.0, %v1599
    %v1601 = vpop.f32.mrf.mxu0
    %1602 = vmatprep.mubr.bf16.mxu0 0
    %1603 = vmatmul.mubr.bf16.gmra.mxu0 %v1484
    %v1604 = vpop.f32.mrf.mxu0
    %v1605 = vadd.f32 0.0, %v1604
    %v1606 = vpop.f32.mrf.mxu0
    %v1607 = vpop.f32.mrf.mxu0
    %v1608 = vadd.f32 0.0, %v1607
    %v1609 = vpop.f32.mrf.mxu0
    %1610 = vmatprep.mubr.bf16.mxu0 0
    %1611 = vmatmul.mubr.bf16.gmra.mxu0 %v1485
    %v1612 = vpop.f32.mrf.mxu0
    %v1613 = vadd.f32 0.0, %v1612
    %v1614 = vpop.f32.mrf.mxu0
    %v1615 = vpop.f32.mrf.mxu0
    %v1616 = vadd.f32 0.0, %v1615
    %v1617 = vpop.f32.mrf.mxu0
    %1618 = vmatprep.mubr.bf16.mxu0 0
    %1619 = vmatmul.mubr.bf16.gmra.mxu0 %v1486
    %v1620 = vpop.f32.mrf.mxu0
    %v1621 = vadd.f32 0.0, %v1620
    %v1622 = vpop.f32.mrf.mxu0
    %v1623 = vpop.f32.mrf.mxu0
    %v1624 = vadd.f32 0.0, %v1623
    %v1625 = vpop.f32.mrf.mxu0
    %1626 = vmatprep.mubr.bf16.mxu0 0
    %1627 = vmatmul.mubr.bf16.gmra.mxu0 %v1487
    %v1628 = vpop.f32.mrf.mxu0
    %v1629 = vadd.f32 0.0, %v1628
    %v1630 = vpop.f32.mrf.mxu0
    %v1631 = vpop.f32.mrf.mxu0
    %v1632 = vadd.f32 0.0, %v1631
    %v1633 = vpop.f32.mrf.mxu0
    %1634 = vmatprep.mubr.bf16.mxu0 0
    %1635 = vmatmul.mubr.bf16.gmra.mxu0 %v1488
    %v1636 = vpop.f32.mrf.mxu0
    %v1637 = vadd.f32 0.0, %v1636
    %v1638 = vpop.f32.mrf.mxu0
    %v1639 = vpop.f32.mrf.mxu0
    %v1640 = vadd.f32 0.0, %v1639
    %v1641 = vpop.f32.mrf.mxu0
    %1642 = vmatprep.mubr.bf16.mxu0 0
    %1643 = vmatmul.mubr.bf16.gmra.mxu0 %v1489
    %v1644 = vpop.f32.mrf.mxu0
    %v1645 = vadd.f32 0.0, %v1644
    %v1646 = vpop.f32.mrf.mxu0
    %v1647 = vpop.f32.mrf.mxu0
    %v1648 = vadd.f32 0.0, %v1647
    %v1649 = vpop.f32.mrf.mxu0
    %1650 = vdwg.mxu0
    %v1651 = vpack.c.bf16 %v194, %v193
    %v1652 = vpack.c.bf16 %v196, %v195
    %v1653 = vpack.c.bf16 %v198, %v197
    %v1654 = vpack.c.bf16 %v200, %v199
    %v1655 = vpack.c.bf16 %v202, %v201
    %v1656 = vpack.c.bf16 %v204, %v203
    %v1657 = vpack.c.bf16 %v206, %v205
    %v1658 = vpack.c.bf16 %v208, %v207
    %v1659 = vld [vmem:[#allocation11] sm:$0xff]
    %v1660 = vld [vmem:[#allocation11 + $0x8] sm:$0xff]
    %v1661 = vld [vmem:[#allocation11 + $0x10] sm:$0xff]
    %v1662 = vld [vmem:[#allocation11 + $0x18] sm:$0xff]
    %v1663 = vld [vmem:[#allocation11 + $0x20] sm:$0xff]
    %v1664 = vld [vmem:[#allocation11 + $0x28] sm:$0xff]
    %v1665 = vld [vmem:[#allocation11 + $0x30] sm:$0xff]
    %v1666 = vld [vmem:[#allocation11 + $0x38] sm:$0xff]
    %v1667 = vld [vmem:[#allocation11 + $0x40] sm:$0xff]
    %v1668 = vld [vmem:[#allocation11 + $0x48] sm:$0xff]
    %v1669 = vld [vmem:[#allocation11 + $0x50] sm:$0xff]
    %v1670 = vld [vmem:[#allocation11 + $0x58] sm:$0xff]
    %v1671 = vld [vmem:[#allocation11 + $0x60] sm:$0xff]
    %v1672 = vld [vmem:[#allocation11 + $0x68] sm:$0xff]
    %v1673 = vld [vmem:[#allocation11 + $0x70] sm:$0xff]
    %v1674 = vld [vmem:[#allocation11 + $0x78] sm:$0xff]
    %v1691 = vunpack.c.l.b16 %v1659
    %v1692 = vunpack.c.h.b16 %v1659
    %v1693 = vunpack.c.l.b16 %v1660
    %v1694 = vunpack.c.h.b16 %v1660
    %v1695 = vunpack.c.l.b16 %v1661
    %v1696 = vunpack.c.h.b16 %v1661
    %v1697 = vunpack.c.l.b16 %v1662
    %v1698 = vunpack.c.h.b16 %v1662
    %v1699 = vunpack.c.l.b16 %v1663
    %v1700 = vunpack.c.h.b16 %v1663
    %v1701 = vunpack.c.l.b16 %v1664
    %v1702 = vunpack.c.h.b16 %v1664
    %v1703 = vunpack.c.l.b16 %v1665
    %v1704 = vunpack.c.h.b16 %v1665
    %v1705 = vunpack.c.l.b16 %v1666
    %v1706 = vunpack.c.h.b16 %v1666
    %v1707 = vunpack.c.l.b16 %v1667
    %v1708 = vunpack.c.h.b16 %v1667
    %v1709 = vunpack.c.l.b16 %v1668
    %v1710 = vunpack.c.h.b16 %v1668
    %v1711 = vunpack.c.l.b16 %v1669
    %v1712 = vunpack.c.h.b16 %v1669
    %v1713 = vunpack.c.l.b16 %v1670
    %v1714 = vunpack.c.h.b16 %v1670
    %v1715 = vunpack.c.l.b16 %v1671
    %v1716 = vunpack.c.h.b16 %v1671
    %v1717 = vunpack.c.l.b16 %v1672
    %v1718 = vunpack.c.h.b16 %v1672
    %v1719 = vunpack.c.l.b16 %v1673
    %v1720 = vunpack.c.h.b16 %v1673
    %v1721 = vunpack.c.l.b16 %v1674
    %v1722 = vunpack.c.h.b16 %v1674
    %v1723 = vpack.c.b16 %v1693, %v1691
    %v1724 = vpack.c.b16 %v1694, %v1692
    %v1725 = vpack.c.b16 %v1697, %v1695
    %v1726 = vpack.c.b16 %v1698, %v1696
    %v1727 = vpack.c.b16 %v1701, %v1699
    %v1728 = vpack.c.b16 %v1702, %v1700
    %v1729 = vpack.c.b16 %v1705, %v1703
    %v1730 = vpack.c.b16 %v1706, %v1704
    %v1731 = vpack.c.b16 %v1709, %v1707
    %v1732 = vpack.c.b16 %v1710, %v1708
    %v1733 = vpack.c.b16 %v1713, %v1711
    %v1734 = vpack.c.b16 %v1714, %v1712
    %v1735 = vpack.c.b16 %v1717, %v1715
    %v1736 = vpack.c.b16 %v1718, %v1716
    %v1737 = vpack.c.b16 %v1721, %v1719
    %v1738 = vpack.c.b16 %v1722, %v1720
    %1755 = vmatprep.subr.bf16.mxu0 %v1738
    %1756 = vmatpush1.bf16.msra.mxu0 %v1737
    %1757 = vmatprep.subr.bf16.mxu0 %v1736
    %1758 = vmatpush1.bf16.msra.mxu0 %v1735
    %1759 = vmatprep.subr.bf16.mxu0 %v1734
    %1760 = vmatpush1.bf16.msra.mxu0 %v1733
    %1761 = vmatprep.subr.bf16.mxu0 %v1732
    %1762 = vmatpush1.bf16.msra.mxu0 %v1731
    %1763 = vmatprep.subr.bf16.mxu0 %v1730
    %1764 = vmatpush1.bf16.msra.mxu0 %v1729
    %1765 = vmatprep.subr.bf16.mxu0 %v1728
    %1766 = vmatpush1.bf16.msra.mxu0 %v1727
    %1767 = vmatprep.subr.bf16.mxu0 %v1726
    %1768 = vmatpush1.bf16.msra.mxu0 %v1725
    %1769 = vmatprep.subr.bf16.mxu0 %v1724
    %1770 = vmatpush1.bf16.msra.mxu0 %v1723
    %1771 = vmatprep.subr.bf16.mxu0 0
    %1772 = vmatpush2.bf16.msra.mxu0 0
    %1773 = vmatprep.subr.bf16.mxu0 0
    %1774 = vmatpush2.bf16.msra.mxu0 0
    %1775 = vmatprep.subr.bf16.mxu0 0
    %1776 = vmatpush2.bf16.msra.mxu0 0
    %1777 = vmatprep.subr.bf16.mxu0 0
    %1778 = vmatpush2.bf16.msra.mxu0 0
    %1779 = vmatprep.subr.bf16.mxu0 0
    %1780 = vmatpush2.bf16.msra.mxu0 0
    %1781 = vmatprep.subr.bf16.mxu0 0
    %1782 = vmatpush2.bf16.msra.mxu0 0
    %1783 = vmatprep.subr.bf16.mxu0 0
    %1784 = vmatpush2.bf16.msra.mxu0 0
    %1785 = vmatprep.subr.bf16.mxu0 0
    %1786 = vmatpush2.bf16.msra.mxu0 0
    %1787 = vmatprep.mubr.bf16.mxu0 0
    %1788 = vmatmul.mubr.bf16.gmra.mxu0 %v1651
    %v1789 = vpop.f32.mrf.mxu0
    %v1790 = vadd.f32 0.0, %v1789
    %v1791 = vpop.f32.mrf.mxu0
    %v1792 = vadd.f32 0.0, %v1791
    %v1793 = vpop.f32.mrf.mxu0
    %v1794 = vadd.f32 0.0, %v1793
    %v1795 = vpop.f32.mrf.mxu0
    %v1796 = vadd.f32 0.0, %v1795
    %1797 = vmatprep.mubr.bf16.mxu0 0
    %1798 = vmatmul.mubr.bf16.gmra.mxu0 %v1652
    %v1799 = vpop.f32.mrf.mxu0
    %v1800 = vadd.f32 0.0, %v1799
    %v1801 = vpop.f32.mrf.mxu0
    %v1802 = vadd.f32 0.0, %v1801
    %v1803 = vpop.f32.mrf.mxu0
    %v1804 = vadd.f32 0.0, %v1803
    %v1805 = vpop.f32.mrf.mxu0
    %v1806 = vadd.f32 0.0, %v1805
    %1807 = vmatprep.mubr.bf16.mxu0 0
    %1808 = vmatmul.mubr.bf16.gmra.mxu0 %v1653
    %v1809 = vpop.f32.mrf.mxu0
    %v1810 = vadd.f32 0.0, %v1809
    %v1811 = vpop.f32.mrf.mxu0
    %v1812 = vadd.f32 0.0, %v1811
    %v1813 = vpop.f32.mrf.mxu0
    %v1814 = vadd.f32 0.0, %v1813
    %v1815 = vpop.f32.mrf.mxu0
    %v1816 = vadd.f32 0.0, %v1815
    %1817 = vmatprep.mubr.bf16.mxu0 0
    %1818 = vmatmul.mubr.bf16.gmra.mxu0 %v1654
    %v1819 = vpop.f32.mrf.mxu0
    %v1820 = vadd.f32 0.0, %v1819
    %v1821 = vpop.f32.mrf.mxu0
    %v1822 = vadd.f32 0.0, %v1821
    %v1823 = vpop.f32.mrf.mxu0
    %v1824 = vadd.f32 0.0, %v1823
    %v1825 = vpop.f32.mrf.mxu0
    %v1826 = vadd.f32 0.0, %v1825
    %1827 = vmatprep.mubr.bf16.mxu0 0
    %1828 = vmatmul.mubr.bf16.gmra.mxu0 %v1655
    %v1829 = vpop.f32.mrf.mxu0
    %v1830 = vadd.f32 0.0, %v1829
    %v1831 = vpop.f32.mrf.mxu0
    %v1832 = vadd.f32 0.0, %v1831
    %v1833 = vpop.f32.mrf.mxu0
    %v1834 = vadd.f32 0.0, %v1833
    %v1835 = vpop.f32.mrf.mxu0
    %v1836 = vadd.f32 0.0, %v1835
    %1837 = vmatprep.mubr.bf16.mxu0 0
    %1838 = vmatmul.mubr.bf16.gmra.mxu0 %v1656
    %v1839 = vpop.f32.mrf.mxu0
    %v1840 = vadd.f32 0.0, %v1839
    %v1841 = vpop.f32.mrf.mxu0
    %v1842 = vadd.f32 0.0, %v1841
    %v1843 = vpop.f32.mrf.mxu0
    %v1844 = vadd.f32 0.0, %v1843
    %v1845 = vpop.f32.mrf.mxu0
    %v1846 = vadd.f32 0.0, %v1845
    %1847 = vmatprep.mubr.bf16.mxu0 0
    %1848 = vmatmul.mubr.bf16.gmra.mxu0 %v1657
    %v1849 = vpop.f32.mrf.mxu0
    %v1850 = vadd.f32 0.0, %v1849
    %v1851 = vpop.f32.mrf.mxu0
    %v1852 = vadd.f32 0.0, %v1851
    %v1853 = vpop.f32.mrf.mxu0
    %v1854 = vadd.f32 0.0, %v1853
    %v1855 = vpop.f32.mrf.mxu0
    %v1856 = vadd.f32 0.0, %v1855
    %1857 = vmatprep.mubr.bf16.mxu0 0
    %1858 = vmatmul.mubr.bf16.gmra.mxu0 %v1658
    %v1859 = vpop.f32.mrf.mxu0
    %v1860 = vadd.f32 0.0, %v1859
    %v1861 = vpop.f32.mrf.mxu0
    %v1862 = vadd.f32 0.0, %v1861
    %v1863 = vpop.f32.mrf.mxu0
    %v1864 = vadd.f32 0.0, %v1863
    %v1865 = vpop.f32.mrf.mxu0
    %v1866 = vadd.f32 0.0, %v1865
    %1867 = vdwg.mxu0
    %v1868 = vpack.c.bf16 %v1592, %v1589
    %v1869 = vpack.c.bf16 %v1600, %v1597
    %v1870 = vpack.c.bf16 %v1608, %v1605
    %v1871 = vpack.c.bf16 %v1616, %v1613
    %v1872 = vpack.c.bf16 %v1624, %v1621
    %v1873 = vpack.c.bf16 %v1632, %v1629
    %v1874 = vpack.c.bf16 %v1640, %v1637
    %v1875 = vpack.c.bf16 %v1648, %v1645
    %v1876 = vpack.c.bf16 %v1794, %v1790
    %v1877 = vpack.c.bf16 %v1804, %v1800
    %v1878 = vpack.c.bf16 %v1814, %v1810
    %v1879 = vpack.c.bf16 %v1824, %v1820
    %v1880 = vpack.c.bf16 %v1834, %v1830
    %v1881 = vpack.c.bf16 %v1844, %v1840
    %v1882 = vpack.c.bf16 %v1854, %v1850
    %v1883 = vpack.c.bf16 %v1864, %v1860
    %v1884 = vpack.c.bf16 %v1796, %v1792
    %v1885 = vpack.c.bf16 %v1806, %v1802
    %v1886 = vpack.c.bf16 %v1816, %v1812
    %v1887 = vpack.c.bf16 %v1826, %v1822
    %v1888 = vpack.c.bf16 %v1836, %v1832
    %v1889 = vpack.c.bf16 %v1846, %v1842
    %v1890 = vpack.c.bf16 %v1856, %v1852
    %v1891 = vpack.c.bf16 %v1866, %v1862
    %1892 = vmatprep.subr.bf16.mxu0 0
    %1893 = vmatpush1.bf16.xpose.msra.mxu0 0
    %1894 = vmatprep.subr.bf16.mxu0 0
    %1895 = vmatpush1.bf16.xpose.msra.mxu0 0
    %1896 = vmatprep.subr.bf16.mxu0 0
    %1897 = vmatpush1.bf16.xpose.msra.mxu0 0
    %1898 = vmatprep.subr.bf16.mxu0 0
    %1899 = vmatpush1.bf16.xpose.msra.mxu0 0
    %1900 = vmatprep.subr.bf16.mxu0 0
    %1901 = vmatpush1.bf16.xpose.msra.mxu0 %v1879
    %1902 = vmatprep.subr.bf16.mxu0 0
    %1903 = vmatpush1.bf16.xpose.msra.mxu0 %v1878
    %1904 = vmatprep.subr.bf16.mxu0 0
    %1905 = vmatpush1.bf16.xpose.msra.mxu0 %v1877
    %1906 = vmatprep.subr.bf16.mxu0 0
    %1907 = vmatpush1.bf16.xpose.msra.mxu0 %v1876
    %1908 = vmatprep.subr.bf16.mxu0 0
    %1909 = vmatpush2.bf16.xpose.msra.mxu0 0
    %1910 = vmatprep.subr.bf16.mxu0 0
    %1911 = vmatpush2.bf16.xpose.msra.mxu0 0
    %1912 = vmatprep.subr.bf16.mxu0 0
    %1913 = vmatpush2.bf16.xpose.msra.mxu0 0
    %1914 = vmatprep.subr.bf16.mxu0 0
    %1915 = vmatpush2.bf16.xpose.msra.mxu0 0
    %1916 = vmatprep.subr.bf16.mxu0 0
    %1917 = vmatpush2.bf16.xpose.msra.mxu0 0
    %1918 = vmatprep.subr.bf16.mxu0 0
    %1919 = vmatpush2.bf16.xpose.msra.mxu0 0
    %1920 = vmatprep.subr.bf16.mxu0 0
    %1921 = vmatpush2.bf16.xpose.msra.mxu0 0
    %1922 = vmatprep.subr.bf16.mxu0 0
    %1923 = vmatpush2.bf16.xpose.msra.mxu0 0
    %1924 = vmatprep.mubr.bf16.mxu0 0
    %1925 = vmatmul.mubr.bf16.gmra.mxu0 %v1868
    %v1926 = vpop.f32.mrf.mxu0
    %v1927 = vadd.f32 0.0, %v1926
    %v1928 = vpop.f32.mrf.mxu0
    %v1929 = vpop.f32.mrf.mxu0
    %v1930 = vadd.f32 0.0, %v1929
    %v1931 = vpop.f32.mrf.mxu0
    %1932 = vmatprep.mubr.bf16.mxu0 0
    %1933 = vmatmul.mubr.bf16.gmra.mxu0 %v1869
    %v1934 = vpop.f32.mrf.mxu0
    %v1935 = vadd.f32 0.0, %v1934
    %v1936 = vpop.f32.mrf.mxu0
    %v1937 = vpop.f32.mrf.mxu0
    %v1938 = vadd.f32 0.0, %v1937
    %v1939 = vpop.f32.mrf.mxu0
    %1940 = vmatprep.mubr.bf16.mxu0 0
    %1941 = vmatmul.mubr.bf16.gmra.mxu0 %v1870
    %v1942 = vpop.f32.mrf.mxu0
    %v1943 = vadd.f32 0.0, %v1942
    %v1944 = vpop.f32.mrf.mxu0
    %v1945 = vpop.f32.mrf.mxu0
    %v1946 = vadd.f32 0.0, %v1945
    %v1947 = vpop.f32.mrf.mxu0
    %1948 = vmatprep.mubr.bf16.mxu0 0
    %1949 = vmatmul.mubr.bf16.gmra.mxu0 %v1871
    %v1950 = vpop.f32.mrf.mxu0
    %v1951 = vadd.f32 0.0, %v1950
    %v1952 = vpop.f32.mrf.mxu0
    %v1953 = vpop.f32.mrf.mxu0
    %v1954 = vadd.f32 0.0, %v1953
    %v1955 = vpop.f32.mrf.mxu0
    %1956 = vdwg.mxu0
    %1957 = vmatprep.subr.bf16.mxu0 0
    %1958 = vmatpush1.bf16.xpose.msra.mxu0 0
    %1959 = vmatprep.subr.bf16.mxu0 0
    %1960 = vmatpush1.bf16.xpose.msra.mxu0 0
    %1961 = vmatprep.subr.bf16.mxu0 0
    %1962 = vmatpush1.bf16.xpose.msra.mxu0 0
    %1963 = vmatprep.subr.bf16.mxu0 0
    %1964 = vmatpush1.bf16.xpose.msra.mxu0 0
    %1965 = vmatprep.subr.bf16.mxu0 0
    %1966 = vmatpush1.bf16.xpose.msra.mxu0 %v1883
    %1967 = vmatprep.subr.bf16.mxu0 0
    %1968 = vmatpush1.bf16.xpose.msra.mxu0 %v1882
    %1969 = vmatprep.subr.bf16.mxu0 0
    %1970 = vmatpush1.bf16.xpose.msra.mxu0 %v1881
    %1971 = vmatprep.subr.bf16.mxu0 0
    %1972 = vmatpush1.bf16.xpose.msra.mxu0 %v1880
    %1973 = vmatprep.subr.bf16.mxu0 0
    %1974 = vmatpush2.bf16.xpose.msra.mxu0 0
    %1975 = vmatprep.subr.bf16.mxu0 0
    %1976 = vmatpush2.bf16.xpose.msra.mxu0 0
    %1977 = vmatprep.subr.bf16.mxu0 0
    %1978 = vmatpush2.bf16.xpose.msra.mxu0 0
    %1979 = vmatprep.subr.bf16.mxu0 0
    %1980 = vmatpush2.bf16.xpose.msra.mxu0 0
    %1981 = vmatprep.subr.bf16.mxu0 0
    %1982 = vmatpush2.bf16.xpose.msra.mxu0 0
    %1983 = vmatprep.subr.bf16.mxu0 0
    %1984 = vmatpush2.bf16.xpose.msra.mxu0 0
    %1985 = vmatprep.subr.bf16.mxu0 0
    %1986 = vmatpush2.bf16.xpose.msra.mxu0 0
    %1987 = vmatprep.subr.bf16.mxu0 0
    %1988 = vmatpush2.bf16.xpose.msra.mxu0 0
    %1989 = vmatprep.mubr.bf16.mxu0 0
    %1990 = vmatmul.mubr.bf16.gmra.mxu0 %v1872
    %v1991 = vpop.f32.mrf.mxu0
    %v1992 = vadd.f32 0.0, %v1991
    %v1993 = vpop.f32.mrf.mxu0
    %v1994 = vpop.f32.mrf.mxu0
    %v1995 = vadd.f32 0.0, %v1994
    %v1996 = vpop.f32.mrf.mxu0
    %1997 = vmatprep.mubr.bf16.mxu0 0
    %1998 = vmatmul.mubr.bf16.gmra.mxu0 %v1873
    %v1999 = vpop.f32.mrf.mxu0
    %v2000 = vadd.f32 0.0, %v1999
    %v2001 = vpop.f32.mrf.mxu0
    %v2002 = vpop.f32.mrf.mxu0
    %v2003 = vadd.f32 0.0, %v2002
    %v2004 = vpop.f32.mrf.mxu0
    %2005 = vmatprep.mubr.bf16.mxu0 0
    %2006 = vmatmul.mubr.bf16.gmra.mxu0 %v1874
    %v2007 = vpop.f32.mrf.mxu0
    %v2008 = vadd.f32 0.0, %v2007
    %v2009 = vpop.f32.mrf.mxu0
    %v2010 = vpop.f32.mrf.mxu0
    %v2011 = vadd.f32 0.0, %v2010
    %v2012 = vpop.f32.mrf.mxu0
    %2013 = vmatprep.mubr.bf16.mxu0 0
    %2014 = vmatmul.mubr.bf16.gmra.mxu0 %v1875
    %v2015 = vpop.f32.mrf.mxu0
    %v2016 = vadd.f32 0.0, %v2015
    %v2017 = vpop.f32.mrf.mxu0
    %v2018 = vpop.f32.mrf.mxu0
    %v2019 = vadd.f32 0.0, %v2018
    %v2020 = vpop.f32.mrf.mxu0
    %2021 = vdwg.mxu0
    %v2022 = vsel %vm741, %v1927, -inf
    %2023 = vmax.xlane.f32.xlu0 %v2022
    %v2024 = vpop.xlane.xlu0 %2023
    %v2025 = vsel %vm741, %v1930, -inf
    %2026 = vmax.xlane.f32.xlu0 %v2025
    %v2027 = vpop.xlane.xlu0 %2026
    %v2028 = vsel %vm741, %v1935, -inf
    %2029 = vmax.xlane.f32.xlu0 %v2028
    %v2030 = vpop.xlane.xlu0 %2029
    %v2031 = vsel %vm741, %v1938, -inf
    %2032 = vmax.xlane.f32.xlu0 %v2031
    %v2033 = vpop.xlane.xlu0 %2032
    %v2034 = vsel %vm741, %v1943, -inf
    %2035 = vmax.xlane.f32.xlu0 %v2034
    %v2036 = vpop.xlane.xlu0 %2035
    %v2037 = vsel %vm741, %v1946, -inf
    %2038 = vmax.xlane.f32.xlu0 %v2037
    %v2039 = vpop.xlane.xlu0 %2038
    %v2040 = vsel %vm741, %v1951, -inf
    %2041 = vmax.xlane.f32.xlu0 %v2040
    %v2042 = vpop.xlane.xlu0 %2041
    %v2043 = vsel %vm741, %v1954, -inf
    %2044 = vmax.xlane.f32.xlu0 %v2043
    %v2045 = vpop.xlane.xlu0 %2044
    %v2046 = vsel %vm741, %v1992, -inf
    %2047 = vmax.xlane.f32.xlu0 %v2046
    %v2048 = vpop.xlane.xlu0 %2047
    %v2049 = vsel %vm741, %v1995, -inf
    %2050 = vmax.xlane.f32.xlu0 %v2049
    %v2051 = vpop.xlane.xlu0 %2050
    %v2052 = vsel %vm741, %v2000, -inf
    %2053 = vmax.xlane.f32.xlu0 %v2052
    %v2054 = vpop.xlane.xlu0 %2053
    %v2055 = vsel %vm741, %v2003, -inf
    %2056 = vmax.xlane.f32.xlu0 %v2055
    %v2057 = vpop.xlane.xlu0 %2056
    %v2058 = vsel %vm741, %v2008, -inf
    %2059 = vmax.xlane.f32.xlu0 %v2058
    %v2060 = vpop.xlane.xlu0 %2059
    %v2061 = vsel %vm741, %v2011, -inf
    %2062 = vmax.xlane.f32.xlu0 %v2061
    %v2063 = vpop.xlane.xlu0 %2062
    %v2064 = vsel %vm741, %v2016, -inf
    %2065 = vmax.xlane.f32.xlu0 %v2064
    %v2066 = vpop.xlane.xlu0 %2065
    %v2067 = vsel %vm741, %v2019, -inf
    %2068 = vmax.xlane.f32.xlu0 %v2067
    %v2069 = vpop.xlane.xlu0 %2068
    %v2070 = vsub.f32 %v1927, %v2024
    %v2071 = vsub.f32 %v1930, %v2027
    %v2072 = vsub.f32 %v1935, %v2030
    %v2073 = vsub.f32 %v1938, %v2033
    %v2074 = vsub.f32 %v1943, %v2036
    %v2075 = vsub.f32 %v1946, %v2039
    %v2076 = vsub.f32 %v1951, %v2042
    %v2077 = vsub.f32 %v1954, %v2045
    %v2078 = vsub.f32 %v1992, %v2048
    %v2079 = vsub.f32 %v1995, %v2051
    %v2080 = vsub.f32 %v2000, %v2054
    %v2081 = vsub.f32 %v2003, %v2057
    %v2082 = vsub.f32 %v2008, %v2060
    %v2083 = vsub.f32 %v2011, %v2063
    %v2084 = vsub.f32 %v2016, %v2066
    %v2085 = vsub.f32 %v2019, %v2069
    %v2086 = vmul.f32 %v2070, 1.442695
    %v2087 = vpow.pop %v2086
    %v2088 = vmul.f32 %v2071, 1.442695
    %v2089 = vpow.pop %v2088
    %v2090 = vmul.f32 %v2072, 1.442695
    %v2091 = vpow.pop %v2090
    %v2092 = vmul.f32 %v2073, 1.442695
    %v2093 = vpow.pop %v2092
    %v2094 = vmul.f32 %v2074, 1.442695
    %v2095 = vpow.pop %v2094
    %v2096 = vmul.f32 %v2075, 1.442695
    %v2097 = vpow.pop %v2096
    %v2098 = vmul.f32 %v2076, 1.442695
    %v2099 = vpow.pop %v2098
    %v2100 = vmul.f32 %v2077, 1.442695
    %v2101 = vpow.pop %v2100
    %v2102 = vmul.f32 %v2078, 1.442695
    %v2103 = vpow.pop %v2102
    %v2104 = vmul.f32 %v2079, 1.442695
    %v2105 = vpow.pop %v2104
    %v2106 = vmul.f32 %v2080, 1.442695
    %v2107 = vpow.pop %v2106
    %v2108 = vmul.f32 %v2081, 1.442695
    %v2109 = vpow.pop %v2108
    %v2110 = vmul.f32 %v2082, 1.442695
    %v2111 = vpow.pop %v2110
    %v2112 = vmul.f32 %v2083, 1.442695
    %v2113 = vpow.pop %v2112
    %v2114 = vmul.f32 %v2084, 1.442695
    %v2115 = vpow.pop %v2114
    %v2116 = vmul.f32 %v2085, 1.442695
    %v2117 = vpow.pop %v2116
    %v2118 = vsel %vm741, %v2087, 0.0
    %2119 = vadd.xlane.f32.xlu0 %v2118
    %v2120 = vpop.xlane.xlu0 %2119
    %v2121 = vsel %vm741, %v2089, 0.0
    %2122 = vadd.xlane.f32.xlu0 %v2121
    %v2123 = vpop.xlane.xlu0 %2122
    %v2124 = vsel %vm741, %v2091, 0.0
    %2125 = vadd.xlane.f32.xlu0 %v2124
    %v2126 = vpop.xlane.xlu0 %2125
    %v2127 = vsel %vm741, %v2093, 0.0
    %2128 = vadd.xlane.f32.xlu0 %v2127
    %v2129 = vpop.xlane.xlu0 %2128
    %v2130 = vsel %vm741, %v2095, 0.0
    %2131 = vadd.xlane.f32.xlu0 %v2130
    %v2132 = vpop.xlane.xlu0 %2131
    %v2133 = vsel %vm741, %v2097, 0.0
    %2134 = vadd.xlane.f32.xlu0 %v2133
    %v2135 = vpop.xlane.xlu0 %2134
    %v2136 = vsel %vm741, %v2099, 0.0
    %2137 = vadd.xlane.f32.xlu0 %v2136
    %v2138 = vpop.xlane.xlu0 %2137
    %v2139 = vsel %vm741, %v2101, 0.0
    %2140 = vadd.xlane.f32.xlu0 %v2139
    %v2141 = vpop.xlane.xlu0 %2140
    %v2142 = vsel %vm741, %v2103, 0.0
    %2143 = vadd.xlane.f32.xlu0 %v2142
    %v2144 = vpop.xlane.xlu0 %2143
    %v2145 = vsel %vm741, %v2105, 0.0
    %2146 = vadd.xlane.f32.xlu0 %v2145
    %v2147 = vpop.xlane.xlu0 %2146
    %v2148 = vsel %vm741, %v2107, 0.0
    %2149 = vadd.xlane.f32.xlu0 %v2148
    %v2150 = vpop.xlane.xlu0 %2149
    %v2151 = vsel %vm741, %v2109, 0.0
    %2152 = vadd.xlane.f32.xlu0 %v2151
    %v2153 = vpop.xlane.xlu0 %2152
    %v2154 = vsel %vm741, %v2111, 0.0
    %2155 = vadd.xlane.f32.xlu0 %v2154
    %v2156 = vpop.xlane.xlu0 %2155
    %v2157 = vsel %vm741, %v2113, 0.0
    %2158 = vadd.xlane.f32.xlu0 %v2157
    %v2159 = vpop.xlane.xlu0 %2158
    %v2160 = vsel %vm741, %v2115, 0.0
    %2161 = vadd.xlane.f32.xlu0 %v2160
    %v2162 = vpop.xlane.xlu0 %2161
    %v2163 = vsel %vm741, %v2117, 0.0
    %2164 = vadd.xlane.f32.xlu0 %v2163
    %v2165 = vpop.xlane.xlu0 %2164
    %v2166 = vrcp.pop %v2120
    %v2167 = vrcp.pop %v2123
    %v2168 = vrcp.pop %v2126
    %v2169 = vrcp.pop %v2129
    %v2170 = vrcp.pop %v2132
    %v2171 = vrcp.pop %v2135
    %v2172 = vrcp.pop %v2138
    %v2173 = vrcp.pop %v2141
    %v2174 = vrcp.pop %v2144
    %v2175 = vrcp.pop %v2147
    %v2176 = vrcp.pop %v2150
    %v2177 = vrcp.pop %v2153
    %v2178 = vrcp.pop %v2156
    %v2179 = vrcp.pop %v2159
    %v2180 = vrcp.pop %v2162
    %v2181 = vrcp.pop %v2165
    %v2182 = vmul.f32 %v2087, %v2166
    %v2183 = vmul.f32 %v2089, %v2167
    %v2184 = vmul.f32 %v2091, %v2168
    %v2185 = vmul.f32 %v2093, %v2169
    %v2186 = vmul.f32 %v2095, %v2170
    %v2187 = vmul.f32 %v2097, %v2171
    %v2188 = vmul.f32 %v2099, %v2172
    %v2189 = vmul.f32 %v2101, %v2173
    %v2190 = vmul.f32 %v2103, %v2174
    %v2191 = vmul.f32 %v2105, %v2175
    %v2192 = vmul.f32 %v2107, %v2176
    %v2193 = vmul.f32 %v2109, %v2177
    %v2194 = vmul.f32 %v2111, %v2178
    %v2195 = vmul.f32 %v2113, %v2179
    %v2196 = vmul.f32 %v2115, %v2180
    %v2197 = vmul.f32 %v2117, %v2181
    %v2198 = vpack.c.bf16 %v2183, %v2182
    %v2199 = vpack.c.bf16 %v2185, %v2184
    %v2200 = vpack.c.bf16 %v2187, %v2186
    %v2201 = vpack.c.bf16 %v2189, %v2188
    %v2202 = vpack.c.bf16 %v2191, %v2190
    %v2203 = vpack.c.bf16 %v2193, %v2192
    %v2204 = vpack.c.bf16 %v2195, %v2194
    %v2205 = vpack.c.bf16 %v2197, %v2196
    %v2207 = vsel %vm741, %v2198, 0
    %v2210 = vsel %vm741, %v2199, 0
    %v2213 = vsel %vm741, %v2200, 0
    %v2216 = vsel %vm741, %v2201, 0
    %2218 = vmatprep.subr.bf16.mxu0 0
    %2219 = vmatpush1.bf16.msra.mxu0 0
    %2220 = vmatprep.subr.bf16.mxu0 0
    %2221 = vmatpush1.bf16.msra.mxu0 0
    %2222 = vmatprep.subr.bf16.mxu0 0
    %2223 = vmatpush1.bf16.msra.mxu0 0
    %2224 = vmatprep.subr.bf16.mxu0 0
    %2225 = vmatpush1.bf16.msra.mxu0 0
    %2226 = vmatprep.subr.bf16.mxu0 0
    %2227 = vmatpush1.bf16.msra.mxu0 %v1887
    %2228 = vmatprep.subr.bf16.mxu0 0
    %2229 = vmatpush1.bf16.msra.mxu0 %v1886
    %2230 = vmatprep.subr.bf16.mxu0 0
    %2231 = vmatpush1.bf16.msra.mxu0 %v1885
    %2232 = vmatprep.subr.bf16.mxu0 0
    %2233 = vmatpush1.bf16.msra.mxu0 %v1884
    %2234 = vmatprep.subr.bf16.mxu0 0
    %2235 = vmatpush2.bf16.msra.mxu0 0
    %2236 = vmatprep.subr.bf16.mxu0 0
    %2237 = vmatpush2.bf16.msra.mxu0 0
    %2238 = vmatprep.subr.bf16.mxu0 0
    %2239 = vmatpush2.bf16.msra.mxu0 0
    %2240 = vmatprep.subr.bf16.mxu0 0
    %2241 = vmatpush2.bf16.msra.mxu0 0
    %2242 = vmatprep.subr.bf16.mxu0 0
    %2243 = vmatpush2.bf16.msra.mxu0 0
    %2244 = vmatprep.subr.bf16.mxu0 0
    %2245 = vmatpush2.bf16.msra.mxu0 0
    %2246 = vmatprep.subr.bf16.mxu0 0
    %2247 = vmatpush2.bf16.msra.mxu0 0
    %2248 = vmatprep.subr.bf16.mxu0 0
    %2249 = vmatpush2.bf16.msra.mxu0 0
    %2250 = vmatprep.mubr.bf16.mxu0 0
    %2251 = vmatmul.mubr.bf16.gmra.mxu0 %v2207
    %v2252 = vpop.f32.mrf.mxu0
    %v2253 = vadd.f32 0.0, %v2252
    %v2254 = vpop.f32.mrf.mxu0
    %v2255 = vpop.f32.mrf.mxu0
    %v2256 = vadd.f32 0.0, %v2255
    %v2257 = vpop.f32.mrf.mxu0
    %2258 = vmatprep.mubr.bf16.mxu0 0
    %2259 = vmatmul.mubr.bf16.gmra.mxu0 %v2210
    %v2260 = vpop.f32.mrf.mxu0
    %v2261 = vadd.f32 0.0, %v2260
    %v2262 = vpop.f32.mrf.mxu0
    %v2263 = vpop.f32.mrf.mxu0
    %v2264 = vadd.f32 0.0, %v2263
    %v2265 = vpop.f32.mrf.mxu0
    %2266 = vmatprep.mubr.bf16.mxu0 0
    %2267 = vmatmul.mubr.bf16.gmra.mxu0 %v2213
    %v2268 = vpop.f32.mrf.mxu0
    %v2269 = vadd.f32 0.0, %v2268
    %v2270 = vpop.f32.mrf.mxu0
    %v2271 = vpop.f32.mrf.mxu0
    %v2272 = vadd.f32 0.0, %v2271
    %v2273 = vpop.f32.mrf.mxu0
    %2274 = vmatprep.mubr.bf16.mxu0 0
    %2275 = vmatmul.mubr.bf16.gmra.mxu0 %v2216
    %v2276 = vpop.f32.mrf.mxu0
    %v2277 = vadd.f32 0.0, %v2276
    %v2278 = vpop.f32.mrf.mxu0
    %v2279 = vpop.f32.mrf.mxu0
    %v2280 = vadd.f32 0.0, %v2279
    %v2281 = vpop.f32.mrf.mxu0
    %2282 = vdwg.mxu0
    %v2284 = vsel %vm741, %v2202, 0
    %v2287 = vsel %vm741, %v2203, 0
    %v2290 = vsel %vm741, %v2204, 0
    %v2293 = vsel %vm741, %v2205, 0
    %2295 = vmatprep.subr.bf16.mxu0 0
    %2296 = vmatpush1.bf16.msra.mxu0 0
    %2297 = vmatprep.subr.bf16.mxu0 0
    %2298 = vmatpush1.bf16.msra.mxu0 0
    %2299 = vmatprep.subr.bf16.mxu0 0
    %2300 = vmatpush1.bf16.msra.mxu0 0
    %2301 = vmatprep.subr.bf16.mxu0 0
    %2302 = vmatpush1.bf16.msra.mxu0 0
    %2303 = vmatprep.subr.bf16.mxu0 0
    %2304 = vmatpush1.bf16.msra.mxu0 %v1891
    %2305 = vmatprep.subr.bf16.mxu0 0
    %2306 = vmatpush1.bf16.msra.mxu0 %v1890
    %2307 = vmatprep.subr.bf16.mxu0 0
    %2308 = vmatpush1.bf16.msra.mxu0 %v1889
    %2309 = vmatprep.subr.bf16.mxu0 0
    %2310 = vmatpush1.bf16.msra.mxu0 %v1888
    %2311 = vmatprep.subr.bf16.mxu0 0
    %2312 = vmatpush2.bf16.msra.mxu0 0
    %2313 = vmatprep.subr.bf16.mxu0 0
    %2314 = vmatpush2.bf16.msra.mxu0 0
    %2315 = vmatprep.subr.bf16.mxu0 0
    %2316 = vmatpush2.bf16.msra.mxu0 0
    %2317 = vmatprep.subr.bf16.mxu0 0
    %2318 = vmatpush2.bf16.msra.mxu0 0
    %2319 = vmatprep.subr.bf16.mxu0 0
    %2320 = vmatpush2.bf16.msra.mxu0 0
    %2321 = vmatprep.subr.bf16.mxu0 0
    %2322 = vmatpush2.bf16.msra.mxu0 0
    %2323 = vmatprep.subr.bf16.mxu0 0
    %2324 = vmatpush2.bf16.msra.mxu0 0
    %2325 = vmatprep.subr.bf16.mxu0 0
    %2326 = vmatpush2.bf16.msra.mxu0 0
    %2327 = vmatprep.mubr.bf16.mxu0 0
    %2328 = vmatmul.mubr.bf16.gmra.mxu0 %v2284
    %v2329 = vpop.f32.mrf.mxu0
    %v2330 = vadd.f32 0.0, %v2329
    %v2331 = vpop.f32.mrf.mxu0
    %v2332 = vpop.f32.mrf.mxu0
    %v2333 = vadd.f32 0.0, %v2332
    %v2334 = vpop.f32.mrf.mxu0
    %2335 = vmatprep.mubr.bf16.mxu0 0
    %2336 = vmatmul.mubr.bf16.gmra.mxu0 %v2287
    %v2337 = vpop.f32.mrf.mxu0
    %v2338 = vadd.f32 0.0, %v2337
    %v2339 = vpop.f32.mrf.mxu0
    %v2340 = vpop.f32.mrf.mxu0
    %v2341 = vadd.f32 0.0, %v2340
    %v2342 = vpop.f32.mrf.mxu0
    %2343 = vmatprep.mubr.bf16.mxu0 0
    %2344 = vmatmul.mubr.bf16.gmra.mxu0 %v2290
    %v2345 = vpop.f32.mrf.mxu0
    %v2346 = vadd.f32 0.0, %v2345
    %v2347 = vpop.f32.mrf.mxu0
    %v2348 = vpop.f32.mrf.mxu0
    %v2349 = vadd.f32 0.0, %v2348
    %v2350 = vpop.f32.mrf.mxu0
    %2351 = vmatprep.mubr.bf16.mxu0 0
    %2352 = vmatmul.mubr.bf16.gmra.mxu0 %v2293
    %v2353 = vpop.f32.mrf.mxu0
    %v2354 = vadd.f32 0.0, %v2353
    %v2355 = vpop.f32.mrf.mxu0
    %v2356 = vpop.f32.mrf.mxu0
    %v2357 = vadd.f32 0.0, %v2356
    %v2358 = vpop.f32.mrf.mxu0
    %2359 = vdwg.mxu0
    %v2360 = vpack.c.bf16 %v2256, %v2253
    %v2361 = vpack.c.bf16 %v2264, %v2261
    %v2362 = vpack.c.bf16 %v2272, %v2269
    %v2363 = vpack.c.bf16 %v2280, %v2277
    %v2364 = vpack.c.bf16 %v2333, %v2330
    %v2365 = vpack.c.bf16 %v2341, %v2338
    %v2366 = vpack.c.bf16 %v2349, %v2346
    %v2367 = vpack.c.bf16 %v2357, %v2354
    %v2368 = vld [vmem:[#allocation13] sm:$0xf]
    %v2369 = vld [vmem:[#allocation13 + $0x4] sm:$0xf]
    %v2370 = vld [vmem:[#allocation13 + $0x8] sm:$0xf]
    %v2371 = vld [vmem:[#allocation13 + $0xc] sm:$0xf]
    %v2372 = vld [vmem:[#allocation13 + $0x10] sm:$0xf]
    %v2373 = vld [vmem:[#allocation13 + $0x14] sm:$0xf]
    %v2374 = vld [vmem:[#allocation13 + $0x18] sm:$0xf]
    %v2375 = vld [vmem:[#allocation13 + $0x1c] sm:$0xf]
    %v2376 = vld [vmem:[#allocation13 + $0x20] sm:$0xf]
    %v2377 = vld [vmem:[#allocation13 + $0x24] sm:$0xf]
    %v2378 = vld [vmem:[#allocation13 + $0x28] sm:$0xf]
    %v2379 = vld [vmem:[#allocation13 + $0x2c] sm:$0xf]
    %v2380 = vld [vmem:[#allocation13 + $0x30] sm:$0xf]
    %v2381 = vld [vmem:[#allocation13 + $0x34] sm:$0xf]
    %v2382 = vld [vmem:[#allocation13 + $0x38] sm:$0xf]
    %v2383 = vld [vmem:[#allocation13 + $0x3c] sm:$0xf]
    %v2400 = vunpack.c.l.b16 %v2368
    %v2401 = vunpack.c.l.b16 %v2369
    %v2402 = vunpack.c.l.b16 %v2370
    %v2403 = vunpack.c.l.b16 %v2371
    %v2404 = vunpack.c.l.b16 %v2372
    %v2405 = vunpack.c.l.b16 %v2373
    %v2406 = vunpack.c.l.b16 %v2374
    %v2407 = vunpack.c.l.b16 %v2375
    %v2408 = vunpack.c.l.b16 %v2376
    %v2409 = vunpack.c.l.b16 %v2377
    %v2410 = vunpack.c.l.b16 %v2378
    %v2411 = vunpack.c.l.b16 %v2379
    %v2412 = vunpack.c.l.b16 %v2380
    %v2413 = vunpack.c.l.b16 %v2381
    %v2414 = vunpack.c.l.b16 %v2382
    %v2415 = vunpack.c.l.b16 %v2383
    %v2416 = vpack.c.b16 %v2401, %v2400
    %v2417 = vpack.c.b16 %v2403, %v2402
    %v2418 = vpack.c.b16 %v2405, %v2404
    %v2419 = vpack.c.b16 %v2407, %v2406
    %v2420 = vpack.c.b16 %v2409, %v2408
    %v2421 = vpack.c.b16 %v2411, %v2410
    %v2422 = vpack.c.b16 %v2413, %v2412
    %v2423 = vpack.c.b16 %v2415, %v2414
    %2432 = vmatprep.subr.bf16.mxu0 0
    %2433 = vmatpush1.bf16.msra.mxu0 %v2423
    %2434 = vmatprep.subr.bf16.mxu0 0
    %2435 = vmatpush1.bf16.msra.mxu0 %v2422
    %2436 = vmatprep.subr.bf16.mxu0 0
    %2437 = vmatpush1.bf16.msra.mxu0 %v2421
    %2438 = vmatprep.subr.bf16.mxu0 0
    %2439 = vmatpush1.bf16.msra.mxu0 %v2420
    %2440 = vmatprep.subr.bf16.mxu0 0
    %2441 = vmatpush1.bf16.msra.mxu0 %v2419
    %2442 = vmatprep.subr.bf16.mxu0 0
    %2443 = vmatpush1.bf16.msra.mxu0 %v2418
    %2444 = vmatprep.subr.bf16.mxu0 0
    %2445 = vmatpush1.bf16.msra.mxu0 %v2417
    %2446 = vmatprep.subr.bf16.mxu0 0
    %2447 = vmatpush1.bf16.msra.mxu0 %v2416
    %2448 = vmatprep.subr.bf16.mxu0 0
    %2449 = vmatpush2.bf16.msra.mxu0 0
    %2450 = vmatprep.subr.bf16.mxu0 0
    %2451 = vmatpush2.bf16.msra.mxu0 0
    %2452 = vmatprep.subr.bf16.mxu0 0
    %2453 = vmatpush2.bf16.msra.mxu0 0
    %2454 = vmatprep.subr.bf16.mxu0 0
    %2455 = vmatpush2.bf16.msra.mxu0 0
    %2456 = vmatprep.subr.bf16.mxu0 0
    %2457 = vmatpush2.bf16.msra.mxu0 0
    %2458 = vmatprep.subr.bf16.mxu0 0
    %2459 = vmatpush2.bf16.msra.mxu0 0
    %2460 = vmatprep.subr.bf16.mxu0 0
    %2461 = vmatpush2.bf16.msra.mxu0 0
    %2462 = vmatprep.subr.bf16.mxu0 0
    %2463 = vmatpush2.bf16.msra.mxu0 0
    %2464 = vmatprep.mubr.bf16.mxu0 0
    %2465 = vmatmul.mubr.bf16.gmra.mxu0 %v2360
    %v2466 = vpop.f32.mrf.mxu0
    %v2467 = vadd.f32 0.0, %v2466
    %v2468 = vpop.f32.mrf.mxu0
    %v2469 = vpop.f32.mrf.mxu0
    %v2470 = vadd.f32 0.0, %v2469
    %v2471 = vpop.f32.mrf.mxu0
    %2472 = vmatprep.mubr.bf16.mxu0 0
    %2473 = vmatmul.mubr.bf16.gmra.mxu0 %v2361
    %v2474 = vpop.f32.mrf.mxu0
    %v2475 = vadd.f32 0.0, %v2474
    %v2476 = vpop.f32.mrf.mxu0
    %v2477 = vpop.f32.mrf.mxu0
    %v2478 = vadd.f32 0.0, %v2477
    %v2479 = vpop.f32.mrf.mxu0
    %2480 = vmatprep.mubr.bf16.mxu0 0
    %2481 = vmatmul.mubr.bf16.gmra.mxu0 %v2362
    %v2482 = vpop.f32.mrf.mxu0
    %v2483 = vadd.f32 0.0, %v2482
    %v2484 = vpop.f32.mrf.mxu0
    %v2485 = vpop.f32.mrf.mxu0
    %v2486 = vadd.f32 0.0, %v2485
    %v2487 = vpop.f32.mrf.mxu0
    %2488 = vmatprep.mubr.bf16.mxu0 0
    %2489 = vmatmul.mubr.bf16.gmra.mxu0 %v2363
    %v2490 = vpop.f32.mrf.mxu0
    %v2491 = vadd.f32 0.0, %v2490
    %v2492 = vpop.f32.mrf.mxu0
    %v2493 = vpop.f32.mrf.mxu0
    %v2494 = vadd.f32 0.0, %v2493
    %v2495 = vpop.f32.mrf.mxu0
    %2496 = vmatprep.mubr.bf16.mxu0 0
    %2497 = vmatmul.mubr.bf16.gmra.mxu0 %v2364
    %v2498 = vpop.f32.mrf.mxu0
    %v2499 = vadd.f32 0.0, %v2498
    %v2500 = vpop.f32.mrf.mxu0
    %v2501 = vpop.f32.mrf.mxu0
    %v2502 = vadd.f32 0.0, %v2501
    %v2503 = vpop.f32.mrf.mxu0
    %2504 = vmatprep.mubr.bf16.mxu0 0
    %2505 = vmatmul.mubr.bf16.gmra.mxu0 %v2365
    %v2506 = vpop.f32.mrf.mxu0
    %v2507 = vadd.f32 0.0, %v2506
    %v2508 = vpop.f32.mrf.mxu0
    %v2509 = vpop.f32.mrf.mxu0
    %v2510 = vadd.f32 0.0, %v2509
    %v2511 = vpop.f32.mrf.mxu0
    %2512 = vmatprep.mubr.bf16.mxu0 0
    %2513 = vmatmul.mubr.bf16.gmra.mxu0 %v2366
    %v2514 = vpop.f32.mrf.mxu0
    %v2515 = vadd.f32 0.0, %v2514
    %v2516 = vpop.f32.mrf.mxu0
    %v2517 = vpop.f32.mrf.mxu0
    %v2518 = vadd.f32 0.0, %v2517
    %v2519 = vpop.f32.mrf.mxu0
    %2520 = vmatprep.mubr.bf16.mxu0 0
    %2521 = vmatmul.mubr.bf16.gmra.mxu0 %v2367
    %v2522 = vpop.f32.mrf.mxu0
    %v2523 = vadd.f32 0.0, %v2522
    %v2524 = vpop.f32.mrf.mxu0
    %v2525 = vpop.f32.mrf.mxu0
    %v2526 = vadd.f32 0.0, %v2525
    %v2527 = vpop.f32.mrf.mxu0
    %2528 = vdwg.mxu0
    %2529 = vadd.xlane.f32.xlu0 %v2467
    %v2530 = vpop.xlane.xlu0 %2529
    %2531 = vadd.xlane.f32.xlu0 %v2470
    %v2532 = vpop.xlane.xlu0 %2531
    %2533 = vadd.xlane.f32.xlu0 %v2475
    %v2534 = vpop.xlane.xlu0 %2533
    %2535 = vadd.xlane.f32.xlu0 %v2478
    %v2536 = vpop.xlane.xlu0 %2535
    %2537 = vadd.xlane.f32.xlu0 %v2483
    %v2538 = vpop.xlane.xlu0 %2537
    %2539 = vadd.xlane.f32.xlu0 %v2486
    %v2540 = vpop.xlane.xlu0 %2539
    %2541 = vadd.xlane.f32.xlu0 %v2491
    %v2542 = vpop.xlane.xlu0 %2541
    %2543 = vadd.xlane.f32.xlu0 %v2494
    %v2544 = vpop.xlane.xlu0 %2543
    %2545 = vadd.xlane.f32.xlu0 %v2499
    %v2546 = vpop.xlane.xlu0 %2545
    %2547 = vadd.xlane.f32.xlu0 %v2502
    %v2548 = vpop.xlane.xlu0 %2547
    %2549 = vadd.xlane.f32.xlu0 %v2507
    %v2550 = vpop.xlane.xlu0 %2549
    %2551 = vadd.xlane.f32.xlu0 %v2510
    %v2552 = vpop.xlane.xlu0 %2551
    %2553 = vadd.xlane.f32.xlu0 %v2515
    %v2554 = vpop.xlane.xlu0 %2553
    %2555 = vadd.xlane.f32.xlu0 %v2518
    %v2556 = vpop.xlane.xlu0 %2555
    %2557 = vadd.xlane.f32.xlu0 %v2523
    %v2558 = vpop.xlane.xlu0 %2557
    %2559 = vadd.xlane.f32.xlu0 %v2526
    %v2560 = vpop.xlane.xlu0 %2559
    %v2561 = vmul.f32 %v2530, %v1281
    %v2562 = vmul.f32 %v2532, %v1281
    %v2563 = vmul.f32 %v2534, %v1281
    %v2564 = vmul.f32 %v2536, %v1281
    %v2565 = vmul.f32 %v2538, %v1281
    %v2566 = vmul.f32 %v2540, %v1281
    %v2567 = vmul.f32 %v2542, %v1281
    %v2568 = vmul.f32 %v2544, %v1281
    %v2569 = vmul.f32 %v2546, %v1281
    %v2570 = vmul.f32 %v2548, %v1281
    %v2571 = vmul.f32 %v2550, %v1281
    %v2572 = vmul.f32 %v2552, %v1281
    %v2573 = vmul.f32 %v2554, %v1281
    %v2574 = vmul.f32 %v2556, %v1281
    %v2575 = vmul.f32 %v2558, %v1281
    %v2576 = vmul.f32 %v2560, %v1281
    %v2577 = vsub.f32 %v2467, %v2561
    %v2578 = vsub.f32 %v2470, %v2562
    %v2579 = vsub.f32 %v2475, %v2563
    %v2580 = vsub.f32 %v2478, %v2564
    %v2581 = vsub.f32 %v2483, %v2565
    %v2582 = vsub.f32 %v2486, %v2566
    %v2583 = vsub.f32 %v2491, %v2567
    %v2584 = vsub.f32 %v2494, %v2568
    %v2585 = vsub.f32 %v2499, %v2569
    %v2586 = vsub.f32 %v2502, %v2570
    %v2587 = vsub.f32 %v2507, %v2571
    %v2588 = vsub.f32 %v2510, %v2572
    %v2589 = vsub.f32 %v2515, %v2573
    %v2590 = vsub.f32 %v2518, %v2574
    %v2591 = vsub.f32 %v2523, %v2575
    %v2592 = vsub.f32 %v2526, %v2576
    %v2593 = vmul.f32 %v2577, %v2577
    %v2594 = vmul.f32 %v2578, %v2578
    %v2595 = vmul.f32 %v2579, %v2579
    %v2596 = vmul.f32 %v2580, %v2580
    %v2597 = vmul.f32 %v2581, %v2581
    %v2598 = vmul.f32 %v2582, %v2582
    %v2599 = vmul.f32 %v2583, %v2583
    %v2600 = vmul.f32 %v2584, %v2584
    %v2601 = vmul.f32 %v2585, %v2585
    %v2602 = vmul.f32 %v2586, %v2586
    %v2603 = vmul.f32 %v2587, %v2587
    %v2604 = vmul.f32 %v2588, %v2588
    %v2605 = vmul.f32 %v2589, %v2589
    %v2606 = vmul.f32 %v2590, %v2590
    %v2607 = vmul.f32 %v2591, %v2591
    %v2608 = vmul.f32 %v2592, %v2592
    %2609 = vadd.xlane.f32.xlu0 %v2593
    %v2610 = vpop.xlane.xlu0 %2609
    %2611 = vadd.xlane.f32.xlu0 %v2594
    %v2612 = vpop.xlane.xlu0 %2611
    %2613 = vadd.xlane.f32.xlu0 %v2595
    %v2614 = vpop.xlane.xlu0 %2613
    %2615 = vadd.xlane.f32.xlu0 %v2596
    %v2616 = vpop.xlane.xlu0 %2615
    %2617 = vadd.xlane.f32.xlu0 %v2597
    %v2618 = vpop.xlane.xlu0 %2617
    %2619 = vadd.xlane.f32.xlu0 %v2598
    %v2620 = vpop.xlane.xlu0 %2619
    %2621 = vadd.xlane.f32.xlu0 %v2599
    %v2622 = vpop.xlane.xlu0 %2621
    %2623 = vadd.xlane.f32.xlu0 %v2600
    %v2624 = vpop.xlane.xlu0 %2623
    %2625 = vadd.xlane.f32.xlu0 %v2601
    %v2626 = vpop.xlane.xlu0 %2625
    %2627 = vadd.xlane.f32.xlu0 %v2602
    %v2628 = vpop.xlane.xlu0 %2627
    %2629 = vadd.xlane.f32.xlu0 %v2603
    %v2630 = vpop.xlane.xlu0 %2629
    %2631 = vadd.xlane.f32.xlu0 %v2604
    %v2632 = vpop.xlane.xlu0 %2631
    %2633 = vadd.xlane.f32.xlu0 %v2605
    %v2634 = vpop.xlane.xlu0 %2633
    %2635 = vadd.xlane.f32.xlu0 %v2606
    %v2636 = vpop.xlane.xlu0 %2635
    %2637 = vadd.xlane.f32.xlu0 %v2607
    %v2638 = vpop.xlane.xlu0 %2637
    %2639 = vadd.xlane.f32.xlu0 %v2608
    %v2640 = vpop.xlane.xlu0 %2639
    %v2641 = vmul.f32 %v2610, %v1281
    %v2642 = vmul.f32 %v2612, %v1281
    %v2643 = vmul.f32 %v2614, %v1281
    %v2644 = vmul.f32 %v2616, %v1281
    %v2645 = vmul.f32 %v2618, %v1281
    %v2646 = vmul.f32 %v2620, %v1281
    %v2647 = vmul.f32 %v2622, %v1281
    %v2648 = vmul.f32 %v2624, %v1281
    %v2649 = vmul.f32 %v2626, %v1281
    %v2650 = vmul.f32 %v2628, %v1281
    %v2651 = vmul.f32 %v2630, %v1281
    %v2652 = vmul.f32 %v2632, %v1281
    %v2653 = vmul.f32 %v2634, %v1281
    %v2654 = vmul.f32 %v2636, %v1281
    %v2655 = vmul.f32 %v2638, %v1281
    %v2656 = vmul.f32 %v2640, %v1281
    %v2657 = vadd.f32 %v2641, 1e-05
    %v2658 = vadd.f32 %v2642, 1e-05
    %v2659 = vadd.f32 %v2643, 1e-05
    %v2660 = vadd.f32 %v2644, 1e-05
    %v2661 = vadd.f32 %v2645, 1e-05
    %v2662 = vadd.f32 %v2646, 1e-05
    %v2663 = vadd.f32 %v2647, 1e-05
    %v2664 = vadd.f32 %v2648, 1e-05
    %v2665 = vadd.f32 %v2649, 1e-05
    %v2666 = vadd.f32 %v2650, 1e-05
    %v2667 = vadd.f32 %v2651, 1e-05
    %v2668 = vadd.f32 %v2652, 1e-05
    %v2669 = vadd.f32 %v2653, 1e-05
    %v2670 = vadd.f32 %v2654, 1e-05
    %v2671 = vadd.f32 %v2655, 1e-05
    %v2672 = vadd.f32 %v2656, 1e-05
    %v2673 = vrsqrt.pop %v2657
    %v2674 = vrsqrt.pop %v2658
    %v2675 = vrsqrt.pop %v2659
    %v2676 = vrsqrt.pop %v2660
    %v2677 = vrsqrt.pop %v2661
    %v2678 = vrsqrt.pop %v2662
    %v2679 = vrsqrt.pop %v2663
    %v2680 = vrsqrt.pop %v2664
    %v2681 = vrsqrt.pop %v2665
    %v2682 = vrsqrt.pop %v2666
    %v2683 = vrsqrt.pop %v2667
    %v2684 = vrsqrt.pop %v2668
    %v2685 = vrsqrt.pop %v2669
    %v2686 = vrsqrt.pop %v2670
    %v2687 = vrsqrt.pop %v2671
    %v2688 = vrsqrt.pop %v2672
    %v2689 = vmul.f32 %v2577, %v2673
    %v2690 = vmul.f32 %v2578, %v2674
    %v2691 = vmul.f32 %v2579, %v2675
    %v2692 = vmul.f32 %v2580, %v2676
    %v2693 = vmul.f32 %v2581, %v2677
    %v2694 = vmul.f32 %v2582, %v2678
    %v2695 = vmul.f32 %v2583, %v2679
    %v2696 = vmul.f32 %v2584, %v2680
    %v2697 = vmul.f32 %v2585, %v2681
    %v2698 = vmul.f32 %v2586, %v2682
    %v2699 = vmul.f32 %v2587, %v2683
    %v2700 = vmul.f32 %v2588, %v2684
    %v2701 = vmul.f32 %v2589, %v2685
    %v2702 = vmul.f32 %v2590, %v2686
    %v2703 = vmul.f32 %v2591, %v2687
    %v2704 = vmul.f32 %v2592, %v2688
    %v2705 = vlaneseq
    %v2706 = vshrl.u32 %v2705, 7
    %v2707 = vsub.s32 2, %v2706
    %v2708 = vrot.slane %v176, %v2707
    %v2709 = vmul.f32 %v2689, %v2708
    %v2710 = vmul.f32 %v2690, %v2708
    %v2711 = vmul.f32 %v2691, %v2708
    %v2712 = vmul.f32 %v2692, %v2708
    %v2713 = vmul.f32 %v2693, %v2708
    %v2714 = vmul.f32 %v2694, %v2708
    %v2715 = vmul.f32 %v2695, %v2708
    %v2716 = vmul.f32 %v2696, %v2708
    %v2717 = vmul.f32 %v2697, %v2708
    %v2718 = vmul.f32 %v2698, %v2708
    %v2719 = vmul.f32 %v2699, %v2708
    %v2720 = vmul.f32 %v2700, %v2708
    %v2721 = vmul.f32 %v2701, %v2708
    %v2722 = vmul.f32 %v2702, %v2708
    %v2723 = vmul.f32 %v2703, %v2708
    %v2724 = vmul.f32 %v2704, %v2708
    %v2725 = vlaneseq
    %v2726 = vshrl.u32 %v2725, 7
    %v2727 = vsub.s32 3, %v2726
    %v2728 = vrot.slane %v176, %v2727
    %v2729 = vadd.f32 %v2709, %v2728
    %v2730 = vadd.f32 %v2710, %v2728
    %v2731 = vadd.f32 %v2711, %v2728
    %v2732 = vadd.f32 %v2712, %v2728
    %v2733 = vadd.f32 %v2713, %v2728
    %v2734 = vadd.f32 %v2714, %v2728
    %v2735 = vadd.f32 %v2715, %v2728
    %v2736 = vadd.f32 %v2716, %v2728
    %v2737 = vadd.f32 %v2717, %v2728
    %v2738 = vadd.f32 %v2718, %v2728
    %v2739 = vadd.f32 %v2719, %v2728
    %v2740 = vadd.f32 %v2720, %v2728
    %v2741 = vadd.f32 %v2721, %v2728
    %v2742 = vadd.f32 %v2722, %v2728
    %v2743 = vadd.f32 %v2723, %v2728
    %v2744 = vadd.f32 %v2724, %v2728
    %v2745 = vld [vmem:[#allocation14] sm:$0xff]
    %v2746 = vld [vmem:[#allocation14 + $0x8] sm:$0xff]
    %v2747 = vld [vmem:[#allocation14 + $0x10] sm:$0xff]
    %v2748 = vld [vmem:[#allocation14 + $0x18] sm:$0xff]
    %v2749 = vld [vmem:[#allocation14 + $0x20] sm:$0xff]
    %v2750 = vld [vmem:[#allocation14 + $0x28] sm:$0xff]
    %v2751 = vld [vmem:[#allocation14 + $0x30] sm:$0xff]
    %v2752 = vld [vmem:[#allocation14 + $0x38] sm:$0xff]
    %v2753 = vld [vmem:[#allocation14 + $0x40] sm:$0xff]
    %v2754 = vld [vmem:[#allocation14 + $0x48] sm:$0xff]
    %v2755 = vld [vmem:[#allocation14 + $0x50] sm:$0xff]
    %v2756 = vld [vmem:[#allocation14 + $0x58] sm:$0xff]
    %v2757 = vld [vmem:[#allocation14 + $0x60] sm:$0xff]
    %v2758 = vld [vmem:[#allocation14 + $0x68] sm:$0xff]
    %v2759 = vld [vmem:[#allocation14 + $0x70] sm:$0xff]
    %v2760 = vld [vmem:[#allocation14 + $0x78] sm:$0xff]
    %v2761 = vld [vmem:[#allocation14 + $0x80] sm:$0xff]
    %v2762 = vld [vmem:[#allocation14 + $0x88] sm:$0xff]
    %v2763 = vld [vmem:[#allocation14 + $0x90] sm:$0xff]
    %v2764 = vld [vmem:[#allocation14 + $0x98] sm:$0xff]
    %v2765 = vld [vmem:[#allocation14 + $0xa0] sm:$0xff]
    %v2766 = vld [vmem:[#allocation14 + $0xa8] sm:$0xff]
    %v2767 = vld [vmem:[#allocation14 + $0xb0] sm:$0xff]
    %v2768 = vld [vmem:[#allocation14 + $0xb8] sm:$0xff]
    %v2769 = vld [vmem:[#allocation14 + $0xc0] sm:$0xff]
    %v2770 = vld [vmem:[#allocation14 + $0xc8] sm:$0xff]
    %v2771 = vld [vmem:[#allocation14 + $0xd0] sm:$0xff]
    %v2772 = vld [vmem:[#allocation14 + $0xd8] sm:$0xff]
    %v2773 = vld [vmem:[#allocation14 + $0xe0] sm:$0xff]
    %v2774 = vld [vmem:[#allocation14 + $0xe8] sm:$0xff]
    %v2775 = vld [vmem:[#allocation14 + $0xf0] sm:$0xff]
    %v2776 = vld [vmem:[#allocation14 + $0xf8] sm:$0xff]
    %v2777 = vld [vmem:[#allocation14 + $0x100] sm:$0xff]
    %v2778 = vld [vmem:[#allocation14 + $0x108] sm:$0xff]
    %v2779 = vld [vmem:[#allocation14 + $0x110] sm:$0xff]
    %v2780 = vld [vmem:[#allocation14 + $0x118] sm:$0xff]
    %v2781 = vld [vmem:[#allocation14 + $0x120] sm:$0xff]
    %v2782 = vld [vmem:[#allocation14 + $0x128] sm:$0xff]
    %v2783 = vld [vmem:[#allocation14 + $0x130] sm:$0xff]
    %v2784 = vld [vmem:[#allocation14 + $0x138] sm:$0xff]
    %v2785 = vld [vmem:[#allocation14 + $0x140] sm:$0xff]
    %v2786 = vld [vmem:[#allocation14 + $0x148] sm:$0xff]
    %v2787 = vld [vmem:[#allocation14 + $0x150] sm:$0xff]
    %v2788 = vld [vmem:[#allocation14 + $0x158] sm:$0xff]
    %v2789 = vld [vmem:[#allocation14 + $0x160] sm:$0xff]
    %v2790 = vld [vmem:[#allocation14 + $0x168] sm:$0xff]
    %v2791 = vld [vmem:[#allocation14 + $0x170] sm:$0xff]
    %v2792 = vld [vmem:[#allocation14 + $0x178] sm:$0xff]
    %v2793 = vld [vmem:[#allocation14 + $0x180] sm:$0xff]
    %v2794 = vld [vmem:[#allocation14 + $0x188] sm:$0xff]
    %v2795 = vld [vmem:[#allocation14 + $0x190] sm:$0xff]
    %v2796 = vld [vmem:[#allocation14 + $0x198] sm:$0xff]
    %v2797 = vld [vmem:[#allocation14 + $0x1a0] sm:$0xff]
    %v2798 = vld [vmem:[#allocation14 + $0x1a8] sm:$0xff]
    %v2799 = vld [vmem:[#allocation14 + $0x1b0] sm:$0xff]
    %v2800 = vld [vmem:[#allocation14 + $0x1b8] sm:$0xff]
    %v2801 = vld [vmem:[#allocation14 + $0x1c0] sm:$0xff]
    %v2802 = vld [vmem:[#allocation14 + $0x1c8] sm:$0xff]
    %v2803 = vld [vmem:[#allocation14 + $0x1d0] sm:$0xff]
    %v2804 = vld [vmem:[#allocation14 + $0x1d8] sm:$0xff]
    %v2805 = vld [vmem:[#allocation14 + $0x1e0] sm:$0xff]
    %v2806 = vld [vmem:[#allocation14 + $0x1e8] sm:$0xff]
    %v2807 = vld [vmem:[#allocation14 + $0x1f0] sm:$0xff]
    %v2808 = vld [vmem:[#allocation14 + $0x1f8] sm:$0xff]
    %v2809 = vpack.c.bf16 %v2730, %v2729
    %v2810 = vpack.c.bf16 %v2732, %v2731
    %v2811 = vpack.c.bf16 %v2734, %v2733
    %v2812 = vpack.c.bf16 %v2736, %v2735
    %v2813 = vpack.c.bf16 %v2738, %v2737
    %v2814 = vpack.c.bf16 %v2740, %v2739
    %v2815 = vpack.c.bf16 %v2742, %v2741
    %v2816 = vpack.c.bf16 %v2744, %v2743
    %v2817 = vld [vmem:[#allocation16] sm:$0xff]
    %v2818 = vld [vmem:[#allocation16 + $0x8] sm:$0xff]
    %v2819 = vld [vmem:[#allocation16 + $0x10] sm:$0xff]
    %v2820 = vld [vmem:[#allocation16 + $0x18] sm:$0xff]
    %v2821 = vld [vmem:[#allocation16 + $0x20] sm:$0xff]
    %v2822 = vld [vmem:[#allocation16 + $0x28] sm:$0xff]
    %v2823 = vld [vmem:[#allocation16 + $0x30] sm:$0xff]
    %v2824 = vld [vmem:[#allocation16 + $0x38] sm:$0xff]
    %v2825 = vld [vmem:[#allocation16 + $0x40] sm:$0xff]
    %v2826 = vld [vmem:[#allocation16 + $0x48] sm:$0xff]
    %v2827 = vld [vmem:[#allocation16 + $0x50] sm:$0xff]
    %v2828 = vld [vmem:[#allocation16 + $0x58] sm:$0xff]
    %v2829 = vld [vmem:[#allocation16 + $0x60] sm:$0xff]
    %v2830 = vld [vmem:[#allocation16 + $0x68] sm:$0xff]
    %v2831 = vld [vmem:[#allocation16 + $0x70] sm:$0xff]
    %v2832 = vld [vmem:[#allocation16 + $0x78] sm:$0xff]
    %v2833 = vld [vmem:[#allocation16 + $0x80] sm:$0xff]
    %v2834 = vld [vmem:[#allocation16 + $0x88] sm:$0xff]
    %v2835 = vld [vmem:[#allocation16 + $0x90] sm:$0xff]
    %v2836 = vld [vmem:[#allocation16 + $0x98] sm:$0xff]
    %v2837 = vld [vmem:[#allocation16 + $0xa0] sm:$0xff]
    %v2838 = vld [vmem:[#allocation16 + $0xa8] sm:$0xff]
    %v2839 = vld [vmem:[#allocation16 + $0xb0] sm:$0xff]
    %v2840 = vld [vmem:[#allocation16 + $0xb8] sm:$0xff]
    %v2841 = vld [vmem:[#allocation16 + $0xc0] sm:$0xff]
    %v2842 = vld [vmem:[#allocation16 + $0xc8] sm:$0xff]
    %v2843 = vld [vmem:[#allocation16 + $0xd0] sm:$0xff]
    %v2844 = vld [vmem:[#allocation16 + $0xd8] sm:$0xff]
    %v2845 = vld [vmem:[#allocation16 + $0xe0] sm:$0xff]
    %v2846 = vld [vmem:[#allocation16 + $0xe8] sm:$0xff]
    %v2847 = vld [vmem:[#allocation16 + $0xf0] sm:$0xff]
    %v2848 = vld [vmem:[#allocation16 + $0xf8] sm:$0xff]
    %v2849 = vld [vmem:[#allocation16 + $0x100] sm:$0xff]
    %v2850 = vld [vmem:[#allocation16 + $0x108] sm:$0xff]
    %v2851 = vld [vmem:[#allocation16 + $0x110] sm:$0xff]
    %v2852 = vld [vmem:[#allocation16 + $0x118] sm:$0xff]
    %v2853 = vld [vmem:[#allocation16 + $0x120] sm:$0xff]
    %v2854 = vld [vmem:[#allocation16 + $0x128] sm:$0xff]
    %v2855 = vld [vmem:[#allocation16 + $0x130] sm:$0xff]
    %v2856 = vld [vmem:[#allocation16 + $0x138] sm:$0xff]
    %v2857 = vld [vmem:[#allocation16 + $0x140] sm:$0xff]
    %v2858 = vld [vmem:[#allocation16 + $0x148] sm:$0xff]
    %v2859 = vld [vmem:[#allocation16 + $0x150] sm:$0xff]
    %v2860 = vld [vmem:[#allocation16 + $0x158] sm:$0xff]
    %v2861 = vld [vmem:[#allocation16 + $0x160] sm:$0xff]
    %v2862 = vld [vmem:[#allocation16 + $0x168] sm:$0xff]
    %v2863 = vld [vmem:[#allocation16 + $0x170] sm:$0xff]
    %v2864 = vld [vmem:[#allocation16 + $0x178] sm:$0xff]
    %v2865 = vld [vmem:[#allocation16 + $0x180] sm:$0xff]
    %v2866 = vld [vmem:[#allocation16 + $0x188] sm:$0xff]
    %v2867 = vld [vmem:[#allocation16 + $0x190] sm:$0xff]
    %v2868 = vld [vmem:[#allocation16 + $0x198] sm:$0xff]
    %v2869 = vld [vmem:[#allocation16 + $0x1a0] sm:$0xff]
    %v2870 = vld [vmem:[#allocation16 + $0x1a8] sm:$0xff]
    %v2871 = vld [vmem:[#allocation16 + $0x1b0] sm:$0xff]
    %v2872 = vld [vmem:[#allocation16 + $0x1b8] sm:$0xff]
    %v2873 = vld [vmem:[#allocation16 + $0x1c0] sm:$0xff]
    %v2874 = vld [vmem:[#allocation16 + $0x1c8] sm:$0xff]
    %v2875 = vld [vmem:[#allocation16 + $0x1d0] sm:$0xff]
    %v2876 = vld [vmem:[#allocation16 + $0x1d8] sm:$0xff]
    %v2877 = vld [vmem:[#allocation16 + $0x1e0] sm:$0xff]
    %v2878 = vld [vmem:[#allocation16 + $0x1e8] sm:$0xff]
    %v2879 = vld [vmem:[#allocation16 + $0x1f0] sm:$0xff]
    %v2880 = vld [vmem:[#allocation16 + $0x1f8] sm:$0xff]
    %v2945 = vunpack.c.l.b16 %v2817
    %v2946 = vunpack.c.h.b16 %v2817
    %v2947 = vunpack.c.l.b16 %v2818
    %v2948 = vunpack.c.h.b16 %v2818
    %v2949 = vunpack.c.l.b16 %v2819
    %v2950 = vunpack.c.h.b16 %v2819
    %v2951 = vunpack.c.l.b16 %v2820
    %v2952 = vunpack.c.h.b16 %v2820
    %v2953 = vunpack.c.l.b16 %v2821
    %v2954 = vunpack.c.h.b16 %v2821
    %v2955 = vunpack.c.l.b16 %v2822
    %v2956 = vunpack.c.h.b16 %v2822
    %v2957 = vunpack.c.l.b16 %v2823
    %v2958 = vunpack.c.h.b16 %v2823
    %v2959 = vunpack.c.l.b16 %v2824
    %v2960 = vunpack.c.h.b16 %v2824
    %v2961 = vunpack.c.l.b16 %v2825
    %v2962 = vunpack.c.h.b16 %v2825
    %v2963 = vunpack.c.l.b16 %v2826
    %v2964 = vunpack.c.h.b16 %v2826
    %v2965 = vunpack.c.l.b16 %v2827
    %v2966 = vunpack.c.h.b16 %v2827
    %v2967 = vunpack.c.l.b16 %v2828
    %v2968 = vunpack.c.h.b16 %v2828
    %v2969 = vunpack.c.l.b16 %v2829
    %v2970 = vunpack.c.h.b16 %v2829
    %v2971 = vunpack.c.l.b16 %v2830
    %v2972 = vunpack.c.h.b16 %v2830
    %v2973 = vunpack.c.l.b16 %v2831
    %v2974 = vunpack.c.h.b16 %v2831
    %v2975 = vunpack.c.l.b16 %v2832
    %v2976 = vunpack.c.h.b16 %v2832
    %v2977 = vunpack.c.l.b16 %v2833
    %v2978 = vunpack.c.h.b16 %v2833
    %v2979 = vunpack.c.l.b16 %v2834
    %v2980 = vunpack.c.h.b16 %v2834
    %v2981 = vunpack.c.l.b16 %v2835
    %v2982 = vunpack.c.h.b16 %v2835
    %v2983 = vunpack.c.l.b16 %v2836
    %v2984 = vunpack.c.h.b16 %v2836
    %v2985 = vunpack.c.l.b16 %v2837
    %v2986 = vunpack.c.h.b16 %v2837
    %v2987 = vunpack.c.l.b16 %v2838
    %v2988 = vunpack.c.h.b16 %v2838
    %v2989 = vunpack.c.l.b16 %v2839
    %v2990 = vunpack.c.h.b16 %v2839
    %v2991 = vunpack.c.l.b16 %v2840
    %v2992 = vunpack.c.h.b16 %v2840
    %v2993 = vunpack.c.l.b16 %v2841
    %v2994 = vunpack.c.h.b16 %v2841
    %v2995 = vunpack.c.l.b16 %v2842
    %v2996 = vunpack.c.h.b16 %v2842
    %v2997 = vunpack.c.l.b16 %v2843
    %v2998 = vunpack.c.h.b16 %v2843
    %v2999 = vunpack.c.l.b16 %v2844
    %v3000 = vunpack.c.h.b16 %v2844
    %v3001 = vunpack.c.l.b16 %v2845
    %v3002 = vunpack.c.h.b16 %v2845
    %v3003 = vunpack.c.l.b16 %v2846
    %v3004 = vunpack.c.h.b16 %v2846
    %v3005 = vunpack.c.l.b16 %v2847
    %v3006 = vunpack.c.h.b16 %v2847
    %v3007 = vunpack.c.l.b16 %v2848
    %v3008 = vunpack.c.h.b16 %v2848
    %v3009 = vunpack.c.l.b16 %v2849
    %v3010 = vunpack.c.h.b16 %v2849
    %v3011 = vunpack.c.l.b16 %v2850
    %v3012 = vunpack.c.h.b16 %v2850
    %v3013 = vunpack.c.l.b16 %v2851
    %v3014 = vunpack.c.h.b16 %v2851
    %v3015 = vunpack.c.l.b16 %v2852
    %v3016 = vunpack.c.h.b16 %v2852
    %v3017 = vunpack.c.l.b16 %v2853
    %v3018 = vunpack.c.h.b16 %v2853
    %v3019 = vunpack.c.l.b16 %v2854
    %v3020 = vunpack.c.h.b16 %v2854
    %v3021 = vunpack.c.l.b16 %v2855
    %v3022 = vunpack.c.h.b16 %v2855
    %v3023 = vunpack.c.l.b16 %v2856
    %v3024 = vunpack.c.h.b16 %v2856
    %v3025 = vunpack.c.l.b16 %v2857
    %v3026 = vunpack.c.h.b16 %v2857
    %v3027 = vunpack.c.l.b16 %v2858
    %v3028 = vunpack.c.h.b16 %v2858
    %v3029 = vunpack.c.l.b16 %v2859
    %v3030 = vunpack.c.h.b16 %v2859
    %v3031 = vunpack.c.l.b16 %v2860
    %v3032 = vunpack.c.h.b16 %v2860
    %v3033 = vunpack.c.l.b16 %v2861
    %v3034 = vunpack.c.h.b16 %v2861
    %v3035 = vunpack.c.l.b16 %v2862
    %v3036 = vunpack.c.h.b16 %v2862
    %v3037 = vunpack.c.l.b16 %v2863
    %v3038 = vunpack.c.h.b16 %v2863
    %v3039 = vunpack.c.l.b16 %v2864
    %v3040 = vunpack.c.h.b16 %v2864
    %v3041 = vunpack.c.l.b16 %v2865
    %v3042 = vunpack.c.h.b16 %v2865
    %v3043 = vunpack.c.l.b16 %v2866
    %v3044 = vunpack.c.h.b16 %v2866
    %v3045 = vunpack.c.l.b16 %v2867
    %v3046 = vunpack.c.h.b16 %v2867
    %v3047 = vunpack.c.l.b16 %v2868
    %v3048 = vunpack.c.h.b16 %v2868
    %v3049 = vunpack.c.l.b16 %v2869
    %v3050 = vunpack.c.h.b16 %v2869
    %v3051 = vunpack.c.l.b16 %v2870
    %v3052 = vunpack.c.h.b16 %v2870
    %v3053 = vunpack.c.l.b16 %v2871
    %v3054 = vunpack.c.h.b16 %v2871
    %v3055 = vunpack.c.l.b16 %v2872
    %v3056 = vunpack.c.h.b16 %v2872
    %v3057 = vunpack.c.l.b16 %v2873
    %v3058 = vunpack.c.h.b16 %v2873
    %v3059 = vunpack.c.l.b16 %v2874
    %v3060 = vunpack.c.h.b16 %v2874
    %v3061 = vunpack.c.l.b16 %v2875
    %v3062 = vunpack.c.h.b16 %v2875
    %v3063 = vunpack.c.l.b16 %v2876
    %v3064 = vunpack.c.h.b16 %v2876
    %v3065 = vunpack.c.l.b16 %v2877
    %v3066 = vunpack.c.h.b16 %v2877
    %v3067 = vunpack.c.l.b16 %v2878
    %v3068 = vunpack.c.h.b16 %v2878
    %v3069 = vunpack.c.l.b16 %v2879
    %v3070 = vunpack.c.h.b16 %v2879
    %v3071 = vunpack.c.l.b16 %v2880
    %v3072 = vunpack.c.h.b16 %v2880
    %v3073 = vpack.c.b16 %v2953, %v2945
    %v3074 = vpack.c.b16 %v2954, %v2946
    %v3075 = vpack.c.b16 %v2955, %v2947
    %v3076 = vpack.c.b16 %v2956, %v2948
    %v3077 = vpack.c.b16 %v2957, %v2949
    %v3078 = vpack.c.b16 %v2958, %v2950
    %v3079 = vpack.c.b16 %v2959, %v2951
    %v3080 = vpack.c.b16 %v2960, %v2952
    %v3081 = vpack.c.b16 %v2969, %v2961
    %v3082 = vpack.c.b16 %v2970, %v2962
    %v3083 = vpack.c.b16 %v2971, %v2963
    %v3084 = vpack.c.b16 %v2972, %v2964
    %v3085 = vpack.c.b16 %v2973, %v2965
    %v3086 = vpack.c.b16 %v2974, %v2966
    %v3087 = vpack.c.b16 %v2975, %v2967
    %v3088 = vpack.c.b16 %v2976, %v2968
    %v3089 = vpack.c.b16 %v2985, %v2977
    %v3090 = vpack.c.b16 %v2986, %v2978
    %v3091 = vpack.c.b16 %v2987, %v2979
    %v3092 = vpack.c.b16 %v2988, %v2980
    %v3093 = vpack.c.b16 %v2989, %v2981
    %v3094 = vpack.c.b16 %v2990, %v2982
    %v3095 = vpack.c.b16 %v2991, %v2983
    %v3096 = vpack.c.b16 %v2992, %v2984
    %v3097 = vpack.c.b16 %v3001, %v2993
    %v3098 = vpack.c.b16 %v3002, %v2994
    %v3099 = vpack.c.b16 %v3003, %v2995
    %v3100 = vpack.c.b16 %v3004, %v2996
    %v3101 = vpack.c.b16 %v3005, %v2997
    %v3102 = vpack.c.b16 %v3006, %v2998
    %v3103 = vpack.c.b16 %v3007, %v2999
    %v3104 = vpack.c.b16 %v3008, %v3000
    %v3105 = vpack.c.b16 %v3017, %v3009
    %v3106 = vpack.c.b16 %v3018, %v3010
    %v3107 = vpack.c.b16 %v3019, %v3011
    %v3108 = vpack.c.b16 %v3020, %v3012
    %v3109 = vpack.c.b16 %v3021, %v3013
    %v3110 = vpack.c.b16 %v3022, %v3014
    %v3111 = vpack.c.b16 %v3023, %v3015
    %v3112 = vpack.c.b16 %v3024, %v3016
    %v3113 = vpack.c.b16 %v3033, %v3025
    %v3114 = vpack.c.b16 %v3034, %v3026
    %v3115 = vpack.c.b16 %v3035, %v3027
    %v3116 = vpack.c.b16 %v3036, %v3028
    %v3117 = vpack.c.b16 %v3037, %v3029
    %v3118 = vpack.c.b16 %v3038, %v3030
    %v3119 = vpack.c.b16 %v3039, %v3031
    %v3120 = vpack.c.b16 %v3040, %v3032
    %v3121 = vpack.c.b16 %v3049, %v3041
    %v3122 = vpack.c.b16 %v3050, %v3042
    %v3123 = vpack.c.b16 %v3051, %v3043
    %v3124 = vpack.c.b16 %v3052, %v3044
    %v3125 = vpack.c.b16 %v3053, %v3045
    %v3126 = vpack.c.b16 %v3054, %v3046
    %v3127 = vpack.c.b16 %v3055, %v3047
    %v3128 = vpack.c.b16 %v3056, %v3048
    %v3129 = vpack.c.b16 %v3065, %v3057
    %v3130 = vpack.c.b16 %v3066, %v3058
    %v3131 = vpack.c.b16 %v3067, %v3059
    %v3132 = vpack.c.b16 %v3068, %v3060
    %v3133 = vpack.c.b16 %v3069, %v3061
    %v3134 = vpack.c.b16 %v3070, %v3062
    %v3135 = vpack.c.b16 %v3071, %v3063
    %v3136 = vpack.c.b16 %v3072, %v3064
    %3201 = vmatprep.subr.bf16.mxu0 %v3130
    %3202 = vmatpush1.bf16.msra.mxu0 %v3129
    %3203 = vmatprep.subr.bf16.mxu0 %v3122
    %3204 = vmatpush1.bf16.msra.mxu0 %v3121
    %3205 = vmatprep.subr.bf16.mxu0 %v3114
    %3206 = vmatpush1.bf16.msra.mxu0 %v3113
    %3207 = vmatprep.subr.bf16.mxu0 %v3106
    %3208 = vmatpush1.bf16.msra.mxu0 %v3105
    %3209 = vmatprep.subr.bf16.mxu0 %v3098
    %3210 = vmatpush1.bf16.msra.mxu0 %v3097
    %3211 = vmatprep.subr.bf16.mxu0 %v3090
    %3212 = vmatpush1.bf16.msra.mxu0 %v3089
    %3213 = vmatprep.subr.bf16.mxu0 %v3082
    %3214 = vmatpush1.bf16.msra.mxu0 %v3081
    %3215 = vmatprep.subr.bf16.mxu0 %v3074
    %3216 = vmatpush1.bf16.msra.mxu0 %v3073
    %3217 = vmatprep.subr.bf16.mxu0 0
    %3218 = vmatpush2.bf16.msra.mxu0 0
    %3219 = vmatprep.subr.bf16.mxu0 0
    %3220 = vmatpush2.bf16.msra.mxu0 0
    %3221 = vmatprep.subr.bf16.mxu0 0
    %3222 = vmatpush2.bf16.msra.mxu0 0
    %3223 = vmatprep.subr.bf16.mxu0 0
    %3224 = vmatpush2.bf16.msra.mxu0 0
    %3225 = vmatprep.subr.bf16.mxu0 0
    %3226 = vmatpush2.bf16.msra.mxu0 0
    %3227 = vmatprep.subr.bf16.mxu0 0
    %3228 = vmatpush2.bf16.msra.mxu0 0
    %3229 = vmatprep.subr.bf16.mxu0 0
    %3230 = vmatpush2.bf16.msra.mxu0 0
    %3231 = vmatprep.subr.bf16.mxu0 0
    %3232 = vmatpush2.bf16.msra.mxu0 0
    %3233 = vmatprep.mubr.bf16.mxu0 0
    %3234 = vmatmul.mubr.bf16.gmra.mxu0 %v2809
    %v3235 = vpop.f32.mrf.mxu0
    %v3236 = vadd.f32 0.0, %v3235
    %v3237 = vpop.f32.mrf.mxu0
    %v3238 = vadd.f32 0.0, %v3237
    %v3239 = vpop.f32.mrf.mxu0
    %v3240 = vadd.f32 0.0, %v3239
    %v3241 = vpop.f32.mrf.mxu0
    %v3242 = vadd.f32 0.0, %v3241
    %3243 = vmatprep.mubr.bf16.mxu0 0
    %3244 = vmatmul.mubr.bf16.gmra.mxu0 %v2810
    %v3245 = vpop.f32.mrf.mxu0
    %v3246 = vadd.f32 0.0, %v3245
    %v3247 = vpop.f32.mrf.mxu0
    %v3248 = vadd.f32 0.0, %v3247
    %v3249 = vpop.f32.mrf.mxu0
    %v3250 = vadd.f32 0.0, %v3249
    %v3251 = vpop.f32.mrf.mxu0
    %v3252 = vadd.f32 0.0, %v3251
    %3253 = vmatprep.mubr.bf16.mxu0 0
    %3254 = vmatmul.mubr.bf16.gmra.mxu0 %v2811
    %v3255 = vpop.f32.mrf.mxu0
    %v3256 = vadd.f32 0.0, %v3255
    %v3257 = vpop.f32.mrf.mxu0
    %v3258 = vadd.f32 0.0, %v3257
    %v3259 = vpop.f32.mrf.mxu0
    %v3260 = vadd.f32 0.0, %v3259
    %v3261 = vpop.f32.mrf.mxu0
    %v3262 = vadd.f32 0.0, %v3261
    %3263 = vmatprep.mubr.bf16.mxu0 0
    %3264 = vmatmul.mubr.bf16.gmra.mxu0 %v2812
    %v3265 = vpop.f32.mrf.mxu0
    %v3266 = vadd.f32 0.0, %v3265
    %v3267 = vpop.f32.mrf.mxu0
    %v3268 = vadd.f32 0.0, %v3267
    %v3269 = vpop.f32.mrf.mxu0
    %v3270 = vadd.f32 0.0, %v3269
    %v3271 = vpop.f32.mrf.mxu0
    %v3272 = vadd.f32 0.0, %v3271
    %3273 = vmatprep.mubr.bf16.mxu0 0
    %3274 = vmatmul.mubr.bf16.gmra.mxu0 %v2813
    %v3275 = vpop.f32.mrf.mxu0
    %v3276 = vadd.f32 0.0, %v3275
    %v3277 = vpop.f32.mrf.mxu0
    %v3278 = vadd.f32 0.0, %v3277
    %v3279 = vpop.f32.mrf.mxu0
    %v3280 = vadd.f32 0.0, %v3279
    %v3281 = vpop.f32.mrf.mxu0
    %v3282 = vadd.f32 0.0, %v3281
    %3283 = vmatprep.mubr.bf16.mxu0 0
    %3284 = vmatmul.mubr.bf16.gmra.mxu0 %v2814
    %v3285 = vpop.f32.mrf.mxu0
    %v3286 = vadd.f32 0.0, %v3285
    %v3287 = vpop.f32.mrf.mxu0
    %v3288 = vadd.f32 0.0, %v3287
    %v3289 = vpop.f32.mrf.mxu0
    %v3290 = vadd.f32 0.0, %v3289
    %v3291 = vpop.f32.mrf.mxu0
    %v3292 = vadd.f32 0.0, %v3291
    %3293 = vmatprep.mubr.bf16.mxu0 0
    %3294 = vmatmul.mubr.bf16.gmra.mxu0 %v2815
    %v3295 = vpop.f32.mrf.mxu0
    %v3296 = vadd.f32 0.0, %v3295
    %v3297 = vpop.f32.mrf.mxu0
    %v3298 = vadd.f32 0.0, %v3297
    %v3299 = vpop.f32.mrf.mxu0
    %v3300 = vadd.f32 0.0, %v3299
    %v3301 = vpop.f32.mrf.mxu0
    %v3302 = vadd.f32 0.0, %v3301
    %3303 = vmatprep.mubr.bf16.mxu0 0
    %3304 = vmatmul.mubr.bf16.gmra.mxu0 %v2816
    %v3305 = vpop.f32.mrf.mxu0
    %v3306 = vadd.f32 0.0, %v3305
    %v3307 = vpop.f32.mrf.mxu0
    %v3308 = vadd.f32 0.0, %v3307
    %v3309 = vpop.f32.mrf.mxu0
    %v3310 = vadd.f32 0.0, %v3309
    %v3311 = vpop.f32.mrf.mxu0
    %v3312 = vadd.f32 0.0, %v3311
    %3313 = vdwg.mxu0
    %3314 = vmatprep.subr.bf16.mxu0 %v3132
    %3315 = vmatpush1.bf16.msra.mxu0 %v3131
    %3316 = vmatprep.subr.bf16.mxu0 %v3124
    %3317 = vmatpush1.bf16.msra.mxu0 %v3123
    %3318 = vmatprep.subr.bf16.mxu0 %v3116
    %3319 = vmatpush1.bf16.msra.mxu0 %v3115
    %3320 = vmatprep.subr.bf16.mxu0 %v3108
    %3321 = vmatpush1.bf16.msra.mxu0 %v3107
    %3322 = vmatprep.subr.bf16.mxu0 %v3100
    %3323 = vmatpush1.bf16.msra.mxu0 %v3099
    %3324 = vmatprep.subr.bf16.mxu0 %v3092
    %3325 = vmatpush1.bf16.msra.mxu0 %v3091
    %3326 = vmatprep.subr.bf16.mxu0 %v3084
    %3327 = vmatpush1.bf16.msra.mxu0 %v3083
    %3328 = vmatprep.subr.bf16.mxu0 %v3076
    %3329 = vmatpush1.bf16.msra.mxu0 %v3075
    %3330 = vmatprep.subr.bf16.mxu0 0
    %3331 = vmatpush2.bf16.msra.mxu0 0
    %3332 = vmatprep.subr.bf16.mxu0 0
    %3333 = vmatpush2.bf16.msra.mxu0 0
    %3334 = vmatprep.subr.bf16.mxu0 0
    %3335 = vmatpush2.bf16.msra.mxu0 0
    %3336 = vmatprep.subr.bf16.mxu0 0
    %3337 = vmatpush2.bf16.msra.mxu0 0
    %3338 = vmatprep.subr.bf16.mxu0 0
    %3339 = vmatpush2.bf16.msra.mxu0 0
    %3340 = vmatprep.subr.bf16.mxu0 0
    %3341 = vmatpush2.bf16.msra.mxu0 0
    %3342 = vmatprep.subr.bf16.mxu0 0
    %3343 = vmatpush2.bf16.msra.mxu0 0
    %3344 = vmatprep.subr.bf16.mxu0 0
    %3345 = vmatpush2.bf16.msra.mxu0 0
    %3346 = vmatprep.mubr.bf16.mxu0 0
    %3347 = vmatmul.mubr.bf16.gmra.mxu0 %v2809
    %v3348 = vpop.f32.mrf.mxu0
    %v3349 = vadd.f32 0.0, %v3348
    %v3350 = vpop.f32.mrf.mxu0
    %v3351 = vadd.f32 0.0, %v3350
    %v3352 = vpop.f32.mrf.mxu0
    %v3353 = vadd.f32 0.0, %v3352
    %v3354 = vpop.f32.mrf.mxu0
    %v3355 = vadd.f32 0.0, %v3354
    %3356 = vmatprep.mubr.bf16.mxu0 0
    %3357 = vmatmul.mubr.bf16.gmra.mxu0 %v2810
    %v3358 = vpop.f32.mrf.mxu0
    %v3359 = vadd.f32 0.0, %v3358
    %v3360 = vpop.f32.mrf.mxu0
    %v3361 = vadd.f32 0.0, %v3360
    %v3362 = vpop.f32.mrf.mxu0
    %v3363 = vadd.f32 0.0, %v3362
    %v3364 = vpop.f32.mrf.mxu0
    %v3365 = vadd.f32 0.0, %v3364
    %3366 = vmatprep.mubr.bf16.mxu0 0
    %3367 = vmatmul.mubr.bf16.gmra.mxu0 %v2811
    %v3368 = vpop.f32.mrf.mxu0
    %v3369 = vadd.f32 0.0, %v3368
    %v3370 = vpop.f32.mrf.mxu0
    %v3371 = vadd.f32 0.0, %v3370
    %v3372 = vpop.f32.mrf.mxu0
    %v3373 = vadd.f32 0.0, %v3372
    %v3374 = vpop.f32.mrf.mxu0
    %v3375 = vadd.f32 0.0, %v3374
    %3376 = vmatprep.mubr.bf16.mxu0 0
    %3377 = vmatmul.mubr.bf16.gmra.mxu0 %v2812
    %v3378 = vpop.f32.mrf.mxu0
    %v3379 = vadd.f32 0.0, %v3378
    %v3380 = vpop.f32.mrf.mxu0
    %v3381 = vadd.f32 0.0, %v3380
    %v3382 = vpop.f32.mrf.mxu0
    %v3383 = vadd.f32 0.0, %v3382
    %v3384 = vpop.f32.mrf.mxu0
    %v3385 = vadd.f32 0.0, %v3384
    %3386 = vmatprep.mubr.bf16.mxu0 0
    %3387 = vmatmul.mubr.bf16.gmra.mxu0 %v2813
    %v3388 = vpop.f32.mrf.mxu0
    %v3389 = vadd.f32 0.0, %v3388
    %v3390 = vpop.f32.mrf.mxu0
    %v3391 = vadd.f32 0.0, %v3390
    %v3392 = vpop.f32.mrf.mxu0
    %v3393 = vadd.f32 0.0, %v3392
    %v3394 = vpop.f32.mrf.mxu0
    %v3395 = vadd.f32 0.0, %v3394
    %3396 = vmatprep.mubr.bf16.mxu0 0
    %3397 = vmatmul.mubr.bf16.gmra.mxu0 %v2814
    %v3398 = vpop.f32.mrf.mxu0
    %v3399 = vadd.f32 0.0, %v3398
    %v3400 = vpop.f32.mrf.mxu0
    %v3401 = vadd.f32 0.0, %v3400
    %v3402 = vpop.f32.mrf.mxu0
    %v3403 = vadd.f32 0.0, %v3402
    %v3404 = vpop.f32.mrf.mxu0
    %v3405 = vadd.f32 0.0, %v3404
    %3406 = vmatprep.mubr.bf16.mxu0 0
    %3407 = vmatmul.mubr.bf16.gmra.mxu0 %v2815
    %v3408 = vpop.f32.mrf.mxu0
    %v3409 = vadd.f32 0.0, %v3408
    %v3410 = vpop.f32.mrf.mxu0
    %v3411 = vadd.f32 0.0, %v3410
    %v3412 = vpop.f32.mrf.mxu0
    %v3413 = vadd.f32 0.0, %v3412
    %v3414 = vpop.f32.mrf.mxu0
    %v3415 = vadd.f32 0.0, %v3414
    %3416 = vmatprep.mubr.bf16.mxu0 0
    %3417 = vmatmul.mubr.bf16.gmra.mxu0 %v2816
    %v3418 = vpop.f32.mrf.mxu0
    %v3419 = vadd.f32 0.0, %v3418
    %v3420 = vpop.f32.mrf.mxu0
    %v3421 = vadd.f32 0.0, %v3420
    %v3422 = vpop.f32.mrf.mxu0
    %v3423 = vadd.f32 0.0, %v3422
    %v3424 = vpop.f32.mrf.mxu0
    %v3425 = vadd.f32 0.0, %v3424
    %3426 = vdwg.mxu0
    %3427 = vmatprep.subr.bf16.mxu0 %v3134
    %3428 = vmatpush1.bf16.msra.mxu0 %v3133
    %3429 = vmatprep.subr.bf16.mxu0 %v3126
    %3430 = vmatpush1.bf16.msra.mxu0 %v3125
    %3431 = vmatprep.subr.bf16.mxu0 %v3118
    %3432 = vmatpush1.bf16.msra.mxu0 %v3117
    %3433 = vmatprep.subr.bf16.mxu0 %v3110
    %3434 = vmatpush1.bf16.msra.mxu0 %v3109
    %3435 = vmatprep.subr.bf16.mxu0 %v3102
    %3436 = vmatpush1.bf16.msra.mxu0 %v3101
    %3437 = vmatprep.subr.bf16.mxu0 %v3094
    %3438 = vmatpush1.bf16.msra.mxu0 %v3093
    %3439 = vmatprep.subr.bf16.mxu0 %v3086
    %3440 = vmatpush1.bf16.msra.mxu0 %v3085
    %3441 = vmatprep.subr.bf16.mxu0 %v3078
    %3442 = vmatpush1.bf16.msra.mxu0 %v3077
    %3443 = vmatprep.subr.bf16.mxu0 0
    %3444 = vmatpush2.bf16.msra.mxu0 0
    %3445 = vmatprep.subr.bf16.mxu0 0
    %3446 = vmatpush2.bf16.msra.mxu0 0
    %3447 = vmatprep.subr.bf16.mxu0 0
    %3448 = vmatpush2.bf16.msra.mxu0 0
    %3449 = vmatprep.subr.bf16.mxu0 0
    %3450 = vmatpush2.bf16.msra.mxu0 0
    %3451 = vmatprep.subr.bf16.mxu0 0
    %3452 = vmatpush2.bf16.msra.mxu0 0
    %3453 = vmatprep.subr.bf16.mxu0 0
    %3454 = vmatpush2.bf16.msra.mxu0 0
    %3455 = vmatprep.subr.bf16.mxu0 0
    %3456 = vmatpush2.bf16.msra.mxu0 0
    %3457 = vmatprep.subr.bf16.mxu0 0
    %3458 = vmatpush2.bf16.msra.mxu0 0
    %3459 = vmatprep.mubr.bf16.mxu0 0
    %3460 = vmatmul.mubr.bf16.gmra.mxu0 %v2809
    %v3461 = vpop.f32.mrf.mxu0
    %v3462 = vadd.f32 0.0, %v3461
    %v3463 = vpop.f32.mrf.mxu0
    %v3464 = vadd.f32 0.0, %v3463
    %v3465 = vpop.f32.mrf.mxu0
    %v3466 = vadd.f32 0.0, %v3465
    %v3467 = vpop.f32.mrf.mxu0
    %v3468 = vadd.f32 0.0, %v3467
    %3469 = vmatprep.mubr.bf16.mxu0 0
    %3470 = vmatmul.mubr.bf16.gmra.mxu0 %v2810
    %v3471 = vpop.f32.mrf.mxu0
    %v3472 = vadd.f32 0.0, %v3471
    %v3473 = vpop.f32.mrf.mxu0
    %v3474 = vadd.f32 0.0, %v3473
    %v3475 = vpop.f32.mrf.mxu0
    %v3476 = vadd.f32 0.0, %v3475
    %v3477 = vpop.f32.mrf.mxu0
    %v3478 = vadd.f32 0.0, %v3477
    %3479 = vmatprep.mubr.bf16.mxu0 0
    %3480 = vmatmul.mubr.bf16.gmra.mxu0 %v2811
    %v3481 = vpop.f32.mrf.mxu0
    %v3482 = vadd.f32 0.0, %v3481
    %v3483 = vpop.f32.mrf.mxu0
    %v3484 = vadd.f32 0.0, %v3483
    %v3485 = vpop.f32.mrf.mxu0
    %v3486 = vadd.f32 0.0, %v3485
    %v3487 = vpop.f32.mrf.mxu0
    %v3488 = vadd.f32 0.0, %v3487
    %3489 = vmatprep.mubr.bf16.mxu0 0
    %3490 = vmatmul.mubr.bf16.gmra.mxu0 %v2812
    %v3491 = vpop.f32.mrf.mxu0
    %v3492 = vadd.f32 0.0, %v3491
    %v3493 = vpop.f32.mrf.mxu0
    %v3494 = vadd.f32 0.0, %v3493
    %v3495 = vpop.f32.mrf.mxu0
    %v3496 = vadd.f32 0.0, %v3495
    %v3497 = vpop.f32.mrf.mxu0
    %v3498 = vadd.f32 0.0, %v3497
    %3499 = vmatprep.mubr.bf16.mxu0 0
    %3500 = vmatmul.mubr.bf16.gmra.mxu0 %v2813
    %v3501 = vpop.f32.mrf.mxu0
    %v3502 = vadd.f32 0.0, %v3501
    %v3503 = vpop.f32.mrf.mxu0
    %v3504 = vadd.f32 0.0, %v3503
    %v3505 = vpop.f32.mrf.mxu0
    %v3506 = vadd.f32 0.0, %v3505
    %v3507 = vpop.f32.mrf.mxu0
    %v3508 = vadd.f32 0.0, %v3507
    %3509 = vmatprep.mubr.bf16.mxu0 0
    %3510 = vmatmul.mubr.bf16.gmra.mxu0 %v2814
    %v3511 = vpop.f32.mrf.mxu0
    %v3512 = vadd.f32 0.0, %v3511
    %v3513 = vpop.f32.mrf.mxu0
    %v3514 = vadd.f32 0.0, %v3513
    %v3515 = vpop.f32.mrf.mxu0
    %v3516 = vadd.f32 0.0, %v3515
    %v3517 = vpop.f32.mrf.mxu0
    %v3518 = vadd.f32 0.0, %v3517
    %3519 = vmatprep.mubr.bf16.mxu0 0
    %3520 = vmatmul.mubr.bf16.gmra.mxu0 %v2815
    %v3521 = vpop.f32.mrf.mxu0
    %v3522 = vadd.f32 0.0, %v3521
    %v3523 = vpop.f32.mrf.mxu0
    %v3524 = vadd.f32 0.0, %v3523
    %v3525 = vpop.f32.mrf.mxu0
    %v3526 = vadd.f32 0.0, %v3525
    %v3527 = vpop.f32.mrf.mxu0
    %v3528 = vadd.f32 0.0, %v3527
    %3529 = vmatprep.mubr.bf16.mxu0 0
    %3530 = vmatmul.mubr.bf16.gmra.mxu0 %v2816
    %v3531 = vpop.f32.mrf.mxu0
    %v3532 = vadd.f32 0.0, %v3531
    %v3533 = vpop.f32.mrf.mxu0
    %v3534 = vadd.f32 0.0, %v3533
    %v3535 = vpop.f32.mrf.mxu0
    %v3536 = vadd.f32 0.0, %v3535
    %v3537 = vpop.f32.mrf.mxu0
    %v3538 = vadd.f32 0.0, %v3537
    %3539 = vdwg.mxu0
    %3540 = vmatprep.subr.bf16.mxu0 %v3136
    %3541 = vmatpush1.bf16.msra.mxu0 %v3135
    %3542 = vmatprep.subr.bf16.mxu0 %v3128
    %3543 = vmatpush1.bf16.msra.mxu0 %v3127
    %3544 = vmatprep.subr.bf16.mxu0 %v3120
    %3545 = vmatpush1.bf16.msra.mxu0 %v3119
    %3546 = vmatprep.subr.bf16.mxu0 %v3112
    %3547 = vmatpush1.bf16.msra.mxu0 %v3111
    %3548 = vmatprep.subr.bf16.mxu0 %v3104
    %3549 = vmatpush1.bf16.msra.mxu0 %v3103
    %3550 = vmatprep.subr.bf16.mxu0 %v3096
    %3551 = vmatpush1.bf16.msra.mxu0 %v3095
    %3552 = vmatprep.subr.bf16.mxu0 %v3088
    %3553 = vmatpush1.bf16.msra.mxu0 %v3087
    %3554 = vmatprep.subr.bf16.mxu0 %v3080
    %3555 = vmatpush1.bf16.msra.mxu0 %v3079
    %3556 = vmatprep.subr.bf16.mxu0 0
    %3557 = vmatpush2.bf16.msra.mxu0 0
    %3558 = vmatprep.subr.bf16.mxu0 0
    %3559 = vmatpush2.bf16.msra.mxu0 0
    %3560 = vmatprep.subr.bf16.mxu0 0
    %3561 = vmatpush2.bf16.msra.mxu0 0
    %3562 = vmatprep.subr.bf16.mxu0 0
    %3563 = vmatpush2.bf16.msra.mxu0 0
    %3564 = vmatprep.subr.bf16.mxu0 0
    %3565 = vmatpush2.bf16.msra.mxu0 0
    %3566 = vmatprep.subr.bf16.mxu0 0
    %3567 = vmatpush2.bf16.msra.mxu0 0
    %3568 = vmatprep.subr.bf16.mxu0 0
    %3569 = vmatpush2.bf16.msra.mxu0 0
    %3570 = vmatprep.subr.bf16.mxu0 0
    %3571 = vmatpush2.bf16.msra.mxu0 0
    %3572 = vmatprep.mubr.bf16.mxu0 0
    %3573 = vmatmul.mubr.bf16.gmra.mxu0 %v2809
    %v3574 = vpop.f32.mrf.mxu0
    %v3575 = vadd.f32 0.0, %v3574
    %v3576 = vpop.f32.mrf.mxu0
    %v3577 = vadd.f32 0.0, %v3576
    %v3578 = vpop.f32.mrf.mxu0
    %v3579 = vadd.f32 0.0, %v3578
    %v3580 = vpop.f32.mrf.mxu0
    %v3581 = vadd.f32 0.0, %v3580
    %3582 = vmatprep.mubr.bf16.mxu0 0
    %3583 = vmatmul.mubr.bf16.gmra.mxu0 %v2810
    %v3584 = vpop.f32.mrf.mxu0
    %v3585 = vadd.f32 0.0, %v3584
    %v3586 = vpop.f32.mrf.mxu0
    %v3587 = vadd.f32 0.0, %v3586
    %v3588 = vpop.f32.mrf.mxu0
    %v3589 = vadd.f32 0.0, %v3588
    %v3590 = vpop.f32.mrf.mxu0
    %v3591 = vadd.f32 0.0, %v3590
    %3592 = vmatprep.mubr.bf16.mxu0 0
    %3593 = vmatmul.mubr.bf16.gmra.mxu0 %v2811
    %v3594 = vpop.f32.mrf.mxu0
    %v3595 = vadd.f32 0.0, %v3594
    %v3596 = vpop.f32.mrf.mxu0
    %v3597 = vadd.f32 0.0, %v3596
    %v3598 = vpop.f32.mrf.mxu0
    %v3599 = vadd.f32 0.0, %v3598
    %v3600 = vpop.f32.mrf.mxu0
    %v3601 = vadd.f32 0.0, %v3600
    %3602 = vmatprep.mubr.bf16.mxu0 0
    %3603 = vmatmul.mubr.bf16.gmra.mxu0 %v2812
    %v3604 = vpop.f32.mrf.mxu0
    %v3605 = vadd.f32 0.0, %v3604
    %v3606 = vpop.f32.mrf.mxu0
    %v3607 = vadd.f32 0.0, %v3606
    %v3608 = vpop.f32.mrf.mxu0
    %v3609 = vadd.f32 0.0, %v3608
    %v3610 = vpop.f32.mrf.mxu0
    %v3611 = vadd.f32 0.0, %v3610
    %3612 = vmatprep.mubr.bf16.mxu0 0
    %3613 = vmatmul.mubr.bf16.gmra.mxu0 %v2813
    %v3614 = vpop.f32.mrf.mxu0
    %v3615 = vadd.f32 0.0, %v3614
    %v3616 = vpop.f32.mrf.mxu0
    %v3617 = vadd.f32 0.0, %v3616
    %v3618 = vpop.f32.mrf.mxu0
    %v3619 = vadd.f32 0.0, %v3618
    %v3620 = vpop.f32.mrf.mxu0
    %v3621 = vadd.f32 0.0, %v3620
    %3622 = vmatprep.mubr.bf16.mxu0 0
    %3623 = vmatmul.mubr.bf16.gmra.mxu0 %v2814
    %v3624 = vpop.f32.mrf.mxu0
    %v3625 = vadd.f32 0.0, %v3624
    %v3626 = vpop.f32.mrf.mxu0
    %v3627 = vadd.f32 0.0, %v3626
    %v3628 = vpop.f32.mrf.mxu0
    %v3629 = vadd.f32 0.0, %v3628
    %v3630 = vpop.f32.mrf.mxu0
    %v3631 = vadd.f32 0.0, %v3630
    %3632 = vmatprep.mubr.bf16.mxu0 0
    %3633 = vmatmul.mubr.bf16.gmra.mxu0 %v2815
    %v3634 = vpop.f32.mrf.mxu0
    %v3635 = vadd.f32 0.0, %v3634
    %v3636 = vpop.f32.mrf.mxu0
    %v3637 = vadd.f32 0.0, %v3636
    %v3638 = vpop.f32.mrf.mxu0
    %v3639 = vadd.f32 0.0, %v3638
    %v3640 = vpop.f32.mrf.mxu0
    %v3641 = vadd.f32 0.0, %v3640
    %3642 = vmatprep.mubr.bf16.mxu0 0
    %3643 = vmatmul.mubr.bf16.gmra.mxu0 %v2816
    %v3644 = vpop.f32.mrf.mxu0
    %v3645 = vadd.f32 0.0, %v3644
    %v3646 = vpop.f32.mrf.mxu0
    %v3647 = vadd.f32 0.0, %v3646
    %v3648 = vpop.f32.mrf.mxu0
    %v3649 = vadd.f32 0.0, %v3648
    %v3650 = vpop.f32.mrf.mxu0
    %v3651 = vadd.f32 0.0, %v3650
    %3652 = vdwg.mxu0
    %v3717 = vunpack.c.l.b16 %v2745
    %v3718 = vunpack.c.h.b16 %v2745
    %v3719 = vunpack.c.l.b16 %v2746
    %v3720 = vunpack.c.h.b16 %v2746
    %v3721 = vunpack.c.l.b16 %v2747
    %v3722 = vunpack.c.h.b16 %v2747
    %v3723 = vunpack.c.l.b16 %v2748
    %v3724 = vunpack.c.h.b16 %v2748
    %v3725 = vunpack.c.l.b16 %v2749
    %v3726 = vunpack.c.h.b16 %v2749
    %v3727 = vunpack.c.l.b16 %v2750
    %v3728 = vunpack.c.h.b16 %v2750
    %v3729 = vunpack.c.l.b16 %v2751
    %v3730 = vunpack.c.h.b16 %v2751
    %v3731 = vunpack.c.l.b16 %v2752
    %v3732 = vunpack.c.h.b16 %v2752
    %v3733 = vunpack.c.l.b16 %v2753
    %v3734 = vunpack.c.h.b16 %v2753
    %v3735 = vunpack.c.l.b16 %v2754
    %v3736 = vunpack.c.h.b16 %v2754
    %v3737 = vunpack.c.l.b16 %v2755
    %v3738 = vunpack.c.h.b16 %v2755
    %v3739 = vunpack.c.l.b16 %v2756
    %v3740 = vunpack.c.h.b16 %v2756
    %v3741 = vunpack.c.l.b16 %v2757
    %v3742 = vunpack.c.h.b16 %v2757
    %v3743 = vunpack.c.l.b16 %v2758
    %v3744 = vunpack.c.h.b16 %v2758
    %v3745 = vunpack.c.l.b16 %v2759
    %v3746 = vunpack.c.h.b16 %v2759
    %v3747 = vunpack.c.l.b16 %v2760
    %v3748 = vunpack.c.h.b16 %v2760
    %v3749 = vunpack.c.l.b16 %v2761
    %v3750 = vunpack.c.h.b16 %v2761
    %v3751 = vunpack.c.l.b16 %v2762
    %v3752 = vunpack.c.h.b16 %v2762
    %v3753 = vunpack.c.l.b16 %v2763
    %v3754 = vunpack.c.h.b16 %v2763
    %v3755 = vunpack.c.l.b16 %v2764
    %v3756 = vunpack.c.h.b16 %v2764
    %v3757 = vunpack.c.l.b16 %v2765
    %v3758 = vunpack.c.h.b16 %v2765
    %v3759 = vunpack.c.l.b16 %v2766
    %v3760 = vunpack.c.h.b16 %v2766
    %v3761 = vunpack.c.l.b16 %v2767
    %v3762 = vunpack.c.h.b16 %v2767
    %v3763 = vunpack.c.l.b16 %v2768
    %v3764 = vunpack.c.h.b16 %v2768
    %v3765 = vunpack.c.l.b16 %v2769
    %v3766 = vunpack.c.h.b16 %v2769
    %v3767 = vunpack.c.l.b16 %v2770
    %v3768 = vunpack.c.h.b16 %v2770
    %v3769 = vunpack.c.l.b16 %v2771
    %v3770 = vunpack.c.h.b16 %v2771
    %v3771 = vunpack.c.l.b16 %v2772
    %v3772 = vunpack.c.h.b16 %v2772
    %v3773 = vunpack.c.l.b16 %v2773
    %v3774 = vunpack.c.h.b16 %v2773
    %v3775 = vunpack.c.l.b16 %v2774
    %v3776 = vunpack.c.h.b16 %v2774
    %v3777 = vunpack.c.l.b16 %v2775
    %v3778 = vunpack.c.h.b16 %v2775
    %v3779 = vunpack.c.l.b16 %v2776
    %v3780 = vunpack.c.h.b16 %v2776
    %v3781 = vunpack.c.l.b16 %v2777
    %v3782 = vunpack.c.h.b16 %v2777
    %v3783 = vunpack.c.l.b16 %v2778
    %v3784 = vunpack.c.h.b16 %v2778
    %v3785 = vunpack.c.l.b16 %v2779
    %v3786 = vunpack.c.h.b16 %v2779
    %v3787 = vunpack.c.l.b16 %v2780
    %v3788 = vunpack.c.h.b16 %v2780
    %v3789 = vunpack.c.l.b16 %v2781
    %v3790 = vunpack.c.h.b16 %v2781
    %v3791 = vunpack.c.l.b16 %v2782
    %v3792 = vunpack.c.h.b16 %v2782
    %v3793 = vunpack.c.l.b16 %v2783
    %v3794 = vunpack.c.h.b16 %v2783
    %v3795 = vunpack.c.l.b16 %v2784
    %v3796 = vunpack.c.h.b16 %v2784
    %v3797 = vunpack.c.l.b16 %v2785
    %v3798 = vunpack.c.h.b16 %v2785
    %v3799 = vunpack.c.l.b16 %v2786
    %v3800 = vunpack.c.h.b16 %v2786
    %v3801 = vunpack.c.l.b16 %v2787
    %v3802 = vunpack.c.h.b16 %v2787
    %v3803 = vunpack.c.l.b16 %v2788
    %v3804 = vunpack.c.h.b16 %v2788
    %v3805 = vunpack.c.l.b16 %v2789
    %v3806 = vunpack.c.h.b16 %v2789
    %v3807 = vunpack.c.l.b16 %v2790
    %v3808 = vunpack.c.h.b16 %v2790
    %v3809 = vunpack.c.l.b16 %v2791
    %v3810 = vunpack.c.h.b16 %v2791
    %v3811 = vunpack.c.l.b16 %v2792
    %v3812 = vunpack.c.h.b16 %v2792
    %v3813 = vunpack.c.l.b16 %v2793
    %v3814 = vunpack.c.h.b16 %v2793
    %v3815 = vunpack.c.l.b16 %v2794
    %v3816 = vunpack.c.h.b16 %v2794
    %v3817 = vunpack.c.l.b16 %v2795
    %v3818 = vunpack.c.h.b16 %v2795
    %v3819 = vunpack.c.l.b16 %v2796
    %v3820 = vunpack.c.h.b16 %v2796
    %v3821 = vunpack.c.l.b16 %v2797
    %v3822 = vunpack.c.h.b16 %v2797
    %v3823 = vunpack.c.l.b16 %v2798
    %v3824 = vunpack.c.h.b16 %v2798
    %v3825 = vunpack.c.l.b16 %v2799
    %v3826 = vunpack.c.h.b16 %v2799
    %v3827 = vunpack.c.l.b16 %v2800
    %v3828 = vunpack.c.h.b16 %v2800
    %v3829 = vunpack.c.l.b16 %v2801
    %v3830 = vunpack.c.h.b16 %v2801
    %v3831 = vunpack.c.l.b16 %v2802
    %v3832 = vunpack.c.h.b16 %v2802
    %v3833 = vunpack.c.l.b16 %v2803
    %v3834 = vunpack.c.h.b16 %v2803
    %v3835 = vunpack.c.l.b16 %v2804
    %v3836 = vunpack.c.h.b16 %v2804
    %v3837 = vunpack.c.l.b16 %v2805
    %v3838 = vunpack.c.h.b16 %v2805
    %v3839 = vunpack.c.l.b16 %v2806
    %v3840 = vunpack.c.h.b16 %v2806
    %v3841 = vunpack.c.l.b16 %v2807
    %v3842 = vunpack.c.h.b16 %v2807
    %v3843 = vunpack.c.l.b16 %v2808
    %v3844 = vunpack.c.h.b16 %v2808
    %v3845 = vpack.c.b16 %v3725, %v3717
    %v3846 = vpack.c.b16 %v3726, %v3718
    %v3847 = vpack.c.b16 %v3727, %v3719
    %v3848 = vpack.c.b16 %v3728, %v3720
    %v3849 = vpack.c.b16 %v3729, %v3721
    %v3850 = vpack.c.b16 %v3730, %v3722
    %v3851 = vpack.c.b16 %v3731, %v3723
    %v3852 = vpack.c.b16 %v3732, %v3724
    %v3853 = vpack.c.b16 %v3741, %v3733
    %v3854 = vpack.c.b16 %v3742, %v3734
    %v3855 = vpack.c.b16 %v3743, %v3735
    %v3856 = vpack.c.b16 %v3744, %v3736
    %v3857 = vpack.c.b16 %v3745, %v3737
    %v3858 = vpack.c.b16 %v3746, %v3738
    %v3859 = vpack.c.b16 %v3747, %v3739
    %v3860 = vpack.c.b16 %v3748, %v3740
    %v3861 = vpack.c.b16 %v3757, %v3749
    %v3862 = vpack.c.b16 %v3758, %v3750
    %v3863 = vpack.c.b16 %v3759, %v3751
    %v3864 = vpack.c.b16 %v3760, %v3752
    %v3865 = vpack.c.b16 %v3761, %v3753
    %v3866 = vpack.c.b16 %v3762, %v3754
    %v3867 = vpack.c.b16 %v3763, %v3755
    %v3868 = vpack.c.b16 %v3764, %v3756
    %v3869 = vpack.c.b16 %v3773, %v3765
    %v3870 = vpack.c.b16 %v3774, %v3766
    %v3871 = vpack.c.b16 %v3775, %v3767
    %v3872 = vpack.c.b16 %v3776, %v3768
    %v3873 = vpack.c.b16 %v3777, %v3769
    %v3874 = vpack.c.b16 %v3778, %v3770
    %v3875 = vpack.c.b16 %v3779, %v3771
    %v3876 = vpack.c.b16 %v3780, %v3772
    %v3877 = vpack.c.b16 %v3789, %v3781
    %v3878 = vpack.c.b16 %v3790, %v3782
    %v3879 = vpack.c.b16 %v3791, %v3783
    %v3880 = vpack.c.b16 %v3792, %v3784
    %v3881 = vpack.c.b16 %v3793, %v3785
    %v3882 = vpack.c.b16 %v3794, %v3786
    %v3883 = vpack.c.b16 %v3795, %v3787
    %v3884 = vpack.c.b16 %v3796, %v3788
    %v3885 = vpack.c.b16 %v3805, %v3797
    %v3886 = vpack.c.b16 %v3806, %v3798
    %v3887 = vpack.c.b16 %v3807, %v3799
    %v3888 = vpack.c.b16 %v3808, %v3800
    %v3889 = vpack.c.b16 %v3809, %v3801
    %v3890 = vpack.c.b16 %v3810, %v3802
    %v3891 = vpack.c.b16 %v3811, %v3803
    %v3892 = vpack.c.b16 %v3812, %v3804
    %v3893 = vpack.c.b16 %v3821, %v3813
    %v3894 = vpack.c.b16 %v3822, %v3814
    %v3895 = vpack.c.b16 %v3823, %v3815
    %v3896 = vpack.c.b16 %v3824, %v3816
    %v3897 = vpack.c.b16 %v3825, %v3817
    %v3898 = vpack.c.b16 %v3826, %v3818
    %v3899 = vpack.c.b16 %v3827, %v3819
    %v3900 = vpack.c.b16 %v3828, %v3820
    %v3901 = vpack.c.b16 %v3837, %v3829
    %v3902 = vpack.c.b16 %v3838, %v3830
    %v3903 = vpack.c.b16 %v3839, %v3831
    %v3904 = vpack.c.b16 %v3840, %v3832
    %v3905 = vpack.c.b16 %v3841, %v3833
    %v3906 = vpack.c.b16 %v3842, %v3834
    %v3907 = vpack.c.b16 %v3843, %v3835
    %v3908 = vpack.c.b16 %v3844, %v3836
    %3973 = vmatprep.subr.bf16.mxu0 %v3902
    %3974 = vmatpush1.bf16.msra.mxu0 %v3901
    %3975 = vmatprep.subr.bf16.mxu0 %v3894
    %3976 = vmatpush1.bf16.msra.mxu0 %v3893
    %3977 = vmatprep.subr.bf16.mxu0 %v3886
    %3978 = vmatpush1.bf16.msra.mxu0 %v3885
    %3979 = vmatprep.subr.bf16.mxu0 %v3878
    %3980 = vmatpush1.bf16.msra.mxu0 %v3877
    %3981 = vmatprep.subr.bf16.mxu0 %v3870
    %3982 = vmatpush1.bf16.msra.mxu0 %v3869
    %3983 = vmatprep.subr.bf16.mxu0 %v3862
    %3984 = vmatpush1.bf16.msra.mxu0 %v3861
    %3985 = vmatprep.subr.bf16.mxu0 %v3854
    %3986 = vmatpush1.bf16.msra.mxu0 %v3853
    %3987 = vmatprep.subr.bf16.mxu0 %v3846
    %3988 = vmatpush1.bf16.msra.mxu0 %v3845
    %3989 = vmatprep.subr.bf16.mxu0 0
    %3990 = vmatpush2.bf16.msra.mxu0 0
    %3991 = vmatprep.subr.bf16.mxu0 0
    %3992 = vmatpush2.bf16.msra.mxu0 0
    %3993 = vmatprep.subr.bf16.mxu0 0
    %3994 = vmatpush2.bf16.msra.mxu0 0
    %3995 = vmatprep.subr.bf16.mxu0 0
    %3996 = vmatpush2.bf16.msra.mxu0 0
    %3997 = vmatprep.subr.bf16.mxu0 0
    %3998 = vmatpush2.bf16.msra.mxu0 0
    %3999 = vmatprep.subr.bf16.mxu0 0
    %4000 = vmatpush2.bf16.msra.mxu0 0
    %4001 = vmatprep.subr.bf16.mxu0 0
    %4002 = vmatpush2.bf16.msra.mxu0 0
    %4003 = vmatprep.subr.bf16.mxu0 0
    %4004 = vmatpush2.bf16.msra.mxu0 0
    %4005 = vmatprep.mubr.bf16.mxu0 0
    %4006 = vmatmul.mubr.bf16.gmra.mxu0 %v1482
    %v4007 = vpop.f32.mrf.mxu0
    %v4008 = vadd.f32 %v3236, %v4007
    %v4009 = vpop.f32.mrf.mxu0
    %v4010 = vadd.f32 %v3238, %v4009
    %v4011 = vpop.f32.mrf.mxu0
    %v4012 = vadd.f32 %v3240, %v4011
    %v4013 = vpop.f32.mrf.mxu0
    %v4014 = vadd.f32 %v3242, %v4013
    %4015 = vmatprep.mubr.bf16.mxu0 0
    %4016 = vmatmul.mubr.bf16.gmra.mxu0 %v1483
    %v4017 = vpop.f32.mrf.mxu0
    %v4018 = vadd.f32 %v3246, %v4017
    %v4019 = vpop.f32.mrf.mxu0
    %v4020 = vadd.f32 %v3248, %v4019
    %v4021 = vpop.f32.mrf.mxu0
    %v4022 = vadd.f32 %v3250, %v4021
    %v4023 = vpop.f32.mrf.mxu0
    %v4024 = vadd.f32 %v3252, %v4023
    %4025 = vmatprep.mubr.bf16.mxu0 0
    %4026 = vmatmul.mubr.bf16.gmra.mxu0 %v1484
    %v4027 = vpop.f32.mrf.mxu0
    %v4028 = vadd.f32 %v3256, %v4027
    %v4029 = vpop.f32.mrf.mxu0
    %v4030 = vadd.f32 %v3258, %v4029
    %v4031 = vpop.f32.mrf.mxu0
    %v4032 = vadd.f32 %v3260, %v4031
    %v4033 = vpop.f32.mrf.mxu0
    %v4034 = vadd.f32 %v3262, %v4033
    %4035 = vmatprep.mubr.bf16.mxu0 0
    %4036 = vmatmul.mubr.bf16.gmra.mxu0 %v1485
    %v4037 = vpop.f32.mrf.mxu0
    %v4038 = vadd.f32 %v3266, %v4037
    %v4039 = vpop.f32.mrf.mxu0
    %v4040 = vadd.f32 %v3268, %v4039
    %v4041 = vpop.f32.mrf.mxu0
    %v4042 = vadd.f32 %v3270, %v4041
    %v4043 = vpop.f32.mrf.mxu0
    %v4044 = vadd.f32 %v3272, %v4043
    %4045 = vmatprep.mubr.bf16.mxu0 0
    %4046 = vmatmul.mubr.bf16.gmra.mxu0 %v1486
    %v4047 = vpop.f32.mrf.mxu0
    %v4048 = vadd.f32 %v3276, %v4047
    %v4049 = vpop.f32.mrf.mxu0
    %v4050 = vadd.f32 %v3278, %v4049
    %v4051 = vpop.f32.mrf.mxu0
    %v4052 = vadd.f32 %v3280, %v4051
    %v4053 = vpop.f32.mrf.mxu0
    %v4054 = vadd.f32 %v3282, %v4053
    %4055 = vmatprep.mubr.bf16.mxu0 0
    %4056 = vmatmul.mubr.bf16.gmra.mxu0 %v1487
    %v4057 = vpop.f32.mrf.mxu0
    %v4058 = vadd.f32 %v3286, %v4057
    %v4059 = vpop.f32.mrf.mxu0
    %v4060 = vadd.f32 %v3288, %v4059
    %v4061 = vpop.f32.mrf.mxu0
    %v4062 = vadd.f32 %v3290, %v4061
    %v4063 = vpop.f32.mrf.mxu0
    %v4064 = vadd.f32 %v3292, %v4063
    %4065 = vmatprep.mubr.bf16.mxu0 0
    %4066 = vmatmul.mubr.bf16.gmra.mxu0 %v1488
    %v4067 = vpop.f32.mrf.mxu0
    %v4068 = vadd.f32 %v3296, %v4067
    %v4069 = vpop.f32.mrf.mxu0
    %v4070 = vadd.f32 %v3298, %v4069
    %v4071 = vpop.f32.mrf.mxu0
    %v4072 = vadd.f32 %v3300, %v4071
    %v4073 = vpop.f32.mrf.mxu0
    %v4074 = vadd.f32 %v3302, %v4073
    %4075 = vmatprep.mubr.bf16.mxu0 0
    %4076 = vmatmul.mubr.bf16.gmra.mxu0 %v1489
    %v4077 = vpop.f32.mrf.mxu0
    %v4078 = vadd.f32 %v3306, %v4077
    %v4079 = vpop.f32.mrf.mxu0
    %v4080 = vadd.f32 %v3308, %v4079
    %v4081 = vpop.f32.mrf.mxu0
    %v4082 = vadd.f32 %v3310, %v4081
    %v4083 = vpop.f32.mrf.mxu0
    %v4084 = vadd.f32 %v3312, %v4083
    %4085 = vdwg.mxu0
    %4086 = vmatprep.subr.bf16.mxu0 %v3904
    %4087 = vmatpush1.bf16.msra.mxu0 %v3903
    %4088 = vmatprep.subr.bf16.mxu0 %v3896
    %4089 = vmatpush1.bf16.msra.mxu0 %v3895
    %4090 = vmatprep.subr.bf16.mxu0 %v3888
    %4091 = vmatpush1.bf16.msra.mxu0 %v3887
    %4092 = vmatprep.subr.bf16.mxu0 %v3880
    %4093 = vmatpush1.bf16.msra.mxu0 %v3879
    %4094 = vmatprep.subr.bf16.mxu0 %v3872
    %4095 = vmatpush1.bf16.msra.mxu0 %v3871
    %4096 = vmatprep.subr.bf16.mxu0 %v3864
    %4097 = vmatpush1.bf16.msra.mxu0 %v3863
    %4098 = vmatprep.subr.bf16.mxu0 %v3856
    %4099 = vmatpush1.bf16.msra.mxu0 %v3855
    %4100 = vmatprep.subr.bf16.mxu0 %v3848
    %4101 = vmatpush1.bf16.msra.mxu0 %v3847
    %4102 = vmatprep.subr.bf16.mxu0 0
    %4103 = vmatpush2.bf16.msra.mxu0 0
    %4104 = vmatprep.subr.bf16.mxu0 0
    %4105 = vmatpush2.bf16.msra.mxu0 0
    %4106 = vmatprep.subr.bf16.mxu0 0
    %4107 = vmatpush2.bf16.msra.mxu0 0
    %4108 = vmatprep.subr.bf16.mxu0 0
    %4109 = vmatpush2.bf16.msra.mxu0 0
    %4110 = vmatprep.subr.bf16.mxu0 0
    %4111 = vmatpush2.bf16.msra.mxu0 0
    %4112 = vmatprep.subr.bf16.mxu0 0
    %4113 = vmatpush2.bf16.msra.mxu0 0
    %4114 = vmatprep.subr.bf16.mxu0 0
    %4115 = vmatpush2.bf16.msra.mxu0 0
    %4116 = vmatprep.subr.bf16.mxu0 0
    %4117 = vmatpush2.bf16.msra.mxu0 0
    %4118 = vmatprep.mubr.bf16.mxu0 0
    %4119 = vmatmul.mubr.bf16.gmra.mxu0 %v1482
    %v4120 = vpop.f32.mrf.mxu0
    %v4121 = vadd.f32 %v3349, %v4120
    %v4122 = vpop.f32.mrf.mxu0
    %v4123 = vadd.f32 %v3351, %v4122
    %v4124 = vpop.f32.mrf.mxu0
    %v4125 = vadd.f32 %v3353, %v4124
    %v4126 = vpop.f32.mrf.mxu0
    %v4127 = vadd.f32 %v3355, %v4126
    %4128 = vmatprep.mubr.bf16.mxu0 0
    %4129 = vmatmul.mubr.bf16.gmra.mxu0 %v1483
    %v4130 = vpop.f32.mrf.mxu0
    %v4131 = vadd.f32 %v3359, %v4130
    %v4132 = vpop.f32.mrf.mxu0
    %v4133 = vadd.f32 %v3361, %v4132
    %v4134 = vpop.f32.mrf.mxu0
    %v4135 = vadd.f32 %v3363, %v4134
    %v4136 = vpop.f32.mrf.mxu0
    %v4137 = vadd.f32 %v3365, %v4136
    %4138 = vmatprep.mubr.bf16.mxu0 0
    %4139 = vmatmul.mubr.bf16.gmra.mxu0 %v1484
    %v4140 = vpop.f32.mrf.mxu0
    %v4141 = vadd.f32 %v3369, %v4140
    %v4142 = vpop.f32.mrf.mxu0
    %v4143 = vadd.f32 %v3371, %v4142
    %v4144 = vpop.f32.mrf.mxu0
    %v4145 = vadd.f32 %v3373, %v4144
    %v4146 = vpop.f32.mrf.mxu0
    %v4147 = vadd.f32 %v3375, %v4146
    %4148 = vmatprep.mubr.bf16.mxu0 0
    %4149 = vmatmul.mubr.bf16.gmra.mxu0 %v1485
    %v4150 = vpop.f32.mrf.mxu0
    %v4151 = vadd.f32 %v3379, %v4150
    %v4152 = vpop.f32.mrf.mxu0
    %v4153 = vadd.f32 %v3381, %v4152
    %v4154 = vpop.f32.mrf.mxu0
    %v4155 = vadd.f32 %v3383, %v4154
    %v4156 = vpop.f32.mrf.mxu0
    %v4157 = vadd.f32 %v3385, %v4156
    %4158 = vmatprep.mubr.bf16.mxu0 0
    %4159 = vmatmul.mubr.bf16.gmra.mxu0 %v1486
    %v4160 = vpop.f32.mrf.mxu0
    %v4161 = vadd.f32 %v3389, %v4160
    %v4162 = vpop.f32.mrf.mxu0
    %v4163 = vadd.f32 %v3391, %v4162
    %v4164 = vpop.f32.mrf.mxu0
    %v4165 = vadd.f32 %v3393, %v4164
    %v4166 = vpop.f32.mrf.mxu0
    %v4167 = vadd.f32 %v3395, %v4166
    %4168 = vmatprep.mubr.bf16.mxu0 0
    %4169 = vmatmul.mubr.bf16.gmra.mxu0 %v1487
    %v4170 = vpop.f32.mrf.mxu0
    %v4171 = vadd.f32 %v3399, %v4170
    %v4172 = vpop.f32.mrf.mxu0
    %v4173 = vadd.f32 %v3401, %v4172
    %v4174 = vpop.f32.mrf.mxu0
    %v4175 = vadd.f32 %v3403, %v4174
    %v4176 = vpop.f32.mrf.mxu0
    %v4177 = vadd.f32 %v3405, %v4176
    %4178 = vmatprep.mubr.bf16.mxu0 0
    %4179 = vmatmul.mubr.bf16.gmra.mxu0 %v1488
    %v4180 = vpop.f32.mrf.mxu0
    %v4181 = vadd.f32 %v3409, %v4180
    %v4182 = vpop.f32.mrf.mxu0
    %v4183 = vadd.f32 %v3411, %v4182
    %v4184 = vpop.f32.mrf.mxu0
    %v4185 = vadd.f32 %v3413, %v4184
    %v4186 = vpop.f32.mrf.mxu0
    %v4187 = vadd.f32 %v3415, %v4186
    %4188 = vmatprep.mubr.bf16.mxu0 0
    %4189 = vmatmul.mubr.bf16.gmra.mxu0 %v1489
    %v4190 = vpop.f32.mrf.mxu0
    %v4191 = vadd.f32 %v3419, %v4190
    %v4192 = vpop.f32.mrf.mxu0
    %v4193 = vadd.f32 %v3421, %v4192
    %v4194 = vpop.f32.mrf.mxu0
    %v4195 = vadd.f32 %v3423, %v4194
    %v4196 = vpop.f32.mrf.mxu0
    %v4197 = vadd.f32 %v3425, %v4196
    %4198 = vdwg.mxu0
    %4199 = vmatprep.subr.bf16.mxu0 %v3906
    %4200 = vmatpush1.bf16.msra.mxu0 %v3905
    %4201 = vmatprep.subr.bf16.mxu0 %v3898
    %4202 = vmatpush1.bf16.msra.mxu0 %v3897
    %4203 = vmatprep.subr.bf16.mxu0 %v3890
    %4204 = vmatpush1.bf16.msra.mxu0 %v3889
    %4205 = vmatprep.subr.bf16.mxu0 %v3882
    %4206 = vmatpush1.bf16.msra.mxu0 %v3881
    %4207 = vmatprep.subr.bf16.mxu0 %v3874
    %4208 = vmatpush1.bf16.msra.mxu0 %v3873
    %4209 = vmatprep.subr.bf16.mxu0 %v3866
    %4210 = vmatpush1.bf16.msra.mxu0 %v3865
    %4211 = vmatprep.subr.bf16.mxu0 %v3858
    %4212 = vmatpush1.bf16.msra.mxu0 %v3857
    %4213 = vmatprep.subr.bf16.mxu0 %v3850
    %4214 = vmatpush1.bf16.msra.mxu0 %v3849
    %4215 = vmatprep.subr.bf16.mxu0 0
    %4216 = vmatpush2.bf16.msra.mxu0 0
    %4217 = vmatprep.subr.bf16.mxu0 0
    %4218 = vmatpush2.bf16.msra.mxu0 0
    %4219 = vmatprep.subr.bf16.mxu0 0
    %4220 = vmatpush2.bf16.msra.mxu0 0
    %4221 = vmatprep.subr.bf16.mxu0 0
    %4222 = vmatpush2.bf16.msra.mxu0 0
    %4223 = vmatprep.subr.bf16.mxu0 0
    %4224 = vmatpush2.bf16.msra.mxu0 0
    %4225 = vmatprep.subr.bf16.mxu0 0
    %4226 = vmatpush2.bf16.msra.mxu0 0
    %4227 = vmatprep.subr.bf16.mxu0 0
    %4228 = vmatpush2.bf16.msra.mxu0 0
    %4229 = vmatprep.subr.bf16.mxu0 0
    %4230 = vmatpush2.bf16.msra.mxu0 0
    %4231 = vmatprep.mubr.bf16.mxu0 0
    %4232 = vmatmul.mubr.bf16.gmra.mxu0 %v1482
    %v4233 = vpop.f32.mrf.mxu0
    %v4234 = vadd.f32 %v3462, %v4233
    %v4235 = vpop.f32.mrf.mxu0
    %v4236 = vadd.f32 %v3464, %v4235
    %v4237 = vpop.f32.mrf.mxu0
    %v4238 = vadd.f32 %v3466, %v4237
    %v4239 = vpop.f32.mrf.mxu0
    %v4240 = vadd.f32 %v3468, %v4239
    %4241 = vmatprep.mubr.bf16.mxu0 0
    %4242 = vmatmul.mubr.bf16.gmra.mxu0 %v1483
    %v4243 = vpop.f32.mrf.mxu0
    %v4244 = vadd.f32 %v3472, %v4243
    %v4245 = vpop.f32.mrf.mxu0
    %v4246 = vadd.f32 %v3474, %v4245
    %v4247 = vpop.f32.mrf.mxu0
    %v4248 = vadd.f32 %v3476, %v4247
    %v4249 = vpop.f32.mrf.mxu0
    %v4250 = vadd.f32 %v3478, %v4249
    %4251 = vmatprep.mubr.bf16.mxu0 0
    %4252 = vmatmul.mubr.bf16.gmra.mxu0 %v1484
    %v4253 = vpop.f32.mrf.mxu0
    %v4254 = vadd.f32 %v3482, %v4253
    %v4255 = vpop.f32.mrf.mxu0
    %v4256 = vadd.f32 %v3484, %v4255
    %v4257 = vpop.f32.mrf.mxu0
    %v4258 = vadd.f32 %v3486, %v4257
    %v4259 = vpop.f32.mrf.mxu0
    %v4260 = vadd.f32 %v3488, %v4259
    %4261 = vmatprep.mubr.bf16.mxu0 0
    %4262 = vmatmul.mubr.bf16.gmra.mxu0 %v1485
    %v4263 = vpop.f32.mrf.mxu0
    %v4264 = vadd.f32 %v3492, %v4263
    %v4265 = vpop.f32.mrf.mxu0
    %v4266 = vadd.f32 %v3494, %v4265
    %v4267 = vpop.f32.mrf.mxu0
    %v4268 = vadd.f32 %v3496, %v4267
    %v4269 = vpop.f32.mrf.mxu0
    %v4270 = vadd.f32 %v3498, %v4269
    %4271 = vmatprep.mubr.bf16.mxu0 0
    %4272 = vmatmul.mubr.bf16.gmra.mxu0 %v1486
    %v4273 = vpop.f32.mrf.mxu0
    %v4274 = vadd.f32 %v3502, %v4273
    %v4275 = vpop.f32.mrf.mxu0
    %v4276 = vadd.f32 %v3504, %v4275
    %v4277 = vpop.f32.mrf.mxu0
    %v4278 = vadd.f32 %v3506, %v4277
    %v4279 = vpop.f32.mrf.mxu0
    %v4280 = vadd.f32 %v3508, %v4279
    %4281 = vmatprep.mubr.bf16.mxu0 0
    %4282 = vmatmul.mubr.bf16.gmra.mxu0 %v1487
    %v4283 = vpop.f32.mrf.mxu0
    %v4284 = vadd.f32 %v3512, %v4283
    %v4285 = vpop.f32.mrf.mxu0
    %v4286 = vadd.f32 %v3514, %v4285
    %v4287 = vpop.f32.mrf.mxu0
    %v4288 = vadd.f32 %v3516, %v4287
    %v4289 = vpop.f32.mrf.mxu0
    %v4290 = vadd.f32 %v3518, %v4289
    %4291 = vmatprep.mubr.bf16.mxu0 0
    %4292 = vmatmul.mubr.bf16.gmra.mxu0 %v1488
    %v4293 = vpop.f32.mrf.mxu0
    %v4294 = vadd.f32 %v3522, %v4293
    %v4295 = vpop.f32.mrf.mxu0
    %v4296 = vadd.f32 %v3524, %v4295
    %v4297 = vpop.f32.mrf.mxu0
    %v4298 = vadd.f32 %v3526, %v4297
    %v4299 = vpop.f32.mrf.mxu0
    %v4300 = vadd.f32 %v3528, %v4299
    %4301 = vmatprep.mubr.bf16.mxu0 0
    %4302 = vmatmul.mubr.bf16.gmra.mxu0 %v1489
    %v4303 = vpop.f32.mrf.mxu0
    %v4304 = vadd.f32 %v3532, %v4303
    %v4305 = vpop.f32.mrf.mxu0
    %v4306 = vadd.f32 %v3534, %v4305
    %v4307 = vpop.f32.mrf.mxu0
    %v4308 = vadd.f32 %v3536, %v4307
    %v4309 = vpop.f32.mrf.mxu0
    %v4310 = vadd.f32 %v3538, %v4309
    %4311 = vdwg.mxu0
    %4312 = vmatprep.subr.bf16.mxu0 %v3908
    %4313 = vmatpush1.bf16.msra.mxu0 %v3907
    %4314 = vmatprep.subr.bf16.mxu0 %v3900
    %4315 = vmatpush1.bf16.msra.mxu0 %v3899
    %4316 = vmatprep.subr.bf16.mxu0 %v3892
    %4317 = vmatpush1.bf16.msra.mxu0 %v3891
    %4318 = vmatprep.subr.bf16.mxu0 %v3884
    %4319 = vmatpush1.bf16.msra.mxu0 %v3883
    %4320 = vmatprep.subr.bf16.mxu0 %v3876
    %4321 = vmatpush1.bf16.msra.mxu0 %v3875
    %4322 = vmatprep.subr.bf16.mxu0 %v3868
    %4323 = vmatpush1.bf16.msra.mxu0 %v3867
    %4324 = vmatprep.subr.bf16.mxu0 %v3860
    %4325 = vmatpush1.bf16.msra.mxu0 %v3859
    %4326 = vmatprep.subr.bf16.mxu0 %v3852
    %4327 = vmatpush1.bf16.msra.mxu0 %v3851
    %4328 = vmatprep.subr.bf16.mxu0 0
    %4329 = vmatpush2.bf16.msra.mxu0 0
    %4330 = vmatprep.subr.bf16.mxu0 0
    %4331 = vmatpush2.bf16.msra.mxu0 0
    %4332 = vmatprep.subr.bf16.mxu0 0
    %4333 = vmatpush2.bf16.msra.mxu0 0
    %4334 = vmatprep.subr.bf16.mxu0 0
    %4335 = vmatpush2.bf16.msra.mxu0 0
    %4336 = vmatprep.subr.bf16.mxu0 0
    %4337 = vmatpush2.bf16.msra.mxu0 0
    %4338 = vmatprep.subr.bf16.mxu0 0
    %4339 = vmatpush2.bf16.msra.mxu0 0
    %4340 = vmatprep.subr.bf16.mxu0 0
    %4341 = vmatpush2.bf16.msra.mxu0 0
    %4342 = vmatprep.subr.bf16.mxu0 0
    %4343 = vmatpush2.bf16.msra.mxu0 0
    %4344 = vmatprep.mubr.bf16.mxu0 0
    %4345 = vmatmul.mubr.bf16.gmra.mxu0 %v1482
    %v4346 = vpop.f32.mrf.mxu0
    %v4347 = vadd.f32 %v3575, %v4346
    %v4348 = vpop.f32.mrf.mxu0
    %v4349 = vadd.f32 %v3577, %v4348
    %v4350 = vpop.f32.mrf.mxu0
    %v4351 = vadd.f32 %v3579, %v4350
    %v4352 = vpop.f32.mrf.mxu0
    %v4353 = vadd.f32 %v3581, %v4352
    %4354 = vmatprep.mubr.bf16.mxu0 0
    %4355 = vmatmul.mubr.bf16.gmra.mxu0 %v1483
    %v4356 = vpop.f32.mrf.mxu0
    %v4357 = vadd.f32 %v3585, %v4356
    %v4358 = vpop.f32.mrf.mxu0
    %v4359 = vadd.f32 %v3587, %v4358
    %v4360 = vpop.f32.mrf.mxu0
    %v4361 = vadd.f32 %v3589, %v4360
    %v4362 = vpop.f32.mrf.mxu0
    %v4363 = vadd.f32 %v3591, %v4362
    %4364 = vmatprep.mubr.bf16.mxu0 0
    %4365 = vmatmul.mubr.bf16.gmra.mxu0 %v1484
    %v4366 = vpop.f32.mrf.mxu0
    %v4367 = vadd.f32 %v3595, %v4366
    %v4368 = vpop.f32.mrf.mxu0
    %v4369 = vadd.f32 %v3597, %v4368
    %v4370 = vpop.f32.mrf.mxu0
    %v4371 = vadd.f32 %v3599, %v4370
    %v4372 = vpop.f32.mrf.mxu0
    %v4373 = vadd.f32 %v3601, %v4372
    %4374 = vmatprep.mubr.bf16.mxu0 0
    %4375 = vmatmul.mubr.bf16.gmra.mxu0 %v1485
    %v4376 = vpop.f32.mrf.mxu0
    %v4377 = vadd.f32 %v3605, %v4376
    %v4378 = vpop.f32.mrf.mxu0
    %v4379 = vadd.f32 %v3607, %v4378
    %v4380 = vpop.f32.mrf.mxu0
    %v4381 = vadd.f32 %v3609, %v4380
    %v4382 = vpop.f32.mrf.mxu0
    %v4383 = vadd.f32 %v3611, %v4382
    %4384 = vmatprep.mubr.bf16.mxu0 0
    %4385 = vmatmul.mubr.bf16.gmra.mxu0 %v1486
    %v4386 = vpop.f32.mrf.mxu0
    %v4387 = vadd.f32 %v3615, %v4386
    %v4388 = vpop.f32.mrf.mxu0
    %v4389 = vadd.f32 %v3617, %v4388
    %v4390 = vpop.f32.mrf.mxu0
    %v4391 = vadd.f32 %v3619, %v4390
    %v4392 = vpop.f32.mrf.mxu0
    %v4393 = vadd.f32 %v3621, %v4392
    %4394 = vmatprep.mubr.bf16.mxu0 0
    %4395 = vmatmul.mubr.bf16.gmra.mxu0 %v1487
    %v4396 = vpop.f32.mrf.mxu0
    %v4397 = vadd.f32 %v3625, %v4396
    %v4398 = vpop.f32.mrf.mxu0
    %v4399 = vadd.f32 %v3627, %v4398
    %v4400 = vpop.f32.mrf.mxu0
    %v4401 = vadd.f32 %v3629, %v4400
    %v4402 = vpop.f32.mrf.mxu0
    %v4403 = vadd.f32 %v3631, %v4402
    %4404 = vmatprep.mubr.bf16.mxu0 0
    %4405 = vmatmul.mubr.bf16.gmra.mxu0 %v1488
    %v4406 = vpop.f32.mrf.mxu0
    %v4407 = vadd.f32 %v3635, %v4406
    %v4408 = vpop.f32.mrf.mxu0
    %v4409 = vadd.f32 %v3637, %v4408
    %v4410 = vpop.f32.mrf.mxu0
    %v4411 = vadd.f32 %v3639, %v4410
    %v4412 = vpop.f32.mrf.mxu0
    %v4413 = vadd.f32 %v3641, %v4412
    %4414 = vmatprep.mubr.bf16.mxu0 0
    %4415 = vmatmul.mubr.bf16.gmra.mxu0 %v1489
    %v4416 = vpop.f32.mrf.mxu0
    %v4417 = vadd.f32 %v3645, %v4416
    %v4418 = vpop.f32.mrf.mxu0
    %v4419 = vadd.f32 %v3647, %v4418
    %v4420 = vpop.f32.mrf.mxu0
    %v4421 = vadd.f32 %v3649, %v4420
    %v4422 = vpop.f32.mrf.mxu0
    %v4423 = vadd.f32 %v3651, %v4422
    %4424 = vdwg.mxu0
    %v4425 = vmul.f32 %v4008, 0.5
    %v4426 = vmul.f32 %v4010, 0.5
    %v4427 = vmul.f32 %v4121, 0.5
    %v4428 = vmul.f32 %v4123, 0.5
    %v4429 = vmul.f32 %v4234, 0.5
    %v4430 = vmul.f32 %v4236, 0.5
    %v4431 = vmul.f32 %v4347, 0.5
    %v4432 = vmul.f32 %v4349, 0.5
    %v4433 = vmul.f32 %v4012, 0.5
    %v4434 = vmul.f32 %v4014, 0.5
    %v4435 = vmul.f32 %v4125, 0.5
    %v4436 = vmul.f32 %v4127, 0.5
    %v4437 = vmul.f32 %v4238, 0.5
    %v4438 = vmul.f32 %v4240, 0.5
    %v4439 = vmul.f32 %v4351, 0.5
    %v4440 = vmul.f32 %v4353, 0.5
    %v4441 = vmul.f32 %v4018, 0.5
    %v4442 = vmul.f32 %v4020, 0.5
    %v4443 = vmul.f32 %v4131, 0.5
    %v4444 = vmul.f32 %v4133, 0.5
    %v4445 = vmul.f32 %v4244, 0.5
    %v4446 = vmul.f32 %v4246, 0.5
    %v4447 = vmul.f32 %v4357, 0.5
    %v4448 = vmul.f32 %v4359, 0.5
    %v4449 = vmul.f32 %v4022, 0.5
    %v4450 = vmul.f32 %v4024, 0.5
    %v4451 = vmul.f32 %v4135, 0.5
    %v4452 = vmul.f32 %v4137, 0.5
    %v4453 = vmul.f32 %v4248, 0.5
    %v4454 = vmul.f32 %v4250, 0.5
    %v4455 = vmul.f32 %v4361, 0.5
    %v4456 = vmul.f32 %v4363, 0.5
    %v4457 = vmul.f32 %v4028, 0.5
    %v4458 = vmul.f32 %v4030, 0.5
    %v4459 = vmul.f32 %v4141, 0.5
    %v4460 = vmul.f32 %v4143, 0.5
    %v4461 = vmul.f32 %v4254, 0.5
    %v4462 = vmul.f32 %v4256, 0.5
    %v4463 = vmul.f32 %v4367, 0.5
    %v4464 = vmul.f32 %v4369, 0.5
    %v4465 = vmul.f32 %v4032, 0.5
    %v4466 = vmul.f32 %v4034, 0.5
    %v4467 = vmul.f32 %v4145, 0.5
    %v4468 = vmul.f32 %v4147, 0.5
    %v4469 = vmul.f32 %v4258, 0.5
    %v4470 = vmul.f32 %v4260, 0.5
    %v4471 = vmul.f32 %v4371, 0.5
    %v4472 = vmul.f32 %v4373, 0.5
    %v4473 = vmul.f32 %v4038, 0.5
    %v4474 = vmul.f32 %v4040, 0.5
    %v4475 = vmul.f32 %v4151, 0.5
    %v4476 = vmul.f32 %v4153, 0.5
    %v4477 = vmul.f32 %v4264, 0.5
    %v4478 = vmul.f32 %v4266, 0.5
    %v4479 = vmul.f32 %v4377, 0.5
    %v4480 = vmul.f32 %v4379, 0.5
    %v4481 = vmul.f32 %v4042, 0.5
    %v4482 = vmul.f32 %v4044, 0.5
    %v4483 = vmul.f32 %v4155, 0.5
    %v4484 = vmul.f32 %v4157, 0.5
    %v4485 = vmul.f32 %v4268, 0.5
    %v4486 = vmul.f32 %v4270, 0.5
    %v4487 = vmul.f32 %v4381, 0.5
    %v4488 = vmul.f32 %v4383, 0.5
    %v4489 = vmul.f32 %v4048, 0.5
    %v4490 = vmul.f32 %v4050, 0.5
    %v4491 = vmul.f32 %v4161, 0.5
    %v4492 = vmul.f32 %v4163, 0.5
    %v4493 = vmul.f32 %v4274, 0.5
    %v4494 = vmul.f32 %v4276, 0.5
    %v4495 = vmul.f32 %v4387, 0.5
    %v4496 = vmul.f32 %v4389, 0.5
    %v4497 = vmul.f32 %v4052, 0.5
    %v4498 = vmul.f32 %v4054, 0.5
    %v4499 = vmul.f32 %v4165, 0.5
    %v4500 = vmul.f32 %v4167, 0.5
    %v4501 = vmul.f32 %v4278, 0.5
    %v4502 = vmul.f32 %v4280, 0.5
    %v4503 = vmul.f32 %v4391, 0.5
    %v4504 = vmul.f32 %v4393, 0.5
    %v4505 = vmul.f32 %v4058, 0.5
    %v4506 = vmul.f32 %v4060, 0.5
    %v4507 = vmul.f32 %v4171, 0.5
    %v4508 = vmul.f32 %v4173, 0.5
    %v4509 = vmul.f32 %v4284, 0.5
    %v4510 = vmul.f32 %v4286, 0.5
    %v4511 = vmul.f32 %v4397, 0.5
    %v4512 = vmul.f32 %v4399, 0.5
    %v4513 = vmul.f32 %v4062, 0.5
    %v4514 = vmul.f32 %v4064, 0.5
    %v4515 = vmul.f32 %v4175, 0.5
    %v4516 = vmul.f32 %v4177, 0.5
    %v4517 = vmul.f32 %v4288, 0.5
    %v4518 = vmul.f32 %v4290, 0.5
    %v4519 = vmul.f32 %v4401, 0.5
    %v4520 = vmul.f32 %v4403, 0.5
    %v4521 = vmul.f32 %v4068, 0.5
    %v4522 = vmul.f32 %v4070, 0.5
    %v4523 = vmul.f32 %v4181, 0.5
    %v4524 = vmul.f32 %v4183, 0.5
    %v4525 = vmul.f32 %v4294, 0.5
    %v4526 = vmul.f32 %v4296, 0.5
    %v4527 = vmul.f32 %v4407, 0.5
    %v4528 = vmul.f32 %v4409, 0.5
    %v4529 = vmul.f32 %v4072, 0.5
    %v4530 = vmul.f32 %v4074, 0.5
    %v4531 = vmul.f32 %v4185, 0.5
    %v4532 = vmul.f32 %v4187, 0.5
    %v4533 = vmul.f32 %v4298, 0.5
    %v4534 = vmul.f32 %v4300, 0.5
    %v4535 = vmul.f32 %v4411, 0.5
    %v4536 = vmul.f32 %v4413, 0.5
    %v4537 = vmul.f32 %v4078, 0.5
    %v4538 = vmul.f32 %v4080, 0.5
    %v4539 = vmul.f32 %v4191, 0.5
    %v4540 = vmul.f32 %v4193, 0.5
    %v4541 = vmul.f32 %v4304, 0.5
    %v4542 = vmul.f32 %v4306, 0.5
    %v4543 = vmul.f32 %v4417, 0.5
    %v4544 = vmul.f32 %v4419, 0.5
    %v4545 = vmul.f32 %v4082, 0.5
    %v4546 = vmul.f32 %v4084, 0.5
    %v4547 = vmul.f32 %v4195, 0.5
    %v4548 = vmul.f32 %v4197, 0.5
    %v4549 = vmul.f32 %v4308, 0.5
    %v4550 = vmul.f32 %v4310, 0.5
    %v4551 = vmul.f32 %v4421, 0.5
    %v4552 = vmul.f32 %v4423, 0.5
    %v4553 = vmul.f32 %v4008, 0.044715
    %v4554 = vmul.f32 %v4010, 0.044715
    %v4555 = vmul.f32 %v4121, 0.044715
    %v4556 = vmul.f32 %v4123, 0.044715
    %v4557 = vmul.f32 %v4234, 0.044715
    %v4558 = vmul.f32 %v4236, 0.044715
    %v4559 = vmul.f32 %v4347, 0.044715
    %v4560 = vmul.f32 %v4349, 0.044715
    %v4561 = vmul.f32 %v4012, 0.044715
    %v4562 = vmul.f32 %v4014, 0.044715
    %v4563 = vmul.f32 %v4125, 0.044715
    %v4564 = vmul.f32 %v4127, 0.044715
    %v4565 = vmul.f32 %v4238, 0.044715
    %v4566 = vmul.f32 %v4240, 0.044715
    %v4567 = vmul.f32 %v4351, 0.044715
    %v4568 = vmul.f32 %v4353, 0.044715
    %v4569 = vmul.f32 %v4018, 0.044715
    %v4570 = vmul.f32 %v4020, 0.044715
    %v4571 = vmul.f32 %v4131, 0.044715
    %v4572 = vmul.f32 %v4133, 0.044715
    %v4573 = vmul.f32 %v4244, 0.044715
    %v4574 = vmul.f32 %v4246, 0.044715
    %v4575 = vmul.f32 %v4357, 0.044715
    %v4576 = vmul.f32 %v4359, 0.044715
    %v4577 = vmul.f32 %v4022, 0.044715
    %v4578 = vmul.f32 %v4024, 0.044715
    %v4579 = vmul.f32 %v4135, 0.044715
    %v4580 = vmul.f32 %v4137, 0.044715
    %v4581 = vmul.f32 %v4248, 0.044715
    %v4582 = vmul.f32 %v4250, 0.044715
    %v4583 = vmul.f32 %v4361, 0.044715
    %v4584 = vmul.f32 %v4363, 0.044715
    %v4585 = vmul.f32 %v4028, 0.044715
    %v4586 = vmul.f32 %v4030, 0.044715
    %v4587 = vmul.f32 %v4141, 0.044715
    %v4588 = vmul.f32 %v4143, 0.044715
    %v4589 = vmul.f32 %v4254, 0.044715
    %v4590 = vmul.f32 %v4256, 0.044715
    %v4591 = vmul.f32 %v4367, 0.044715
    %v4592 = vmul.f32 %v4369, 0.044715
    %v4593 = vmul.f32 %v4032, 0.044715
    %v4594 = vmul.f32 %v4034, 0.044715
    %v4595 = vmul.f32 %v4145, 0.044715
    %v4596 = vmul.f32 %v4147, 0.044715
    %v4597 = vmul.f32 %v4258, 0.044715
    %v4598 = vmul.f32 %v4260, 0.044715
    %v4599 = vmul.f32 %v4371, 0.044715
    %v4600 = vmul.f32 %v4373, 0.044715
    %v4601 = vmul.f32 %v4038, 0.044715
    %v4602 = vmul.f32 %v4040, 0.044715
    %v4603 = vmul.f32 %v4151, 0.044715
    %v4604 = vmul.f32 %v4153, 0.044715
    %v4605 = vmul.f32 %v4264, 0.044715
    %v4606 = vmul.f32 %v4266, 0.044715
    %v4607 = vmul.f32 %v4377, 0.044715
    %v4608 = vmul.f32 %v4379, 0.044715
    %v4609 = vmul.f32 %v4042, 0.044715
    %v4610 = vmul.f32 %v4044, 0.044715
    %v4611 = vmul.f32 %v4155, 0.044715
    %v4612 = vmul.f32 %v4157, 0.044715
    %v4613 = vmul.f32 %v4268, 0.044715
    %v4614 = vmul.f32 %v4270, 0.044715
    %v4615 = vmul.f32 %v4381, 0.044715
    %v4616 = vmul.f32 %v4383, 0.044715
    %v4617 = vmul.f32 %v4048, 0.044715
    %v4618 = vmul.f32 %v4050, 0.044715
    %v4619 = vmul.f32 %v4161, 0.044715
    %v4620 = vmul.f32 %v4163, 0.044715
    %v4621 = vmul.f32 %v4274, 0.044715
    %v4622 = vmul.f32 %v4276, 0.044715
    %v4623 = vmul.f32 %v4387, 0.044715
    %v4624 = vmul.f32 %v4389, 0.044715
    %v4625 = vmul.f32 %v4052, 0.044715
    %v4626 = vmul.f32 %v4054, 0.044715
    %v4627 = vmul.f32 %v4165, 0.044715
    %v4628 = vmul.f32 %v4167, 0.044715
    %v4629 = vmul.f32 %v4278, 0.044715
    %v4630 = vmul.f32 %v4280, 0.044715
    %v4631 = vmul.f32 %v4391, 0.044715
    %v4632 = vmul.f32 %v4393, 0.044715
    %v4633 = vmul.f32 %v4058, 0.044715
    %v4634 = vmul.f32 %v4060, 0.044715
    %v4635 = vmul.f32 %v4171, 0.044715
    %v4636 = vmul.f32 %v4173, 0.044715
    %v4637 = vmul.f32 %v4284, 0.044715
    %v4638 = vmul.f32 %v4286, 0.044715
    %v4639 = vmul.f32 %v4397, 0.044715
    %v4640 = vmul.f32 %v4399, 0.044715
    %v4641 = vmul.f32 %v4062, 0.044715
    %v4642 = vmul.f32 %v4064, 0.044715
    %v4643 = vmul.f32 %v4175, 0.044715
    %v4644 = vmul.f32 %v4177, 0.044715
    %v4645 = vmul.f32 %v4288, 0.044715
    %v4646 = vmul.f32 %v4290, 0.044715
    %v4647 = vmul.f32 %v4401, 0.044715
    %v4648 = vmul.f32 %v4403, 0.044715
    %v4649 = vmul.f32 %v4068, 0.044715
    %v4650 = vmul.f32 %v4070, 0.044715
    %v4651 = vmul.f32 %v4181, 0.044715
    %v4652 = vmul.f32 %v4183, 0.044715
    %v4653 = vmul.f32 %v4294, 0.044715
    %v4654 = vmul.f32 %v4296, 0.044715
    %v4655 = vmul.f32 %v4407, 0.044715
    %v4656 = vmul.f32 %v4409, 0.044715
    %v4657 = vmul.f32 %v4072, 0.044715
    %v4658 = vmul.f32 %v4074, 0.044715
    %v4659 = vmul.f32 %v4185, 0.044715
    %v4660 = vmul.f32 %v4187, 0.044715
    %v4661 = vmul.f32 %v4298, 0.044715
    %v4662 = vmul.f32 %v4300, 0.044715
    %v4663 = vmul.f32 %v4411, 0.044715
    %v4664 = vmul.f32 %v4413, 0.044715
    %v4665 = vmul.f32 %v4078, 0.044715
    %v4666 = vmul.f32 %v4080, 0.044715
    %v4667 = vmul.f32 %v4191, 0.044715
    %v4668 = vmul.f32 %v4193, 0.044715
    %v4669 = vmul.f32 %v4304, 0.044715
    %v4670 = vmul.f32 %v4306, 0.044715
    %v4671 = vmul.f32 %v4417, 0.044715
    %v4672 = vmul.f32 %v4419, 0.044715
    %v4673 = vmul.f32 %v4082, 0.044715
    %v4674 = vmul.f32 %v4084, 0.044715
    %v4675 = vmul.f32 %v4195, 0.044715
    %v4676 = vmul.f32 %v4197, 0.044715
    %v4677 = vmul.f32 %v4308, 0.044715
    %v4678 = vmul.f32 %v4310, 0.044715
    %v4679 = vmul.f32 %v4421, 0.044715
    %v4680 = vmul.f32 %v4423, 0.044715
    %v4681 = vmul.f32 %v4553, %v4008
    %v4682 = vmul.f32 %v4554, %v4010
    %v4683 = vmul.f32 %v4555, %v4121
    %v4684 = vmul.f32 %v4556, %v4123
    %v4685 = vmul.f32 %v4557, %v4234
    %v4686 = vmul.f32 %v4558, %v4236
    %v4687 = vmul.f32 %v4559, %v4347
    %v4688 = vmul.f32 %v4560, %v4349
    %v4689 = vmul.f32 %v4561, %v4012
    %v4690 = vmul.f32 %v4562, %v4014
    %v4691 = vmul.f32 %v4563, %v4125
    %v4692 = vmul.f32 %v4564, %v4127
    %v4693 = vmul.f32 %v4565, %v4238
    %v4694 = vmul.f32 %v4566, %v4240
    %v4695 = vmul.f32 %v4567, %v4351
    %v4696 = vmul.f32 %v4568, %v4353
    %v4697 = vmul.f32 %v4569, %v4018
    %v4698 = vmul.f32 %v4570, %v4020
    %v4699 = vmul.f32 %v4571, %v4131
    %v4700 = vmul.f32 %v4572, %v4133
    %v4701 = vmul.f32 %v4573, %v4244
    %v4702 = vmul.f32 %v4574, %v4246
    %v4703 = vmul.f32 %v4575, %v4357
    %v4704 = vmul.f32 %v4576, %v4359
    %v4705 = vmul.f32 %v4577, %v4022
    %v4706 = vmul.f32 %v4578, %v4024
    %v4707 = vmul.f32 %v4579, %v4135
    %v4708 = vmul.f32 %v4580, %v4137
    %v4709 = vmul.f32 %v4581, %v4248
    %v4710 = vmul.f32 %v4582, %v4250
    %v4711 = vmul.f32 %v4583, %v4361
    %v4712 = vmul.f32 %v4584, %v4363
    %v4713 = vmul.f32 %v4585, %v4028
    %v4714 = vmul.f32 %v4586, %v4030
    %v4715 = vmul.f32 %v4587, %v4141
    %v4716 = vmul.f32 %v4588, %v4143
    %v4717 = vmul.f32 %v4589, %v4254
    %v4718 = vmul.f32 %v4590, %v4256
    %v4719 = vmul.f32 %v4591, %v4367
    %v4720 = vmul.f32 %v4592, %v4369
    %v4721 = vmul.f32 %v4593, %v4032
    %v4722 = vmul.f32 %v4594, %v4034
    %v4723 = vmul.f32 %v4595, %v4145
    %v4724 = vmul.f32 %v4596, %v4147
    %v4725 = vmul.f32 %v4597, %v4258
    %v4726 = vmul.f32 %v4598, %v4260
    %v4727 = vmul.f32 %v4599, %v4371
    %v4728 = vmul.f32 %v4600, %v4373
    %v4729 = vmul.f32 %v4601, %v4038
    %v4730 = vmul.f32 %v4602, %v4040
    %v4731 = vmul.f32 %v4603, %v4151
    %v4732 = vmul.f32 %v4604, %v4153
    %v4733 = vmul.f32 %v4605, %v4264
    %v4734 = vmul.f32 %v4606, %v4266
    %v4735 = vmul.f32 %v4607, %v4377
    %v4736 = vmul.f32 %v4608, %v4379
    %v4737 = vmul.f32 %v4609, %v4042
    %v4738 = vmul.f32 %v4610, %v4044
    %v4739 = vmul.f32 %v4611, %v4155
    %v4740 = vmul.f32 %v4612, %v4157
    %v4741 = vmul.f32 %v4613, %v4268
    %v4742 = vmul.f32 %v4614, %v4270
    %v4743 = vmul.f32 %v4615, %v4381
    %v4744 = vmul.f32 %v4616, %v4383
    %v4745 = vmul.f32 %v4617, %v4048
    %v4746 = vmul.f32 %v4618, %v4050
    %v4747 = vmul.f32 %v4619, %v4161
    %v4748 = vmul.f32 %v4620, %v4163
    %v4749 = vmul.f32 %v4621, %v4274
    %v4750 = vmul.f32 %v4622, %v4276
    %v4751 = vmul.f32 %v4623, %v4387
    %v4752 = vmul.f32 %v4624, %v4389
    %v4753 = vmul.f32 %v4625, %v4052
    %v4754 = vmul.f32 %v4626, %v4054
    %v4755 = vmul.f32 %v4627, %v4165
    %v4756 = vmul.f32 %v4628, %v4167
    %v4757 = vmul.f32 %v4629, %v4278
    %v4758 = vmul.f32 %v4630, %v4280
    %v4759 = vmul.f32 %v4631, %v4391
    %v4760 = vmul.f32 %v4632, %v4393
    %v4761 = vmul.f32 %v4633, %v4058
    %v4762 = vmul.f32 %v4634, %v4060
    %v4763 = vmul.f32 %v4635, %v4171
    %v4764 = vmul.f32 %v4636, %v4173
    %v4765 = vmul.f32 %v4637, %v4284
    %v4766 = vmul.f32 %v4638, %v4286
    %v4767 = vmul.f32 %v4639, %v4397
    %v4768 = vmul.f32 %v4640, %v4399
    %v4769 = vmul.f32 %v4641, %v4062
    %v4770 = vmul.f32 %v4642, %v4064
    %v4771 = vmul.f32 %v4643, %v4175
    %v4772 = vmul.f32 %v4644, %v4177
    %v4773 = vmul.f32 %v4645, %v4288
    %v4774 = vmul.f32 %v4646, %v4290
    %v4775 = vmul.f32 %v4647, %v4401
    %v4776 = vmul.f32 %v4648, %v4403
    %v4777 = vmul.f32 %v4649, %v4068
    %v4778 = vmul.f32 %v4650, %v4070
    %v4779 = vmul.f32 %v4651, %v4181
    %v4780 = vmul.f32 %v4652, %v4183
    %v4781 = vmul.f32 %v4653, %v4294
    %v4782 = vmul.f32 %v4654, %v4296
    %v4783 = vmul.f32 %v4655, %v4407
    %v4784 = vmul.f32 %v4656, %v4409
    %v4785 = vmul.f32 %v4657, %v4072
    %v4786 = vmul.f32 %v4658, %v4074
    %v4787 = vmul.f32 %v4659, %v4185
    %v4788 = vmul.f32 %v4660, %v4187
    %v4789 = vmul.f32 %v4661, %v4298
    %v4790 = vmul.f32 %v4662, %v4300
    %v4791 = vmul.f32 %v4663, %v4411
    %v4792 = vmul.f32 %v4664, %v4413
    %v4793 = vmul.f32 %v4665, %v4078
    %v4794 = vmul.f32 %v4666, %v4080
    %v4795 = vmul.f32 %v4667, %v4191
    %v4796 = vmul.f32 %v4668, %v4193
    %v4797 = vmul.f32 %v4669, %v4304
    %v4798 = vmul.f32 %v4670, %v4306
    %v4799 = vmul.f32 %v4671, %v4417
    %v4800 = vmul.f32 %v4672, %v4419
    %v4801 = vmul.f32 %v4673, %v4082
    %v4802 = vmul.f32 %v4674, %v4084
    %v4803 = vmul.f32 %v4675, %v4195
    %v4804 = vmul.f32 %v4676, %v4197
    %v4805 = vmul.f32 %v4677, %v4308
    %v4806 = vmul.f32 %v4678, %v4310
    %v4807 = vmul.f32 %v4679, %v4421
    %v4808 = vmul.f32 %v4680, %v4423
    %v4809 = vmul.f32 %v4681, %v4008
    %v4810 = vmul.f32 %v4682, %v4010
    %v4811 = vmul.f32 %v4683, %v4121
    %v4812 = vmul.f32 %v4684, %v4123
    %v4813 = vmul.f32 %v4685, %v4234
    %v4814 = vmul.f32 %v4686, %v4236
    %v4815 = vmul.f32 %v4687, %v4347
    %v4816 = vmul.f32 %v4688, %v4349
    %v4817 = vmul.f32 %v4689, %v4012
    %v4818 = vmul.f32 %v4690, %v4014
    %v4819 = vmul.f32 %v4691, %v4125
    %v4820 = vmul.f32 %v4692, %v4127
    %v4821 = vmul.f32 %v4693, %v4238
    %v4822 = vmul.f32 %v4694, %v4240
    %v4823 = vmul.f32 %v4695, %v4351
    %v4824 = vmul.f32 %v4696, %v4353
    %v4825 = vmul.f32 %v4697, %v4018
    %v4826 = vmul.f32 %v4698, %v4020
    %v4827 = vmul.f32 %v4699, %v4131
    %v4828 = vmul.f32 %v4700, %v4133
    %v4829 = vmul.f32 %v4701, %v4244
    %v4830 = vmul.f32 %v4702, %v4246
    %v4831 = vmul.f32 %v4703, %v4357
    %v4832 = vmul.f32 %v4704, %v4359
    %v4833 = vmul.f32 %v4705, %v4022
    %v4834 = vmul.f32 %v4706, %v4024
    %v4835 = vmul.f32 %v4707, %v4135
    %v4836 = vmul.f32 %v4708, %v4137
    %v4837 = vmul.f32 %v4709, %v4248
    %v4838 = vmul.f32 %v4710, %v4250
    %v4839 = vmul.f32 %v4711, %v4361
    %v4840 = vmul.f32 %v4712, %v4363
    %v4841 = vmul.f32 %v4713, %v4028
    %v4842 = vmul.f32 %v4714, %v4030
    %v4843 = vmul.f32 %v4715, %v4141
    %v4844 = vmul.f32 %v4716, %v4143
    %v4845 = vmul.f32 %v4717, %v4254
    %v4846 = vmul.f32 %v4718, %v4256
    %v4847 = vmul.f32 %v4719, %v4367
    %v4848 = vmul.f32 %v4720, %v4369
    %v4849 = vmul.f32 %v4721, %v4032
    %v4850 = vmul.f32 %v4722, %v4034
    %v4851 = vmul.f32 %v4723, %v4145
    %v4852 = vmul.f32 %v4724, %v4147
    %v4853 = vmul.f32 %v4725, %v4258
    %v4854 = vmul.f32 %v4726, %v4260
    %v4855 = vmul.f32 %v4727, %v4371
    %v4856 = vmul.f32 %v4728, %v4373
    %v4857 = vmul.f32 %v4729, %v4038
    %v4858 = vmul.f32 %v4730, %v4040
    %v4859 = vmul.f32 %v4731, %v4151
    %v4860 = vmul.f32 %v4732, %v4153
    %v4861 = vmul.f32 %v4733, %v4264
    %v4862 = vmul.f32 %v4734, %v4266
    %v4863 = vmul.f32 %v4735, %v4377
    %v4864 = vmul.f32 %v4736, %v4379
    %v4865 = vmul.f32 %v4737, %v4042
    %v4866 = vmul.f32 %v4738, %v4044
    %v4867 = vmul.f32 %v4739, %v4155
    %v4868 = vmul.f32 %v4740, %v4157
    %v4869 = vmul.f32 %v4741, %v4268
    %v4870 = vmul.f32 %v4742, %v4270
    %v4871 = vmul.f32 %v4743, %v4381
    %v4872 = vmul.f32 %v4744, %v4383
    %v4873 = vmul.f32 %v4745, %v4048
    %v4874 = vmul.f32 %v4746, %v4050
    %v4875 = vmul.f32 %v4747, %v4161
    %v4876 = vmul.f32 %v4748, %v4163
    %v4877 = vmul.f32 %v4749, %v4274
    %v4878 = vmul.f32 %v4750, %v4276
    %v4879 = vmul.f32 %v4751, %v4387
    %v4880 = vmul.f32 %v4752, %v4389
    %v4881 = vmul.f32 %v4753, %v4052
    %v4882 = vmul.f32 %v4754, %v4054
    %v4883 = vmul.f32 %v4755, %v4165
    %v4884 = vmul.f32 %v4756, %v4167
    %v4885 = vmul.f32 %v4757, %v4278
    %v4886 = vmul.f32 %v4758, %v4280
    %v4887 = vmul.f32 %v4759, %v4391
    %v4888 = vmul.f32 %v4760, %v4393
    %v4889 = vmul.f32 %v4761, %v4058
    %v4890 = vmul.f32 %v4762, %v4060
    %v4891 = vmul.f32 %v4763, %v4171
    %v4892 = vmul.f32 %v4764, %v4173
    %v4893 = vmul.f32 %v4765, %v4284
    %v4894 = vmul.f32 %v4766, %v4286
    %v4895 = vmul.f32 %v4767, %v4397
    %v4896 = vmul.f32 %v4768, %v4399
    %v4897 = vmul.f32 %v4769, %v4062
    %v4898 = vmul.f32 %v4770, %v4064
    %v4899 = vmul.f32 %v4771, %v4175
    %v4900 = vmul.f32 %v4772, %v4177
    %v4901 = vmul.f32 %v4773, %v4288
    %v4902 = vmul.f32 %v4774, %v4290
    %v4903 = vmul.f32 %v4775, %v4401
    %v4904 = vmul.f32 %v4776, %v4403
    %v4905 = vmul.f32 %v4777, %v4068
    %v4906 = vmul.f32 %v4778, %v4070
    %v4907 = vmul.f32 %v4779, %v4181
    %v4908 = vmul.f32 %v4780, %v4183
    %v4909 = vmul.f32 %v4781, %v4294
    %v4910 = vmul.f32 %v4782, %v4296
    %v4911 = vmul.f32 %v4783, %v4407
    %v4912 = vmul.f32 %v4784, %v4409
    %v4913 = vmul.f32 %v4785, %v4072
    %v4914 = vmul.f32 %v4786, %v4074
    %v4915 = vmul.f32 %v4787, %v4185
    %v4916 = vmul.f32 %v4788, %v4187
    %v4917 = vmul.f32 %v4789, %v4298
    %v4918 = vmul.f32 %v4790, %v4300
    %v4919 = vmul.f32 %v4791, %v4411
    %v4920 = vmul.f32 %v4792, %v4413
    %v4921 = vmul.f32 %v4793, %v4078
    %v4922 = vmul.f32 %v4794, %v4080
    %v4923 = vmul.f32 %v4795, %v4191
    %v4924 = vmul.f32 %v4796, %v4193
    %v4925 = vmul.f32 %v4797, %v4304
    %v4926 = vmul.f32 %v4798, %v4306
    %v4927 = vmul.f32 %v4799, %v4417
    %v4928 = vmul.f32 %v4800, %v4419
    %v4929 = vmul.f32 %v4801, %v4082
    %v4930 = vmul.f32 %v4802, %v4084
    %v4931 = vmul.f32 %v4803, %v4195
    %v4932 = vmul.f32 %v4804, %v4197
    %v4933 = vmul.f32 %v4805, %v4308
    %v4934 = vmul.f32 %v4806, %v4310
    %v4935 = vmul.f32 %v4807, %v4421
    %v4936 = vmul.f32 %v4808, %v4423
    %v4937 = vadd.f32 %v4008, %v4809
    %v4938 = vadd.f32 %v4010, %v4810
    %v4939 = vadd.f32 %v4121, %v4811
    %v4940 = vadd.f32 %v4123, %v4812
    %v4941 = vadd.f32 %v4234, %v4813
    %v4942 = vadd.f32 %v4236, %v4814
    %v4943 = vadd.f32 %v4347, %v4815
    %v4944 = vadd.f32 %v4349, %v4816
    %v4945 = vadd.f32 %v4012, %v4817
    %v4946 = vadd.f32 %v4014, %v4818
    %v4947 = vadd.f32 %v4125, %v4819
    %v4948 = vadd.f32 %v4127, %v4820
    %v4949 = vadd.f32 %v4238, %v4821
    %v4950 = vadd.f32 %v4240, %v4822
    %v4951 = vadd.f32 %v4351, %v4823
    %v4952 = vadd.f32 %v4353, %v4824
    %v4953 = vadd.f32 %v4018, %v4825
    %v4954 = vadd.f32 %v4020, %v4826
    %v4955 = vadd.f32 %v4131, %v4827
    %v4956 = vadd.f32 %v4133, %v4828
    %v4957 = vadd.f32 %v4244, %v4829
    %v4958 = vadd.f32 %v4246, %v4830
    %v4959 = vadd.f32 %v4357, %v4831
    %v4960 = vadd.f32 %v4359, %v4832
    %v4961 = vadd.f32 %v4022, %v4833
    %v4962 = vadd.f32 %v4024, %v4834
    %v4963 = vadd.f32 %v4135, %v4835
    %v4964 = vadd.f32 %v4137, %v4836
    %v4965 = vadd.f32 %v4248, %v4837
    %v4966 = vadd.f32 %v4250, %v4838
    %v4967 = vadd.f32 %v4361, %v4839
    %v4968 = vadd.f32 %v4363, %v4840
    %v4969 = vadd.f32 %v4028, %v4841
    %v4970 = vadd.f32 %v4030, %v4842
    %v4971 = vadd.f32 %v4141, %v4843
    %v4972 = vadd.f32 %v4143, %v4844
    %v4973 = vadd.f32 %v4254, %v4845
    %v4974 = vadd.f32 %v4256, %v4846
    %v4975 = vadd.f32 %v4367, %v4847
    %v4976 = vadd.f32 %v4369, %v4848
    %v4977 = vadd.f32 %v4032, %v4849
    %v4978 = vadd.f32 %v4034, %v4850
    %v4979 = vadd.f32 %v4145, %v4851
    %v4980 = vadd.f32 %v4147, %v4852
    %v4981 = vadd.f32 %v4258, %v4853
    %v4982 = vadd.f32 %v4260, %v4854
    %v4983 = vadd.f32 %v4371, %v4855
    %v4984 = vadd.f32 %v4373, %v4856
    %v4985 = vadd.f32 %v4038, %v4857
    %v4986 = vadd.f32 %v4040, %v4858
    %v4987 = vadd.f32 %v4151, %v4859
    %v4988 = vadd.f32 %v4153, %v4860
    %v4989 = vadd.f32 %v4264, %v4861
    %v4990 = vadd.f32 %v4266, %v4862
    %v4991 = vadd.f32 %v4377, %v4863
    %v4992 = vadd.f32 %v4379, %v4864
    %v4993 = vadd.f32 %v4042, %v4865
    %v4994 = vadd.f32 %v4044, %v4866
    %v4995 = vadd.f32 %v4155, %v4867
    %v4996 = vadd.f32 %v4157, %v4868
    %v4997 = vadd.f32 %v4268, %v4869
    %v4998 = vadd.f32 %v4270, %v4870
    %v4999 = vadd.f32 %v4381, %v4871
    %v5000 = vadd.f32 %v4383, %v4872
    %v5001 = vadd.f32 %v4048, %v4873
    %v5002 = vadd.f32 %v4050, %v4874
    %v5003 = vadd.f32 %v4161, %v4875
    %v5004 = vadd.f32 %v4163, %v4876
    %v5005 = vadd.f32 %v4274, %v4877
    %v5006 = vadd.f32 %v4276, %v4878
    %v5007 = vadd.f32 %v4387, %v4879
    %v5008 = vadd.f32 %v4389, %v4880
    %v5009 = vadd.f32 %v4052, %v4881
    %v5010 = vadd.f32 %v4054, %v4882
    %v5011 = vadd.f32 %v4165, %v4883
    %v5012 = vadd.f32 %v4167, %v4884
    %v5013 = vadd.f32 %v4278, %v4885
    %v5014 = vadd.f32 %v4280, %v4886
    %v5015 = vadd.f32 %v4391, %v4887
    %v5016 = vadd.f32 %v4393, %v4888
    %v5017 = vadd.f32 %v4058, %v4889
    %v5018 = vadd.f32 %v4060, %v4890
    %v5019 = vadd.f32 %v4171, %v4891
    %v5020 = vadd.f32 %v4173, %v4892
    %v5021 = vadd.f32 %v4284, %v4893
    %v5022 = vadd.f32 %v4286, %v4894
    %v5023 = vadd.f32 %v4397, %v4895
    %v5024 = vadd.f32 %v4399, %v4896
    %v5025 = vadd.f32 %v4062, %v4897
    %v5026 = vadd.f32 %v4064, %v4898
    %v5027 = vadd.f32 %v4175, %v4899
    %v5028 = vadd.f32 %v4177, %v4900
    %v5029 = vadd.f32 %v4288, %v4901
    %v5030 = vadd.f32 %v4290, %v4902
    %v5031 = vadd.f32 %v4401, %v4903
    %v5032 = vadd.f32 %v4403, %v4904
    %v5033 = vadd.f32 %v4068, %v4905
    %v5034 = vadd.f32 %v4070, %v4906
    %v5035 = vadd.f32 %v4181, %v4907
    %v5036 = vadd.f32 %v4183, %v4908
    %v5037 = vadd.f32 %v4294, %v4909
    %v5038 = vadd.f32 %v4296, %v4910
    %v5039 = vadd.f32 %v4407, %v4911
    %v5040 = vadd.f32 %v4409, %v4912
    %v5041 = vadd.f32 %v4072, %v4913
    %v5042 = vadd.f32 %v4074, %v4914
    %v5043 = vadd.f32 %v4185, %v4915
    %v5044 = vadd.f32 %v4187, %v4916
    %v5045 = vadd.f32 %v4298, %v4917
    %v5046 = vadd.f32 %v4300, %v4918
    %v5047 = vadd.f32 %v4411, %v4919
    %v5048 = vadd.f32 %v4413, %v4920
    %v5049 = vadd.f32 %v4078, %v4921
    %v5050 = vadd.f32 %v4080, %v4922
    %v5051 = vadd.f32 %v4191, %v4923
    %v5052 = vadd.f32 %v4193, %v4924
    %v5053 = vadd.f32 %v4304, %v4925
    %v5054 = vadd.f32 %v4306, %v4926
    %v5055 = vadd.f32 %v4417, %v4927
    %v5056 = vadd.f32 %v4419, %v4928
    %v5057 = vadd.f32 %v4082, %v4929
    %v5058 = vadd.f32 %v4084, %v4930
    %v5059 = vadd.f32 %v4195, %v4931
    %v5060 = vadd.f32 %v4197, %v4932
    %v5061 = vadd.f32 %v4308, %v4933
    %v5062 = vadd.f32 %v4310, %v4934
    %v5063 = vadd.f32 %v4421, %v4935
    %v5064 = vadd.f32 %v4423, %v4936
    %v5065 = vmul.f32 %v4937, 0.7978846
    %v5066 = vmul.f32 %v4938, 0.7978846
    %v5067 = vmul.f32 %v4939, 0.7978846
    %v5068 = vmul.f32 %v4940, 0.7978846
    %v5069 = vmul.f32 %v4941, 0.7978846
    %v5070 = vmul.f32 %v4942, 0.7978846
    %v5071 = vmul.f32 %v4943, 0.7978846
    %v5072 = vmul.f32 %v4944, 0.7978846
    %v5073 = vmul.f32 %v4945, 0.7978846
    %v5074 = vmul.f32 %v4946, 0.7978846
    %v5075 = vmul.f32 %v4947, 0.7978846
    %v5076 = vmul.f32 %v4948, 0.7978846
    %v5077 = vmul.f32 %v4949, 0.7978846
    %v5078 = vmul.f32 %v4950, 0.7978846
    %v5079 = vmul.f32 %v4951, 0.7978846
    %v5080 = vmul.f32 %v4952, 0.7978846
    %v5081 = vmul.f32 %v4953, 0.7978846
    %v5082 = vmul.f32 %v4954, 0.7978846
    %v5083 = vmul.f32 %v4955, 0.7978846
    %v5084 = vmul.f32 %v4956, 0.7978846
    %v5085 = vmul.f32 %v4957, 0.7978846
    %v5086 = vmul.f32 %v4958, 0.7978846
    %v5087 = vmul.f32 %v4959, 0.7978846
    %v5088 = vmul.f32 %v4960, 0.7978846
    %v5089 = vmul.f32 %v4961, 0.7978846
    %v5090 = vmul.f32 %v4962, 0.7978846
    %v5091 = vmul.f32 %v4963, 0.7978846
    %v5092 = vmul.f32 %v4964, 0.7978846
    %v5093 = vmul.f32 %v4965, 0.7978846
    %v5094 = vmul.f32 %v4966, 0.7978846
    %v5095 = vmul.f32 %v4967, 0.7978846
    %v5096 = vmul.f32 %v4968, 0.7978846
    %v5097 = vmul.f32 %v4969, 0.7978846
    %v5098 = vmul.f32 %v4970, 0.7978846
    %v5099 = vmul.f32 %v4971, 0.7978846
    %v5100 = vmul.f32 %v4972, 0.7978846
    %v5101 = vmul.f32 %v4973, 0.7978846
    %v5102 = vmul.f32 %v4974, 0.7978846
    %v5103 = vmul.f32 %v4975, 0.7978846
    %v5104 = vmul.f32 %v4976, 0.7978846
    %v5105 = vmul.f32 %v4977, 0.7978846
    %v5106 = vmul.f32 %v4978, 0.7978846
    %v5107 = vmul.f32 %v4979, 0.7978846
    %v5108 = vmul.f32 %v4980, 0.7978846
    %v5109 = vmul.f32 %v4981, 0.7978846
    %v5110 = vmul.f32 %v4982, 0.7978846
    %v5111 = vmul.f32 %v4983, 0.7978846
    %v5112 = vmul.f32 %v4984, 0.7978846
    %v5113 = vmul.f32 %v4985, 0.7978846
    %v5114 = vmul.f32 %v4986, 0.7978846
    %v5115 = vmul.f32 %v4987, 0.7978846
    %v5116 = vmul.f32 %v4988, 0.7978846
    %v5117 = vmul.f32 %v4989, 0.7978846
    %v5118 = vmul.f32 %v4990, 0.7978846
    %v5119 = vmul.f32 %v4991, 0.7978846
    %v5120 = vmul.f32 %v4992, 0.7978846
    %v5121 = vmul.f32 %v4993, 0.7978846
    %v5122 = vmul.f32 %v4994, 0.7978846
    %v5123 = vmul.f32 %v4995, 0.7978846
    %v5124 = vmul.f32 %v4996, 0.7978846
    %v5125 = vmul.f32 %v4997, 0.7978846
    %v5126 = vmul.f32 %v4998, 0.7978846
    %v5127 = vmul.f32 %v4999, 0.7978846
    %v5128 = vmul.f32 %v5000, 0.7978846
    %v5129 = vmul.f32 %v5001, 0.7978846
    %v5130 = vmul.f32 %v5002, 0.7978846
    %v5131 = vmul.f32 %v5003, 0.7978846
    %v5132 = vmul.f32 %v5004, 0.7978846
    %v5133 = vmul.f32 %v5005, 0.7978846
    %v5134 = vmul.f32 %v5006, 0.7978846
    %v5135 = vmul.f32 %v5007, 0.7978846
    %v5136 = vmul.f32 %v5008, 0.7978846
    %v5137 = vmul.f32 %v5009, 0.7978846
    %v5138 = vmul.f32 %v5010, 0.7978846
    %v5139 = vmul.f32 %v5011, 0.7978846
    %v5140 = vmul.f32 %v5012, 0.7978846
    %v5141 = vmul.f32 %v5013, 0.7978846
    %v5142 = vmul.f32 %v5014, 0.7978846
    %v5143 = vmul.f32 %v5015, 0.7978846
    %v5144 = vmul.f32 %v5016, 0.7978846
    %v5145 = vmul.f32 %v5017, 0.7978846
    %v5146 = vmul.f32 %v5018, 0.7978846
    %v5147 = vmul.f32 %v5019, 0.7978846
    %v5148 = vmul.f32 %v5020, 0.7978846
    %v5149 = vmul.f32 %v5021, 0.7978846
    %v5150 = vmul.f32 %v5022, 0.7978846
    %v5151 = vmul.f32 %v5023, 0.7978846
    %v5152 = vmul.f32 %v5024, 0.7978846
    %v5153 = vmul.f32 %v5025, 0.7978846
    %v5154 = vmul.f32 %v5026, 0.7978846
    %v5155 = vmul.f32 %v5027, 0.7978846
    %v5156 = vmul.f32 %v5028, 0.7978846
    %v5157 = vmul.f32 %v5029, 0.7978846
    %v5158 = vmul.f32 %v5030, 0.7978846
    %v5159 = vmul.f32 %v5031, 0.7978846
    %v5160 = vmul.f32 %v5032, 0.7978846
    %v5161 = vmul.f32 %v5033, 0.7978846
    %v5162 = vmul.f32 %v5034, 0.7978846
    %v5163 = vmul.f32 %v5035, 0.7978846
    %v5164 = vmul.f32 %v5036, 0.7978846
    %v5165 = vmul.f32 %v5037, 0.7978846
    %v5166 = vmul.f32 %v5038, 0.7978846
    %v5167 = vmul.f32 %v5039, 0.7978846
    %v5168 = vmul.f32 %v5040, 0.7978846
    %v5169 = vmul.f32 %v5041, 0.7978846
    %v5170 = vmul.f32 %v5042, 0.7978846
    %v5171 = vmul.f32 %v5043, 0.7978846
    %v5172 = vmul.f32 %v5044, 0.7978846
    %v5173 = vmul.f32 %v5045, 0.7978846
    %v5174 = vmul.f32 %v5046, 0.7978846
    %v5175 = vmul.f32 %v5047, 0.7978846
    %v5176 = vmul.f32 %v5048, 0.7978846
    %v5177 = vmul.f32 %v5049, 0.7978846
    %v5178 = vmul.f32 %v5050, 0.7978846
    %v5179 = vmul.f32 %v5051, 0.7978846
    %v5180 = vmul.f32 %v5052, 0.7978846
    %v5181 = vmul.f32 %v5053, 0.7978846
    %v5182 = vmul.f32 %v5054, 0.7978846
    %v5183 = vmul.f32 %v5055, 0.7978846
    %v5184 = vmul.f32 %v5056, 0.7978846
    %v5185 = vmul.f32 %v5057, 0.7978846
    %v5186 = vmul.f32 %v5058, 0.7978846
    %v5187 = vmul.f32 %v5059, 0.7978846
    %v5188 = vmul.f32 %v5060, 0.7978846
    %v5189 = vmul.f32 %v5061, 0.7978846
    %v5190 = vmul.f32 %v5062, 0.7978846
    %v5191 = vmul.f32 %v5063, 0.7978846
    %v5192 = vmul.f32 %v5064, 0.7978846
    %v5193 = vtanh.pop %v5065
    %v5194 = vtanh.pop %v5066
    %v5195 = vtanh.pop %v5067
    %v5196 = vtanh.pop %v5068
    %v5197 = vtanh.pop %v5069
    %v5198 = vtanh.pop %v5070
    %v5199 = vtanh.pop %v5071
    %v5200 = vtanh.pop %v5072
    %v5201 = vtanh.pop %v5073
    %v5202 = vtanh.pop %v5074
    %v5203 = vtanh.pop %v5075
    %v5204 = vtanh.pop %v5076
    %v5205 = vtanh.pop %v5077
    %v5206 = vtanh.pop %v5078
    %v5207 = vtanh.pop %v5079
    %v5208 = vtanh.pop %v5080
    %v5209 = vtanh.pop %v5081
    %v5210 = vtanh.pop %v5082
    %v5211 = vtanh.pop %v5083
    %v5212 = vtanh.pop %v5084
    %v5213 = vtanh.pop %v5085
    %v5214 = vtanh.pop %v5086
    %v5215 = vtanh.pop %v5087
    %v5216 = vtanh.pop %v5088
    %v5217 = vtanh.pop %v5089
    %v5218 = vtanh.pop %v5090
    %v5219 = vtanh.pop %v5091
    %v5220 = vtanh.pop %v5092
    %v5221 = vtanh.pop %v5093
    %v5222 = vtanh.pop %v5094
    %v5223 = vtanh.pop %v5095
    %v5224 = vtanh.pop %v5096
    %v5225 = vtanh.pop %v5097
    %v5226 = vtanh.pop %v5098
    %v5227 = vtanh.pop %v5099
    %v5228 = vtanh.pop %v5100
    %v5229 = vtanh.pop %v5101
    %v5230 = vtanh.pop %v5102
    %v5231 = vtanh.pop %v5103
    %v5232 = vtanh.pop %v5104
    %v5233 = vtanh.pop %v5105
    %v5234 = vtanh.pop %v5106
    %v5235 = vtanh.pop %v5107
    %v5236 = vtanh.pop %v5108
    %v5237 = vtanh.pop %v5109
    %v5238 = vtanh.pop %v5110
    %v5239 = vtanh.pop %v5111
    %v5240 = vtanh.pop %v5112
    %v5241 = vtanh.pop %v5113
    %v5242 = vtanh.pop %v5114
    %v5243 = vtanh.pop %v5115
    %v5244 = vtanh.pop %v5116
    %v5245 = vtanh.pop %v5117
    %v5246 = vtanh.pop %v5118
    %v5247 = vtanh.pop %v5119
    %v5248 = vtanh.pop %v5120
    %v5249 = vtanh.pop %v5121
    %v5250 = vtanh.pop %v5122
    %v5251 = vtanh.pop %v5123
    %v5252 = vtanh.pop %v5124
    %v5253 = vtanh.pop %v5125
    %v5254 = vtanh.pop %v5126
    %v5255 = vtanh.pop %v5127
    %v5256 = vtanh.pop %v5128
    %v5257 = vtanh.pop %v5129
    %v5258 = vtanh.pop %v5130
    %v5259 = vtanh.pop %v5131
    %v5260 = vtanh.pop %v5132
    %v5261 = vtanh.pop %v5133
    %v5262 = vtanh.pop %v5134
    %v5263 = vtanh.pop %v5135
    %v5264 = vtanh.pop %v5136
    %v5265 = vtanh.pop %v5137
    %v5266 = vtanh.pop %v5138
    %v5267 = vtanh.pop %v5139
    %v5268 = vtanh.pop %v5140
    %v5269 = vtanh.pop %v5141
    %v5270 = vtanh.pop %v5142
    %v5271 = vtanh.pop %v5143
    %v5272 = vtanh.pop %v5144
    %v5273 = vtanh.pop %v5145
    %v5274 = vtanh.pop %v5146
    %v5275 = vtanh.pop %v5147
    %v5276 = vtanh.pop %v5148
    %v5277 = vtanh.pop %v5149
    %v5278 = vtanh.pop %v5150
    %v5279 = vtanh.pop %v5151
    %v5280 = vtanh.pop %v5152
    %v5281 = vtanh.pop %v5153
    %v5282 = vtanh.pop %v5154
    %v5283 = vtanh.pop %v5155
    %v5284 = vtanh.pop %v5156
    %v5285 = vtanh.pop %v5157
    %v5286 = vtanh.pop %v5158
    %v5287 = vtanh.pop %v5159
    %v5288 = vtanh.pop %v5160
    %v5289 = vtanh.pop %v5161
    %v5290 = vtanh.pop %v5162
    %v5291 = vtanh.pop %v5163
    %v5292 = vtanh.pop %v5164
    %v5293 = vtanh.pop %v5165
    %v5294 = vtanh.pop %v5166
    %v5295 = vtanh.pop %v5167
    %v5296 = vtanh.pop %v5168
    %v5297 = vtanh.pop %v5169
    %v5298 = vtanh.pop %v5170
    %v5299 = vtanh.pop %v5171
    %v5300 = vtanh.pop %v5172
    %v5301 = vtanh.pop %v5173
    %v5302 = vtanh.pop %v5174
    %v5303 = vtanh.pop %v5175
    %v5304 = vtanh.pop %v5176
    %v5305 = vtanh.pop %v5177
    %v5306 = vtanh.pop %v5178
    %v5307 = vtanh.pop %v5179
    %v5308 = vtanh.pop %v5180
    %v5309 = vtanh.pop %v5181
    %v5310 = vtanh.pop %v5182
    %v5311 = vtanh.pop %v5183
    %v5312 = vtanh.pop %v5184
    %v5313 = vtanh.pop %v5185
    %v5314 = vtanh.pop %v5186
    %v5315 = vtanh.pop %v5187
    %v5316 = vtanh.pop %v5188
    %v5317 = vtanh.pop %v5189
    %v5318 = vtanh.pop %v5190
    %v5319 = vtanh.pop %v5191
    %v5320 = vtanh.pop %v5192
    %v5321 = vadd.f32 %v5193, 1.0
    %v5322 = vadd.f32 %v5194, 1.0
    %v5323 = vadd.f32 %v5195, 1.0
    %v5324 = vadd.f32 %v5196, 1.0
    %v5325 = vadd.f32 %v5197, 1.0
    %v5326 = vadd.f32 %v5198, 1.0
    %v5327 = vadd.f32 %v5199, 1.0
    %v5328 = vadd.f32 %v5200, 1.0
    %v5329 = vadd.f32 %v5201, 1.0
    %v5330 = vadd.f32 %v5202, 1.0
    %v5331 = vadd.f32 %v5203, 1.0
    %v5332 = vadd.f32 %v5204, 1.0
    %v5333 = vadd.f32 %v5205, 1.0
    %v5334 = vadd.f32 %v5206, 1.0
    %v5335 = vadd.f32 %v5207, 1.0
    %v5336 = vadd.f32 %v5208, 1.0
    %v5337 = vadd.f32 %v5209, 1.0
    %v5338 = vadd.f32 %v5210, 1.0
    %v5339 = vadd.f32 %v5211, 1.0
    %v5340 = vadd.f32 %v5212, 1.0
    %v5341 = vadd.f32 %v5213, 1.0
    %v5342 = vadd.f32 %v5214, 1.0
    %v5343 = vadd.f32 %v5215, 1.0
    %v5344 = vadd.f32 %v5216, 1.0
    %v5345 = vadd.f32 %v5217, 1.0
    %v5346 = vadd.f32 %v5218, 1.0
    %v5347 = vadd.f32 %v5219, 1.0
    %v5348 = vadd.f32 %v5220, 1.0
    %v5349 = vadd.f32 %v5221, 1.0
    %v5350 = vadd.f32 %v5222, 1.0
    %v5351 = vadd.f32 %v5223, 1.0
    %v5352 = vadd.f32 %v5224, 1.0
    %v5353 = vadd.f32 %v5225, 1.0
    %v5354 = vadd.f32 %v5226, 1.0
    %v5355 = vadd.f32 %v5227, 1.0
    %v5356 = vadd.f32 %v5228, 1.0
    %v5357 = vadd.f32 %v5229, 1.0
    %v5358 = vadd.f32 %v5230, 1.0
    %v5359 = vadd.f32 %v5231, 1.0
    %v5360 = vadd.f32 %v5232, 1.0
    %v5361 = vadd.f32 %v5233, 1.0
    %v5362 = vadd.f32 %v5234, 1.0
    %v5363 = vadd.f32 %v5235, 1.0
    %v5364 = vadd.f32 %v5236, 1.0
    %v5365 = vadd.f32 %v5237, 1.0
    %v5366 = vadd.f32 %v5238, 1.0
    %v5367 = vadd.f32 %v5239, 1.0
    %v5368 = vadd.f32 %v5240, 1.0
    %v5369 = vadd.f32 %v5241, 1.0
    %v5370 = vadd.f32 %v5242, 1.0
    %v5371 = vadd.f32 %v5243, 1.0
    %v5372 = vadd.f32 %v5244, 1.0
    %v5373 = vadd.f32 %v5245, 1.0
    %v5374 = vadd.f32 %v5246, 1.0
    %v5375 = vadd.f32 %v5247, 1.0
    %v5376 = vadd.f32 %v5248, 1.0
    %v5377 = vadd.f32 %v5249, 1.0
    %v5378 = vadd.f32 %v5250, 1.0
    %v5379 = vadd.f32 %v5251, 1.0
    %v5380 = vadd.f32 %v5252, 1.0
    %v5381 = vadd.f32 %v5253, 1.0
    %v5382 = vadd.f32 %v5254, 1.0
    %v5383 = vadd.f32 %v5255, 1.0
    %v5384 = vadd.f32 %v5256, 1.0
    %v5385 = vadd.f32 %v5257, 1.0
    %v5386 = vadd.f32 %v5258, 1.0
    %v5387 = vadd.f32 %v5259, 1.0
    %v5388 = vadd.f32 %v5260, 1.0
    %v5389 = vadd.f32 %v5261, 1.0
    %v5390 = vadd.f32 %v5262, 1.0
    %v5391 = vadd.f32 %v5263, 1.0
    %v5392 = vadd.f32 %v5264, 1.0
    %v5393 = vadd.f32 %v5265, 1.0
    %v5394 = vadd.f32 %v5266, 1.0
    %v5395 = vadd.f32 %v5267, 1.0
    %v5396 = vadd.f32 %v5268, 1.0
    %v5397 = vadd.f32 %v5269, 1.0
    %v5398 = vadd.f32 %v5270, 1.0
    %v5399 = vadd.f32 %v5271, 1.0
    %v5400 = vadd.f32 %v5272, 1.0
    %v5401 = vadd.f32 %v5273, 1.0
    %v5402 = vadd.f32 %v5274, 1.0
    %v5403 = vadd.f32 %v5275, 1.0
    %v5404 = vadd.f32 %v5276, 1.0
    %v5405 = vadd.f32 %v5277, 1.0
    %v5406 = vadd.f32 %v5278, 1.0
    %v5407 = vadd.f32 %v5279, 1.0
    %v5408 = vadd.f32 %v5280, 1.0
    %v5409 = vadd.f32 %v5281, 1.0
    %v5410 = vadd.f32 %v5282, 1.0
    %v5411 = vadd.f32 %v5283, 1.0
    %v5412 = vadd.f32 %v5284, 1.0
    %v5413 = vadd.f32 %v5285, 1.0
    %v5414 = vadd.f32 %v5286, 1.0
    %v5415 = vadd.f32 %v5287, 1.0
    %v5416 = vadd.f32 %v5288, 1.0
    %v5417 = vadd.f32 %v5289, 1.0
    %v5418 = vadd.f32 %v5290, 1.0
    %v5419 = vadd.f32 %v5291, 1.0
    %v5420 = vadd.f32 %v5292, 1.0
    %v5421 = vadd.f32 %v5293, 1.0
    %v5422 = vadd.f32 %v5294, 1.0
    %v5423 = vadd.f32 %v5295, 1.0
    %v5424 = vadd.f32 %v5296, 1.0
    %v5425 = vadd.f32 %v5297, 1.0
    %v5426 = vadd.f32 %v5298, 1.0
    %v5427 = vadd.f32 %v5299, 1.0
    %v5428 = vadd.f32 %v5300, 1.0
    %v5429 = vadd.f32 %v5301, 1.0
    %v5430 = vadd.f32 %v5302, 1.0
    %v5431 = vadd.f32 %v5303, 1.0
    %v5432 = vadd.f32 %v5304, 1.0
    %v5433 = vadd.f32 %v5305, 1.0
    %v5434 = vadd.f32 %v5306, 1.0
    %v5435 = vadd.f32 %v5307, 1.0
    %v5436 = vadd.f32 %v5308, 1.0
    %v5437 = vadd.f32 %v5309, 1.0
    %v5438 = vadd.f32 %v5310, 1.0
    %v5439 = vadd.f32 %v5311, 1.0
    %v5440 = vadd.f32 %v5312, 1.0
    %v5441 = vadd.f32 %v5313, 1.0
    %v5442 = vadd.f32 %v5314, 1.0
    %v5443 = vadd.f32 %v5315, 1.0
    %v5444 = vadd.f32 %v5316, 1.0
    %v5445 = vadd.f32 %v5317, 1.0
    %v5446 = vadd.f32 %v5318, 1.0
    %v5447 = vadd.f32 %v5319, 1.0
    %v5448 = vadd.f32 %v5320, 1.0
    %v5449 = vmul.f32 %v4425, %v5321
    %v5450 = vmul.f32 %v4426, %v5322
    %v5451 = vmul.f32 %v4427, %v5323
    %v5452 = vmul.f32 %v4428, %v5324
    %v5453 = vmul.f32 %v4429, %v5325
    %v5454 = vmul.f32 %v4430, %v5326
    %v5455 = vmul.f32 %v4431, %v5327
    %v5456 = vmul.f32 %v4432, %v5328
    %v5457 = vmul.f32 %v4433, %v5329
    %v5458 = vmul.f32 %v4434, %v5330
    %v5459 = vmul.f32 %v4435, %v5331
    %v5460 = vmul.f32 %v4436, %v5332
    %v5461 = vmul.f32 %v4437, %v5333
    %v5462 = vmul.f32 %v4438, %v5334
    %v5463 = vmul.f32 %v4439, %v5335
    %v5464 = vmul.f32 %v4440, %v5336
    %v5465 = vmul.f32 %v4441, %v5337
    %v5466 = vmul.f32 %v4442, %v5338
    %v5467 = vmul.f32 %v4443, %v5339
    %v5468 = vmul.f32 %v4444, %v5340
    %v5469 = vmul.f32 %v4445, %v5341
    %v5470 = vmul.f32 %v4446, %v5342
    %v5471 = vmul.f32 %v4447, %v5343
    %v5472 = vmul.f32 %v4448, %v5344
    %v5473 = vmul.f32 %v4449, %v5345
    %v5474 = vmul.f32 %v4450, %v5346
    %v5475 = vmul.f32 %v4451, %v5347
    %v5476 = vmul.f32 %v4452, %v5348
    %v5477 = vmul.f32 %v4453, %v5349
    %v5478 = vmul.f32 %v4454, %v5350
    %v5479 = vmul.f32 %v4455, %v5351
    %v5480 = vmul.f32 %v4456, %v5352
    %v5481 = vmul.f32 %v4457, %v5353
    %v5482 = vmul.f32 %v4458, %v5354
    %v5483 = vmul.f32 %v4459, %v5355
    %v5484 = vmul.f32 %v4460, %v5356
    %v5485 = vmul.f32 %v4461, %v5357
    %v5486 = vmul.f32 %v4462, %v5358
    %v5487 = vmul.f32 %v4463, %v5359
    %v5488 = vmul.f32 %v4464, %v5360
    %v5489 = vmul.f32 %v4465, %v5361
    %v5490 = vmul.f32 %v4466, %v5362
    %v5491 = vmul.f32 %v4467, %v5363
    %v5492 = vmul.f32 %v4468, %v5364
    %v5493 = vmul.f32 %v4469, %v5365
    %v5494 = vmul.f32 %v4470, %v5366
    %v5495 = vmul.f32 %v4471, %v5367
    %v5496 = vmul.f32 %v4472, %v5368
    %v5497 = vmul.f32 %v4473, %v5369
    %v5498 = vmul.f32 %v4474, %v5370
    %v5499 = vmul.f32 %v4475, %v5371
    %v5500 = vmul.f32 %v4476, %v5372
    %v5501 = vmul.f32 %v4477, %v5373
    %v5502 = vmul.f32 %v4478, %v5374
    %v5503 = vmul.f32 %v4479, %v5375
    %v5504 = vmul.f32 %v4480, %v5376
    %v5505 = vmul.f32 %v4481, %v5377
    %v5506 = vmul.f32 %v4482, %v5378
    %v5507 = vmul.f32 %v4483, %v5379
    %v5508 = vmul.f32 %v4484, %v5380
    %v5509 = vmul.f32 %v4485, %v5381
    %v5510 = vmul.f32 %v4486, %v5382
    %v5511 = vmul.f32 %v4487, %v5383
    %v5512 = vmul.f32 %v4488, %v5384
    %v5513 = vmul.f32 %v4489, %v5385
    %v5514 = vmul.f32 %v4490, %v5386
    %v5515 = vmul.f32 %v4491, %v5387
    %v5516 = vmul.f32 %v4492, %v5388
    %v5517 = vmul.f32 %v4493, %v5389
    %v5518 = vmul.f32 %v4494, %v5390
    %v5519 = vmul.f32 %v4495, %v5391
    %v5520 = vmul.f32 %v4496, %v5392
    %v5521 = vmul.f32 %v4497, %v5393
    %v5522 = vmul.f32 %v4498, %v5394
    %v5523 = vmul.f32 %v4499, %v5395
    %v5524 = vmul.f32 %v4500, %v5396
    %v5525 = vmul.f32 %v4501, %v5397
    %v5526 = vmul.f32 %v4502, %v5398
    %v5527 = vmul.f32 %v4503, %v5399
    %v5528 = vmul.f32 %v4504, %v5400
    %v5529 = vmul.f32 %v4505, %v5401
    %v5530 = vmul.f32 %v4506, %v5402
    %v5531 = vmul.f32 %v4507, %v5403
    %v5532 = vmul.f32 %v4508, %v5404
    %v5533 = vmul.f32 %v4509, %v5405
    %v5534 = vmul.f32 %v4510, %v5406
    %v5535 = vmul.f32 %v4511, %v5407
    %v5536 = vmul.f32 %v4512, %v5408
    %v5537 = vmul.f32 %v4513, %v5409
    %v5538 = vmul.f32 %v4514, %v5410
    %v5539 = vmul.f32 %v4515, %v5411
    %v5540 = vmul.f32 %v4516, %v5412
    %v5541 = vmul.f32 %v4517, %v5413
    %v5542 = vmul.f32 %v4518, %v5414
    %v5543 = vmul.f32 %v4519, %v5415
    %v5544 = vmul.f32 %v4520, %v5416
    %v5545 = vmul.f32 %v4521, %v5417
    %v5546 = vmul.f32 %v4522, %v5418
    %v5547 = vmul.f32 %v4523, %v5419
    %v5548 = vmul.f32 %v4524, %v5420
    %v5549 = vmul.f32 %v4525, %v5421
    %v5550 = vmul.f32 %v4526, %v5422
    %v5551 = vmul.f32 %v4527, %v5423
    %v5552 = vmul.f32 %v4528, %v5424
    %v5553 = vmul.f32 %v4529, %v5425
    %v5554 = vmul.f32 %v4530, %v5426
    %v5555 = vmul.f32 %v4531, %v5427
    %v5556 = vmul.f32 %v4532, %v5428
    %v5557 = vmul.f32 %v4533, %v5429
    %v5558 = vmul.f32 %v4534, %v5430
    %v5559 = vmul.f32 %v4535, %v5431
    %v5560 = vmul.f32 %v4536, %v5432
    %v5561 = vmul.f32 %v4537, %v5433
    %v5562 = vmul.f32 %v4538, %v5434
    %v5563 = vmul.f32 %v4539, %v5435
    %v5564 = vmul.f32 %v4540, %v5436
    %v5565 = vmul.f32 %v4541, %v5437
    %v5566 = vmul.f32 %v4542, %v5438
    %v5567 = vmul.f32 %v4543, %v5439
    %v5568 = vmul.f32 %v4544, %v5440
    %v5569 = vmul.f32 %v4545, %v5441
    %v5570 = vmul.f32 %v4546, %v5442
    %v5571 = vmul.f32 %v4547, %v5443
    %v5572 = vmul.f32 %v4548, %v5444
    %v5573 = vmul.f32 %v4549, %v5445
    %v5574 = vmul.f32 %v4550, %v5446
    %v5575 = vmul.f32 %v4551, %v5447
    %v5576 = vmul.f32 %v4552, %v5448
    %v5577 = vpack.c.bf16 %v5457, %v5449
    %v5578 = vpack.c.bf16 %v5458, %v5450
    %v5579 = vpack.c.bf16 %v5459, %v5451
    %v5580 = vpack.c.bf16 %v5460, %v5452
    %v5581 = vpack.c.bf16 %v5461, %v5453
    %v5582 = vpack.c.bf16 %v5462, %v5454
    %v5583 = vpack.c.bf16 %v5463, %v5455
    %v5584 = vpack.c.bf16 %v5464, %v5456
    %v5585 = vpack.c.bf16 %v5473, %v5465
    %v5586 = vpack.c.bf16 %v5474, %v5466
    %v5587 = vpack.c.bf16 %v5475, %v5467
    %v5588 = vpack.c.bf16 %v5476, %v5468
    %v5589 = vpack.c.bf16 %v5477, %v5469
    %v5590 = vpack.c.bf16 %v5478, %v5470
    %v5591 = vpack.c.bf16 %v5479, %v5471
    %v5592 = vpack.c.bf16 %v5480, %v5472
    %v5593 = vpack.c.bf16 %v5489, %v5481
    %v5594 = vpack.c.bf16 %v5490, %v5482
    %v5595 = vpack.c.bf16 %v5491, %v5483
    %v5596 = vpack.c.bf16 %v5492, %v5484
    %v5597 = vpack.c.bf16 %v5493, %v5485
    %v5598 = vpack.c.bf16 %v5494, %v5486
    %v5599 = vpack.c.bf16 %v5495, %v5487
    %v5600 = vpack.c.bf16 %v5496, %v5488
    %v5601 = vpack.c.bf16 %v5505, %v5497
    %v5602 = vpack.c.bf16 %v5506, %v5498
    %v5603 = vpack.c.bf16 %v5507, %v5499
    %v5604 = vpack.c.bf16 %v5508, %v5500
    %v5605 = vpack.c.bf16 %v5509, %v5501
    %v5606 = vpack.c.bf16 %v5510, %v5502
    %v5607 = vpack.c.bf16 %v5511, %v5503
    %v5608 = vpack.c.bf16 %v5512, %v5504
    %v5609 = vpack.c.bf16 %v5521, %v5513
    %v5610 = vpack.c.bf16 %v5522, %v5514
    %v5611 = vpack.c.bf16 %v5523, %v5515
    %v5612 = vpack.c.bf16 %v5524, %v5516
    %v5613 = vpack.c.bf16 %v5525, %v5517
    %v5614 = vpack.c.bf16 %v5526, %v5518
    %v5615 = vpack.c.bf16 %v5527, %v5519
    %v5616 = vpack.c.bf16 %v5528, %v5520
    %v5617 = vpack.c.bf16 %v5537, %v5529
    %v5618 = vpack.c.bf16 %v5538, %v5530
    %v5619 = vpack.c.bf16 %v5539, %v5531
    %v5620 = vpack.c.bf16 %v5540, %v5532
    %v5621 = vpack.c.bf16 %v5541, %v5533
    %v5622 = vpack.c.bf16 %v5542, %v5534
    %v5623 = vpack.c.bf16 %v5543, %v5535
    %v5624 = vpack.c.bf16 %v5544, %v5536
    %v5625 = vpack.c.bf16 %v5553, %v5545
    %v5626 = vpack.c.bf16 %v5554, %v5546
    %v5627 = vpack.c.bf16 %v5555, %v5547
    %v5628 = vpack.c.bf16 %v5556, %v5548
    %v5629 = vpack.c.bf16 %v5557, %v5549
    %v5630 = vpack.c.bf16 %v5558, %v5550
    %v5631 = vpack.c.bf16 %v5559, %v5551
    %v5632 = vpack.c.bf16 %v5560, %v5552
    %v5633 = vpack.c.bf16 %v5569, %v5561
    %v5634 = vpack.c.bf16 %v5570, %v5562
    %v5635 = vpack.c.bf16 %v5571, %v5563
    %v5636 = vpack.c.bf16 %v5572, %v5564
    %v5637 = vpack.c.bf16 %v5573, %v5565
    %v5638 = vpack.c.bf16 %v5574, %v5566
    %v5639 = vpack.c.bf16 %v5575, %v5567
    %v5640 = vpack.c.bf16 %v5576, %v5568
    %v5641 = vld [vmem:[#allocation17] sm:$0xf]
    %v5642 = vld [vmem:[#allocation17 + $0x4] sm:$0xf]
    %v5643 = vld [vmem:[#allocation17 + $0x8] sm:$0xf]
    %v5644 = vld [vmem:[#allocation17 + $0xc] sm:$0xf]
    %v5645 = vld [vmem:[#allocation17 + $0x10] sm:$0xf]
    %v5646 = vld [vmem:[#allocation17 + $0x14] sm:$0xf]
    %v5647 = vld [vmem:[#allocation17 + $0x18] sm:$0xf]
    %v5648 = vld [vmem:[#allocation17 + $0x1c] sm:$0xf]
    %v5649 = vld [vmem:[#allocation17 + $0x20] sm:$0xf]
    %v5650 = vld [vmem:[#allocation17 + $0x24] sm:$0xf]
    %v5651 = vld [vmem:[#allocation17 + $0x28] sm:$0xf]
    %v5652 = vld [vmem:[#allocation17 + $0x2c] sm:$0xf]
    %v5653 = vld [vmem:[#allocation17 + $0x30] sm:$0xf]
    %v5654 = vld [vmem:[#allocation17 + $0x34] sm:$0xf]
    %v5655 = vld [vmem:[#allocation17 + $0x38] sm:$0xf]
    %v5656 = vld [vmem:[#allocation17 + $0x3c] sm:$0xf]
    %v5657 = vld [vmem:[#allocation17 + $0x40] sm:$0xf]
    %v5658 = vld [vmem:[#allocation17 + $0x44] sm:$0xf]
    %v5659 = vld [vmem:[#allocation17 + $0x48] sm:$0xf]
    %v5660 = vld [vmem:[#allocation17 + $0x4c] sm:$0xf]
    %v5661 = vld [vmem:[#allocation17 + $0x50] sm:$0xf]
    %v5662 = vld [vmem:[#allocation17 + $0x54] sm:$0xf]
    %v5663 = vld [vmem:[#allocation17 + $0x58] sm:$0xf]
    %v5664 = vld [vmem:[#allocation17 + $0x5c] sm:$0xf]
    %v5665 = vld [vmem:[#allocation17 + $0x60] sm:$0xf]
    %v5666 = vld [vmem:[#allocation17 + $0x64] sm:$0xf]
    %v5667 = vld [vmem:[#allocation17 + $0x68] sm:$0xf]
    %v5668 = vld [vmem:[#allocation17 + $0x6c] sm:$0xf]
    %v5669 = vld [vmem:[#allocation17 + $0x70] sm:$0xf]
    %v5670 = vld [vmem:[#allocation17 + $0x74] sm:$0xf]
    %v5671 = vld [vmem:[#allocation17 + $0x78] sm:$0xf]
    %v5672 = vld [vmem:[#allocation17 + $0x7c] sm:$0xf]
    %v5673 = vld [vmem:[#allocation17 + $0x80] sm:$0xf]
    %v5674 = vld [vmem:[#allocation17 + $0x84] sm:$0xf]
    %v5675 = vld [vmem:[#allocation17 + $0x88] sm:$0xf]
    %v5676 = vld [vmem:[#allocation17 + $0x8c] sm:$0xf]
    %v5677 = vld [vmem:[#allocation17 + $0x90] sm:$0xf]
    %v5678 = vld [vmem:[#allocation17 + $0x94] sm:$0xf]
    %v5679 = vld [vmem:[#allocation17 + $0x98] sm:$0xf]
    %v5680 = vld [vmem:[#allocation17 + $0x9c] sm:$0xf]
    %v5681 = vld [vmem:[#allocation17 + $0xa0] sm:$0xf]
    %v5682 = vld [vmem:[#allocation17 + $0xa4] sm:$0xf]
    %v5683 = vld [vmem:[#allocation17 + $0xa8] sm:$0xf]
    %v5684 = vld [vmem:[#allocation17 + $0xac] sm:$0xf]
    %v5685 = vld [vmem:[#allocation17 + $0xb0] sm:$0xf]
    %v5686 = vld [vmem:[#allocation17 + $0xb4] sm:$0xf]
    %v5687 = vld [vmem:[#allocation17 + $0xb8] sm:$0xf]
    %v5688 = vld [vmem:[#allocation17 + $0xbc] sm:$0xf]
    %v5689 = vld [vmem:[#allocation17 + $0xc0] sm:$0xf]
    %v5690 = vld [vmem:[#allocation17 + $0xc4] sm:$0xf]
    %v5691 = vld [vmem:[#allocation17 + $0xc8] sm:$0xf]
    %v5692 = vld [vmem:[#allocation17 + $0xcc] sm:$0xf]
    %v5693 = vld [vmem:[#allocation17 + $0xd0] sm:$0xf]
    %v5694 = vld [vmem:[#allocation17 + $0xd4] sm:$0xf]
    %v5695 = vld [vmem:[#allocation17 + $0xd8] sm:$0xf]
    %v5696 = vld [vmem:[#allocation17 + $0xdc] sm:$0xf]
    %v5697 = vld [vmem:[#allocation17 + $0xe0] sm:$0xf]
    %v5698 = vld [vmem:[#allocation17 + $0xe4] sm:$0xf]
    %v5699 = vld [vmem:[#allocation17 + $0xe8] sm:$0xf]
    %v5700 = vld [vmem:[#allocation17 + $0xec] sm:$0xf]
    %v5701 = vld [vmem:[#allocation17 + $0xf0] sm:$0xf]
    %v5702 = vld [vmem:[#allocation17 + $0xf4] sm:$0xf]
    %v5703 = vld [vmem:[#allocation17 + $0xf8] sm:$0xf]
    %v5704 = vld [vmem:[#allocation17 + $0xfc] sm:$0xf]
    %v5705 = vld [vmem:[#allocation17 + $0x100] sm:$0xf]
    %v5706 = vld [vmem:[#allocation17 + $0x104] sm:$0xf]
    %v5707 = vld [vmem:[#allocation17 + $0x108] sm:$0xf]
    %v5708 = vld [vmem:[#allocation17 + $0x10c] sm:$0xf]
    %v5709 = vld [vmem:[#allocation17 + $0x110] sm:$0xf]
    %v5710 = vld [vmem:[#allocation17 + $0x114] sm:$0xf]
    %v5711 = vld [vmem:[#allocation17 + $0x118] sm:$0xf]
    %v5712 = vld [vmem:[#allocation17 + $0x11c] sm:$0xf]
    %v5713 = vld [vmem:[#allocation17 + $0x120] sm:$0xf]
    %v5714 = vld [vmem:[#allocation17 + $0x124] sm:$0xf]
    %v5715 = vld [vmem:[#allocation17 + $0x128] sm:$0xf]
    %v5716 = vld [vmem:[#allocation17 + $0x12c] sm:$0xf]
    %v5717 = vld [vmem:[#allocation17 + $0x130] sm:$0xf]
    %v5718 = vld [vmem:[#allocation17 + $0x134] sm:$0xf]
    %v5719 = vld [vmem:[#allocation17 + $0x138] sm:$0xf]
    %v5720 = vld [vmem:[#allocation17 + $0x13c] sm:$0xf]
    %v5721 = vld [vmem:[#allocation17 + $0x140] sm:$0xf]
    %v5722 = vld [vmem:[#allocation17 + $0x144] sm:$0xf]
    %v5723 = vld [vmem:[#allocation17 + $0x148] sm:$0xf]
    %v5724 = vld [vmem:[#allocation17 + $0x14c] sm:$0xf]
    %v5725 = vld [vmem:[#allocation17 + $0x150] sm:$0xf]
    %v5726 = vld [vmem:[#allocation17 + $0x154] sm:$0xf]
    %v5727 = vld [vmem:[#allocation17 + $0x158] sm:$0xf]
    %v5728 = vld [vmem:[#allocation17 + $0x15c] sm:$0xf]
    %v5729 = vld [vmem:[#allocation17 + $0x160] sm:$0xf]
    %v5730 = vld [vmem:[#allocation17 + $0x164] sm:$0xf]
    %v5731 = vld [vmem:[#allocation17 + $0x168] sm:$0xf]
    %v5732 = vld [vmem:[#allocation17 + $0x16c] sm:$0xf]
    %v5733 = vld [vmem:[#allocation17 + $0x170] sm:$0xf]
    %v5734 = vld [vmem:[#allocation17 + $0x174] sm:$0xf]
    %v5735 = vld [vmem:[#allocation17 + $0x178] sm:$0xf]
    %v5736 = vld [vmem:[#allocation17 + $0x17c] sm:$0xf]
    %v5737 = vld [vmem:[#allocation17 + $0x180] sm:$0xf]
    %v5738 = vld [vmem:[#allocation17 + $0x184] sm:$0xf]
    %v5739 = vld [vmem:[#allocation17 + $0x188] sm:$0xf]
    %v5740 = vld [vmem:[#allocation17 + $0x18c] sm:$0xf]
    %v5741 = vld [vmem:[#allocation17 + $0x190] sm:$0xf]
    %v5742 = vld [vmem:[#allocation17 + $0x194] sm:$0xf]
    %v5743 = vld [vmem:[#allocation17 + $0x198] sm:$0xf]
    %v5744 = vld [vmem:[#allocation17 + $0x19c] sm:$0xf]
    %v5745 = vld [vmem:[#allocation17 + $0x1a0] sm:$0xf]
    %v5746 = vld [vmem:[#allocation17 + $0x1a4] sm:$0xf]
    %v5747 = vld [vmem:[#allocation17 + $0x1a8] sm:$0xf]
    %v5748 = vld [vmem:[#allocation17 + $0x1ac] sm:$0xf]
    %v5749 = vld [vmem:[#allocation17 + $0x1b0] sm:$0xf]
    %v5750 = vld [vmem:[#allocation17 + $0x1b4] sm:$0xf]
    %v5751 = vld [vmem:[#allocation17 + $0x1b8] sm:$0xf]
    %v5752 = vld [vmem:[#allocation17 + $0x1bc] sm:$0xf]
    %v5753 = vld [vmem:[#allocation17 + $0x1c0] sm:$0xf]
    %v5754 = vld [vmem:[#allocation17 + $0x1c4] sm:$0xf]
    %v5755 = vld [vmem:[#allocation17 + $0x1c8] sm:$0xf]
    %v5756 = vld [vmem:[#allocation17 + $0x1cc] sm:$0xf]
    %v5757 = vld [vmem:[#allocation17 + $0x1d0] sm:$0xf]
    %v5758 = vld [vmem:[#allocation17 + $0x1d4] sm:$0xf]
    %v5759 = vld [vmem:[#allocation17 + $0x1d8] sm:$0xf]
    %v5760 = vld [vmem:[#allocation17 + $0x1dc] sm:$0xf]
    %v5761 = vld [vmem:[#allocation17 + $0x1e0] sm:$0xf]
    %v5762 = vld [vmem:[#allocation17 + $0x1e4] sm:$0xf]
    %v5763 = vld [vmem:[#allocation17 + $0x1e8] sm:$0xf]
    %v5764 = vld [vmem:[#allocation17 + $0x1ec] sm:$0xf]
    %v5765 = vld [vmem:[#allocation17 + $0x1f0] sm:$0xf]
    %v5766 = vld [vmem:[#allocation17 + $0x1f4] sm:$0xf]
    %v5767 = vld [vmem:[#allocation17 + $0x1f8] sm:$0xf]
    %v5768 = vld [vmem:[#allocation17 + $0x1fc] sm:$0xf]
    %v5897 = vunpack.c.l.b16 %v5641
    %v5898 = vunpack.c.l.b16 %v5642
    %v5899 = vunpack.c.l.b16 %v5643
    %v5900 = vunpack.c.l.b16 %v5644
    %v5901 = vunpack.c.l.b16 %v5645
    %v5902 = vunpack.c.l.b16 %v5646
    %v5903 = vunpack.c.l.b16 %v5647
    %v5904 = vunpack.c.l.b16 %v5648
    %v5905 = vunpack.c.l.b16 %v5649
    %v5906 = vunpack.c.l.b16 %v5650
    %v5907 = vunpack.c.l.b16 %v5651
    %v5908 = vunpack.c.l.b16 %v5652
    %v5909 = vunpack.c.l.b16 %v5653
    %v5910 = vunpack.c.l.b16 %v5654
    %v5911 = vunpack.c.l.b16 %v5655
    %v5912 = vunpack.c.l.b16 %v5656
    %v5913 = vunpack.c.l.b16 %v5657
    %v5914 = vunpack.c.l.b16 %v5658
    %v5915 = vunpack.c.l.b16 %v5659
    %v5916 = vunpack.c.l.b16 %v5660
    %v5917 = vunpack.c.l.b16 %v5661
    %v5918 = vunpack.c.l.b16 %v5662
    %v5919 = vunpack.c.l.b16 %v5663
    %v5920 = vunpack.c.l.b16 %v5664
    %v5921 = vunpack.c.l.b16 %v5665
    %v5922 = vunpack.c.l.b16 %v5666
    %v5923 = vunpack.c.l.b16 %v5667
    %v5924 = vunpack.c.l.b16 %v5668
    %v5925 = vunpack.c.l.b16 %v5669
    %v5926 = vunpack.c.l.b16 %v5670
    %v5927 = vunpack.c.l.b16 %v5671
    %v5928 = vunpack.c.l.b16 %v5672
    %v5929 = vunpack.c.l.b16 %v5673
    %v5930 = vunpack.c.l.b16 %v5674
    %v5931 = vunpack.c.l.b16 %v5675
    %v5932 = vunpack.c.l.b16 %v5676
    %v5933 = vunpack.c.l.b16 %v5677
    %v5934 = vunpack.c.l.b16 %v5678
    %v5935 = vunpack.c.l.b16 %v5679
    %v5936 = vunpack.c.l.b16 %v5680
    %v5937 = vunpack.c.l.b16 %v5681
    %v5938 = vunpack.c.l.b16 %v5682
    %v5939 = vunpack.c.l.b16 %v5683
    %v5940 = vunpack.c.l.b16 %v5684
    %v5941 = vunpack.c.l.b16 %v5685
    %v5942 = vunpack.c.l.b16 %v5686
    %v5943 = vunpack.c.l.b16 %v5687
    %v5944 = vunpack.c.l.b16 %v5688
    %v5945 = vunpack.c.l.b16 %v5689
    %v5946 = vunpack.c.l.b16 %v5690
    %v5947 = vunpack.c.l.b16 %v5691
    %v5948 = vunpack.c.l.b16 %v5692
    %v5949 = vunpack.c.l.b16 %v5693
    %v5950 = vunpack.c.l.b16 %v5694
    %v5951 = vunpack.c.l.b16 %v5695
    %v5952 = vunpack.c.l.b16 %v5696
    %v5953 = vunpack.c.l.b16 %v5697
    %v5954 = vunpack.c.l.b16 %v5698
    %v5955 = vunpack.c.l.b16 %v5699
    %v5956 = vunpack.c.l.b16 %v5700
    %v5957 = vunpack.c.l.b16 %v5701
    %v5958 = vunpack.c.l.b16 %v5702
    %v5959 = vunpack.c.l.b16 %v5703
    %v5960 = vunpack.c.l.b16 %v5704
    %v5961 = vunpack.c.l.b16 %v5705
    %v5962 = vunpack.c.l.b16 %v5706
    %v5963 = vunpack.c.l.b16 %v5707
    %v5964 = vunpack.c.l.b16 %v5708
    %v5965 = vunpack.c.l.b16 %v5709
    %v5966 = vunpack.c.l.b16 %v5710
    %v5967 = vunpack.c.l.b16 %v5711
    %v5968 = vunpack.c.l.b16 %v5712
    %v5969 = vunpack.c.l.b16 %v5713
    %v5970 = vunpack.c.l.b16 %v5714
    %v5971 = vunpack.c.l.b16 %v5715
    %v5972 = vunpack.c.l.b16 %v5716
    %v5973 = vunpack.c.l.b16 %v5717
    %v5974 = vunpack.c.l.b16 %v5718
    %v5975 = vunpack.c.l.b16 %v5719
    %v5976 = vunpack.c.l.b16 %v5720
    %v5977 = vunpack.c.l.b16 %v5721
    %v5978 = vunpack.c.l.b16 %v5722
    %v5979 = vunpack.c.l.b16 %v5723
    %v5980 = vunpack.c.l.b16 %v5724
    %v5981 = vunpack.c.l.b16 %v5725
    %v5982 = vunpack.c.l.b16 %v5726
    %v5983 = vunpack.c.l.b16 %v5727
    %v5984 = vunpack.c.l.b16 %v5728
    %v5985 = vunpack.c.l.b16 %v5729
    %v5986 = vunpack.c.l.b16 %v5730
    %v5987 = vunpack.c.l.b16 %v5731
    %v5988 = vunpack.c.l.b16 %v5732
    %v5989 = vunpack.c.l.b16 %v5733
    %v5990 = vunpack.c.l.b16 %v5734
    %v5991 = vunpack.c.l.b16 %v5735
    %v5992 = vunpack.c.l.b16 %v5736
    %v5993 = vunpack.c.l.b16 %v5737
    %v5994 = vunpack.c.l.b16 %v5738
    %v5995 = vunpack.c.l.b16 %v5739
    %v5996 = vunpack.c.l.b16 %v5740
    %v5997 = vunpack.c.l.b16 %v5741
    %v5998 = vunpack.c.l.b16 %v5742
    %v5999 = vunpack.c.l.b16 %v5743
    %v6000 = vunpack.c.l.b16 %v5744
    %v6001 = vunpack.c.l.b16 %v5745
    %v6002 = vunpack.c.l.b16 %v5746
    %v6003 = vunpack.c.l.b16 %v5747
    %v6004 = vunpack.c.l.b16 %v5748
    %v6005 = vunpack.c.l.b16 %v5749
    %v6006 = vunpack.c.l.b16 %v5750
    %v6007 = vunpack.c.l.b16 %v5751
    %v6008 = vunpack.c.l.b16 %v5752
    %v6009 = vunpack.c.l.b16 %v5753
    %v6010 = vunpack.c.l.b16 %v5754
    %v6011 = vunpack.c.l.b16 %v5755
    %v6012 = vunpack.c.l.b16 %v5756
    %v6013 = vunpack.c.l.b16 %v5757
    %v6014 = vunpack.c.l.b16 %v5758
    %v6015 = vunpack.c.l.b16 %v5759
    %v6016 = vunpack.c.l.b16 %v5760
    %v6017 = vunpack.c.l.b16 %v5761
    %v6018 = vunpack.c.l.b16 %v5762
    %v6019 = vunpack.c.l.b16 %v5763
    %v6020 = vunpack.c.l.b16 %v5764
    %v6021 = vunpack.c.l.b16 %v5765
    %v6022 = vunpack.c.l.b16 %v5766
    %v6023 = vunpack.c.l.b16 %v5767
    %v6024 = vunpack.c.l.b16 %v5768
    %v6025 = vpack.c.b16 %v5898, %v5897
    %v6026 = vpack.c.b16 %v5900, %v5899
    %v6027 = vpack.c.b16 %v5902, %v5901
    %v6028 = vpack.c.b16 %v5904, %v5903
    %v6029 = vpack.c.b16 %v5906, %v5905
    %v6030 = vpack.c.b16 %v5908, %v5907
    %v6031 = vpack.c.b16 %v5910, %v5909
    %v6032 = vpack.c.b16 %v5912, %v5911
    %v6033 = vpack.c.b16 %v5914, %v5913
    %v6034 = vpack.c.b16 %v5916, %v5915
    %v6035 = vpack.c.b16 %v5918, %v5917
    %v6036 = vpack.c.b16 %v5920, %v5919
    %v6037 = vpack.c.b16 %v5922, %v5921
    %v6038 = vpack.c.b16 %v5924, %v5923
    %v6039 = vpack.c.b16 %v5926, %v5925
    %v6040 = vpack.c.b16 %v5928, %v5927
    %v6041 = vpack.c.b16 %v5930, %v5929
    %v6042 = vpack.c.b16 %v5932, %v5931
    %v6043 = vpack.c.b16 %v5934, %v5933
    %v6044 = vpack.c.b16 %v5936, %v5935
    %v6045 = vpack.c.b16 %v5938, %v5937
    %v6046 = vpack.c.b16 %v5940, %v5939
    %v6047 = vpack.c.b16 %v5942, %v5941
    %v6048 = vpack.c.b16 %v5944, %v5943
    %v6049 = vpack.c.b16 %v5946, %v5945
    %v6050 = vpack.c.b16 %v5948, %v5947
    %v6051 = vpack.c.b16 %v5950, %v5949
    %v6052 = vpack.c.b16 %v5952, %v5951
    %v6053 = vpack.c.b16 %v5954, %v5953
    %v6054 = vpack.c.b16 %v5956, %v5955
    %v6055 = vpack.c.b16 %v5958, %v5957
    %v6056 = vpack.c.b16 %v5960, %v5959
    %v6057 = vpack.c.b16 %v5962, %v5961
    %v6058 = vpack.c.b16 %v5964, %v5963
    %v6059 = vpack.c.b16 %v5966, %v5965
    %v6060 = vpack.c.b16 %v5968, %v5967
    %v6061 = vpack.c.b16 %v5970, %v5969
    %v6062 = vpack.c.b16 %v5972, %v5971
    %v6063 = vpack.c.b16 %v5974, %v5973
    %v6064 = vpack.c.b16 %v5976, %v5975
    %v6065 = vpack.c.b16 %v5978, %v5977
    %v6066 = vpack.c.b16 %v5980, %v5979
    %v6067 = vpack.c.b16 %v5982, %v5981
    %v6068 = vpack.c.b16 %v5984, %v5983
    %v6069 = vpack.c.b16 %v5986, %v5985
    %v6070 = vpack.c.b16 %v5988, %v5987
    %v6071 = vpack.c.b16 %v5990, %v5989
    %v6072 = vpack.c.b16 %v5992, %v5991
    %v6073 = vpack.c.b16 %v5994, %v5993
    %v6074 = vpack.c.b16 %v5996, %v5995
    %v6075 = vpack.c.b16 %v5998, %v5997
    %v6076 = vpack.c.b16 %v6000, %v5999
    %v6077 = vpack.c.b16 %v6002, %v6001
    %v6078 = vpack.c.b16 %v6004, %v6003
    %v6079 = vpack.c.b16 %v6006, %v6005
    %v6080 = vpack.c.b16 %v6008, %v6007
    %v6081 = vpack.c.b16 %v6010, %v6009
    %v6082 = vpack.c.b16 %v6012, %v6011
    %v6083 = vpack.c.b16 %v6014, %v6013
    %v6084 = vpack.c.b16 %v6016, %v6015
    %v6085 = vpack.c.b16 %v6018, %v6017
    %v6086 = vpack.c.b16 %v6020, %v6019
    %v6087 = vpack.c.b16 %v6022, %v6021
    %v6088 = vpack.c.b16 %v6024, %v6023
    %6153 = vmatprep.subr.bf16.mxu0 0
    %6154 = vmatpush1.bf16.msra.mxu0 %v6032
    %6155 = vmatprep.subr.bf16.mxu0 0
    %6156 = vmatpush1.bf16.msra.mxu0 %v6031
    %6157 = vmatprep.subr.bf16.mxu0 0
    %6158 = vmatpush1.bf16.msra.mxu0 %v6030
    %6159 = vmatprep.subr.bf16.mxu0 0
    %6160 = vmatpush1.bf16.msra.mxu0 %v6029
    %6161 = vmatprep.subr.bf16.mxu0 0
    %6162 = vmatpush1.bf16.msra.mxu0 %v6028
    %6163 = vmatprep.subr.bf16.mxu0 0
    %6164 = vmatpush1.bf16.msra.mxu0 %v6027
    %6165 = vmatprep.subr.bf16.mxu0 0
    %6166 = vmatpush1.bf16.msra.mxu0 %v6026
    %6167 = vmatprep.subr.bf16.mxu0 0
    %6168 = vmatpush1.bf16.msra.mxu0 %v6025
    %6169 = vmatprep.subr.bf16.mxu0 0
    %6170 = vmatpush2.bf16.msra.mxu0 %v6040
    %6171 = vmatprep.subr.bf16.mxu0 0
    %6172 = vmatpush2.bf16.msra.mxu0 %v6039
    %6173 = vmatprep.subr.bf16.mxu0 0
    %6174 = vmatpush2.bf16.msra.mxu0 %v6038
    %6175 = vmatprep.subr.bf16.mxu0 0
    %6176 = vmatpush2.bf16.msra.mxu0 %v6037
    %6177 = vmatprep.subr.bf16.mxu0 0
    %6178 = vmatpush2.bf16.msra.mxu0 %v6036
    %6179 = vmatprep.subr.bf16.mxu0 0
    %6180 = vmatpush2.bf16.msra.mxu0 %v6035
    %6181 = vmatprep.subr.bf16.mxu0 0
    %6182 = vmatpush2.bf16.msra.mxu0 %v6034
    %6183 = vmatprep.subr.bf16.mxu0 0
    %6184 = vmatpush2.bf16.msra.mxu0 %v6033
    %6185 = vmatprep.mubr.bf16.mxu0 %v5578
    %6186 = vmatmul.mubr.bf16.gmra.mxu0 %v5577
    %v6187 = vpop.f32.mrf.mxu0
    %v6188 = vadd.f32 0.0, %v6187
    %v6189 = vpop.f32.mrf.mxu0
    %v6190 = vpop.f32.mrf.mxu0
    %v6191 = vadd.f32 0.0, %v6190
    %v6192 = vpop.f32.mrf.mxu0
    %6193 = vmatprep.mubr.bf16.mxu0 %v5586
    %6194 = vmatmul.mubr.bf16.gmra.mxu0 %v5585
    %v6195 = vpop.f32.mrf.mxu0
    %v6196 = vadd.f32 0.0, %v6195
    %v6197 = vpop.f32.mrf.mxu0
    %v6198 = vpop.f32.mrf.mxu0
    %v6199 = vadd.f32 0.0, %v6198
    %v6200 = vpop.f32.mrf.mxu0
    %6201 = vmatprep.mubr.bf16.mxu0 %v5594
    %6202 = vmatmul.mubr.bf16.gmra.mxu0 %v5593
    %v6203 = vpop.f32.mrf.mxu0
    %v6204 = vadd.f32 0.0, %v6203
    %v6205 = vpop.f32.mrf.mxu0
    %v6206 = vpop.f32.mrf.mxu0
    %v6207 = vadd.f32 0.0, %v6206
    %v6208 = vpop.f32.mrf.mxu0
    %6209 = vmatprep.mubr.bf16.mxu0 %v5602
    %6210 = vmatmul.mubr.bf16.gmra.mxu0 %v5601
    %v6211 = vpop.f32.mrf.mxu0
    %v6212 = vadd.f32 0.0, %v6211
    %v6213 = vpop.f32.mrf.mxu0
    %v6214 = vpop.f32.mrf.mxu0
    %v6215 = vadd.f32 0.0, %v6214
    %v6216 = vpop.f32.mrf.mxu0
    %6217 = vmatprep.mubr.bf16.mxu0 %v5610
    %6218 = vmatmul.mubr.bf16.gmra.mxu0 %v5609
    %v6219 = vpop.f32.mrf.mxu0
    %v6220 = vadd.f32 0.0, %v6219
    %v6221 = vpop.f32.mrf.mxu0
    %v6222 = vpop.f32.mrf.mxu0
    %v6223 = vadd.f32 0.0, %v6222
    %v6224 = vpop.f32.mrf.mxu0
    %6225 = vmatprep.mubr.bf16.mxu0 %v5618
    %6226 = vmatmul.mubr.bf16.gmra.mxu0 %v5617
    %v6227 = vpop.f32.mrf.mxu0
    %v6228 = vadd.f32 0.0, %v6227
    %v6229 = vpop.f32.mrf.mxu0
    %v6230 = vpop.f32.mrf.mxu0
    %v6231 = vadd.f32 0.0, %v6230
    %v6232 = vpop.f32.mrf.mxu0
    %6233 = vmatprep.mubr.bf16.mxu0 %v5626
    %6234 = vmatmul.mubr.bf16.gmra.mxu0 %v5625
    %v6235 = vpop.f32.mrf.mxu0
    %v6236 = vadd.f32 0.0, %v6235
    %v6237 = vpop.f32.mrf.mxu0
    %v6238 = vpop.f32.mrf.mxu0
    %v6239 = vadd.f32 0.0, %v6238
    %v6240 = vpop.f32.mrf.mxu0
    %6241 = vmatprep.mubr.bf16.mxu0 %v5634
    %6242 = vmatmul.mubr.bf16.gmra.mxu0 %v5633
    %v6243 = vpop.f32.mrf.mxu0
    %v6244 = vadd.f32 0.0, %v6243
    %v6245 = vpop.f32.mrf.mxu0
    %v6246 = vpop.f32.mrf.mxu0
    %v6247 = vadd.f32 0.0, %v6246
    %v6248 = vpop.f32.mrf.mxu0
    %6249 = vdwg.mxu0
    %6250 = vmatprep.subr.bf16.mxu0 0
    %6251 = vmatpush1.bf16.msra.mxu0 %v6048
    %6252 = vmatprep.subr.bf16.mxu0 0
    %6253 = vmatpush1.bf16.msra.mxu0 %v6047
    %6254 = vmatprep.subr.bf16.mxu0 0
    %6255 = vmatpush1.bf16.msra.mxu0 %v6046
    %6256 = vmatprep.subr.bf16.mxu0 0
    %6257 = vmatpush1.bf16.msra.mxu0 %v6045
    %6258 = vmatprep.subr.bf16.mxu0 0
    %6259 = vmatpush1.bf16.msra.mxu0 %v6044
    %6260 = vmatprep.subr.bf16.mxu0 0
    %6261 = vmatpush1.bf16.msra.mxu0 %v6043
    %6262 = vmatprep.subr.bf16.mxu0 0
    %6263 = vmatpush1.bf16.msra.mxu0 %v6042
    %6264 = vmatprep.subr.bf16.mxu0 0
    %6265 = vmatpush1.bf16.msra.mxu0 %v6041
    %6266 = vmatprep.subr.bf16.mxu0 0
    %6267 = vmatpush2.bf16.msra.mxu0 %v6056
    %6268 = vmatprep.subr.bf16.mxu0 0
    %6269 = vmatpush2.bf16.msra.mxu0 %v6055
    %6270 = vmatprep.subr.bf16.mxu0 0
    %6271 = vmatpush2.bf16.msra.mxu0 %v6054
    %6272 = vmatprep.subr.bf16.mxu0 0
    %6273 = vmatpush2.bf16.msra.mxu0 %v6053
    %6274 = vmatprep.subr.bf16.mxu0 0
    %6275 = vmatpush2.bf16.msra.mxu0 %v6052
    %6276 = vmatprep.subr.bf16.mxu0 0
    %6277 = vmatpush2.bf16.msra.mxu0 %v6051
    %6278 = vmatprep.subr.bf16.mxu0 0
    %6279 = vmatpush2.bf16.msra.mxu0 %v6050
    %6280 = vmatprep.subr.bf16.mxu0 0
    %6281 = vmatpush2.bf16.msra.mxu0 %v6049
    %6282 = vmatprep.mubr.bf16.mxu0 %v5580
    %6283 = vmatmul.mubr.bf16.gmra.mxu0 %v5579
    %v6284 = vpop.f32.mrf.mxu0
    %v6285 = vadd.f32 %v6188, %v6284
    %v6286 = vpop.f32.mrf.mxu0
    %v6287 = vpop.f32.mrf.mxu0
    %v6288 = vadd.f32 %v6191, %v6287
    %v6289 = vpop.f32.mrf.mxu0
    %6290 = vmatprep.mubr.bf16.mxu0 %v5588
    %6291 = vmatmul.mubr.bf16.gmra.mxu0 %v5587
    %v6292 = vpop.f32.mrf.mxu0
    %v6293 = vadd.f32 %v6196, %v6292
    %v6294 = vpop.f32.mrf.mxu0
    %v6295 = vpop.f32.mrf.mxu0
    %v6296 = vadd.f32 %v6199, %v6295
    %v6297 = vpop.f32.mrf.mxu0
    %6298 = vmatprep.mubr.bf16.mxu0 %v5596
    %6299 = vmatmul.mubr.bf16.gmra.mxu0 %v5595
    %v6300 = vpop.f32.mrf.mxu0
    %v6301 = vadd.f32 %v6204, %v6300
    %v6302 = vpop.f32.mrf.mxu0
    %v6303 = vpop.f32.mrf.mxu0
    %v6304 = vadd.f32 %v6207, %v6303
    %v6305 = vpop.f32.mrf.mxu0
    %6306 = vmatprep.mubr.bf16.mxu0 %v5604
    %6307 = vmatmul.mubr.bf16.gmra.mxu0 %v5603
    %v6308 = vpop.f32.mrf.mxu0
    %v6309 = vadd.f32 %v6212, %v6308
    %v6310 = vpop.f32.mrf.mxu0
    %v6311 = vpop.f32.mrf.mxu0
    %v6312 = vadd.f32 %v6215, %v6311
    %v6313 = vpop.f32.mrf.mxu0
    %6314 = vmatprep.mubr.bf16.mxu0 %v5612
    %6315 = vmatmul.mubr.bf16.gmra.mxu0 %v5611
    %v6316 = vpop.f32.mrf.mxu0
    %v6317 = vadd.f32 %v6220, %v6316
    %v6318 = vpop.f32.mrf.mxu0
    %v6319 = vpop.f32.mrf.mxu0
    %v6320 = vadd.f32 %v6223, %v6319
    %v6321 = vpop.f32.mrf.mxu0
    %6322 = vmatprep.mubr.bf16.mxu0 %v5620
    %6323 = vmatmul.mubr.bf16.gmra.mxu0 %v5619
    %v6324 = vpop.f32.mrf.mxu0
    %v6325 = vadd.f32 %v6228, %v6324
    %v6326 = vpop.f32.mrf.mxu0
    %v6327 = vpop.f32.mrf.mxu0
    %v6328 = vadd.f32 %v6231, %v6327
    %v6329 = vpop.f32.mrf.mxu0
    %6330 = vmatprep.mubr.bf16.mxu0 %v5628
    %6331 = vmatmul.mubr.bf16.gmra.mxu0 %v5627
    %v6332 = vpop.f32.mrf.mxu0
    %v6333 = vadd.f32 %v6236, %v6332
    %v6334 = vpop.f32.mrf.mxu0
    %v6335 = vpop.f32.mrf.mxu0
    %v6336 = vadd.f32 %v6239, %v6335
    %v6337 = vpop.f32.mrf.mxu0
    %6338 = vmatprep.mubr.bf16.mxu0 %v5636
    %6339 = vmatmul.mubr.bf16.gmra.mxu0 %v5635
    %v6340 = vpop.f32.mrf.mxu0
    %v6341 = vadd.f32 %v6244, %v6340
    %v6342 = vpop.f32.mrf.mxu0
    %v6343 = vpop.f32.mrf.mxu0
    %v6344 = vadd.f32 %v6247, %v6343
    %v6345 = vpop.f32.mrf.mxu0
    %6346 = vdwg.mxu0
    %6347 = vmatprep.subr.bf16.mxu0 0
    %6348 = vmatpush1.bf16.msra.mxu0 %v6064
    %6349 = vmatprep.subr.bf16.mxu0 0
    %6350 = vmatpush1.bf16.msra.mxu0 %v6063
    %6351 = vmatprep.subr.bf16.mxu0 0
    %6352 = vmatpush1.bf16.msra.mxu0 %v6062
    %6353 = vmatprep.subr.bf16.mxu0 0
    %6354 = vmatpush1.bf16.msra.mxu0 %v6061
    %6355 = vmatprep.subr.bf16.mxu0 0
    %6356 = vmatpush1.bf16.msra.mxu0 %v6060
    %6357 = vmatprep.subr.bf16.mxu0 0
    %6358 = vmatpush1.bf16.msra.mxu0 %v6059
    %6359 = vmatprep.subr.bf16.mxu0 0
    %6360 = vmatpush1.bf16.msra.mxu0 %v6058
    %6361 = vmatprep.subr.bf16.mxu0 0
    %6362 = vmatpush1.bf16.msra.mxu0 %v6057
    %6363 = vmatprep.subr.bf16.mxu0 0
    %6364 = vmatpush2.bf16.msra.mxu0 %v6072
    %6365 = vmatprep.subr.bf16.mxu0 0
    %6366 = vmatpush2.bf16.msra.mxu0 %v6071
    %6367 = vmatprep.subr.bf16.mxu0 0
    %6368 = vmatpush2.bf16.msra.mxu0 %v6070
    %6369 = vmatprep.subr.bf16.mxu0 0
    %6370 = vmatpush2.bf16.msra.mxu0 %v6069
    %6371 = vmatprep.subr.bf16.mxu0 0
    %6372 = vmatpush2.bf16.msra.mxu0 %v6068
    %6373 = vmatprep.subr.bf16.mxu0 0
    %6374 = vmatpush2.bf16.msra.mxu0 %v6067
    %6375 = vmatprep.subr.bf16.mxu0 0
    %6376 = vmatpush2.bf16.msra.mxu0 %v6066
    %6377 = vmatprep.subr.bf16.mxu0 0
    %6378 = vmatpush2.bf16.msra.mxu0 %v6065
    %6379 = vmatprep.mubr.bf16.mxu0 %v5582
    %6380 = vmatmul.mubr.bf16.gmra.mxu0 %v5581
    %v6381 = vpop.f32.mrf.mxu0
    %v6382 = vadd.f32 %v6285, %v6381
    %v6383 = vpop.f32.mrf.mxu0
    %v6384 = vpop.f32.mrf.mxu0
    %v6385 = vadd.f32 %v6288, %v6384
    %v6386 = vpop.f32.mrf.mxu0
    %6387 = vmatprep.mubr.bf16.mxu0 %v5590
    %6388 = vmatmul.mubr.bf16.gmra.mxu0 %v5589
    %v6389 = vpop.f32.mrf.mxu0
    %v6390 = vadd.f32 %v6293, %v6389
    %v6391 = vpop.f32.mrf.mxu0
    %v6392 = vpop.f32.mrf.mxu0
    %v6393 = vadd.f32 %v6296, %v6392
    %v6394 = vpop.f32.mrf.mxu0
    %6395 = vmatprep.mubr.bf16.mxu0 %v5598
    %6396 = vmatmul.mubr.bf16.gmra.mxu0 %v5597
    %v6397 = vpop.f32.mrf.mxu0
    %v6398 = vadd.f32 %v6301, %v6397
    %v6399 = vpop.f32.mrf.mxu0
    %v6400 = vpop.f32.mrf.mxu0
    %v6401 = vadd.f32 %v6304, %v6400
    %v6402 = vpop.f32.mrf.mxu0
    %6403 = vmatprep.mubr.bf16.mxu0 %v5606
    %6404 = vmatmul.mubr.bf16.gmra.mxu0 %v5605
    %v6405 = vpop.f32.mrf.mxu0
    %v6406 = vadd.f32 %v6309, %v6405
    %v6407 = vpop.f32.mrf.mxu0
    %v6408 = vpop.f32.mrf.mxu0
    %v6409 = vadd.f32 %v6312, %v6408
    %v6410 = vpop.f32.mrf.mxu0
    %6411 = vmatprep.mubr.bf16.mxu0 %v5614
    %6412 = vmatmul.mubr.bf16.gmra.mxu0 %v5613
    %v6413 = vpop.f32.mrf.mxu0
    %v6414 = vadd.f32 %v6317, %v6413
    %v6415 = vpop.f32.mrf.mxu0
    %v6416 = vpop.f32.mrf.mxu0
    %v6417 = vadd.f32 %v6320, %v6416
    %v6418 = vpop.f32.mrf.mxu0
    %6419 = vmatprep.mubr.bf16.mxu0 %v5622
    %6420 = vmatmul.mubr.bf16.gmra.mxu0 %v5621
    %v6421 = vpop.f32.mrf.mxu0
    %v6422 = vadd.f32 %v6325, %v6421
    %v6423 = vpop.f32.mrf.mxu0
    %v6424 = vpop.f32.mrf.mxu0
    %v6425 = vadd.f32 %v6328, %v6424
    %v6426 = vpop.f32.mrf.mxu0
    %6427 = vmatprep.mubr.bf16.mxu0 %v5630
    %6428 = vmatmul.mubr.bf16.gmra.mxu0 %v5629
    %v6429 = vpop.f32.mrf.mxu0
    %v6430 = vadd.f32 %v6333, %v6429
    %v6431 = vpop.f32.mrf.mxu0
    %v6432 = vpop.f32.mrf.mxu0
    %v6433 = vadd.f32 %v6336, %v6432
    %v6434 = vpop.f32.mrf.mxu0
    %6435 = vmatprep.mubr.bf16.mxu0 %v5638
    %6436 = vmatmul.mubr.bf16.gmra.mxu0 %v5637
    %v6437 = vpop.f32.mrf.mxu0
    %v6438 = vadd.f32 %v6341, %v6437
    %v6439 = vpop.f32.mrf.mxu0
    %v6440 = vpop.f32.mrf.mxu0
    %v6441 = vadd.f32 %v6344, %v6440
    %v6442 = vpop.f32.mrf.mxu0
    %6443 = vdwg.mxu0
    %6444 = vmatprep.subr.bf16.mxu0 0
    %6445 = vmatpush1.bf16.msra.mxu0 %v6080
    %6446 = vmatprep.subr.bf16.mxu0 0
    %6447 = vmatpush1.bf16.msra.mxu0 %v6079
    %6448 = vmatprep.subr.bf16.mxu0 0
    %6449 = vmatpush1.bf16.msra.mxu0 %v6078
    %6450 = vmatprep.subr.bf16.mxu0 0
    %6451 = vmatpush1.bf16.msra.mxu0 %v6077
    %6452 = vmatprep.subr.bf16.mxu0 0
    %6453 = vmatpush1.bf16.msra.mxu0 %v6076
    %6454 = vmatprep.subr.bf16.mxu0 0
    %6455 = vmatpush1.bf16.msra.mxu0 %v6075
    %6456 = vmatprep.subr.bf16.mxu0 0
    %6457 = vmatpush1.bf16.msra.mxu0 %v6074
    %6458 = vmatprep.subr.bf16.mxu0 0
    %6459 = vmatpush1.bf16.msra.mxu0 %v6073
    %6460 = vmatprep.subr.bf16.mxu0 0
    %6461 = vmatpush2.bf16.msra.mxu0 %v6088
    %6462 = vmatprep.subr.bf16.mxu0 0
    %6463 = vmatpush2.bf16.msra.mxu0 %v6087
    %6464 = vmatprep.subr.bf16.mxu0 0
    %6465 = vmatpush2.bf16.msra.mxu0 %v6086
    %6466 = vmatprep.subr.bf16.mxu0 0
    %6467 = vmatpush2.bf16.msra.mxu0 %v6085
    %6468 = vmatprep.subr.bf16.mxu0 0
    %6469 = vmatpush2.bf16.msra.mxu0 %v6084
    %6470 = vmatprep.subr.bf16.mxu0 0
    %6471 = vmatpush2.bf16.msra.mxu0 %v6083
    %6472 = vmatprep.subr.bf16.mxu0 0
    %6473 = vmatpush2.bf16.msra.mxu0 %v6082
    %6474 = vmatprep.subr.bf16.mxu0 0
    %6475 = vmatpush2.bf16.msra.mxu0 %v6081
    %6476 = vmatprep.mubr.bf16.mxu0 %v5584
    %6477 = vmatmul.mubr.bf16.gmra.mxu0 %v5583
    %v6478 = vpop.f32.mrf.mxu0
    %v6479 = vadd.f32 %v6382, %v6478
    %v6480 = vpop.f32.mrf.mxu0
    %v6481 = vpop.f32.mrf.mxu0
    %v6482 = vadd.f32 %v6385, %v6481
    %v6483 = vpop.f32.mrf.mxu0
    %6484 = vmatprep.mubr.bf16.mxu0 %v5592
    %6485 = vmatmul.mubr.bf16.gmra.mxu0 %v5591
    %v6486 = vpop.f32.mrf.mxu0
    %v6487 = vadd.f32 %v6390, %v6486
    %v6488 = vpop.f32.mrf.mxu0
    %v6489 = vpop.f32.mrf.mxu0
    %v6490 = vadd.f32 %v6393, %v6489
    %v6491 = vpop.f32.mrf.mxu0
    %6492 = vmatprep.mubr.bf16.mxu0 %v5600
    %6493 = vmatmul.mubr.bf16.gmra.mxu0 %v5599
    %v6494 = vpop.f32.mrf.mxu0
    %v6495 = vadd.f32 %v6398, %v6494
    %v6496 = vpop.f32.mrf.mxu0
    %v6497 = vpop.f32.mrf.mxu0
    %v6498 = vadd.f32 %v6401, %v6497
    %v6499 = vpop.f32.mrf.mxu0
    %6500 = vmatprep.mubr.bf16.mxu0 %v5608
    %6501 = vmatmul.mubr.bf16.gmra.mxu0 %v5607
    %v6502 = vpop.f32.mrf.mxu0
    %v6503 = vadd.f32 %v6406, %v6502
    %v6504 = vpop.f32.mrf.mxu0
    %v6505 = vpop.f32.mrf.mxu0
    %v6506 = vadd.f32 %v6409, %v6505
    %v6507 = vpop.f32.mrf.mxu0
    %6508 = vmatprep.mubr.bf16.mxu0 %v5616
    %6509 = vmatmul.mubr.bf16.gmra.mxu0 %v5615
    %v6510 = vpop.f32.mrf.mxu0
    %v6511 = vadd.f32 %v6414, %v6510
    %v6512 = vpop.f32.mrf.mxu0
    %v6513 = vpop.f32.mrf.mxu0
    %v6514 = vadd.f32 %v6417, %v6513
    %v6515 = vpop.f32.mrf.mxu0
    %6516 = vmatprep.mubr.bf16.mxu0 %v5624
    %6517 = vmatmul.mubr.bf16.gmra.mxu0 %v5623
    %v6518 = vpop.f32.mrf.mxu0
    %v6519 = vadd.f32 %v6422, %v6518
    %v6520 = vpop.f32.mrf.mxu0
    %v6521 = vpop.f32.mrf.mxu0
    %v6522 = vadd.f32 %v6425, %v6521
    %v6523 = vpop.f32.mrf.mxu0
    %6524 = vmatprep.mubr.bf16.mxu0 %v5632
    %6525 = vmatmul.mubr.bf16.gmra.mxu0 %v5631
    %v6526 = vpop.f32.mrf.mxu0
    %v6527 = vadd.f32 %v6430, %v6526
    %v6528 = vpop.f32.mrf.mxu0
    %v6529 = vpop.f32.mrf.mxu0
    %v6530 = vadd.f32 %v6433, %v6529
    %v6531 = vpop.f32.mrf.mxu0
    %6532 = vmatprep.mubr.bf16.mxu0 %v5640
    %6533 = vmatmul.mubr.bf16.gmra.mxu0 %v5639
    %v6534 = vpop.f32.mrf.mxu0
    %v6535 = vadd.f32 %v6438, %v6534
    %v6536 = vpop.f32.mrf.mxu0
    %v6537 = vpop.f32.mrf.mxu0
    %v6538 = vadd.f32 %v6441, %v6537
    %v6539 = vpop.f32.mrf.mxu0
    %6540 = vdwg.mxu0
    %6541 = vadd.xlane.f32.xlu0 %v6479
    %v6542 = vpop.xlane.xlu0 %6541
    %6543 = vadd.xlane.f32.xlu0 %v6482
    %v6544 = vpop.xlane.xlu0 %6543
    %6545 = vadd.xlane.f32.xlu0 %v6487
    %v6546 = vpop.xlane.xlu0 %6545
    %6547 = vadd.xlane.f32.xlu0 %v6490
    %v6548 = vpop.xlane.xlu0 %6547
    %6549 = vadd.xlane.f32.xlu0 %v6495
    %v6550 = vpop.xlane.xlu0 %6549
    %6551 = vadd.xlane.f32.xlu0 %v6498
    %v6552 = vpop.xlane.xlu0 %6551
    %6553 = vadd.xlane.f32.xlu0 %v6503
    %v6554 = vpop.xlane.xlu0 %6553
    %6555 = vadd.xlane.f32.xlu0 %v6506
    %v6556 = vpop.xlane.xlu0 %6555
    %6557 = vadd.xlane.f32.xlu0 %v6511
    %v6558 = vpop.xlane.xlu0 %6557
    %6559 = vadd.xlane.f32.xlu0 %v6514
    %v6560 = vpop.xlane.xlu0 %6559
    %6561 = vadd.xlane.f32.xlu0 %v6519
    %v6562 = vpop.xlane.xlu0 %6561
    %6563 = vadd.xlane.f32.xlu0 %v6522
    %v6564 = vpop.xlane.xlu0 %6563
    %6565 = vadd.xlane.f32.xlu0 %v6527
    %v6566 = vpop.xlane.xlu0 %6565
    %6567 = vadd.xlane.f32.xlu0 %v6530
    %v6568 = vpop.xlane.xlu0 %6567
    %6569 = vadd.xlane.f32.xlu0 %v6535
    %v6570 = vpop.xlane.xlu0 %6569
    %6571 = vadd.xlane.f32.xlu0 %v6538
    %v6572 = vpop.xlane.xlu0 %6571
    %v6573 = vmul.f32 %v6542, %v1281
    %v6574 = vmul.f32 %v6544, %v1281
    %v6575 = vmul.f32 %v6546, %v1281
    %v6576 = vmul.f32 %v6548, %v1281
    %v6577 = vmul.f32 %v6550, %v1281
    %v6578 = vmul.f32 %v6552, %v1281
    %v6579 = vmul.f32 %v6554, %v1281
    %v6580 = vmul.f32 %v6556, %v1281
    %v6581 = vmul.f32 %v6558, %v1281
    %v6582 = vmul.f32 %v6560, %v1281
    %v6583 = vmul.f32 %v6562, %v1281
    %v6584 = vmul.f32 %v6564, %v1281
    %v6585 = vmul.f32 %v6566, %v1281
    %v6586 = vmul.f32 %v6568, %v1281
    %v6587 = vmul.f32 %v6570, %v1281
    %v6588 = vmul.f32 %v6572, %v1281
    %v6589 = vsub.f32 %v6479, %v6573
    %v6590 = vsub.f32 %v6482, %v6574
    %v6591 = vsub.f32 %v6487, %v6575
    %v6592 = vsub.f32 %v6490, %v6576
    %v6593 = vsub.f32 %v6495, %v6577
    %v6594 = vsub.f32 %v6498, %v6578
    %v6595 = vsub.f32 %v6503, %v6579
    %v6596 = vsub.f32 %v6506, %v6580
    %v6597 = vsub.f32 %v6511, %v6581
    %v6598 = vsub.f32 %v6514, %v6582
    %v6599 = vsub.f32 %v6519, %v6583
    %v6600 = vsub.f32 %v6522, %v6584
    %v6601 = vsub.f32 %v6527, %v6585
    %v6602 = vsub.f32 %v6530, %v6586
    %v6603 = vsub.f32 %v6535, %v6587
    %v6604 = vsub.f32 %v6538, %v6588
    %v6605 = vmul.f32 %v6589, %v6589
    %v6606 = vmul.f32 %v6590, %v6590
    %v6607 = vmul.f32 %v6591, %v6591
    %v6608 = vmul.f32 %v6592, %v6592
    %v6609 = vmul.f32 %v6593, %v6593
    %v6610 = vmul.f32 %v6594, %v6594
    %v6611 = vmul.f32 %v6595, %v6595
    %v6612 = vmul.f32 %v6596, %v6596
    %v6613 = vmul.f32 %v6597, %v6597
    %v6614 = vmul.f32 %v6598, %v6598
    %v6615 = vmul.f32 %v6599, %v6599
    %v6616 = vmul.f32 %v6600, %v6600
    %v6617 = vmul.f32 %v6601, %v6601
    %v6618 = vmul.f32 %v6602, %v6602
    %v6619 = vmul.f32 %v6603, %v6603
    %v6620 = vmul.f32 %v6604, %v6604
    %6621 = vadd.xlane.f32.xlu0 %v6605
    %v6622 = vpop.xlane.xlu0 %6621
    %6623 = vadd.xlane.f32.xlu0 %v6606
    %v6624 = vpop.xlane.xlu0 %6623
    %6625 = vadd.xlane.f32.xlu0 %v6607
    %v6626 = vpop.xlane.xlu0 %6625
    %6627 = vadd.xlane.f32.xlu0 %v6608
    %v6628 = vpop.xlane.xlu0 %6627
    %6629 = vadd.xlane.f32.xlu0 %v6609
    %v6630 = vpop.xlane.xlu0 %6629
    %6631 = vadd.xlane.f32.xlu0 %v6610
    %v6632 = vpop.xlane.xlu0 %6631
    %6633 = vadd.xlane.f32.xlu0 %v6611
    %v6634 = vpop.xlane.xlu0 %6633
    %6635 = vadd.xlane.f32.xlu0 %v6612
    %v6636 = vpop.xlane.xlu0 %6635
    %6637 = vadd.xlane.f32.xlu0 %v6613
    %v6638 = vpop.xlane.xlu0 %6637
    %6639 = vadd.xlane.f32.xlu0 %v6614
    %v6640 = vpop.xlane.xlu0 %6639
    %6641 = vadd.xlane.f32.xlu0 %v6615
    %v6642 = vpop.xlane.xlu0 %6641
    %6643 = vadd.xlane.f32.xlu0 %v6616
    %v6644 = vpop.xlane.xlu0 %6643
    %6645 = vadd.xlane.f32.xlu0 %v6617
    %v6646 = vpop.xlane.xlu0 %6645
    %6647 = vadd.xlane.f32.xlu0 %v6618
    %v6648 = vpop.xlane.xlu0 %6647
    %6649 = vadd.xlane.f32.xlu0 %v6619
    %v6650 = vpop.xlane.xlu0 %6649
    %6651 = vadd.xlane.f32.xlu0 %v6620
    %v6652 = vpop.xlane.xlu0 %6651
    %v6653 = vmul.f32 %v6622, %v1281
    %v6654 = vmul.f32 %v6624, %v1281
    %v6655 = vmul.f32 %v6626, %v1281
    %v6656 = vmul.f32 %v6628, %v1281
    %v6657 = vmul.f32 %v6630, %v1281
    %v6658 = vmul.f32 %v6632, %v1281
    %v6659 = vmul.f32 %v6634, %v1281
    %v6660 = vmul.f32 %v6636, %v1281
    %v6661 = vmul.f32 %v6638, %v1281
    %v6662 = vmul.f32 %v6640, %v1281
    %v6663 = vmul.f32 %v6642, %v1281
    %v6664 = vmul.f32 %v6644, %v1281
    %v6665 = vmul.f32 %v6646, %v1281
    %v6666 = vmul.f32 %v6648, %v1281
    %v6667 = vmul.f32 %v6650, %v1281
    %v6668 = vmul.f32 %v6652, %v1281
    %v6669 = vadd.f32 %v6653, 1e-05
    %v6670 = vadd.f32 %v6654, 1e-05
    %v6671 = vadd.f32 %v6655, 1e-05
    %v6672 = vadd.f32 %v6656, 1e-05
    %v6673 = vadd.f32 %v6657, 1e-05
    %v6674 = vadd.f32 %v6658, 1e-05
    %v6675 = vadd.f32 %v6659, 1e-05
    %v6676 = vadd.f32 %v6660, 1e-05
    %v6677 = vadd.f32 %v6661, 1e-05
    %v6678 = vadd.f32 %v6662, 1e-05
    %v6679 = vadd.f32 %v6663, 1e-05
    %v6680 = vadd.f32 %v6664, 1e-05
    %v6681 = vadd.f32 %v6665, 1e-05
    %v6682 = vadd.f32 %v6666, 1e-05
    %v6683 = vadd.f32 %v6667, 1e-05
    %v6684 = vadd.f32 %v6668, 1e-05
    %v6685 = vrsqrt.pop %v6669
    %v6686 = vrsqrt.pop %v6670
    %v6687 = vrsqrt.pop %v6671
    %v6688 = vrsqrt.pop %v6672
    %v6689 = vrsqrt.pop %v6673
    %v6690 = vrsqrt.pop %v6674
    %v6691 = vrsqrt.pop %v6675
    %v6692 = vrsqrt.pop %v6676
    %v6693 = vrsqrt.pop %v6677
    %v6694 = vrsqrt.pop %v6678
    %v6695 = vrsqrt.pop %v6679
    %v6696 = vrsqrt.pop %v6680
    %v6697 = vrsqrt.pop %v6681
    %v6698 = vrsqrt.pop %v6682
    %v6699 = vrsqrt.pop %v6683
    %v6700 = vrsqrt.pop %v6684
    %v6701 = vmul.f32 %v6589, %v6685
    %v6702 = vmul.f32 %v6590, %v6686
    %v6703 = vmul.f32 %v6591, %v6687
    %v6704 = vmul.f32 %v6592, %v6688
    %v6705 = vmul.f32 %v6593, %v6689
    %v6706 = vmul.f32 %v6594, %v6690
    %v6707 = vmul.f32 %v6595, %v6691
    %v6708 = vmul.f32 %v6596, %v6692
    %v6709 = vmul.f32 %v6597, %v6693
    %v6710 = vmul.f32 %v6598, %v6694
    %v6711 = vmul.f32 %v6599, %v6695
    %v6712 = vmul.f32 %v6600, %v6696
    %v6713 = vmul.f32 %v6601, %v6697
    %v6714 = vmul.f32 %v6602, %v6698
    %v6715 = vmul.f32 %v6603, %v6699
    %v6716 = vmul.f32 %v6604, %v6700
    %v6717 = vlaneseq
    %v6718 = vshrl.u32 %v6717, 7
    %v6719 = vsub.s32 4, %v6718
    %v6720 = vrot.slane %v176, %v6719
    %v6721 = vmul.f32 %v6701, %v6720
    %v6722 = vmul.f32 %v6702, %v6720
    %v6723 = vmul.f32 %v6703, %v6720
    %v6724 = vmul.f32 %v6704, %v6720
    %v6725 = vmul.f32 %v6705, %v6720
    %v6726 = vmul.f32 %v6706, %v6720
    %v6727 = vmul.f32 %v6707, %v6720
    %v6728 = vmul.f32 %v6708, %v6720
    %v6729 = vmul.f32 %v6709, %v6720
    %v6730 = vmul.f32 %v6710, %v6720
    %v6731 = vmul.f32 %v6711, %v6720
    %v6732 = vmul.f32 %v6712, %v6720
    %v6733 = vmul.f32 %v6713, %v6720
    %v6734 = vmul.f32 %v6714, %v6720
    %v6735 = vmul.f32 %v6715, %v6720
    %v6736 = vmul.f32 %v6716, %v6720
    %v6737 = vlaneseq
    %v6738 = vshrl.u32 %v6737, 7
    %v6739 = vsub.s32 5, %v6738
    %v6740 = vrot.slane %v176, %v6739
    %v6741 = vadd.f32 %v6721, %v6740
    %v6742 = vadd.f32 %v6722, %v6740
    %v6743 = vadd.f32 %v6723, %v6740
    %v6744 = vadd.f32 %v6724, %v6740
    %v6745 = vadd.f32 %v6725, %v6740
    %v6746 = vadd.f32 %v6726, %v6740
    %v6747 = vadd.f32 %v6727, %v6740
    %v6748 = vadd.f32 %v6728, %v6740
    %v6749 = vadd.f32 %v6729, %v6740
    %v6750 = vadd.f32 %v6730, %v6740
    %v6751 = vadd.f32 %v6731, %v6740
    %v6752 = vadd.f32 %v6732, %v6740
    %v6753 = vadd.f32 %v6733, %v6740
    %v6754 = vadd.f32 %v6734, %v6740
    %v6755 = vadd.f32 %v6735, %v6740
    %v6756 = vadd.f32 %v6736, %v6740
    %v6757 = vadd.f32 %v1466, %v6741
    %v6758 = vadd.f32 %v1467, %v6742
    %v6759 = vadd.f32 %v1468, %v6743
    %v6760 = vadd.f32 %v1469, %v6744
    %v6761 = vadd.f32 %v1470, %v6745
    %v6762 = vadd.f32 %v1471, %v6746
    %v6763 = vadd.f32 %v1472, %v6747
    %v6764 = vadd.f32 %v1473, %v6748
    %v6765 = vadd.f32 %v1474, %v6749
    %v6766 = vadd.f32 %v1475, %v6750
    %v6767 = vadd.f32 %v1476, %v6751
    %v6768 = vadd.f32 %v1477, %v6752
    %v6769 = vadd.f32 %v1478, %v6753
    %v6770 = vadd.f32 %v1479, %v6754
    %v6771 = vadd.f32 %v1480, %v6755
    %v6772 = vadd.f32 %v1481, %v6756
    %6773 = vst [vmem:[#allocation19] sm:$0xff] %v6757
    %6774 = vst [vmem:[#allocation19 + $0x8] sm:$0xff] %v6758
    %6775 = vst [vmem:[#allocation19 + $0x10] sm:$0xff] %v6759
    %6776 = vst [vmem:[#allocation19 + $0x18] sm:$0xff] %v6760
    %6777 = vst [vmem:[#allocation19 + $0x20] sm:$0xff] %v6761
    %6778 = vst [vmem:[#allocation19 + $0x28] sm:$0xff] %v6762
    %6779 = vst [vmem:[#allocation19 + $0x30] sm:$0xff] %v6763
    %6780 = vst [vmem:[#allocation19 + $0x38] sm:$0xff] %v6764
    %6781 = vst [vmem:[#allocation19 + $0x40] sm:$0xff] %v6765
    %6782 = vst [vmem:[#allocation19 + $0x48] sm:$0xff] %v6766
    %6783 = vst [vmem:[#allocation19 + $0x50] sm:$0xff] %v6767
    %6784 = vst [vmem:[#allocation19 + $0x58] sm:$0xff] %v6768
    %6785 = vst [vmem:[#allocation19 + $0x60] sm:$0xff] %v6769
    %6786 = vst [vmem:[#allocation19 + $0x68] sm:$0xff] %v6770
    %6787 = vst [vmem:[#allocation19 + $0x70] sm:$0xff] %v6771
    %6788 = vst [vmem:[#allocation19 + $0x78] sm:$0xff] %v6772
    // Predicated region
    $region86: #{transformer_block.1} parent=1 // pred_check
      _
    $region87: #{transformer_block.1} parent=1 // pred_check_branch
      %6790 = sbr.rel (0) target = $region89
    $region88: #{transformer_block.1} parent=1 // pred_region
      %s6792 = ssub.s32 2048, 2048
      %6793 = vsyncadd [#allocation4], %s6792
      %s6794 = sshll.u32 [#allocation19], 4
      %s6795 = int_to_ptr.vmem [resolvable:$true] %s6794
      %6800 = dma.vmem_to_hbm [thread:$0]  %s6795, 2048, %s11, [#allocation4], 128, 128, 8
    $region89: #{transformer_block.1} parent=1 // pred_fallthru
      _
    // Predicated region
    $region90: #{transformer_block.1} parent=1 // pred_check
      _
    $region91: #{transformer_block.1} parent=1 // pred_check_branch
      %6802 = sbr.rel (0) target = $region93
    $region92: #{transformer_block.1} parent=1 // pred_region
      %6803 = dma.done [#allocation4], 2048
    $region93: #{transformer_block.1} parent=1 // pred_fallthru
      _
    %6804 = vsyncpa [#allocation3], 1
    %6805 = vsyncpa [#allocation6], 1
    %6806 = vsyncpa [#allocation9], 1
    %6807 = vsyncpa [#allocation12], 1
    %6808 = vsyncpa [#allocation15], 1
    %6809 = vsyncpa [#allocation18], 1
    %6810 = vsyncpa [#allocation4], 1

</llo_original>
